<compile_context>
chip_gen: v7x
topology: tpu7x:2x2x1
jax: 0.10.0
libtpu: 0.0.40
codegen_flags: <defaults>
</compile_context>

<pallas_src>
import functools

import jax
import jax.numpy as jnp
from jax.experimental import pallas as pl
from jax.experimental.pallas import tpu as pltpu

LN_EPS = 1e-5


def _vmem_limit_bytes():
    """~3/4 of physical VMEM (96 MiB on v5e/v6e, 48 MiB on v7x); safe fallback."""
    try:
        cap = int(pltpu.get_tpu_info().vmem_capacity_bytes)
    except Exception:
        cap = 64 * 1024 * 1024
    return max(32 * 1024 * 1024, (cap * 3) // 4)


VMEM_LIMIT = _vmem_limit_bytes()


def _pick_tile(dim, target, align):
    """Largest `align`-aligned divisor of `dim` that is <= target; else the full dim."""
    # TODO(synk): dims with no aligned divisor (e.g. vocab=10000) fall back to one huge
    # block; pad such dims to a multiple of 128 before calling the kernels.
    if dim <= target:
        return dim
    t = (target // align) * align
    while t >= align:
        if dim % t == 0:
            return t
        t -= align
    return dim


def _split_for_parallel(dim, tile, align, want=2):
    """Shrink a tile so its (parallel) grid axis has >= `want` steps (v7x: 2 TCs)."""
    while dim // tile < want:
        half = tile // 2
        if half < align or half % align or dim % half:
            break
        tile = half
    return tile


# ----------------------------------------------------------------------------
# Kernels
# ----------------------------------------------------------------------------
def _matmul_kernel(x_ref, w_ref, b_ref, o_ref, acc_ref, *, apply_relu):
    """Tiled y = x @ w + b (optional ReLU).  K is the last (arbitrary) grid axis."""

    @pl.when(pl.program_id(2) == 0)
    def _init():
        acc_ref[...] = jnp.zeros_like(acc_ref)

    acc_ref[...] += jnp.dot(x_ref[...], w_ref[...],
                            preferred_element_type=jnp.float32)

    @pl.when(pl.program_id(2) == pl.num_programs(2) - 1)
    def _finalize():
        y = acc_ref[...] + b_ref[...]
        if apply_relu:
            y = jnp.maximum(y, 0.0)
        o_ref[...] = y.astype(o_ref.dtype)


def pallas_linear(x, w_t, b, *, relu=False, out_dtype=jnp.bfloat16,
                  tm=512, tn=1024, tk=512):
    """y = x @ w_t + b.  x:(M,K) bf16, w_t:(K,N) bf16 (pre-transposed), b:(N,) f32."""
    M, K = x.shape
    N = w_t.shape[1]
    tm = _pick_tile(M, tm, 16)
    tn = _pick_tile(N, tn, 128)
    tk = _pick_tile(K, tk, 128)
    if (M // tm) * (N // tn) < 2:              # keep >= 2 parallel steps for v7x 2 TCs
        tm = _split_for_parallel(M, tm, 16)
    grid = (M // tm, N // tn, K // tk)
    kern = functools.partial(_matmul_kernel, apply_relu=relu)
    return pl.pallas_call(
        kern,
        out_shape=jax.ShapeDtypeStruct((M, N), out_dtype),
        grid=grid,
        in_specs=[
            pl.BlockSpec((tm, tk), lambda i, j, k: (i, k)),
            pl.BlockSpec((tk, tn), lambda i, j, k: (k, j)),
            pl.BlockSpec((1, tn), lambda i, j, k: (0, j)),
        ],
        out_specs=pl.BlockSpec((tm, tn), lambda i, j, k: (i, j)),
        scratch_shapes=[pltpu.VMEM((tm, tn), jnp.float32)],
        compiler_params=pltpu.CompilerParams(
            dimension_semantics=("parallel", "parallel", "arbitrary"),
            vmem_limit_bytes=VMEM_LIMIT,
        ),
    )(x, w_t, b.reshape(1, N))


def _proj_res_ln_kernel(x_ref, w_ref, b_ref, r_ref, g_ref, be_ref, o_ref, acc_ref):
    """Fused o = LayerNorm(res + x @ w + b); K-tiled; single-pass LN stats (f32)."""

    @pl.when(pl.program_id(1) == 0)
    def _init():
        acc_ref[...] = jnp.zeros_like(acc_ref)

    acc_ref[...] += jnp.dot(x_ref[...], w_ref[...],
                            preferred_element_type=jnp.float32)

    @pl.when(pl.program_id(1) == pl.num_programs(1) - 1)
    def _finalize():
        y = acc_ref[...] + b_ref[...] + r_ref[...].astype(jnp.float32)
        inv_e = 1.0 / y.shape[-1]
        mean = jnp.sum(y, axis=-1, keepdims=True) * inv_e
        var = jnp.sum(y * y, axis=-1, keepdims=True) * inv_e - mean * mean
        yn = (y - mean) * jax.lax.rsqrt(var + LN_EPS)
        o_ref[...] = (yn * g_ref[...] + be_ref[...]).astype(o_ref.dtype)


def pallas_proj_residual_ln(x, w_t, b, res, gamma, beta, *, tm=256, tk=512):
    """LayerNorm(res + x @ w_t + b).  x:(M,K) bf16, w_t:(K,E) bf16, res:(M,E) bf16."""
    M, K = x.shape
    E = w_t.shape[1]
    tm = _pick_tile(M, tm, 16)
    tk = _pick_tile(K, tk, 128)
    if M // tm < 2:
        tm = _split_for_parallel(M, tm, 16)
    grid = (M // tm, K // tk)
    # TODO(synk): bias/gamma/beta blocks never change index; pipeline_mode=pl.Buffered(1)
    # would halve their (tiny) VMEM double-buffers.
    return pl.pallas_call(
        _proj_res_ln_kernel,
        out_shape=jax.ShapeDtypeStruct((M, E), jnp.bfloat16),
        grid=grid,
        in_specs=[
            pl.BlockSpec((tm, tk), lambda i, k: (i, k)),
            pl.BlockSpec((tk, E), lambda i, k: (k, 0)),
            pl.BlockSpec((1, E), lambda i, k: (0, 0)),
            pl.BlockSpec((tm, E), lambda i, k: (i, 0)),
            pl.BlockSpec((1, E), lambda i, k: (0, 0)),
            pl.BlockSpec((1, E), lambda i, k: (0, 0)),
        ],
        out_specs=pl.BlockSpec((tm, E), lambda i, k: (i, 0)),
        scratch_shapes=[pltpu.VMEM((tm, E), jnp.float32)],
        compiler_params=pltpu.CompilerParams(
            dimension_semantics=("parallel", "arbitrary"),
            vmem_limit_bytes=VMEM_LIMIT,
        ),
    )(x, w_t, b.reshape(1, E), res, gamma.reshape(1, E), beta.reshape(1, E))


def _flash_attn_kernel(q_ref, k_ref, v_ref, o_ref, m_sc, l_sc, acc_sc):
    """Unmasked flash attention over one (batch, head); kv tiles on the last grid axis.

    1/sqrt(Dh) is folded into the Q projection weights, so no in-kernel scaling."""
    kv = pl.program_id(2)

    @pl.when(kv == 0)
    def _init():
        m_sc[...] = jnp.full_like(m_sc, -jnp.inf)
        l_sc[...] = jnp.zeros_like(l_sc)
        acc_sc[...] = jnp.zeros_like(acc_sc)

    q = q_ref[0]            # (S,  Dh) bf16
    k = k_ref[0]            # (Tk, Dh) bf16
    v = v_ref[0]            # (Tk, Dh) bf16
    s = jax.lax.dot_general(q, k, (((1,), (1,)), ((), ())),
                            preferred_element_type=jnp.float32)   # (S, Tk)
    m_prev = m_sc[...]
    m_new = jnp.maximum(m_prev, jnp.max(s, axis=-1, keepdims=True))
    alpha = jnp.exp(m_prev - m_new)
    p = jnp.exp(s - m_new)
    l_sc[...] = alpha * l_sc[...] + jnp.sum(p, axis=-1, keepdims=True)
    acc_sc[...] = alpha * acc_sc[...] + jnp.dot(
        p.astype(jnp.bfloat16), v, preferred_element_type=jnp.float32)
    m_sc[...] = m_new

    @pl.when(kv == pl.num_programs(2) - 1)
    def _finalize():
        # Normalize AFTER the PV matmul (S*Dh multiplies instead of S*Sk).
        o_ref[0] = (acc_sc[...] * pl.reciprocal(l_sc[...], approx=True)
                    ).astype(o_ref.dtype)


def pallas_attention(q_src, kv_src, *, num_heads, head_dim,
                     q_head_off, k_head_off, v_head_off, tkv=512):
    """Multi-head SDPA reading heads straight out of packed projection outputs.

    q_src : (B, S,  Cq)  with Q of head h at column block (q_head_off + h) of width Dh.
    kv_src: (B, Sk, Ckv) with K / V of head h at column blocks (k_head_off + h) /
            (v_head_off + h).  Output: (B, S, H*Dh) bf16, lane-dense on E = H*Dh.
    """
    B, S, _ = q_src.shape
    Sk = kv_src.shape[1]
    H, Dh = num_heads, head_dim
    # TODO(synk): this head-folded layout needs Dh % 128 == 0 (lane-aligned blocks);
    # for Dh < 128 fall back to whole-E attention blocks per batch.
    assert Dh % 128 == 0, "head_dim must be a multiple of 128 for lane-dense head blocks"
    tkv = _pick_tile(Sk, tkv, 16)
    grid = (B, H, Sk // tkv)
    return pl.pallas_call(
        _flash_attn_kernel,
        out_shape=jax.ShapeDtypeStruct((B, S, H * Dh), jnp.bfloat16),
        grid=grid,
        in_specs=[
            pl.BlockSpec((1, S, Dh), lambda b, h, kv: (b, 0, q_head_off + h)),
            pl.BlockSpec((1, tkv, Dh), lambda b, h, kv: (b, kv, k_head_off + h)),
            pl.BlockSpec((1, tkv, Dh), lambda b, h, kv: (b, kv, v_head_off + h)),
        ],
        out_specs=pl.BlockSpec((1, S, Dh), lambda b, h, kv: (b, 0, h)),
        scratch_shapes=[
            pltpu.VMEM((S, 1), jnp.float32),     # running max m
            pltpu.VMEM((S, 1), jnp.float32),     # running denom l
            pltpu.VMEM((S, Dh), jnp.float32),    # running accumulator
        ],
        compiler_params=pltpu.CompilerParams(
            dimension_semantics=("parallel", "parallel", "arbitrary"),
            vmem_limit_bytes=VMEM_LIMIT,
        ),
    )(q_src, kv_src, kv_src)


# ----------------------------------------------------------------------------
# Model (glue in plain JAX, compute in the Pallas kernels above)
# ----------------------------------------------------------------------------
def decoder_layer(x, memory, p, num_heads):
    """nn.TransformerDecoderLayer defaults: post-norm, ReLU FFN, eps=1e-5, no masks."""
    B, S, E = x.shape
    Sk = memory.shape[1]
    H = num_heads
    Dh = E // H
    x2 = x.reshape(B * S, E)
    mem2 = memory.reshape(B * Sk, E)

    # --- self-attention block (fused QKV proj -> flash attn -> out-proj+res+LN1) ---
    qkv = pallas_linear(x2, p["sa_wqkv_t"], p["sa_bqkv"])          # (B*S, 3E) bf16
    qkv3 = qkv.reshape(B, S, 3 * E)                                 # free reshape
    attn = pallas_attention(qkv3, qkv3, num_heads=H, head_dim=Dh,
                            q_head_off=0, k_head_off=H, v_head_off=2 * H)
    x2 = pallas_proj_residual_ln(attn.reshape(B * S, E), p["sa_wo_t"], p["sa_bo"],
                                 x2, p["ln1_g"], p["ln1_b"])

    # --- cross-attention block (Q proj, fused KV proj -> flash attn -> proj+res+LN2) ---
    q = pallas_linear(x2, p["ca_wq_t"], p["ca_bq"])                 # (B*S, E) bf16
    kv = pallas_linear(mem2, p["ca_wkv_t"], p["ca_bkv"])            # (B*Sk, 2E) bf16
    attn = pallas_attention(q.reshape(B, S, E), kv.reshape(B, Sk, 2 * E),
                            num_heads=H, head_dim=Dh,
                            q_head_off=0, k_head_off=0, v_head_off=H)
    x2 = pallas_proj_residual_ln(attn.reshape(B * S, E), p["ca_wo_t"], p["ca_bo"],
                                 x2, p["ln2_g"], p["ln2_b"])

    # --- FFN block: W1 + ReLU, then W2 + residual + LN3 fused ---
    h = pallas_linear(x2, p["w1_t"], p["b1"], relu=True)            # (B*S, dff) bf16
    x2 = pallas_proj_residual_ln(h, p["w2_t"], p["b2"], x2, p["ln3_g"], p["ln3_b"])
    return x2.reshape(B, S, E)


@functools.partial(jax.jit, static_argnums=(3,))
def forward(params, x_ids, mem_ids, num_heads):
    B, S = x_ids.shape
    emb = params["embedding"]
    x = jnp.take(emb, x_ids, axis=0) + params["pos"][:, :S, :]
    # TODO(synk): nn.Dropout is identity here (inference semantics; no RNG in eval).
    x = x.astype(jnp.bfloat16)
    memory = jnp.take(emb, mem_ids, axis=0).astype(jnp.bfloat16)
    E = x.shape[-1]
    for lp in params["layers"]:
        x = decoder_layer(x, memory, lp, num_heads)
    out = pallas_linear(x.reshape(B * S, E), params["fc_w_t"], params["fc_b"],
                        out_dtype=jnp.float32)
    return out.reshape(B, S, -1)


# ----------------------------------------------------------------------------
# Deterministic parameter init (weights pre-transposed + bf16, Q-scale folded in)
# ----------------------------------------------------------------------------
def init_params(key, vocab_size, embed_dim, num_heads, num_layers, dff, max_seq):
    head_dim = embed_dim // num_heads
    q_scale = 1.0 / (head_dim ** 0.5)
    keys = iter(jax.random.split(key, 4 + num_layers * 8))

    def w(shape, scale=0.02):
        return scale * jax.random.normal(next(keys), shape, dtype=jnp.float32)

    def z(shape):
        return jnp.zeros(shape, jnp.float32)

    def ones(shape):
        return jnp.ones(shape, jnp.float32)

    params = {
        "embedding": w((vocab_size, embed_dim)),
        "pos": w((1, max_seq, embed_dim)),
        "fc_w_t": w((vocab_size, embed_dim)).T.astype(jnp.bfloat16),
        "fc_b": z((vocab_size,)),
        "layers": [],
    }
    for _ in range(num_layers):
        # Self-attn fused in_proj (rows ordered q,k,v as nn.MultiheadAttention).
        # Fold 1/sqrt(Dh) into the Q rows (and Q bias) so the kernel skips the scale.
        wqkv = w((3 * embed_dim, embed_dim))
        wqkv = wqkv.at[:embed_dim].multiply(q_scale)
        bqkv = z((3 * embed_dim,)).at[:embed_dim].multiply(q_scale)
        lp = {
            "sa_wqkv_t": wqkv.T.astype(jnp.bfloat16),
            "sa_bqkv": bqkv,
            "sa_wo_t": w((embed_dim, embed_dim)).T.astype(jnp.bfloat16),
            "sa_bo": z((embed_dim,)),
            # cross-attn: Q from tgt (scale folded), fused K/V from memory
            "ca_wq_t": (w((embed_dim, embed_dim)) * q_scale).T.astype(jnp.bfloat16),
            "ca_bq": z((embed_dim,)) * q_scale,
            "ca_wkv_t": w((2 * embed_dim, embed_dim)).T.astype(jnp.bfloat16),
            "ca_bkv": z((2 * embed_dim,)),
            "ca_wo_t": w((embed_dim, embed_dim)).T.astype(jnp.bfloat16),
            "ca_bo": z((embed_dim,)),
            # FFN
            "w1_t": w((dff, embed_dim)).T.astype(jnp.bfloat16),
            "b1": z((dff,)),
            "w2_t": w((embed_dim, dff)).T.astype(jnp.bfloat16),
            "b2": z((embed_dim,)),
        }
        for i in ("1", "2", "3"):
            lp["ln" + i + "_g"] = ones((embed_dim,))
            lp["ln" + i + "_b"] = z((embed_dim,))
        params["layers"].append(lp)
    return params


if __name__ == "__main__":
    # Small shapes consistent with the module structure.  head_dim = 128 keeps every
    # attention block lane-dense; E, dff, vocab are multiples of 128 (lane-dense stores).
    VOCAB = 512
    EMBED_DIM = 256
    NUM_HEADS = 2            # head_dim = 128
    NUM_LAYERS = 2
    DFF = 512
    MAX_SEQ = 64
    B, S, SM = 2, 16, 16

    key = jax.random.PRNGKey(0)
    kp, kx, km = jax.random.split(key, 3)
    params = init_params(kp, VOCAB, EMBED_DIM, NUM_HEADS, NUM_LAYERS, DFF, MAX_SEQ)

    x_ids = jax.random.randint(kx, (B, S), 0, VOCAB)     # token ids (acts like x.long())
    mem_ids = jax.random.randint(km, (B, SM), 0, VOCAB)  # memory token ids

    out = forward(params, x_ids, mem_ids, NUM_HEADS)
    out = jax.block_until_ready(out)
    assert out.shape == (B, S, VOCAB), out.shape
    assert out.dtype == jnp.float32
    assert bool(jnp.isfinite(out).all())
    print("KERNEL_OK")
</pallas_src>

<mosaic_0001>
module attributes {stable_mosaic.version = 11 : i64} {
  func.func @_flash_attn_kernel(%arg0: i32, %arg1: i32, %arg2: i32, %arg3: memref<1x16x128xbf16, #tpu.memory_space<vmem>>, %arg4: memref<1x16x128xbf16, #tpu.memory_space<vmem>>, %arg5: memref<1x16x128xbf16, #tpu.memory_space<vmem>>, %arg6: memref<1x16x128xbf16, #tpu.memory_space<vmem>>, %arg7: memref<16x1xf32, #tpu.memory_space<vmem>>, %arg8: memref<16x1xf32, #tpu.memory_space<vmem>>, %arg9: memref<16x128xf32, #tpu.memory_space<vmem>>) attributes {dimension_semantics = [#tpu.dimension_semantics<parallel>, #tpu.dimension_semantics<parallel>, #tpu.dimension_semantics<arbitrary>], iteration_bounds = array<i64: 2, 2, 1>, scalar_prefetch = 0 : i64, scratch_operands = 3 : i64, tpu.core_type = #tpu.core_type<tc>, window_params = [{transform_indices = @transform_0, window_bounds = array<i64: 1, 16, 128>}, {transform_indices = @transform_1, window_bounds = array<i64: 1, 16, 128>}, {transform_indices = @transform_2, window_bounds = array<i64: 1, 16, 128>}, {transform_indices = @transform_3, window_bounds = array<i64: 1, 16, 128>}]} {
    %c0_i32 = arith.constant 0 : i32
    %0 = arith.cmpi eq, %arg2, %c0_i32 : i32
    %1 = arith.extui %0 : i1 to i32
    %c0_i32_0 = arith.constant 0 : i32
    %2 = arith.cmpi ne, %1, %c0_i32_0 : i32
    scf.if %2 {
      %cst_26 = arith.constant 0xFF800000 : f32
      %36 = vector.broadcast %cst_26 : f32 to vector<16x1xf32>
      %c0_27 = arith.constant 0 : index
      %c0_28 = arith.constant 0 : index
      %37 = vector.load %arg7[%c0_27, %c0_28] : memref<16x1xf32, #tpu.memory_space<vmem>>, vector<16x1xf32>
      tpu.vector_store %arg7[%c0_27, %c0_28], %36 {strides = array<i32>} : memref<16x1xf32, #tpu.memory_space<vmem>>, vector<16x1xf32>,
      %cst_29 = arith.constant 0.000000e+00 : f32
      %38 = vector.broadcast %cst_29 : f32 to vector<16x1xf32>
      %c0_30 = arith.constant 0 : index
      %c0_31 = arith.constant 0 : index
      %39 = vector.load %arg8[%c0_30, %c0_31] : memref<16x1xf32, #tpu.memory_space<vmem>>, vector<16x1xf32>
      tpu.vector_store %arg8[%c0_30, %c0_31], %38 {strides = array<i32>} : memref<16x1xf32, #tpu.memory_space<vmem>>, vector<16x1xf32>,
      %cst_32 = arith.constant 0.000000e+00 : f32
      %40 = vector.broadcast %cst_32 : f32 to vector<16x128xf32>
      %c0_33 = arith.constant 0 : index
      %c0_34 = arith.constant 0 : index
      %41 = vector.load %arg9[%c0_33, %c0_34] : memref<16x128xf32, #tpu.memory_space<vmem>>, vector<16x128xf32>
      tpu.vector_store %arg9[%c0_33, %c0_34], %40 {strides = array<i32>} : memref<16x128xf32, #tpu.memory_space<vmem>>, vector<16x128xf32>,
    } else {
    }
    %c0 = arith.constant 0 : index
    %c0_1 = arith.constant 0 : index
    %c0_2 = arith.constant 0 : index
    %3 = vector.load %arg3[%c0, %c0_1, %c0_2] : memref<1x16x128xbf16, #tpu.memory_space<vmem>>, vector<1x16x128xbf16>
    %4 = vector.shape_cast %3 : vector<1x16x128xbf16> to vector<16x128xbf16>
    %c0_3 = arith.constant 0 : index
    %c0_4 = arith.constant 0 : index
    %c0_5 = arith.constant 0 : index
    %5 = vector.load %arg4[%c0_3, %c0_4, %c0_5] : memref<1x16x128xbf16, #tpu.memory_space<vmem>>, vector<1x16x128xbf16>
    %6 = vector.shape_cast %5 : vector<1x16x128xbf16> to vector<16x128xbf16>
    %c0_6 = arith.constant 0 : index
    %c0_7 = arith.constant 0 : index
    %c0_8 = arith.constant 0 : index
    %7 = vector.load %arg5[%c0_6, %c0_7, %c0_8] : memref<1x16x128xbf16, #tpu.memory_space<vmem>>, vector<1x16x128xbf16>
    %8 = vector.shape_cast %7 : vector<1x16x128xbf16> to vector<16x128xbf16>
    %cst = arith.constant dense<0.000000e+00> : vector<16x16xf32>
    %9 = tpu.matmul %4, %6, %cst {dimension_numbers = #tpu.dot_dimension_numbers<[1], [1], [0], [0], [0, 0, 1, 0], [], []>} : vector<16x128xbf16>, vector<16x128xbf16>, vector<16x16xf32> -> vector<16x16xf32>
    %c0_9 = arith.constant 0 : index
    %c0_10 = arith.constant 0 : index
    %10 = vector.load %arg7[%c0_9, %c0_10] : memref<16x1xf32, #tpu.memory_space<vmem>>, vector<16x1xf32>
    %cst_11 = arith.constant dense<0xFF800000> : vector<16xf32>
    %11 = vector.multi_reduction <maximumf>, %9, %cst_11 [1] : vector<16x16xf32> to vector<16xf32>
    %12 = vector.shape_cast %11 : vector<16xf32> to vector<16x1xf32>
    %13 = arith.maximumf %10, %12 : vector<16x1xf32>
    %14 = arith.subf %10, %13 : vector<16x1xf32>
    %15 = math.exp %14 : vector<16x1xf32>
    %16 = vector.broadcast %13 : vector<16x1xf32> to vector<16x16xf32>
    %17 = arith.subf %9, %16 : vector<16x16xf32>
    %18 = math.exp %17 : vector<16x16xf32>
    %c0_12 = arith.constant 0 : index
    %c0_13 = arith.constant 0 : index
    %19 = vector.load %arg8[%c0_12, %c0_13] : memref<16x1xf32, #tpu.memory_space<vmem>>, vector<16x1xf32>
    %20 = arith.mulf %15, %19 : vector<16x1xf32>
    %cst_14 = arith.constant dense<0.000000e+00> : vector<16xf32>
    %21 = vector.multi_reduction <add>, %18, %cst_14 [1] : vector<16x16xf32> to vector<16xf32>
    %22 = vector.shape_cast %21 : vector<16xf32> to vector<16x1xf32>
    %23 = arith.addf %20, %22 : vector<16x1xf32>
    %c0_15 = arith.constant 0 : index
    %c0_16 = arith.constant 0 : index
    %24 = vector.load %arg8[%c0_15, %c0_16] : memref<16x1xf32, #tpu.memory_space<vmem>>, vector<16x1xf32>
    tpu.vector_store %arg8[%c0_15, %c0_16], %23 {strides = array<i32>} : memref<16x1xf32, #tpu.memory_space<vmem>>, vector<16x1xf32>,
    %c0_17 = arith.constant 0 : index
    %c0_18 = arith.constant 0 : index
    %25 = vector.load %arg9[%c0_17, %c0_18] : memref<16x128xf32, #tpu.memory_space<vmem>>, vector<16x128xf32>
    %26 = vector.broadcast %15 : vector<16x1xf32> to vector<16x128xf32>
    %27 = arith.mulf %26, %25 : vector<16x128xf32>
    %28 = arith.truncf %18 : vector<16x16xf32> to vector<16x16xbf16>
    %cst_19 = arith.constant dense<0.000000e+00> : vector<16x128xf32>
    %29 = tpu.matmul %28, %8, %cst_19 {dimension_numbers = #tpu.dot_dimension_numbers<[1], [0], [0], [1], [0, 0, 1, 1], [], []>} : vector<16x16xbf16>, vector<16x128xbf16>, vector<16x128xf32> -> vector<16x128xf32>
    %30 = arith.addf %27, %29 : vector<16x128xf32>
    %c0_20 = arith.constant 0 : index
    %c0_21 = arith.constant 0 : index
    %31 = vector.load %arg9[%c0_20, %c0_21] : memref<16x128xf32, #tpu.memory_space<vmem>>, vector<16x128xf32>
    tpu.vector_store %arg9[%c0_20, %c0_21], %30 {strides = array<i32>} : memref<16x128xf32, #tpu.memory_space<vmem>>, vector<16x128xf32>,
    %c0_22 = arith.constant 0 : index
    %c0_23 = arith.constant 0 : index
    %32 = vector.load %arg7[%c0_22, %c0_23] : memref<16x1xf32, #tpu.memory_space<vmem>>, vector<16x1xf32>
    tpu.vector_store %arg7[%c0_22, %c0_23], %13 {strides = array<i32>} : memref<16x1xf32, #tpu.memory_space<vmem>>, vector<16x1xf32>,
    %c0_i32_24 = arith.constant 0 : i32
    %33 = arith.cmpi eq, %arg2, %c0_i32_24 : i32
    %34 = arith.extui %33 : i1 to i32
    %c0_i32_25 = arith.constant 0 : i32
    %35 = arith.cmpi ne, %34, %c0_i32_25 : i32
    scf.if %35 {
      %c0_26 = arith.constant 0 : index
      %c0_27 = arith.constant 0 : index
      %36 = vector.load %arg9[%c0_26, %c0_27] : memref<16x128xf32, #tpu.memory_space<vmem>>, vector<16x128xf32>
      %c0_28 = arith.constant 0 : index
      %c0_29 = arith.constant 0 : index
      %37 = vector.load %arg8[%c0_28, %c0_29] : memref<16x1xf32, #tpu.memory_space<vmem>>, vector<16x1xf32>
      %38 = tpu.reciprocal %37 {approx = true} : vector<16x1xf32> -> vector<16x1xf32>
      %39 = vector.broadcast %38 : vector<16x1xf32> to vector<16x128xf32>
      %40 = arith.mulf %36, %39 : vector<16x128xf32>
      %41 = arith.truncf %40 : vector<16x128xf32> to vector<16x128xbf16>
      %c0_30 = arith.constant 0 : index
      %c0_31 = arith.constant 0 : index
      %c0_32 = arith.constant 0 : index
      %42 = vector.load %arg6[%c0_30, %c0_31, %c0_32] : memref<1x16x128xbf16, #tpu.memory_space<vmem>>, vector<1x16x128xbf16>
      %43 = vector.shape_cast %42 : vector<1x16x128xbf16> to vector<16x128xbf16>
      %44 = vector.shape_cast %41 : vector<16x128xbf16> to vector<1x16x128xbf16>
      tpu.vector_store %arg6[%c0_30, %c0_31, %c0_32], %44 {strides = array<i32>} : memref<1x16x128xbf16, #tpu.memory_space<vmem>>, vector<1x16x128xbf16>,
    } else {
    }
    return
  }
  func.func @transform_0(%arg0: i32, %arg1: i32, %arg2: i32) -> (i32, i32, i32) {
    %c0_i32 = arith.constant 0 : i32
    %0 = arith.addi %c0_i32, %arg1 : i32
    %c0_i32_0 = arith.constant 0 : i32
    %c0_i32_1 = arith.constant 0 : i32
    return %arg0, %c0_i32_0, %0 : i32, i32, i32
  }
  func.func @transform_1(%arg0: i32, %arg1: i32, %arg2: i32) -> (i32, i32, i32) {
    %c2_i32 = arith.constant 2 : i32
    %0 = arith.addi %c2_i32, %arg1 : i32
    %c0_i32 = arith.constant 0 : i32
    return %arg0, %arg2, %0 : i32, i32, i32
  }
  func.func @transform_2(%arg0: i32, %arg1: i32, %arg2: i32) -> (i32, i32, i32) {
    %c4_i32 = arith.constant 4 : i32
    %0 = arith.addi %c4_i32, %arg1 : i32
    %c0_i32 = arith.constant 0 : i32
    return %arg0, %arg2, %0 : i32, i32, i32
  }
  func.func @transform_3(%arg0: i32, %arg1: i32, %arg2: i32) -> (i32, i32, i32) {
    %c0_i32 = arith.constant 0 : i32
    %c0_i32_0 = arith.constant 0 : i32
    return %arg0, %c0_i32, %arg1 : i32, i32, i32
  }
}

module attributes {stable_mosaic.version = 11 : i64} {
  func.func @_matmul_kernel(%arg0: i32, %arg1: i32, %arg2: i32, %arg3: memref<16x256xbf16, #tpu.memory_space<vmem>>, %arg4: memref<256x256xbf16, #tpu.memory_space<vmem>>, %arg5: memref<1x256xf32, #tpu.memory_space<vmem>>, %arg6: memref<16x256xbf16, #tpu.memory_space<vmem>>, %arg7: memref<16x256xf32, #tpu.memory_space<vmem>>) attributes {dimension_semantics = [#tpu.dimension_semantics<parallel>, #tpu.dimension_semantics<parallel>, #tpu.dimension_semantics<arbitrary>], iteration_bounds = array<i64: 2, 1, 1>, scalar_prefetch = 0 : i64, scratch_operands = 1 : i64, tpu.core_type = #tpu.core_type<tc>, window_params = [{transform_indices = @transform_0, window_bounds = array<i64: 16, 256>}, {transform_indices = @transform_1, window_bounds = array<i64: 256, 256>}, {transform_indices = @transform_2, window_bounds = array<i64: 1, 256>}, {transform_indices = @transform_3, window_bounds = array<i64: 16, 256>}]} {
    %c0_i32 = arith.constant 0 : i32
    %0 = arith.cmpi eq, %arg2, %c0_i32 : i32
    %1 = arith.extui %0 : i1 to i32
    %c0_i32_0 = arith.constant 0 : i32
    %2 = arith.cmpi ne, %1, %c0_i32_0 : i32
    scf.if %2 {
      %cst_10 = arith.constant 0.000000e+00 : f32
      %12 = vector.broadcast %cst_10 : f32 to vector<16x256xf32>
      %c0_11 = arith.constant 0 : index
      %c0_12 = arith.constant 0 : index
      %13 = vector.load %arg7[%c0_11, %c0_12] : memref<16x256xf32, #tpu.memory_space<vmem>>, vector<16x256xf32>
      tpu.vector_store %arg7[%c0_11, %c0_12], %12 {strides = array<i32>} : memref<16x256xf32, #tpu.memory_space<vmem>>, vector<16x256xf32>,
    } else {
    }
    %c0 = arith.constant 0 : index
    %c0_1 = arith.constant 0 : index
    %3 = vector.load %arg7[%c0, %c0_1] : memref<16x256xf32, #tpu.memory_space<vmem>>, vector<16x256xf32>
    %c0_2 = arith.constant 0 : index
    %c0_3 = arith.constant 0 : index
    %4 = vector.load %arg3[%c0_2, %c0_3] : memref<16x256xbf16, #tpu.memory_space<vmem>>, vector<16x256xbf16>
    %c0_4 = arith.constant 0 : index
    %c0_5 = arith.constant 0 : index
    %5 = vector.load %arg4[%c0_4, %c0_5] : memref<256x256xbf16, #tpu.memory_space<vmem>>, vector<256x256xbf16>
    %cst = arith.constant dense<0.000000e+00> : vector<16x256xf32>
    %6 = tpu.matmul %4, %5, %cst {dimension_numbers = #tpu.dot_dimension_numbers<[1], [0], [0], [1], [0, 0, 1, 1], [], []>} : vector<16x256xbf16>, vector<256x256xbf16>, vector<16x256xf32> -> vector<16x256xf32>
    %7 = arith.addf %3, %6 : vector<16x256xf32>
    %c0_6 = arith.constant 0 : index
    %c0_7 = arith.constant 0 : index
    %8 = vector.load %arg7[%c0_6, %c0_7] : memref<16x256xf32, #tpu.memory_space<vmem>>, vector<16x256xf32>
    tpu.vector_store %arg7[%c0_6, %c0_7], %7 {strides = array<i32>} : memref<16x256xf32, #tpu.memory_space<vmem>>, vector<16x256xf32>,
    %c0_i32_8 = arith.constant 0 : i32
    %9 = arith.cmpi eq, %arg2, %c0_i32_8 : i32
    %10 = arith.extui %9 : i1 to i32
    %c0_i32_9 = arith.constant 0 : i32
    %11 = arith.cmpi ne, %10, %c0_i32_9 : i32
    scf.if %11 {
      %c0_10 = arith.constant 0 : index
      %c0_11 = arith.constant 0 : index
      %12 = vector.load %arg7[%c0_10, %c0_11] : memref<16x256xf32, #tpu.memory_space<vmem>>, vector<16x256xf32>
      %c0_12 = arith.constant 0 : index
      %c0_13 = arith.constant 0 : index
      %13 = vector.load %arg5[%c0_12, %c0_13] : memref<1x256xf32, #tpu.memory_space<vmem>>, vector<1x256xf32>
      %14 = vector.broadcast %13 : vector<1x256xf32> to vector<16x256xf32>
      %15 = arith.addf %12, %14 : vector<16x256xf32>
      %16 = arith.truncf %15 : vector<16x256xf32> to vector<16x256xbf16>
      %c0_14 = arith.constant 0 : index
      %c0_15 = arith.constant 0 : index
      %17 = vector.load %arg6[%c0_14, %c0_15] : memref<16x256xbf16, #tpu.memory_space<vmem>>, vector<16x256xbf16>
      tpu.vector_store %arg6[%c0_14, %c0_15], %16 {strides = array<i32>} : memref<16x256xbf16, #tpu.memory_space<vmem>>, vector<16x256xbf16>,
    } else {
    }
    return
  }
  func.func @transform_0(%arg0: i32, %arg1: i32, %arg2: i32) -> (i32, i32) {
    %c0_i32 = arith.constant 0 : i32
    return %arg0, %arg2 : i32, i32
  }
  func.func @transform_1(%arg0: i32, %arg1: i32, %arg2: i32) -> (i32, i32) {
    %c0_i32 = arith.constant 0 : i32
    return %arg2, %arg1 : i32, i32
  }
  func.func @transform_2(%arg0: i32, %arg1: i32, %arg2: i32) -> (i32, i32) {
    %c0_i32 = arith.constant 0 : i32
    %c0_i32_0 = arith.constant 0 : i32
    return %c0_i32, %arg1 : i32, i32
  }
  func.func @transform_3(%arg0: i32, %arg1: i32, %arg2: i32) -> (i32, i32) {
    %c0_i32 = arith.constant 0 : i32
    return %arg0, %arg1 : i32, i32
  }
}

module attributes {stable_mosaic.version = 11 : i64} {
  func.func @_proj_res_ln_kernel(%arg0: i32, %arg1: i32, %arg2: memref<16x256xbf16, #tpu.memory_space<vmem>>, %arg3: memref<256x256xbf16, #tpu.memory_space<vmem>>, %arg4: memref<1x256xf32, #tpu.memory_space<vmem>>, %arg5: memref<16x256xbf16, #tpu.memory_space<vmem>>, %arg6: memref<1x256xf32, #tpu.memory_space<vmem>>, %arg7: memref<1x256xf32, #tpu.memory_space<vmem>>, %arg8: memref<16x256xbf16, #tpu.memory_space<vmem>>, %arg9: memref<16x256xf32, #tpu.memory_space<vmem>>) attributes {dimension_semantics = [#tpu.dimension_semantics<parallel>, #tpu.dimension_semantics<arbitrary>], iteration_bounds = array<i64: 2, 1>, scalar_prefetch = 0 : i64, scratch_operands = 1 : i64, tpu.core_type = #tpu.core_type<tc>, window_params = [{transform_indices = @transform_0, window_bounds = array<i64: 16, 256>}, {transform_indices = @transform_1, window_bounds = array<i64: 256, 256>}, {pipeline_mode = #tpu.pipeline_mode<synchronous>, transform_indices = @transform_2, window_bounds = array<i64: 1, 256>}, {transform_indices = @transform_3, window_bounds = array<i64: 16, 256>}, {pipeline_mode = #tpu.pipeline_mode<synchronous>, transform_indices = @transform_4, window_bounds = array<i64: 1, 256>}, {pipeline_mode = #tpu.pipeline_mode<synchronous>, transform_indices = @transform_5, window_bounds = array<i64: 1, 256>}, {transform_indices = @transform_6, window_bounds = array<i64: 16, 256>}]} {
    %c0_i32 = arith.constant 0 : i32
    %0 = arith.cmpi eq, %arg1, %c0_i32 : i32
    %1 = arith.extui %0 : i1 to i32
    %c0_i32_0 = arith.constant 0 : i32
    %2 = arith.cmpi ne, %1, %c0_i32_0 : i32
    scf.if %2 {
      %cst_10 = arith.constant 0.000000e+00 : f32
      %12 = vector.broadcast %cst_10 : f32 to vector<16x256xf32>
      %c0_11 = arith.constant 0 : index
      %c0_12 = arith.constant 0 : index
      %13 = vector.load %arg9[%c0_11, %c0_12] : memref<16x256xf32, #tpu.memory_space<vmem>>, vector<16x256xf32>
      tpu.vector_store %arg9[%c0_11, %c0_12], %12 {strides = array<i32>} : memref<16x256xf32, #tpu.memory_space<vmem>>, vector<16x256xf32>,
    } else {
    }
    %c0 = arith.constant 0 : index
    %c0_1 = arith.constant 0 : index
    %3 = vector.load %arg9[%c0, %c0_1] : memref<16x256xf32, #tpu.memory_space<vmem>>, vector<16x256xf32>
    %c0_2 = arith.constant 0 : index
    %c0_3 = arith.constant 0 : index
    %4 = vector.load %arg2[%c0_2, %c0_3] : memref<16x256xbf16, #tpu.memory_space<vmem>>, vector<16x256xbf16>
    %c0_4 = arith.constant 0 : index
    %c0_5 = arith.constant 0 : index
    %5 = vector.load %arg3[%c0_4, %c0_5] : memref<256x256xbf16, #tpu.memory_space<vmem>>, vector<256x256xbf16>
    %cst = arith.constant dense<0.000000e+00> : vector<16x256xf32>
    %6 = tpu.matmul %4, %5, %cst {dimension_numbers = #tpu.dot_dimension_numbers<[1], [0], [0], [1], [0, 0, 1, 1], [], []>} : vector<16x256xbf16>, vector<256x256xbf16>, vector<16x256xf32> -> vector<16x256xf32>
    %7 = arith.addf %3, %6 : vector<16x256xf32>
    %c0_6 = arith.constant 0 : index
    %c0_7 = arith.constant 0 : index
    %8 = vector.load %arg9[%c0_6, %c0_7] : memref<16x256xf32, #tpu.memory_space<vmem>>, vector<16x256xf32>
    tpu.vector_store %arg9[%c0_6, %c0_7], %7 {strides = array<i32>} : memref<16x256xf32, #tpu.memory_space<vmem>>, vector<16x256xf32>,
    %c0_i32_8 = arith.constant 0 : i32
    %9 = arith.cmpi eq, %arg1, %c0_i32_8 : i32
    %10 = arith.extui %9 : i1 to i32
    %c0_i32_9 = arith.constant 0 : i32
    %11 = arith.cmpi ne, %10, %c0_i32_9 : i32
    scf.if %11 {
      %c0_10 = arith.constant 0 : index
      %c0_11 = arith.constant 0 : index
      %12 = vector.load %arg9[%c0_10, %c0_11] : memref<16x256xf32, #tpu.memory_space<vmem>>, vector<16x256xf32>
      %c0_12 = arith.constant 0 : index
      %c0_13 = arith.constant 0 : index
      %13 = vector.load %arg4[%c0_12, %c0_13] : memref<1x256xf32, #tpu.memory_space<vmem>>, vector<1x256xf32>
      %14 = vector.broadcast %13 : vector<1x256xf32> to vector<16x256xf32>
      %15 = arith.addf %12, %14 : vector<16x256xf32>
      %c0_14 = arith.constant 0 : index
      %c0_15 = arith.constant 0 : index
      %16 = vector.load %arg5[%c0_14, %c0_15] : memref<16x256xbf16, #tpu.memory_space<vmem>>, vector<16x256xbf16>
      %17 = arith.extf %16 : vector<16x256xbf16> to vector<16x256xf32>
      %18 = arith.addf %15, %17 : vector<16x256xf32>
      %cst_16 = arith.constant dense<0.000000e+00> : vector<16xf32>
      %19 = vector.multi_reduction <add>, %18, %cst_16 [1] : vector<16x256xf32> to vector<16xf32>
      %20 = vector.shape_cast %19 : vector<16xf32> to vector<16x1xf32>
      %cst_17 = arith.constant 3.906250e-03 : f32
      %21 = vector.broadcast %cst_17 : f32 to vector<16x1xf32>
      %22 = arith.mulf %20, %21 : vector<16x1xf32>
      %23 = arith.mulf %18, %18 : vector<16x256xf32>
      %cst_18 = arith.constant dense<0.000000e+00> : vector<16xf32>
      %24 = vector.multi_reduction <add>, %23, %cst_18 [1] : vector<16x256xf32> to vector<16xf32>
      %25 = vector.shape_cast %24 : vector<16xf32> to vector<16x1xf32>
      %cst_19 = arith.constant 3.906250e-03 : f32
      %26 = vector.broadcast %cst_19 : f32 to vector<16x1xf32>
      %27 = arith.mulf %25, %26 : vector<16x1xf32>
      %28 = arith.mulf %22, %22 : vector<16x1xf32>
      %29 = arith.subf %27, %28 : vector<16x1xf32>
      %30 = vector.broadcast %22 : vector<16x1xf32> to vector<16x256xf32>
      %31 = arith.subf %18, %30 : vector<16x256xf32>
      %cst_20 = arith.constant 9.99999974E-6 : f32
      %32 = vector.broadcast %cst_20 : f32 to vector<16x1xf32>
      %33 = arith.addf %29, %32 : vector<16x1xf32>
      %34 = math.rsqrt %33 : vector<16x1xf32>
      %35 = vector.broadcast %34 : vector<16x1xf32> to vector<16x256xf32>
      %36 = arith.mulf %31, %35 : vector<16x256xf32>
      %c0_21 = arith.constant 0 : index
      %c0_22 = arith.constant 0 : index
      %37 = vector.load %arg6[%c0_21, %c0_22] : memref<1x256xf32, #tpu.memory_space<vmem>>, vector<1x256xf32>
      %38 = vector.broadcast %37 : vector<1x256xf32> to vector<16x256xf32>
      %39 = arith.mulf %36, %38 : vector<16x256xf32>
      %c0_23 = arith.constant 0 : index
      %c0_24 = arith.constant 0 : index
      %40 = vector.load %arg7[%c0_23, %c0_24] : memref<1x256xf32, #tpu.memory_space<vmem>>, vector<1x256xf32>
      %41 = vector.broadcast %40 : vector<1x256xf32> to vector<16x256xf32>
      %42 = arith.addf %39, %41 : vector<16x256xf32>
      %43 = arith.truncf %42 : vector<16x256xf32> to vector<16x256xbf16>
      %c0_25 = arith.constant 0 : index
      %c0_26 = arith.constant 0 : index
      %44 = vector.load %arg8[%c0_25, %c0_26] : memref<16x256xbf16, #tpu.memory_space<vmem>>, vector<16x256xbf16>
      tpu.vector_store %arg8[%c0_25, %c0_26], %43 {strides = array<i32>} : memref<16x256xbf16, #tpu.memory_space<vmem>>, vector<16x256xbf16>,
    } else {
    }
    return
  }
  func.func @transform_0(%arg0: i32, %arg1: i32) -> (i32, i32) {
    %c0_i32 = arith.constant 0 : i32
    return %arg0, %arg1 : i32, i32
  }
  func.func @transform_1(%arg0: i32, %arg1: i32) -> (i32, i32) {
    %c0_i32 = arith.constant 0 : i32
    %c0_i32_0 = arith.constant 0 : i32
    return %arg1, %c0_i32 : i32, i32
  }
  func.func @transform_2(%arg0: i32, %arg1: i32) -> (i32, i32) {
    %c0_i32 = arith.constant 0 : i32
    %c0_i32_0 = arith.constant 0 : i32
    %c0_i32_1 = arith.constant 0 : i32
    return %c0_i32, %c0_i32_0 : i32, i32
  }
  func.func @transform_3(%arg0: i32, %arg1: i32) -> (i32, i32) {
    %c0_i32 = arith.constant 0 : i32
    %c0_i32_0 = arith.constant 0 : i32
    return %arg0, %c0_i32 : i32, i32
  }
  func.func @transform_4(%arg0: i32, %arg1: i32) -> (i32, i32) {
    %c0_i32 = arith.constant 0 : i32
    %c0_i32_0 = arith.constant 0 : i32
    %c0_i32_1 = arith.constant 0 : i32
    return %c0_i32, %c0_i32_0 : i32, i32
  }
  func.func @transform_5(%arg0: i32, %arg1: i32) -> (i32, i32) {
    %c0_i32 = arith.constant 0 : i32
    %c0_i32_0 = arith.constant 0 : i32
    %c0_i32_1 = arith.constant 0 : i32
    return %c0_i32, %c0_i32_0 : i32, i32
  }
  func.func @transform_6(%arg0: i32, %arg1: i32) -> (i32, i32) {
    %c0_i32 = arith.constant 0 : i32
    %c0_i32_0 = arith.constant 0 : i32
    return %arg0, %c0_i32 : i32, i32
  }
}

module attributes {stable_mosaic.version = 11 : i64} {
  func.func @_matmul_kernel(%arg0: i32, %arg1: i32, %arg2: i32, %arg3: memref<16x256xbf16, #tpu.memory_space<vmem>>, %arg4: memref<256x768xbf16, #tpu.memory_space<vmem>>, %arg5: memref<1x768xf32, #tpu.memory_space<vmem>>, %arg6: memref<16x768xbf16, #tpu.memory_space<vmem>>, %arg7: memref<16x768xf32, #tpu.memory_space<vmem>>) attributes {dimension_semantics = [#tpu.dimension_semantics<parallel>, #tpu.dimension_semantics<parallel>, #tpu.dimension_semantics<arbitrary>], iteration_bounds = array<i64: 2, 1, 1>, scalar_prefetch = 0 : i64, scratch_operands = 1 : i64, tpu.core_type = #tpu.core_type<tc>, window_params = [{transform_indices = @transform_0, window_bounds = array<i64: 16, 256>}, {transform_indices = @transform_1, window_bounds = array<i64: 256, 768>}, {transform_indices = @transform_2, window_bounds = array<i64: 1, 768>}, {transform_indices = @transform_3, window_bounds = array<i64: 16, 768>}]} {
    %c0_i32 = arith.constant 0 : i32
    %0 = arith.cmpi eq, %arg2, %c0_i32 : i32
    %1 = arith.extui %0 : i1 to i32
    %c0_i32_0 = arith.constant 0 : i32
    %2 = arith.cmpi ne, %1, %c0_i32_0 : i32
    scf.if %2 {
      %cst_10 = arith.constant 0.000000e+00 : f32
      %12 = vector.broadcast %cst_10 : f32 to vector<16x768xf32>
      %c0_11 = arith.constant 0 : index
      %c0_12 = arith.constant 0 : index
      %13 = vector.load %arg7[%c0_11, %c0_12] : memref<16x768xf32, #tpu.memory_space<vmem>>, vector<16x768xf32>
      tpu.vector_store %arg7[%c0_11, %c0_12], %12 {strides = array<i32>} : memref<16x768xf32, #tpu.memory_space<vmem>>, vector<16x768xf32>,
    } else {
    }
    %c0 = arith.constant 0 : index
    %c0_1 = arith.constant 0 : index
    %3 = vector.load %arg7[%c0, %c0_1] : memref<16x768xf32, #tpu.memory_space<vmem>>, vector<16x768xf32>
    %c0_2 = arith.constant 0 : index
    %c0_3 = arith.constant 0 : index
    %4 = vector.load %arg3[%c0_2, %c0_3] : memref<16x256xbf16, #tpu.memory_space<vmem>>, vector<16x256xbf16>
    %c0_4 = arith.constant 0 : index
    %c0_5 = arith.constant 0 : index
    %5 = vector.load %arg4[%c0_4, %c0_5] : memref<256x768xbf16, #tpu.memory_space<vmem>>, vector<256x768xbf16>
    %cst = arith.constant dense<0.000000e+00> : vector<16x768xf32>
    %6 = tpu.matmul %4, %5, %cst {dimension_numbers = #tpu.dot_dimension_numbers<[1], [0], [0], [1], [0, 0, 1, 1], [], []>} : vector<16x256xbf16>, vector<256x768xbf16>, vector<16x768xf32> -> vector<16x768xf32>
    %7 = arith.addf %3, %6 : vector<16x768xf32>
    %c0_6 = arith.constant 0 : index
    %c0_7 = arith.constant 0 : index
    %8 = vector.load %arg7[%c0_6, %c0_7] : memref<16x768xf32, #tpu.memory_space<vmem>>, vector<16x768xf32>
    tpu.vector_store %arg7[%c0_6, %c0_7], %7 {strides = array<i32>} : memref<16x768xf32, #tpu.memory_space<vmem>>, vector<16x768xf32>,
    %c0_i32_8 = arith.constant 0 : i32
    %9 = arith.cmpi eq, %arg2, %c0_i32_8 : i32
    %10 = arith.extui %9 : i1 to i32
    %c0_i32_9 = arith.constant 0 : i32
    %11 = arith.cmpi ne, %10, %c0_i32_9 : i32
    scf.if %11 {
      %c0_10 = arith.constant 0 : index
      %c0_11 = arith.constant 0 : index
      %12 = vector.load %arg7[%c0_10, %c0_11] : memref<16x768xf32, #tpu.memory_space<vmem>>, vector<16x768xf32>
      %c0_12 = arith.constant 0 : index
      %c0_13 = arith.constant 0 : index
      %13 = vector.load %arg5[%c0_12, %c0_13] : memref<1x768xf32, #tpu.memory_space<vmem>>, vector<1x768xf32>
      %14 = vector.broadcast %13 : vector<1x768xf32> to vector<16x768xf32>
      %15 = arith.addf %12, %14 : vector<16x768xf32>
      %16 = arith.truncf %15 : vector<16x768xf32> to vector<16x768xbf16>
      %c0_14 = arith.constant 0 : index
      %c0_15 = arith.constant 0 : index
      %17 = vector.load %arg6[%c0_14, %c0_15] : memref<16x768xbf16, #tpu.memory_space<vmem>>, vector<16x768xbf16>
      tpu.vector_store %arg6[%c0_14, %c0_15], %16 {strides = array<i32>} : memref<16x768xbf16, #tpu.memory_space<vmem>>, vector<16x768xbf16>,
    } else {
    }
    return
  }
  func.func @transform_0(%arg0: i32, %arg1: i32, %arg2: i32) -> (i32, i32) {
    %c0_i32 = arith.constant 0 : i32
    return %arg0, %arg2 : i32, i32
  }
  func.func @transform_1(%arg0: i32, %arg1: i32, %arg2: i32) -> (i32, i32) {
    %c0_i32 = arith.constant 0 : i32
    return %arg2, %arg1 : i32, i32
  }
  func.func @transform_2(%arg0: i32, %arg1: i32, %arg2: i32) -> (i32, i32) {
    %c0_i32 = arith.constant 0 : i32
    %c0_i32_0 = arith.constant 0 : i32
    return %c0_i32, %arg1 : i32, i32
  }
  func.func @transform_3(%arg0: i32, %arg1: i32, %arg2: i32) -> (i32, i32) {
    %c0_i32 = arith.constant 0 : i32
    return %arg0, %arg1 : i32, i32
  }
}

module attributes {stable_mosaic.version = 11 : i64} {
  func.func @_flash_attn_kernel(%arg0: i32, %arg1: i32, %arg2: i32, %arg3: memref<1x16x128xbf16, #tpu.memory_space<vmem>>, %arg4: memref<1x16x128xbf16, #tpu.memory_space<vmem>>, %arg5: memref<1x16x128xbf16, #tpu.memory_space<vmem>>, %arg6: memref<1x16x128xbf16, #tpu.memory_space<vmem>>, %arg7: memref<16x1xf32, #tpu.memory_space<vmem>>, %arg8: memref<16x1xf32, #tpu.memory_space<vmem>>, %arg9: memref<16x128xf32, #tpu.memory_space<vmem>>) attributes {dimension_semantics = [#tpu.dimension_semantics<parallel>, #tpu.dimension_semantics<parallel>, #tpu.dimension_semantics<arbitrary>], iteration_bounds = array<i64: 2, 2, 1>, scalar_prefetch = 0 : i64, scratch_operands = 3 : i64, tpu.core_type = #tpu.core_type<tc>, window_params = [{transform_indices = @transform_0, window_bounds = array<i64: 1, 16, 128>}, {transform_indices = @transform_1, window_bounds = array<i64: 1, 16, 128>}, {transform_indices = @transform_2, window_bounds = array<i64: 1, 16, 128>}, {transform_indices = @transform_3, window_bounds = array<i64: 1, 16, 128>}]} {
    %c0_i32 = arith.constant 0 : i32
    %0 = arith.cmpi eq, %arg2, %c0_i32 : i32
    %1 = arith.extui %0 : i1 to i32
    %c0_i32_0 = arith.constant 0 : i32
    %2 = arith.cmpi ne, %1, %c0_i32_0 : i32
    scf.if %2 {
      %cst_26 = arith.constant 0xFF800000 : f32
      %36 = vector.broadcast %cst_26 : f32 to vector<16x1xf32>
      %c0_27 = arith.constant 0 : index
      %c0_28 = arith.constant 0 : index
      %37 = vector.load %arg7[%c0_27, %c0_28] : memref<16x1xf32, #tpu.memory_space<vmem>>, vector<16x1xf32>
      tpu.vector_store %arg7[%c0_27, %c0_28], %36 {strides = array<i32>} : memref<16x1xf32, #tpu.memory_space<vmem>>, vector<16x1xf32>,
      %cst_29 = arith.constant 0.000000e+00 : f32
      %38 = vector.broadcast %cst_29 : f32 to vector<16x1xf32>
      %c0_30 = arith.constant 0 : index
      %c0_31 = arith.constant 0 : index
      %39 = vector.load %arg8[%c0_30, %c0_31] : memref<16x1xf32, #tpu.memory_space<vmem>>, vector<16x1xf32>
      tpu.vector_store %arg8[%c0_30, %c0_31], %38 {strides = array<i32>} : memref<16x1xf32, #tpu.memory_space<vmem>>, vector<16x1xf32>,
      %cst_32 = arith.constant 0.000000e+00 : f32
      %40 = vector.broadcast %cst_32 : f32 to vector<16x128xf32>
      %c0_33 = arith.constant 0 : index
      %c0_34 = arith.constant 0 : index
      %41 = vector.load %arg9[%c0_33, %c0_34] : memref<16x128xf32, #tpu.memory_space<vmem>>, vector<16x128xf32>
      tpu.vector_store %arg9[%c0_33, %c0_34], %40 {strides = array<i32>} : memref<16x128xf32, #tpu.memory_space<vmem>>, vector<16x128xf32>,
    } else {
    }
    %c0 = arith.constant 0 : index
    %c0_1 = arith.constant 0 : index
    %c0_2 = arith.constant 0 : index
    %3 = vector.load %arg3[%c0, %c0_1, %c0_2] : memref<1x16x128xbf16, #tpu.memory_space<vmem>>, vector<1x16x128xbf16>
    %4 = vector.shape_cast %3 : vector<1x16x128xbf16> to vector<16x128xbf16>
    %c0_3 = arith.constant 0 : index
    %c0_4 = arith.constant 0 : index
    %c0_5 = arith.constant 0 : index
    %5 = vector.load %arg4[%c0_3, %c0_4, %c0_5] : memref<1x16x128xbf16, #tpu.memory_space<vmem>>, vector<1x16x128xbf16>
    %6 = vector.shape_cast %5 : vector<1x16x128xbf16> to vector<16x128xbf16>
    %c0_6 = arith.constant 0 : index
    %c0_7 = arith.constant 0 : index
    %c0_8 = arith.constant 0 : index
    %7 = vector.load %arg5[%c0_6, %c0_7, %c0_8] : memref<1x16x128xbf16, #tpu.memory_space<vmem>>, vector<1x16x128xbf16>
    %8 = vector.shape_cast %7 : vector<1x16x128xbf16> to vector<16x128xbf16>
    %cst = arith.constant dense<0.000000e+00> : vector<16x16xf32>
    %9 = tpu.matmul %4, %6, %cst {dimension_numbers = #tpu.dot_dimension_numbers<[1], [1], [0], [0], [0, 0, 1, 0], [], []>} : vector<16x128xbf16>, vector<16x128xbf16>, vector<16x16xf32> -> vector<16x16xf32>
    %c0_9 = arith.constant 0 : index
    %c0_10 = arith.constant 0 : index
    %10 = vector.load %arg7[%c0_9, %c0_10] : memref<16x1xf32, #tpu.memory_space<vmem>>, vector<16x1xf32>
    %cst_11 = arith.constant dense<0xFF800000> : vector<16xf32>
    %11 = vector.multi_reduction <maximumf>, %9, %cst_11 [1] : vector<16x16xf32> to vector<16xf32>
    %12 = vector.shape_cast %11 : vector<16xf32> to vector<16x1xf32>
    %13 = arith.maximumf %10, %12 : vector<16x1xf32>
    %14 = arith.subf %10, %13 : vector<16x1xf32>
    %15 = math.exp %14 : vector<16x1xf32>
    %16 = vector.broadcast %13 : vector<16x1xf32> to vector<16x16xf32>
    %17 = arith.subf %9, %16 : vector<16x16xf32>
    %18 = math.exp %17 : vector<16x16xf32>
    %c0_12 = arith.constant 0 : index
    %c0_13 = arith.constant 0 : index
    %19 = vector.load %arg8[%c0_12, %c0_13] : memref<16x1xf32, #tpu.memory_space<vmem>>, vector<16x1xf32>
    %20 = arith.mulf %15, %19 : vector<16x1xf32>
    %cst_14 = arith.constant dense<0.000000e+00> : vector<16xf32>
    %21 = vector.multi_reduction <add>, %18, %cst_14 [1] : vector<16x16xf32> to vector<16xf32>
    %22 = vector.shape_cast %21 : vector<16xf32> to vector<16x1xf32>
    %23 = arith.addf %20, %22 : vector<16x1xf32>
    %c0_15 = arith.constant 0 : index
    %c0_16 = arith.constant 0 : index
    %24 = vector.load %arg8[%c0_15, %c0_16] : memref<16x1xf32, #tpu.memory_space<vmem>>, vector<16x1xf32>
    tpu.vector_store %arg8[%c0_15, %c0_16], %23 {strides = array<i32>} : memref<16x1xf32, #tpu.memory_space<vmem>>, vector<16x1xf32>,
    %c0_17 = arith.constant 0 : index
    %c0_18 = arith.constant 0 : index
    %25 = vector.load %arg9[%c0_17, %c0_18] : memref<16x128xf32, #tpu.memory_space<vmem>>, vector<16x128xf32>
    %26 = vector.broadcast %15 : vector<16x1xf32> to vector<16x128xf32>
    %27 = arith.mulf %26, %25 : vector<16x128xf32>
    %28 = arith.truncf %18 : vector<16x16xf32> to vector<16x16xbf16>
    %cst_19 = arith.constant dense<0.000000e+00> : vector<16x128xf32>
    %29 = tpu.matmul %28, %8, %cst_19 {dimension_numbers = #tpu.dot_dimension_numbers<[1], [0], [0], [1], [0, 0, 1, 1], [], []>} : vector<16x16xbf16>, vector<16x128xbf16>, vector<16x128xf32> -> vector<16x128xf32>
    %30 = arith.addf %27, %29 : vector<16x128xf32>
    %c0_20 = arith.constant 0 : index
    %c0_21 = arith.constant 0 : index
    %31 = vector.load %arg9[%c0_20, %c0_21] : memref<16x128xf32, #tpu.memory_space<vmem>>, vector<16x128xf32>
    tpu.vector_store %arg9[%c0_20, %c0_21], %30 {strides = array<i32>} : memref<16x128xf32, #tpu.memory_space<vmem>>, vector<16x128xf32>,
    %c0_22 = arith.constant 0 : index
    %c0_23 = arith.constant 0 : index
    %32 = vector.load %arg7[%c0_22, %c0_23] : memref<16x1xf32, #tpu.memory_space<vmem>>, vector<16x1xf32>
    tpu.vector_store %arg7[%c0_22, %c0_23], %13 {strides = array<i32>} : memref<16x1xf32, #tpu.memory_space<vmem>>, vector<16x1xf32>,
    %c0_i32_24 = arith.constant 0 : i32
    %33 = arith.cmpi eq, %arg2, %c0_i32_24 : i32
    %34 = arith.extui %33 : i1 to i32
    %c0_i32_25 = arith.constant 0 : i32
    %35 = arith.cmpi ne, %34, %c0_i32_25 : i32
    scf.if %35 {
      %c0_26 = arith.constant 0 : index
      %c0_27 = arith.constant 0 : index
      %36 = vector.load %arg9[%c0_26, %c0_27] : memref<16x128xf32, #tpu.memory_space<vmem>>, vector<16x128xf32>
      %c0_28 = arith.constant 0 : index
      %c0_29 = arith.constant 0 : index
      %37 = vector.load %arg8[%c0_28, %c0_29] : memref<16x1xf32, #tpu.memory_space<vmem>>, vector<16x1xf32>
      %38 = tpu.reciprocal %37 {approx = true} : vector<16x1xf32> -> vector<16x1xf32>
      %39 = vector.broadcast %38 : vector<16x1xf32> to vector<16x128xf32>
      %40 = arith.mulf %36, %39 : vector<16x128xf32>
      %41 = arith.truncf %40 : vector<16x128xf32> to vector<16x128xbf16>
      %c0_30 = arith.constant 0 : index
      %c0_31 = arith.constant 0 : index
      %c0_32 = arith.constant 0 : index
      %42 = vector.load %arg6[%c0_30, %c0_31, %c0_32] : memref<1x16x128xbf16, #tpu.memory_space<vmem>>, vector<1x16x128xbf16>
      %43 = vector.shape_cast %42 : vector<1x16x128xbf16> to vector<16x128xbf16>
      %44 = vector.shape_cast %41 : vector<16x128xbf16> to vector<1x16x128xbf16>
      tpu.vector_store %arg6[%c0_30, %c0_31, %c0_32], %44 {strides = array<i32>} : memref<1x16x128xbf16, #tpu.memory_space<vmem>>, vector<1x16x128xbf16>,
    } else {
    }
    return
  }
  func.func @transform_0(%arg0: i32, %arg1: i32, %arg2: i32) -> (i32, i32, i32) {
    %c0_i32 = arith.constant 0 : i32
    %0 = arith.addi %c0_i32, %arg1 : i32
    %c0_i32_0 = arith.constant 0 : i32
    %c0_i32_1 = arith.constant 0 : i32
    return %arg0, %c0_i32_0, %0 : i32, i32, i32
  }
  func.func @transform_1(%arg0: i32, %arg1: i32, %arg2: i32) -> (i32, i32, i32) {
    %c0_i32 = arith.constant 0 : i32
    %0 = arith.addi %c0_i32, %arg1 : i32
    %c0_i32_0 = arith.constant 0 : i32
    return %arg0, %arg2, %0 : i32, i32, i32
  }
  func.func @transform_2(%arg0: i32, %arg1: i32, %arg2: i32) -> (i32, i32, i32) {
    %c2_i32 = arith.constant 2 : i32
    %0 = arith.addi %c2_i32, %arg1 : i32
    %c0_i32 = arith.constant 0 : i32
    return %arg0, %arg2, %0 : i32, i32, i32
  }
  func.func @transform_3(%arg0: i32, %arg1: i32, %arg2: i32) -> (i32, i32, i32) {
    %c0_i32 = arith.constant 0 : i32
    %c0_i32_0 = arith.constant 0 : i32
    return %arg0, %c0_i32, %arg1 : i32, i32, i32
  }
}

module attributes {stable_mosaic.version = 11 : i64} {
  func.func @_matmul_kernel(%arg0: i32, %arg1: i32, %arg2: i32, %arg3: memref<16x256xbf16, #tpu.memory_space<vmem>>, %arg4: memref<256x512xbf16, #tpu.memory_space<vmem>>, %arg5: memref<1x512xf32, #tpu.memory_space<vmem>>, %arg6: memref<16x512xbf16, #tpu.memory_space<vmem>>, %arg7: memref<16x512xf32, #tpu.memory_space<vmem>>) attributes {dimension_semantics = [#tpu.dimension_semantics<parallel>, #tpu.dimension_semantics<parallel>, #tpu.dimension_semantics<arbitrary>], iteration_bounds = array<i64: 2, 1, 1>, scalar_prefetch = 0 : i64, scratch_operands = 1 : i64, tpu.core_type = #tpu.core_type<tc>, window_params = [{transform_indices = @transform_0, window_bounds = array<i64: 16, 256>}, {transform_indices = @transform_1, window_bounds = array<i64: 256, 512>}, {transform_indices = @transform_2, window_bounds = array<i64: 1, 512>}, {transform_indices = @transform_3, window_bounds = array<i64: 16, 512>}]} {
    %c0_i32 = arith.constant 0 : i32
    %0 = arith.cmpi eq, %arg2, %c0_i32 : i32
    %1 = arith.extui %0 : i1 to i32
    %c0_i32_0 = arith.constant 0 : i32
    %2 = arith.cmpi ne, %1, %c0_i32_0 : i32
    scf.if %2 {
      %cst_10 = arith.constant 0.000000e+00 : f32
      %12 = vector.broadcast %cst_10 : f32 to vector<16x512xf32>
      %c0_11 = arith.constant 0 : index
      %c0_12 = arith.constant 0 : index
      %13 = vector.load %arg7[%c0_11, %c0_12] : memref<16x512xf32, #tpu.memory_space<vmem>>, vector<16x512xf32>
      tpu.vector_store %arg7[%c0_11, %c0_12], %12 {strides = array<i32>} : memref<16x512xf32, #tpu.memory_space<vmem>>, vector<16x512xf32>,
    } else {
    }
    %c0 = arith.constant 0 : index
    %c0_1 = arith.constant 0 : index
    %3 = vector.load %arg7[%c0, %c0_1] : memref<16x512xf32, #tpu.memory_space<vmem>>, vector<16x512xf32>
    %c0_2 = arith.constant 0 : index
    %c0_3 = arith.constant 0 : index
    %4 = vector.load %arg3[%c0_2, %c0_3] : memref<16x256xbf16, #tpu.memory_space<vmem>>, vector<16x256xbf16>
    %c0_4 = arith.constant 0 : index
    %c0_5 = arith.constant 0 : index
    %5 = vector.load %arg4[%c0_4, %c0_5] : memref<256x512xbf16, #tpu.memory_space<vmem>>, vector<256x512xbf16>
    %cst = arith.constant dense<0.000000e+00> : vector<16x512xf32>
    %6 = tpu.matmul %4, %5, %cst {dimension_numbers = #tpu.dot_dimension_numbers<[1], [0], [0], [1], [0, 0, 1, 1], [], []>} : vector<16x256xbf16>, vector<256x512xbf16>, vector<16x512xf32> -> vector<16x512xf32>
    %7 = arith.addf %3, %6 : vector<16x512xf32>
    %c0_6 = arith.constant 0 : index
    %c0_7 = arith.constant 0 : index
    %8 = vector.load %arg7[%c0_6, %c0_7] : memref<16x512xf32, #tpu.memory_space<vmem>>, vector<16x512xf32>
    tpu.vector_store %arg7[%c0_6, %c0_7], %7 {strides = array<i32>} : memref<16x512xf32, #tpu.memory_space<vmem>>, vector<16x512xf32>,
    %c0_i32_8 = arith.constant 0 : i32
    %9 = arith.cmpi eq, %arg2, %c0_i32_8 : i32
    %10 = arith.extui %9 : i1 to i32
    %c0_i32_9 = arith.constant 0 : i32
    %11 = arith.cmpi ne, %10, %c0_i32_9 : i32
    scf.if %11 {
      %c0_10 = arith.constant 0 : index
      %c0_11 = arith.constant 0 : index
      %12 = vector.load %arg7[%c0_10, %c0_11] : memref<16x512xf32, #tpu.memory_space<vmem>>, vector<16x512xf32>
      %c0_12 = arith.constant 0 : index
      %c0_13 = arith.constant 0 : index
      %13 = vector.load %arg5[%c0_12, %c0_13] : memref<1x512xf32, #tpu.memory_space<vmem>>, vector<1x512xf32>
      %14 = vector.broadcast %13 : vector<1x512xf32> to vector<16x512xf32>
      %15 = arith.addf %12, %14 : vector<16x512xf32>
      %16 = arith.truncf %15 : vector<16x512xf32> to vector<16x512xbf16>
      %c0_14 = arith.constant 0 : index
      %c0_15 = arith.constant 0 : index
      %17 = vector.load %arg6[%c0_14, %c0_15] : memref<16x512xbf16, #tpu.memory_space<vmem>>, vector<16x512xbf16>
      tpu.vector_store %arg6[%c0_14, %c0_15], %16 {strides = array<i32>} : memref<16x512xbf16, #tpu.memory_space<vmem>>, vector<16x512xbf16>,
    } else {
    }
    return
  }
  func.func @transform_0(%arg0: i32, %arg1: i32, %arg2: i32) -> (i32, i32) {
    %c0_i32 = arith.constant 0 : i32
    return %arg0, %arg2 : i32, i32
  }
  func.func @transform_1(%arg0: i32, %arg1: i32, %arg2: i32) -> (i32, i32) {
    %c0_i32 = arith.constant 0 : i32
    return %arg2, %arg1 : i32, i32
  }
  func.func @transform_2(%arg0: i32, %arg1: i32, %arg2: i32) -> (i32, i32) {
    %c0_i32 = arith.constant 0 : i32
    %c0_i32_0 = arith.constant 0 : i32
    return %c0_i32, %arg1 : i32, i32
  }
  func.func @transform_3(%arg0: i32, %arg1: i32, %arg2: i32) -> (i32, i32) {
    %c0_i32 = arith.constant 0 : i32
    return %arg0, %arg1 : i32, i32
  }
}

module attributes {stable_mosaic.version = 11 : i64} {
  func.func @_proj_res_ln_kernel(%arg0: i32, %arg1: i32, %arg2: memref<16x512xbf16, #tpu.memory_space<vmem>>, %arg3: memref<512x256xbf16, #tpu.memory_space<vmem>>, %arg4: memref<1x256xf32, #tpu.memory_space<vmem>>, %arg5: memref<16x256xbf16, #tpu.memory_space<vmem>>, %arg6: memref<1x256xf32, #tpu.memory_space<vmem>>, %arg7: memref<1x256xf32, #tpu.memory_space<vmem>>, %arg8: memref<16x256xbf16, #tpu.memory_space<vmem>>, %arg9: memref<16x256xf32, #tpu.memory_space<vmem>>) attributes {dimension_semantics = [#tpu.dimension_semantics<parallel>, #tpu.dimension_semantics<arbitrary>], iteration_bounds = array<i64: 2, 1>, scalar_prefetch = 0 : i64, scratch_operands = 1 : i64, tpu.core_type = #tpu.core_type<tc>, window_params = [{transform_indices = @transform_0, window_bounds = array<i64: 16, 512>}, {transform_indices = @transform_1, window_bounds = array<i64: 512, 256>}, {pipeline_mode = #tpu.pipeline_mode<synchronous>, transform_indices = @transform_2, window_bounds = array<i64: 1, 256>}, {transform_indices = @transform_3, window_bounds = array<i64: 16, 256>}, {pipeline_mode = #tpu.pipeline_mode<synchronous>, transform_indices = @transform_4, window_bounds = array<i64: 1, 256>}, {pipeline_mode = #tpu.pipeline_mode<synchronous>, transform_indices = @transform_5, window_bounds = array<i64: 1, 256>}, {transform_indices = @transform_6, window_bounds = array<i64: 16, 256>}]} {
    %c0_i32 = arith.constant 0 : i32
    %0 = arith.cmpi eq, %arg1, %c0_i32 : i32
    %1 = arith.extui %0 : i1 to i32
    %c0_i32_0 = arith.constant 0 : i32
    %2 = arith.cmpi ne, %1, %c0_i32_0 : i32
    scf.if %2 {
      %cst_10 = arith.constant 0.000000e+00 : f32
      %12 = vector.broadcast %cst_10 : f32 to vector<16x256xf32>
      %c0_11 = arith.constant 0 : index
      %c0_12 = arith.constant 0 : index
      %13 = vector.load %arg9[%c0_11, %c0_12] : memref<16x256xf32, #tpu.memory_space<vmem>>, vector<16x256xf32>
      tpu.vector_store %arg9[%c0_11, %c0_12], %12 {strides = array<i32>} : memref<16x256xf32, #tpu.memory_space<vmem>>, vector<16x256xf32>,
    } else {
    }
    %c0 = arith.constant 0 : index
    %c0_1 = arith.constant 0 : index
    %3 = vector.load %arg9[%c0, %c0_1] : memref<16x256xf32, #tpu.memory_space<vmem>>, vector<16x256xf32>
    %c0_2 = arith.constant 0 : index
    %c0_3 = arith.constant 0 : index
    %4 = vector.load %arg2[%c0_2, %c0_3] : memref<16x512xbf16, #tpu.memory_space<vmem>>, vector<16x512xbf16>
    %c0_4 = arith.constant 0 : index
    %c0_5 = arith.constant 0 : index
    %5 = vector.load %arg3[%c0_4, %c0_5] : memref<512x256xbf16, #tpu.memory_space<vmem>>, vector<512x256xbf16>
    %cst = arith.constant dense<0.000000e+00> : vector<16x256xf32>
    %6 = tpu.matmul %4, %5, %cst {dimension_numbers = #tpu.dot_dimension_numbers<[1], [0], [0], [1], [0, 0, 1, 1], [], []>} : vector<16x512xbf16>, vector<512x256xbf16>, vector<16x256xf32> -> vector<16x256xf32>
    %7 = arith.addf %3, %6 : vector<16x256xf32>
    %c0_6 = arith.constant 0 : index
    %c0_7 = arith.constant 0 : index
    %8 = vector.load %arg9[%c0_6, %c0_7] : memref<16x256xf32, #tpu.memory_space<vmem>>, vector<16x256xf32>
    tpu.vector_store %arg9[%c0_6, %c0_7], %7 {strides = array<i32>} : memref<16x256xf32, #tpu.memory_space<vmem>>, vector<16x256xf32>,
    %c0_i32_8 = arith.constant 0 : i32
    %9 = arith.cmpi eq, %arg1, %c0_i32_8 : i32
    %10 = arith.extui %9 : i1 to i32
    %c0_i32_9 = arith.constant 0 : i32
    %11 = arith.cmpi ne, %10, %c0_i32_9 : i32
    scf.if %11 {
      %c0_10 = arith.constant 0 : index
      %c0_11 = arith.constant 0 : index
      %12 = vector.load %arg9[%c0_10, %c0_11] : memref<16x256xf32, #tpu.memory_space<vmem>>, vector<16x256xf32>
      %c0_12 = arith.constant 0 : index
      %c0_13 = arith.constant 0 : index
      %13 = vector.load %arg4[%c0_12, %c0_13] : memref<1x256xf32, #tpu.memory_space<vmem>>, vector<1x256xf32>
      %14 = vector.broadcast %13 : vector<1x256xf32> to vector<16x256xf32>
      %15 = arith.addf %12, %14 : vector<16x256xf32>
      %c0_14 = arith.constant 0 : index
      %c0_15 = arith.constant 0 : index
      %16 = vector.load %arg5[%c0_14, %c0_15] : memref<16x256xbf16, #tpu.memory_space<vmem>>, vector<16x256xbf16>
      %17 = arith.extf %16 : vector<16x256xbf16> to vector<16x256xf32>
      %18 = arith.addf %15, %17 : vector<16x256xf32>
      %cst_16 = arith.constant dense<0.000000e+00> : vector<16xf32>
      %19 = vector.multi_reduction <add>, %18, %cst_16 [1] : vector<16x256xf32> to vector<16xf32>
      %20 = vector.shape_cast %19 : vector<16xf32> to vector<16x1xf32>
      %cst_17 = arith.constant 3.906250e-03 : f32
      %21 = vector.broadcast %cst_17 : f32 to vector<16x1xf32>
      %22 = arith.mulf %20, %21 : vector<16x1xf32>
      %23 = arith.mulf %18, %18 : vector<16x256xf32>
      %cst_18 = arith.constant dense<0.000000e+00> : vector<16xf32>
      %24 = vector.multi_reduction <add>, %23, %cst_18 [1] : vector<16x256xf32> to vector<16xf32>
      %25 = vector.shape_cast %24 : vector<16xf32> to vector<16x1xf32>
      %cst_19 = arith.constant 3.906250e-03 : f32
      %26 = vector.broadcast %cst_19 : f32 to vector<16x1xf32>
      %27 = arith.mulf %25, %26 : vector<16x1xf32>
      %28 = arith.mulf %22, %22 : vector<16x1xf32>
      %29 = arith.subf %27, %28 : vector<16x1xf32>
      %30 = vector.broadcast %22 : vector<16x1xf32> to vector<16x256xf32>
      %31 = arith.subf %18, %30 : vector<16x256xf32>
      %cst_20 = arith.constant 9.99999974E-6 : f32
      %32 = vector.broadcast %cst_20 : f32 to vector<16x1xf32>
      %33 = arith.addf %29, %32 : vector<16x1xf32>
      %34 = math.rsqrt %33 : vector<16x1xf32>
      %35 = vector.broadcast %34 : vector<16x1xf32> to vector<16x256xf32>
      %36 = arith.mulf %31, %35 : vector<16x256xf32>
      %c0_21 = arith.constant 0 : index
      %c0_22 = arith.constant 0 : index
      %37 = vector.load %arg6[%c0_21, %c0_22] : memref<1x256xf32, #tpu.memory_space<vmem>>, vector<1x256xf32>
      %38 = vector.broadcast %37 : vector<1x256xf32> to vector<16x256xf32>
      %39 = arith.mulf %36, %38 : vector<16x256xf32>
      %c0_23 = arith.constant 0 : index
      %c0_24 = arith.constant 0 : index
      %40 = vector.load %arg7[%c0_23, %c0_24] : memref<1x256xf32, #tpu.memory_space<vmem>>, vector<1x256xf32>
      %41 = vector.broadcast %40 : vector<1x256xf32> to vector<16x256xf32>
      %42 = arith.addf %39, %41 : vector<16x256xf32>
      %43 = arith.truncf %42 : vector<16x256xf32> to vector<16x256xbf16>
      %c0_25 = arith.constant 0 : index
      %c0_26 = arith.constant 0 : index
      %44 = vector.load %arg8[%c0_25, %c0_26] : memref<16x256xbf16, #tpu.memory_space<vmem>>, vector<16x256xbf16>
      tpu.vector_store %arg8[%c0_25, %c0_26], %43 {strides = array<i32>} : memref<16x256xbf16, #tpu.memory_space<vmem>>, vector<16x256xbf16>,
    } else {
    }
    return
  }
  func.func @transform_0(%arg0: i32, %arg1: i32) -> (i32, i32) {
    %c0_i32 = arith.constant 0 : i32
    return %arg0, %arg1 : i32, i32
  }
  func.func @transform_1(%arg0: i32, %arg1: i32) -> (i32, i32) {
    %c0_i32 = arith.constant 0 : i32
    %c0_i32_0 = arith.constant 0 : i32
    return %arg1, %c0_i32 : i32, i32
  }
  func.func @transform_2(%arg0: i32, %arg1: i32) -> (i32, i32) {
    %c0_i32 = arith.constant 0 : i32
    %c0_i32_0 = arith.constant 0 : i32
    %c0_i32_1 = arith.constant 0 : i32
    return %c0_i32, %c0_i32_0 : i32, i32
  }
  func.func @transform_3(%arg0: i32, %arg1: i32) -> (i32, i32) {
    %c0_i32 = arith.constant 0 : i32
    %c0_i32_0 = arith.constant 0 : i32
    return %arg0, %c0_i32 : i32, i32
  }
  func.func @transform_4(%arg0: i32, %arg1: i32) -> (i32, i32) {
    %c0_i32 = arith.constant 0 : i32
    %c0_i32_0 = arith.constant 0 : i32
    %c0_i32_1 = arith.constant 0 : i32
    return %c0_i32, %c0_i32_0 : i32, i32
  }
  func.func @transform_5(%arg0: i32, %arg1: i32) -> (i32, i32) {
    %c0_i32 = arith.constant 0 : i32
    %c0_i32_0 = arith.constant 0 : i32
    %c0_i32_1 = arith.constant 0 : i32
    return %c0_i32, %c0_i32_0 : i32, i32
  }
  func.func @transform_6(%arg0: i32, %arg1: i32) -> (i32, i32) {
    %c0_i32 = arith.constant 0 : i32
    %c0_i32_0 = arith.constant 0 : i32
    return %arg0, %c0_i32 : i32, i32
  }
}

module attributes {stable_mosaic.version = 11 : i64} {
  func.func @_matmul_kernel(%arg0: i32, %arg1: i32, %arg2: i32, %arg3: memref<16x256xbf16, #tpu.memory_space<vmem>>, %arg4: memref<256x512xbf16, #tpu.memory_space<vmem>>, %arg5: memref<1x512xf32, #tpu.memory_space<vmem>>, %arg6: memref<16x512xbf16, #tpu.memory_space<vmem>>, %arg7: memref<16x512xf32, #tpu.memory_space<vmem>>) attributes {dimension_semantics = [#tpu.dimension_semantics<parallel>, #tpu.dimension_semantics<parallel>, #tpu.dimension_semantics<arbitrary>], iteration_bounds = array<i64: 2, 1, 1>, scalar_prefetch = 0 : i64, scratch_operands = 1 : i64, tpu.core_type = #tpu.core_type<tc>, window_params = [{transform_indices = @transform_0, window_bounds = array<i64: 16, 256>}, {transform_indices = @transform_1, window_bounds = array<i64: 256, 512>}, {transform_indices = @transform_2, window_bounds = array<i64: 1, 512>}, {transform_indices = @transform_3, window_bounds = array<i64: 16, 512>}]} {
    %c0_i32 = arith.constant 0 : i32
    %0 = arith.cmpi eq, %arg2, %c0_i32 : i32
    %1 = arith.extui %0 : i1 to i32
    %c0_i32_0 = arith.constant 0 : i32
    %2 = arith.cmpi ne, %1, %c0_i32_0 : i32
    scf.if %2 {
      %cst_10 = arith.constant 0.000000e+00 : f32
      %12 = vector.broadcast %cst_10 : f32 to vector<16x512xf32>
      %c0_11 = arith.constant 0 : index
      %c0_12 = arith.constant 0 : index
      %13 = vector.load %arg7[%c0_11, %c0_12] : memref<16x512xf32, #tpu.memory_space<vmem>>, vector<16x512xf32>
      tpu.vector_store %arg7[%c0_11, %c0_12], %12 {strides = array<i32>} : memref<16x512xf32, #tpu.memory_space<vmem>>, vector<16x512xf32>,
    } else {
    }
    %c0 = arith.constant 0 : index
    %c0_1 = arith.constant 0 : index
    %3 = vector.load %arg7[%c0, %c0_1] : memref<16x512xf32, #tpu.memory_space<vmem>>, vector<16x512xf32>
    %c0_2 = arith.constant 0 : index
    %c0_3 = arith.constant 0 : index
    %4 = vector.load %arg3[%c0_2, %c0_3] : memref<16x256xbf16, #tpu.memory_space<vmem>>, vector<16x256xbf16>
    %c0_4 = arith.constant 0 : index
    %c0_5 = arith.constant 0 : index
    %5 = vector.load %arg4[%c0_4, %c0_5] : memref<256x512xbf16, #tpu.memory_space<vmem>>, vector<256x512xbf16>
    %cst = arith.constant dense<0.000000e+00> : vector<16x512xf32>
    %6 = tpu.matmul %4, %5, %cst {dimension_numbers = #tpu.dot_dimension_numbers<[1], [0], [0], [1], [0, 0, 1, 1], [], []>} : vector<16x256xbf16>, vector<256x512xbf16>, vector<16x512xf32> -> vector<16x512xf32>
    %7 = arith.addf %3, %6 : vector<16x512xf32>
    %c0_6 = arith.constant 0 : index
    %c0_7 = arith.constant 0 : index
    %8 = vector.load %arg7[%c0_6, %c0_7] : memref<16x512xf32, #tpu.memory_space<vmem>>, vector<16x512xf32>
    tpu.vector_store %arg7[%c0_6, %c0_7], %7 {strides = array<i32>} : memref<16x512xf32, #tpu.memory_space<vmem>>, vector<16x512xf32>,
    %c0_i32_8 = arith.constant 0 : i32
    %9 = arith.cmpi eq, %arg2, %c0_i32_8 : i32
    %10 = arith.extui %9 : i1 to i32
    %c0_i32_9 = arith.constant 0 : i32
    %11 = arith.cmpi ne, %10, %c0_i32_9 : i32
    scf.if %11 {
      %c0_10 = arith.constant 0 : index
      %c0_11 = arith.constant 0 : index
      %12 = vector.load %arg7[%c0_10, %c0_11] : memref<16x512xf32, #tpu.memory_space<vmem>>, vector<16x512xf32>
      %c0_12 = arith.constant 0 : index
      %c0_13 = arith.constant 0 : index
      %13 = vector.load %arg5[%c0_12, %c0_13] : memref<1x512xf32, #tpu.memory_space<vmem>>, vector<1x512xf32>
      %14 = vector.broadcast %13 : vector<1x512xf32> to vector<16x512xf32>
      %15 = arith.addf %12, %14 : vector<16x512xf32>
      %cst_14 = arith.constant 0.000000e+00 : f32
      %16 = vector.broadcast %cst_14 : f32 to vector<16x512xf32>
      %17 = arith.maximumf %15, %16 : vector<16x512xf32>
      %18 = arith.truncf %17 : vector<16x512xf32> to vector<16x512xbf16>
      %c0_15 = arith.constant 0 : index
      %c0_16 = arith.constant 0 : index
      %19 = vector.load %arg6[%c0_15, %c0_16] : memref<16x512xbf16, #tpu.memory_space<vmem>>, vector<16x512xbf16>
      tpu.vector_store %arg6[%c0_15, %c0_16], %18 {strides = array<i32>} : memref<16x512xbf16, #tpu.memory_space<vmem>>, vector<16x512xbf16>,
    } else {
    }
    return
  }
  func.func @transform_0(%arg0: i32, %arg1: i32, %arg2: i32) -> (i32, i32) {
    %c0_i32 = arith.constant 0 : i32
    return %arg0, %arg2 : i32, i32
  }
  func.func @transform_1(%arg0: i32, %arg1: i32, %arg2: i32) -> (i32, i32) {
    %c0_i32 = arith.constant 0 : i32
    return %arg2, %arg1 : i32, i32
  }
  func.func @transform_2(%arg0: i32, %arg1: i32, %arg2: i32) -> (i32, i32) {
    %c0_i32 = arith.constant 0 : i32
    %c0_i32_0 = arith.constant 0 : i32
    return %c0_i32, %arg1 : i32, i32
  }
  func.func @transform_3(%arg0: i32, %arg1: i32, %arg2: i32) -> (i32, i32) {
    %c0_i32 = arith.constant 0 : i32
    return %arg0, %arg1 : i32, i32
  }
}

module attributes {stable_mosaic.version = 11 : i64} {
  func.func @_matmul_kernel(%arg0: i32, %arg1: i32, %arg2: i32, %arg3: memref<16x256xbf16, #tpu.memory_space<vmem>>, %arg4: memref<256x512xbf16, #tpu.memory_space<vmem>>, %arg5: memref<1x512xf32, #tpu.memory_space<vmem>>, %arg6: memref<16x512xf32, #tpu.memory_space<vmem>>, %arg7: memref<16x512xf32, #tpu.memory_space<vmem>>) attributes {dimension_semantics = [#tpu.dimension_semantics<parallel>, #tpu.dimension_semantics<parallel>, #tpu.dimension_semantics<arbitrary>], iteration_bounds = array<i64: 2, 1, 1>, scalar_prefetch = 0 : i64, scratch_operands = 1 : i64, tpu.core_type = #tpu.core_type<tc>, window_params = [{transform_indices = @transform_0, window_bounds = array<i64: 16, 256>}, {transform_indices = @transform_1, window_bounds = array<i64: 256, 512>}, {transform_indices = @transform_2, window_bounds = array<i64: 1, 512>}, {transform_indices = @transform_3, window_bounds = array<i64: 16, 512>}]} {
    %c0_i32 = arith.constant 0 : i32
    %0 = arith.cmpi eq, %arg2, %c0_i32 : i32
    %1 = arith.extui %0 : i1 to i32
    %c0_i32_0 = arith.constant 0 : i32
    %2 = arith.cmpi ne, %1, %c0_i32_0 : i32
    scf.if %2 {
      %cst_10 = arith.constant 0.000000e+00 : f32
      %12 = vector.broadcast %cst_10 : f32 to vector<16x512xf32>
      %c0_11 = arith.constant 0 : index
      %c0_12 = arith.constant 0 : index
      %13 = vector.load %arg7[%c0_11, %c0_12] : memref<16x512xf32, #tpu.memory_space<vmem>>, vector<16x512xf32>
      tpu.vector_store %arg7[%c0_11, %c0_12], %12 {strides = array<i32>} : memref<16x512xf32, #tpu.memory_space<vmem>>, vector<16x512xf32>,
    } else {
    }
    %c0 = arith.constant 0 : index
    %c0_1 = arith.constant 0 : index
    %3 = vector.load %arg7[%c0, %c0_1] : memref<16x512xf32, #tpu.memory_space<vmem>>, vector<16x512xf32>
    %c0_2 = arith.constant 0 : index
    %c0_3 = arith.constant 0 : index
    %4 = vector.load %arg3[%c0_2, %c0_3] : memref<16x256xbf16, #tpu.memory_space<vmem>>, vector<16x256xbf16>
    %c0_4 = arith.constant 0 : index
    %c0_5 = arith.constant 0 : index
    %5 = vector.load %arg4[%c0_4, %c0_5] : memref<256x512xbf16, #tpu.memory_space<vmem>>, vector<256x512xbf16>
    %cst = arith.constant dense<0.000000e+00> : vector<16x512xf32>
    %6 = tpu.matmul %4, %5, %cst {dimension_numbers = #tpu.dot_dimension_numbers<[1], [0], [0], [1], [0, 0, 1, 1], [], []>} : vector<16x256xbf16>, vector<256x512xbf16>, vector<16x512xf32> -> vector<16x512xf32>
    %7 = arith.addf %3, %6 : vector<16x512xf32>
    %c0_6 = arith.constant 0 : index
    %c0_7 = arith.constant 0 : index
    %8 = vector.load %arg7[%c0_6, %c0_7] : memref<16x512xf32, #tpu.memory_space<vmem>>, vector<16x512xf32>
    tpu.vector_store %arg7[%c0_6, %c0_7], %7 {strides = array<i32>} : memref<16x512xf32, #tpu.memory_space<vmem>>, vector<16x512xf32>,
    %c0_i32_8 = arith.constant 0 : i32
    %9 = arith.cmpi eq, %arg2, %c0_i32_8 : i32
    %10 = arith.extui %9 : i1 to i32
    %c0_i32_9 = arith.constant 0 : i32
    %11 = arith.cmpi ne, %10, %c0_i32_9 : i32
    scf.if %11 {
      %c0_10 = arith.constant 0 : index
      %c0_11 = arith.constant 0 : index
      %12 = vector.load %arg7[%c0_10, %c0_11] : memref<16x512xf32, #tpu.memory_space<vmem>>, vector<16x512xf32>
      %c0_12 = arith.constant 0 : index
      %c0_13 = arith.constant 0 : index
      %13 = vector.load %arg5[%c0_12, %c0_13] : memref<1x512xf32, #tpu.memory_space<vmem>>, vector<1x512xf32>
      %14 = vector.broadcast %13 : vector<1x512xf32> to vector<16x512xf32>
      %15 = arith.addf %12, %14 : vector<16x512xf32>
      %c0_14 = arith.constant 0 : index
      %c0_15 = arith.constant 0 : index
      %16 = vector.load %arg6[%c0_14, %c0_15] : memref<16x512xf32, #tpu.memory_space<vmem>>, vector<16x512xf32>
      tpu.vector_store %arg6[%c0_14, %c0_15], %15 {strides = array<i32>} : memref<16x512xf32, #tpu.memory_space<vmem>>, vector<16x512xf32>,
    } else {
    }
    return
  }
  func.func @transform_0(%arg0: i32, %arg1: i32, %arg2: i32) -> (i32, i32) {
    %c0_i32 = arith.constant 0 : i32
    return %arg0, %arg2 : i32, i32
  }
  func.func @transform_1(%arg0: i32, %arg1: i32, %arg2: i32) -> (i32, i32) {
    %c0_i32 = arith.constant 0 : i32
    return %arg2, %arg1 : i32, i32
  }
  func.func @transform_2(%arg0: i32, %arg1: i32, %arg2: i32) -> (i32, i32) {
    %c0_i32 = arith.constant 0 : i32
    %c0_i32_0 = arith.constant 0 : i32
    return %c0_i32, %arg1 : i32, i32
  }
  func.func @transform_3(%arg0: i32, %arg1: i32, %arg2: i32) -> (i32, i32) {
    %c0_i32 = arith.constant 0 : i32
    return %arg0, %arg1 : i32, i32
  }
}

</mosaic_0001>

<llo_original>
// kernel: forward.20
$region0: #{forward.20}
  #allocation0 [shape = 'u32[]', space=smem, size = 0x4, offset = 0x4, fixed_abs, tag = 'smem constant byte address 0x4 - core index']
  #allocation1 [shape = 'u32[144,128]{1,0:T(1,128)}', space=vmem, size = 0x12000, scoped, tag = 'internal scratch']
  #allocation2 [shape = 'f32[16,1]{1,0:T(8,128)}', space=vmem, size = 0x2000, scoped, tag = 'scratch operand']
  #allocation3 [shape = 'f32[16,1]{1,0:T(8,128)}', space=vmem, size = 0x2000, scoped, tag = 'scratch operand']
  #allocation4 [shape = 'f32[16,128]{1,0:T(8,128)}', space=vmem, size = 0x2000, scoped, tag = 'scratch operand']
  %s0 = inlined_call_operand.vmem [shape: bf16[2,16,768], index: 0, kind: input, shape index: {}, may-alias: {0,1,2}]
  %s1 = inlined_call_operand.vmem [shape: bf16[2,16,768], index: 1, kind: input, shape index: {}, may-alias: {0,1,2}]
  %s2 = inlined_call_operand.vmem [shape: bf16[2,16,768], index: 2, kind: input, shape index: {}, may-alias: {0,1,2}]
  %s3 = inlined_call_operand.vmem [shape: bf16[2,16,256], index: 3, kind: output, shape index: {}]
  %s4 = sld [smem:[#allocation0]]
  $region213: #{forward.20} parent=0
    _
  %s6 = ssub.s32 1, %s4
  %s7 = scalar_select 0, %s6, %s4
  $region1: #{forward.20} parent=0
    #allocation5 [shape = 'u8[8192]{0}', space=vmem, size = 0x2000, scoped, tag = 'input window, operand 0']
    #allocation6 [shape = 'u8[8192]{0}', space=vmem, size = 0x2000, scoped, tag = 'input window, operand 1']
    #allocation7 [shape = 'u8[8192]{0}', space=vmem, size = 0x2000, scoped, tag = 'input window, operand 2']
    #allocation8 [shape = 'u8[8192]{0}', space=vmem, size = 0x2000, scoped, tag = 'output window, operand 0']
    loop: start=0, step=1, limit=6
    $region2: #{forward.20} parent=1 // loop_pre_header
      _
    $region3: #{forward.20} parent=1 // loop_header
      %s9 = sphi 0, %s13
      %p10 = scmp.ge.s32.totalorder %s9, 6
      %s16 = sphi 0, %s35
      %s17 = sphi 0, %s31
      %s18 = sphi 0, %s27
      %s19 = sphi 0, %s16
      %s20 = sphi 0, %s17
      %s21 = sphi 0, %s18
      %s22 = sphi 0, %s19
      %s23 = sphi 0, %s20
      %s24 = sphi 0, %s21
      %s40 = sphi 0, %s42
      %s43 = sphi 0, %s40
      %s44 = sphi 0, %s43
      %s60 = sphi 0, %s44
      %s72 = sphi 0, %s74
      %s75 = sphi 0, %s72
      %s76 = sphi 0, %s75
      %s92 = sphi 0, %s76
      %s104 = sphi 0, %s106
      %s107 = sphi 0, %s104
      %s108 = sphi 0, %s107
      %s124 = sphi 0, %s108
      %s132 = sphi 0, %s134
      %s135 = sphi 0, %s132
      %s136 = sphi 0, %s135
      %s152 = sphi 0, %s136
    $region4: #{forward.20} parent=1 // loop_header_branch
      %12 = sbr.rel (%p10) target = $region8
    $region5: #{forward.20} parent=1 // loop_body
      %s14 = ssub.s32 %s9, 1
      %s15 = ssub.s32 %s9, 2
      %s25 = sadd.s32 1, %s18
      %p26 = scmp.ge.s32.totalorder %s25, 1
      %s27 = scalar_select %p26, 0, %s25
      %s28 = sadd.s32 1, %s17
      %s29 = scalar_select %p26, %s28, %s17
      %p30 = scmp.ge.s32.totalorder %s29, 2
      %s31 = scalar_select %p30, 0, %s29
      %s32 = sadd.s32 1, %s16
      %s33 = scalar_select %p30, %s32, %s16
      %p34 = scmp.ge.s32.totalorder %s33, 2
      %s35 = scalar_select %p34, 0, %s33
      %s36 = ssub.s32 %s16, %s35
      %s37 = ssub.s32 %s17, %s31
      %s38 = sor.u32 %s36, %s37
      %p39 = scmp.eq.s32.totalorder %s38, 0
      %s41 = sadd.s32 %s40, 1
      %s42 = scalar_select %p39, %s40, %s41
      %p45 = pneg %p39
      %p46 = scmp.eq.s32.totalorder %s9, 3
      %p47 = por %p45, %p46
      %p48 = scmp.ne.s32.totalorder %s40, %s43
      %p49 = scmp.eq.s32.totalorder %s9, 0
      %p50 = por %p48, %p49
      %p51 = scmp.ne.s32.totalorder %s40, %s43
      %p52 = scmp.eq.s32.totalorder %s14, 3
      %p53 = por %p51, %p52
      %p54 = scmp.ne.s32.totalorder %s43, %s44
      %p55 = scmp.eq.s32.totalorder %s14, 0
      %p56 = por %p54, %p55
      %p57 = scmp.ne.s32.totalorder %s43, %s44
      %p58 = scmp.eq.s32.totalorder %s15, 3
      %p59 = por %p57, %p58
      %p61 = scmp.ne.s32.totalorder %s44, %s60
      %p62 = scmp.eq.s32.totalorder %s15, 0
      %p63 = por %p61, %p62
      %s64 = sadd.s32 %s17, 2
      %s65 = sadd.s32 %s31, 2
      %s66 = ssub.s32 %s16, %s35
      %s67 = ssub.s32 %s18, %s27
      %s68 = sor.u32 %s66, %s67
      %s69 = ssub.s32 %s64, %s65
      %s70 = sor.u32 %s68, %s69
      %p71 = scmp.eq.s32.totalorder %s70, 0
      %s73 = sadd.s32 %s72, 1
      %s74 = scalar_select %p71, %s72, %s73
      %p77 = pneg %p71
      %p78 = scmp.eq.s32.totalorder %s9, 3
      %p79 = por %p77, %p78
      %p80 = scmp.ne.s32.totalorder %s72, %s75
      %p81 = scmp.eq.s32.totalorder %s9, 0
      %p82 = por %p80, %p81
      %p83 = scmp.ne.s32.totalorder %s72, %s75
      %p84 = scmp.eq.s32.totalorder %s14, 3
      %p85 = por %p83, %p84
      %p86 = scmp.ne.s32.totalorder %s75, %s76
      %p87 = scmp.eq.s32.totalorder %s14, 0
      %p88 = por %p86, %p87
      %p89 = scmp.ne.s32.totalorder %s75, %s76
      %p90 = scmp.eq.s32.totalorder %s15, 3
      %p91 = por %p89, %p90
      %p93 = scmp.ne.s32.totalorder %s76, %s92
      %p94 = scmp.eq.s32.totalorder %s15, 0
      %p95 = por %p93, %p94
      %s96 = sadd.s32 %s17, 4
      %s97 = sadd.s32 %s31, 4
      %s98 = ssub.s32 %s16, %s35
      %s99 = ssub.s32 %s18, %s27
      %s100 = sor.u32 %s98, %s99
      %s101 = ssub.s32 %s96, %s97
      %s102 = sor.u32 %s100, %s101
      %p103 = scmp.eq.s32.totalorder %s102, 0
      %s105 = sadd.s32 %s104, 1
      %s106 = scalar_select %p103, %s104, %s105
      %p109 = pneg %p103
      %p110 = scmp.eq.s32.totalorder %s9, 3
      %p111 = por %p109, %p110
      %p112 = scmp.ne.s32.totalorder %s104, %s107
      %p113 = scmp.eq.s32.totalorder %s9, 0
      %p114 = por %p112, %p113
      %p115 = scmp.ne.s32.totalorder %s104, %s107
      %p116 = scmp.eq.s32.totalorder %s14, 3
      %p117 = por %p115, %p116
      %p118 = scmp.ne.s32.totalorder %s107, %s108
      %p119 = scmp.eq.s32.totalorder %s14, 0
      %p120 = por %p118, %p119
      %p121 = scmp.ne.s32.totalorder %s107, %s108
      %p122 = scmp.eq.s32.totalorder %s15, 3
      %p123 = por %p121, %p122
      %p125 = scmp.ne.s32.totalorder %s108, %s124
      %p126 = scmp.eq.s32.totalorder %s15, 0
      %p127 = por %p125, %p126
      %s128 = ssub.s32 %s16, %s35
      %s129 = ssub.s32 %s17, %s31
      %s130 = sor.u32 %s128, %s129
      %p131 = scmp.eq.s32.totalorder %s130, 0
      %s133 = sadd.s32 %s132, 1
      %s134 = scalar_select %p131, %s132, %s133
      %p137 = pneg %p131
      %p138 = scmp.eq.s32.totalorder %s9, 3
      %p139 = por %p137, %p138
      %p140 = scmp.ne.s32.totalorder %s132, %s135
      %p141 = scmp.eq.s32.totalorder %s9, 0
      %p142 = por %p140, %p141
      %p143 = scmp.ne.s32.totalorder %s132, %s135
      %p144 = scmp.eq.s32.totalorder %s14, 3
      %p145 = por %p143, %p144
      %p146 = scmp.ne.s32.totalorder %s135, %s136
      %p147 = scmp.eq.s32.totalorder %s14, 0
      %p148 = por %p146, %p147
      %p149 = scmp.ne.s32.totalorder %s135, %s136
      %p150 = scmp.eq.s32.totalorder %s15, 3
      %p151 = por %p149, %p150
      %p153 = scmp.ne.s32.totalorder %s136, %s152
      %p154 = scmp.eq.s32.totalorder %s15, 0
      %p155 = por %p153, %p154
      %p156 = scmp.le.s32.totalorder 1, %s9
      %p157 = scmp.lt.s32.totalorder %s9, 5
      %p158 = pnand %p156, %p157
      %p159 = pneg %p158
      // Predicated region
      $region9: #{forward.20} parent=5 // pred_check
        _
      $region10: #{forward.20} parent=5 // pred_check_branch
        %161 = sbr.rel (%p158) target = $region12
      $region11: #{forward.20} parent=5 // pred_region
        %s162 = ssub.s32 %s9, 1
      $region12: #{forward.20} parent=5 // pred_fallthru
        _
      %p163 = scmp.lt.s32.totalorder %s9, 4
      // Predicated region
      $region13: #{forward.20} parent=5 // pred_check
        %p164 = pneg %p163
      $region14: #{forward.20} parent=5 // pred_check_branch
        %166 = sbr.rel (%p164) target = $region16
      $region15: #{forward.20} parent=5 // pred_region
        // Predicated region
        $region17: #{forward.20} parent=15 // pred_check
          %p167 = pneg %p50
        $region18: #{forward.20} parent=15 // pred_check_branch
          %169 = sbr.rel (%p167) target = $region20
        $region19: #{forward.20} parent=15 // pred_region
          %s170 = sand.u32 %s40, 1
          %s171 = sand.u32 %s40, 1
          %s172 = smul.addr %s171, 8
          %s173 = scalar_lea.vmem [#allocation5], %s172
          %s174 = smul.addr %s16, 12
          %s175 = sadd.s32 %s17, %s174
          %s176 = smul.addr %s175, 4
          %s177 = scalar_lea.vmem %s0, %s176
          // Predicated region
          $region21: #{forward.20} parent=19 // pred_check
            _
          $region22: #{forward.20} parent=19 // pred_check_branch
            %179 = sbr.rel (0) target = $region24
          $region23: #{forward.20} parent=19 // pred_region
            // Predicated region
            $region25: #{forward.20} parent=23 // pred_check
              _
            $region26: #{forward.20} parent=23 // pred_check_branch
              %181 = sbr.rel target = $region28
            $region27: #{forward.20} parent=23 // pred_region
              // Predicated region
              $region40: #{forward.20} parent=27 // pred_check
                _
              $region41: #{forward.20} parent=27 // pred_check_branch
                %198 = sbr.rel (0) target = $region43
              $region42: #{forward.20} parent=27 // pred_region
                loop: start=0, step=1, limit=1
                $region44: #{forward.20} parent=42 // loop_pre_header
                  _
                $region45: #{forward.20} parent=42 // loop_header
                  %s200 = sphi 0, %s204
                  %p201 = scmp.ge.s32.totalorder %s200, 1
                  %s205 = sphi %s177, %s177
                  %s206 = sphi %s173, %s173
                $region46: #{forward.20} parent=42 // loop_header_branch
                  %203 = sbr.rel (%p201) target = $region50
                $region47: #{forward.20} parent=42 // loop_body
                  _
                $region48: #{forward.20} parent=42 // loop_footer
                  %s204 = sadd.s32 1, %s200
                $region49: #{forward.20} parent=42 // loop_footer_branch
                  %199 = sbr.rel target = $region45
                $region50: #{forward.20} parent=42 // loop_exit
                  _
                loop: start=0, step=1, limit=1
                $region51: #{forward.20} parent=42 // loop_pre_header
                  _
                $region52: #{forward.20} parent=42 // loop_header
                  %s209 = sphi 0, %s213
                  %p210 = scmp.ge.s32.totalorder %s209, 1
                  %s214 = sphi %s177, %s177
                  %s215 = sphi %s173, %s173
                $region53: #{forward.20} parent=42 // loop_header_branch
                  %212 = sbr.rel (%p210) target = $region57
                $region54: #{forward.20} parent=42 // loop_body
                  %v216 = vld [vmem:[%s214] sm:$0xf]
                  %217 = vst [vmem:[%s215] sm:$0xf] %v216
                  %v218 = vld [vmem:[%s214 + $0x18] sm:$0xf]
                  %219 = vst [vmem:[%s215 + $0x4] sm:$0xf] %v218
                $region55: #{forward.20} parent=42 // loop_footer
                  %s213 = sadd.s32 1, %s209
                $region56: #{forward.20} parent=42 // loop_footer_branch
                  %208 = sbr.rel target = $region52
                $region57: #{forward.20} parent=42 // loop_exit
                  _
              $region43: #{forward.20} parent=27 // pred_fallthru
                _
            $region28: #{forward.20} parent=23 // pred_fallthru
              _
            // Predicated region
            $region29: #{forward.20} parent=23 // pred_check
              _
            $region30: #{forward.20} parent=23 // pred_check_branch
              %183 = sbr.rel (0) target = $region32
            $region31: #{forward.20} parent=23 // pred_region
              loop: start=0, step=1, limit=1
              $region33: #{forward.20} parent=31 // loop_pre_header
                _
              $region34: #{forward.20} parent=31 // loop_header
                %s186 = sphi 0, %s190
                %p187 = scmp.ge.s32.totalorder %s186, 1
                %s191 = sphi %s177, %s177
                %s192 = sphi %s173, %s173
              $region35: #{forward.20} parent=31 // loop_header_branch
                %189 = sbr.rel (%p187) target = $region39
              $region36: #{forward.20} parent=31 // loop_body
                %v193 = vld [vmem:[%s191] sm:$0xf]
                %194 = vst [vmem:[%s192] sm:$0xf] %v193
                %v195 = vld [vmem:[%s191 + $0x18] sm:$0xf]
                %196 = vst [vmem:[%s192 + $0x4] sm:$0xf] %v195
              $region37: #{forward.20} parent=31 // loop_footer
                %s190 = sadd.s32 1, %s186
              $region38: #{forward.20} parent=31 // loop_footer_branch
                %185 = sbr.rel target = $region34
              $region39: #{forward.20} parent=31 // loop_exit
                _
            $region32: #{forward.20} parent=23 // pred_fallthru
              _
          $region24: #{forward.20} parent=19 // pred_fallthru
            _
          %220 = vnop
        $region20: #{forward.20} parent=15 // pred_fallthru
          _
        // Predicated region
        $region58: #{forward.20} parent=15 // pred_check
          %p221 = pneg %p82
        $region59: #{forward.20} parent=15 // pred_check_branch
          %223 = sbr.rel (%p221) target = $region61
        $region60: #{forward.20} parent=15 // pred_region
          %s224 = sand.u32 %s72, 1
          %s225 = sand.u32 %s72, 1
          %s226 = smul.addr %s225, 8
          %s227 = scalar_lea.vmem [#allocation6], %s226
          %s228 = sadd.s32 %s17, 2
          %s229 = smul.u32 2, %s18
          %s230 = smul.addr %s229, 6
          %s231 = sadd.s32 %s228, %s230
          %s232 = smul.addr %s16, 12
          %s233 = sadd.s32 %s231, %s232
          %s234 = smul.addr %s233, 4
          %s235 = scalar_lea.vmem %s1, %s234
          // Predicated region
          $region62: #{forward.20} parent=60 // pred_check
            _
          $region63: #{forward.20} parent=60 // pred_check_branch
            %237 = sbr.rel (0) target = $region65
          $region64: #{forward.20} parent=60 // pred_region
            // Predicated region
            $region66: #{forward.20} parent=64 // pred_check
              _
            $region67: #{forward.20} parent=64 // pred_check_branch
              %239 = sbr.rel target = $region69
            $region68: #{forward.20} parent=64 // pred_region
              // Predicated region
              $region81: #{forward.20} parent=68 // pred_check
                _
              $region82: #{forward.20} parent=68 // pred_check_branch
                %256 = sbr.rel (0) target = $region84
              $region83: #{forward.20} parent=68 // pred_region
                loop: start=0, step=1, limit=1
                $region85: #{forward.20} parent=83 // loop_pre_header
                  _
                $region86: #{forward.20} parent=83 // loop_header
                  %s258 = sphi 0, %s262
                  %p259 = scmp.ge.s32.totalorder %s258, 1
                  %s263 = sphi %s235, %s235
                  %s264 = sphi %s227, %s227
                $region87: #{forward.20} parent=83 // loop_header_branch
                  %261 = sbr.rel (%p259) target = $region91
                $region88: #{forward.20} parent=83 // loop_body
                  _
                $region89: #{forward.20} parent=83 // loop_footer
                  %s262 = sadd.s32 1, %s258
                $region90: #{forward.20} parent=83 // loop_footer_branch
                  %257 = sbr.rel target = $region86
                $region91: #{forward.20} parent=83 // loop_exit
                  _
                loop: start=0, step=1, limit=1
                $region92: #{forward.20} parent=83 // loop_pre_header
                  _
                $region93: #{forward.20} parent=83 // loop_header
                  %s267 = sphi 0, %s271
                  %p268 = scmp.ge.s32.totalorder %s267, 1
                  %s272 = sphi %s235, %s235
                  %s273 = sphi %s227, %s227
                $region94: #{forward.20} parent=83 // loop_header_branch
                  %270 = sbr.rel (%p268) target = $region98
                $region95: #{forward.20} parent=83 // loop_body
                  %v274 = vld [vmem:[%s272] sm:$0xf]
                  %275 = vst [vmem:[%s273] sm:$0xf] %v274
                  %v276 = vld [vmem:[%s272 + $0x18] sm:$0xf]
                  %277 = vst [vmem:[%s273 + $0x4] sm:$0xf] %v276
                $region96: #{forward.20} parent=83 // loop_footer
                  %s271 = sadd.s32 1, %s267
                $region97: #{forward.20} parent=83 // loop_footer_branch
                  %266 = sbr.rel target = $region93
                $region98: #{forward.20} parent=83 // loop_exit
                  _
              $region84: #{forward.20} parent=68 // pred_fallthru
                _
            $region69: #{forward.20} parent=64 // pred_fallthru
              _
            // Predicated region
            $region70: #{forward.20} parent=64 // pred_check
              _
            $region71: #{forward.20} parent=64 // pred_check_branch
              %241 = sbr.rel (0) target = $region73
            $region72: #{forward.20} parent=64 // pred_region
              loop: start=0, step=1, limit=1
              $region74: #{forward.20} parent=72 // loop_pre_header
                _
              $region75: #{forward.20} parent=72 // loop_header
                %s244 = sphi 0, %s248
                %p245 = scmp.ge.s32.totalorder %s244, 1
                %s249 = sphi %s235, %s235
                %s250 = sphi %s227, %s227
              $region76: #{forward.20} parent=72 // loop_header_branch
                %247 = sbr.rel (%p245) target = $region80
              $region77: #{forward.20} parent=72 // loop_body
                %v251 = vld [vmem:[%s249] sm:$0xf]
                %252 = vst [vmem:[%s250] sm:$0xf] %v251
                %v253 = vld [vmem:[%s249 + $0x18] sm:$0xf]
                %254 = vst [vmem:[%s250 + $0x4] sm:$0xf] %v253
              $region78: #{forward.20} parent=72 // loop_footer
                %s248 = sadd.s32 1, %s244
              $region79: #{forward.20} parent=72 // loop_footer_branch
                %243 = sbr.rel target = $region75
              $region80: #{forward.20} parent=72 // loop_exit
                _
            $region73: #{forward.20} parent=64 // pred_fallthru
              _
          $region65: #{forward.20} parent=60 // pred_fallthru
            _
          %278 = vnop
        $region61: #{forward.20} parent=15 // pred_fallthru
          _
        // Predicated region
        $region99: #{forward.20} parent=15 // pred_check
          %p279 = pneg %p114
        $region100: #{forward.20} parent=15 // pred_check_branch
          %281 = sbr.rel (%p279) target = $region102
        $region101: #{forward.20} parent=15 // pred_region
          %s282 = sand.u32 %s104, 1
          %s283 = sand.u32 %s104, 1
          %s284 = smul.addr %s283, 8
          %s285 = scalar_lea.vmem [#allocation7], %s284
          %s286 = sadd.s32 %s17, 4
          %s287 = smul.u32 2, %s18
          %s288 = smul.addr %s287, 6
          %s289 = sadd.s32 %s286, %s288
          %s290 = smul.addr %s16, 12
          %s291 = sadd.s32 %s289, %s290
          %s292 = smul.addr %s291, 4
          %s293 = scalar_lea.vmem %s2, %s292
          // Predicated region
          $region103: #{forward.20} parent=101 // pred_check
            _
          $region104: #{forward.20} parent=101 // pred_check_branch
            %295 = sbr.rel (0) target = $region106
          $region105: #{forward.20} parent=101 // pred_region
            // Predicated region
            $region107: #{forward.20} parent=105 // pred_check
              _
            $region108: #{forward.20} parent=105 // pred_check_branch
              %297 = sbr.rel target = $region110
            $region109: #{forward.20} parent=105 // pred_region
              // Predicated region
              $region122: #{forward.20} parent=109 // pred_check
                _
              $region123: #{forward.20} parent=109 // pred_check_branch
                %314 = sbr.rel (0) target = $region125
              $region124: #{forward.20} parent=109 // pred_region
                loop: start=0, step=1, limit=1
                $region126: #{forward.20} parent=124 // loop_pre_header
                  _
                $region127: #{forward.20} parent=124 // loop_header
                  %s316 = sphi 0, %s320
                  %p317 = scmp.ge.s32.totalorder %s316, 1
                  %s321 = sphi %s293, %s293
                  %s322 = sphi %s285, %s285
                $region128: #{forward.20} parent=124 // loop_header_branch
                  %319 = sbr.rel (%p317) target = $region132
                $region129: #{forward.20} parent=124 // loop_body
                  _
                $region130: #{forward.20} parent=124 // loop_footer
                  %s320 = sadd.s32 1, %s316
                $region131: #{forward.20} parent=124 // loop_footer_branch
                  %315 = sbr.rel target = $region127
                $region132: #{forward.20} parent=124 // loop_exit
                  _
                loop: start=0, step=1, limit=1
                $region133: #{forward.20} parent=124 // loop_pre_header
                  _
                $region134: #{forward.20} parent=124 // loop_header
                  %s325 = sphi 0, %s329
                  %p326 = scmp.ge.s32.totalorder %s325, 1
                  %s330 = sphi %s293, %s293
                  %s331 = sphi %s285, %s285
                $region135: #{forward.20} parent=124 // loop_header_branch
                  %328 = sbr.rel (%p326) target = $region139
                $region136: #{forward.20} parent=124 // loop_body
                  %v332 = vld [vmem:[%s330] sm:$0xf]
                  %333 = vst [vmem:[%s331] sm:$0xf] %v332
                  %v334 = vld [vmem:[%s330 + $0x18] sm:$0xf]
                  %335 = vst [vmem:[%s331 + $0x4] sm:$0xf] %v334
                $region137: #{forward.20} parent=124 // loop_footer
                  %s329 = sadd.s32 1, %s325
                $region138: #{forward.20} parent=124 // loop_footer_branch
                  %324 = sbr.rel target = $region134
                $region139: #{forward.20} parent=124 // loop_exit
                  _
              $region125: #{forward.20} parent=109 // pred_fallthru
                _
            $region110: #{forward.20} parent=105 // pred_fallthru
              _
            // Predicated region
            $region111: #{forward.20} parent=105 // pred_check
              _
            $region112: #{forward.20} parent=105 // pred_check_branch
              %299 = sbr.rel (0) target = $region114
            $region113: #{forward.20} parent=105 // pred_region
              loop: start=0, step=1, limit=1
              $region115: #{forward.20} parent=113 // loop_pre_header
                _
              $region116: #{forward.20} parent=113 // loop_header
                %s302 = sphi 0, %s306
                %p303 = scmp.ge.s32.totalorder %s302, 1
                %s307 = sphi %s293, %s293
                %s308 = sphi %s285, %s285
              $region117: #{forward.20} parent=113 // loop_header_branch
                %305 = sbr.rel (%p303) target = $region121
              $region118: #{forward.20} parent=113 // loop_body
                %v309 = vld [vmem:[%s307] sm:$0xf]
                %310 = vst [vmem:[%s308] sm:$0xf] %v309
                %v311 = vld [vmem:[%s307 + $0x18] sm:$0xf]
                %312 = vst [vmem:[%s308 + $0x4] sm:$0xf] %v311
              $region119: #{forward.20} parent=113 // loop_footer
                %s306 = sadd.s32 1, %s302
              $region120: #{forward.20} parent=113 // loop_footer_branch
                %301 = sbr.rel target = $region116
              $region121: #{forward.20} parent=113 // loop_exit
                _
            $region114: #{forward.20} parent=105 // pred_fallthru
              _
          $region106: #{forward.20} parent=101 // pred_fallthru
            _
          %336 = vnop
        $region102: #{forward.20} parent=15 // pred_fallthru
          _
      $region16: #{forward.20} parent=5 // pred_fallthru
        _
      %p337 = scmp.le.s32.totalorder 1, %s9
      %p338 = scmp.lt.s32.totalorder %s9, 5
      %p339 = pnand %p337, %p338
      %p340 = pneg %p339
      // Predicated region
      $region140: #{forward.20} parent=5 // pred_check
        _
      $region141: #{forward.20} parent=5 // pred_check_branch
        %342 = sbr.rel (%p339) target = $region143
      $region142: #{forward.20} parent=5 // pred_region
        %s343 = ssub.s32 %s9, 1
        %s344 = sand.u32 %s43, 1
        %s345 = sand.u32 %s43, 1
        %s346 = smul.addr %s345, 8
        %s347 = scalar_lea.vmem [#allocation5], %s346
        // Predicated region
        $region144: #{forward.20} parent=142 // pred_check
          %p348 = pneg %p56
        $region145: #{forward.20} parent=142 // pred_check_branch
          %350 = sbr.rel (%p348) target = $region147
        $region146: #{forward.20} parent=142 // pred_region
          _
        $region147: #{forward.20} parent=142 // pred_fallthru
          _
        %s351 = sand.u32 %s75, 1
        %s352 = sand.u32 %s75, 1
        %s353 = smul.addr %s352, 8
        %s354 = scalar_lea.vmem [#allocation6], %s353
        // Predicated region
        $region148: #{forward.20} parent=142 // pred_check
          %p355 = pneg %p88
        $region149: #{forward.20} parent=142 // pred_check_branch
          %357 = sbr.rel (%p355) target = $region151
        $region150: #{forward.20} parent=142 // pred_region
          _
        $region151: #{forward.20} parent=142 // pred_fallthru
          _
        %s358 = sand.u32 %s107, 1
        %s359 = sand.u32 %s107, 1
        %s360 = smul.addr %s359, 8
        %s361 = scalar_lea.vmem [#allocation7], %s360
        // Predicated region
        $region152: #{forward.20} parent=142 // pred_check
          %p362 = pneg %p120
        $region153: #{forward.20} parent=142 // pred_check_branch
          %364 = sbr.rel (%p362) target = $region155
        $region154: #{forward.20} parent=142 // pred_region
          _
        $region155: #{forward.20} parent=142 // pred_fallthru
          _
        %s365 = sand.u32 %s43, 1
        %s366 = sand.u32 %s43, 1
        %s367 = smul.addr %s366, 8
        %s368 = scalar_lea.vmem [#allocation5], %s367
        %p369 = pneg %p56
        %p370 = pneg %p53
        %s371 = sand.u32 %s75, 1
        %s372 = sand.u32 %s75, 1
        %s373 = smul.addr %s372, 8
        %s374 = scalar_lea.vmem [#allocation6], %s373
        %p375 = pneg %p88
        %p376 = pneg %p85
        %s377 = sand.u32 %s107, 1
        %s378 = sand.u32 %s107, 1
        %s379 = smul.addr %s378, 8
        %s380 = scalar_lea.vmem [#allocation7], %s379
        %p381 = pneg %p120
        %p382 = pneg %p117
        %p383 = pneg %p148
        %p384 = pneg %p145
        %s385 = sand.u32 %s135, 1
        %s386 = sand.u32 %s135, 1
        %s387 = smul.addr %s386, 8
        %s388 = scalar_lea.vmem [#allocation8], %s387
        %s389 = sadd.s32 %s20, 2
        %s390 = smul.u32 2, %s21
        %s391 = sadd.s32 %s20, 4
        %s392 = smul.u32 2, %s21
        %p394 = scmp.eq.s32.totalorder %s21, 0
        // Predicated region
        $region156: #{forward.20} parent=142 // pred_check
          %p395 = pneg %p394
        $region157: #{forward.20} parent=142 // pred_check_branch
          %397 = sbr.rel (%p395) target = $region159
        $region158: #{forward.20} parent=142 // pred_region
          %vm398 = vcmask 7168
          %399 = vst.msk [vmem:[#allocation2] sm:$0xff] %vm398, -inf
          %400 = vst.msk [vmem:[#allocation2 + $0x8] sm:$0xff] %vm398, -inf
          %401 = vst.msk [vmem:[#allocation3] sm:$0xff] %vm398, 0.0
          %402 = vst.msk [vmem:[#allocation3 + $0x8] sm:$0xff] %vm398, 0.0
          %403 = vst [vmem:[#allocation4] sm:$0xff] 0.0
          %404 = vst [vmem:[#allocation4 + $0x8] sm:$0xff] 0.0
        $region159: #{forward.20} parent=142 // pred_fallthru
          _
        %v405 = vld [vmem:[%s347] sm:$0xf]
        %v406 = vld [vmem:[%s347 + $0x4] sm:$0xf]
        %v407 = vld [vmem:[%s354] sm:$0xf]
        %v408 = vld [vmem:[%s354 + $0x4] sm:$0xf]
        %v409 = vld [vmem:[%s361] sm:$0xf]
        %v410 = vld [vmem:[%s361 + $0x4] sm:$0xf]
        %v413 = vunpack.c.l.b16 %v405
        %v414 = vunpack.c.l.b16 %v406
        %v415 = vpack.c.b16 %v414, %v413
        %v419 = vunpack.c.l.b16 %v407
        %v420 = vunpack.c.l.b16 %v408
        %v421 = vpack.c.b16 %v420, %v419
        %423 = vmatprep.subr.bf16.mxu0 0
        %424 = vmatpush1.bf16.xpose.msra.mxu0 %v421
        %425 = vmatprep.subr.bf16.mxu0 0
        %426 = vmatpush1.bf16.xpose.msra.mxu0 0
        %427 = vmatprep.subr.bf16.mxu0 0
        %428 = vmatpush1.bf16.xpose.msra.mxu0 0
        %429 = vmatprep.subr.bf16.mxu0 0
        %430 = vmatpush1.bf16.xpose.msra.mxu0 0
        %431 = vmatprep.subr.bf16.mxu0 0
        %432 = vmatpush1.bf16.xpose.msra.mxu0 0
        %433 = vmatprep.subr.bf16.mxu0 0
        %434 = vmatpush1.bf16.xpose.msra.mxu0 0
        %435 = vmatprep.subr.bf16.mxu0 0
        %436 = vmatpush1.bf16.xpose.msra.mxu0 0
        %437 = vmatprep.subr.bf16.mxu0 0
        %438 = vmatpush1.bf16.xpose.msra.mxu0 0
        %439 = vmatprep.subr.bf16.mxu0 0
        %440 = vmatpush1.bf16.xpose.msra.mxu0 0
        %441 = vmatprep.subr.bf16.mxu0 0
        %442 = vmatpush1.bf16.xpose.msra.mxu0 0
        %443 = vmatprep.subr.bf16.mxu0 0
        %444 = vmatpush1.bf16.xpose.msra.mxu0 0
        %445 = vmatprep.subr.bf16.mxu0 0
        %446 = vmatpush1.bf16.xpose.msra.mxu0 0
        %447 = vmatprep.subr.bf16.mxu0 0
        %448 = vmatpush1.bf16.xpose.msra.mxu0 0
        %449 = vmatprep.subr.bf16.mxu0 0
        %450 = vmatpush1.bf16.xpose.msra.mxu0 0
        %451 = vmatprep.subr.bf16.mxu0 0
        %452 = vmatpush1.bf16.xpose.msra.mxu0 0
        %453 = vmatprep.subr.bf16.mxu0 0
        %454 = vmatpush1.bf16.xpose.msra.mxu0 0
        %455 = vmatprep.mubr.bf16.mxu0 0
        %456 = vmatmul.mubr.bf16.gmra.mrb[0].mxu0 %v415
        %v457 = vpop.f32.mrb[0].mxu0
        %v458 = vadd.f32 0.0, %v457
        %v459 = vpop.f32.mrb[0].mxu0
        %v460 = vpop.f32.mrb[0].mxu0
        %v461 = vadd.f32 0.0, %v460
        %v462 = vpop.f32.mrb[0].mxu0
        %463 = vdwg.mxu0
        %v464 = vld [vmem:[#allocation2] sm:$0xff]
        %v465 = vld [vmem:[#allocation2 + $0x8] sm:$0xff]
        %vm466 = vcmask 130048
        %v467 = vsel %vm466, %v458, -inf
        %468 = vmax.xlane.f32.xlu0 %v467
        %v469 = vpop.xlane.xlu0 %468
        %v470 = vsel %vm466, %v461, -inf
        %471 = vmax.xlane.f32.xlu0 %v470
        %v472 = vpop.xlane.xlu0 %471
        %v473 = vmax.f32 %v464, %v469
        %v474 = vmax.f32 %v465, %v472
        %v475 = vsub.f32 %v464, %v473
        %v476 = vsub.f32 %v465, %v474
        %v477 = vmul.f32 %v475, 1.442695
        %v478 = vpow.pop %v477
        %v479 = vmul.f32 %v476, 1.442695
        %v480 = vpow.pop %v479
        %482 = vset.pattern.permute.xlu0 0
        %483 = vperm.xlu0 %482, %v473
        %v484 = vpop.permute.xlu0 %483
        %487 = vset.pattern.permute.xlu0 0
        %488 = vperm.xlu0 %487, %v474
        %v489 = vpop.permute.xlu0 %488
        %v491 = vsub.f32 %v458, %v484
        %v492 = vsub.f32 %v461, %v489
        %v493 = vmul.f32 %v491, 1.442695
        %v494 = vpow.pop %v493
        %v495 = vmul.f32 %v492, 1.442695
        %v496 = vpow.pop %v495
        %v497 = vld [vmem:[#allocation3] sm:$0xff]
        %v498 = vld [vmem:[#allocation3 + $0x8] sm:$0xff]
        %v499 = vmul.f32 %v478, %v497
        %v500 = vmul.f32 %v480, %v498
        %v501 = vsel %vm466, %v494, 0.0
        %502 = vadd.xlane.f32.xlu0 %v501
        %v503 = vpop.xlane.xlu0 %502
        %v504 = vsel %vm466, %v496, 0.0
        %505 = vadd.xlane.f32.xlu0 %v504
        %v506 = vpop.xlane.xlu0 %505
        %v507 = vadd.f32 %v499, %v503
        %v508 = vadd.f32 %v500, %v506
        %vm509 = vcmask 7168
        %510 = vst.msk [vmem:[#allocation3] sm:$0xff] %vm509, %v507
        %511 = vst.msk [vmem:[#allocation3 + $0x8] sm:$0xff] %vm509, %v508
        %v512 = vld [vmem:[#allocation4] sm:$0xff]
        %v513 = vld [vmem:[#allocation4 + $0x8] sm:$0xff]
        %515 = vset.pattern.permute.xlu0 0
        %516 = vperm.xlu0 %515, %v478
        %v517 = vpop.permute.xlu0 %516
        %520 = vset.pattern.permute.xlu0 0
        %521 = vperm.xlu0 %520, %v480
        %v522 = vpop.permute.xlu0 %521
        %v524 = vmul.f32 %v517, %v512
        %v525 = vmul.f32 %v522, %v513
        %v526 = vpack.c.bf16 %v496, %v494
        %v529 = vunpack.c.l.b16 %v409
        %v530 = vunpack.c.l.b16 %v410
        %v531 = vpack.c.b16 %v530, %v529
        %v534 = vsel %vm466, %v526, 0
        %536 = vmatprep.subr.bf16.mxu0 0
        %537 = vmatpush1.bf16.msra.mxu0 %v531
        %538 = vmatprep.subr.bf16.mxu0 0
        %539 = vmatpush1.bf16.msra.mxu0 0
        %540 = vmatprep.subr.bf16.mxu0 0
        %541 = vmatpush1.bf16.msra.mxu0 0
        %542 = vmatprep.subr.bf16.mxu0 0
        %543 = vmatpush1.bf16.msra.mxu0 0
        %544 = vmatprep.subr.bf16.mxu0 0
        %545 = vmatpush1.bf16.msra.mxu0 0
        %546 = vmatprep.subr.bf16.mxu0 0
        %547 = vmatpush1.bf16.msra.mxu0 0
        %548 = vmatprep.subr.bf16.mxu0 0
        %549 = vmatpush1.bf16.msra.mxu0 0
        %550 = vmatprep.subr.bf16.mxu0 0
        %551 = vmatpush1.bf16.msra.mxu0 0
        %552 = vmatprep.subr.bf16.mxu0 0
        %553 = vmatpush1.bf16.msra.mxu0 0
        %554 = vmatprep.subr.bf16.mxu0 0
        %555 = vmatpush1.bf16.msra.mxu0 0
        %556 = vmatprep.subr.bf16.mxu0 0
        %557 = vmatpush1.bf16.msra.mxu0 0
        %558 = vmatprep.subr.bf16.mxu0 0
        %559 = vmatpush1.bf16.msra.mxu0 0
        %560 = vmatprep.subr.bf16.mxu0 0
        %561 = vmatpush1.bf16.msra.mxu0 0
        %562 = vmatprep.subr.bf16.mxu0 0
        %563 = vmatpush1.bf16.msra.mxu0 0
        %564 = vmatprep.subr.bf16.mxu0 0
        %565 = vmatpush1.bf16.msra.mxu0 0
        %566 = vmatprep.subr.bf16.mxu0 0
        %567 = vmatpush1.bf16.msra.mxu0 0
        %568 = vmatprep.mubr.bf16.mxu0 0
        %569 = vmatmul.mubr.bf16.gmra.mrb[0].mxu0 %v534
        %v570 = vpop.f32.mrb[0].mxu0
        %v571 = vadd.f32 0.0, %v570
        %v572 = vpop.f32.mrb[0].mxu0
        %v573 = vpop.f32.mrb[0].mxu0
        %v574 = vadd.f32 0.0, %v573
        %v575 = vpop.f32.mrb[0].mxu0
        %576 = vdwg.mxu0
        %v577 = vadd.f32 %v524, %v571
        %v578 = vadd.f32 %v525, %v574
        %579 = vst [vmem:[#allocation4] sm:$0xff] %v577
        %580 = vst [vmem:[#allocation4 + $0x8] sm:$0xff] %v578
        %581 = vst.msk [vmem:[#allocation2] sm:$0xff] %vm509, %v473
        %582 = vst.msk [vmem:[#allocation2 + $0x8] sm:$0xff] %vm509, %v474
        // Predicated region
        $region160: #{forward.20} parent=142 // pred_check
          %p583 = pneg %p394
        $region161: #{forward.20} parent=142 // pred_check_branch
          %585 = sbr.rel (%p583) target = $region163
        $region162: #{forward.20} parent=142 // pred_region
          %v586 = vld [vmem:[#allocation4] sm:$0xff]
          %v587 = vld [vmem:[#allocation4 + $0x8] sm:$0xff]
          %v588 = vld [vmem:[#allocation3] sm:$0xff]
          %v589 = vld [vmem:[#allocation3 + $0x8] sm:$0xff]
          %v590 = vrcp.pop %v588
          %v591 = vrcp.pop %v589
          %593 = vset.pattern.permute.xlu0 0
          %594 = vperm.xlu0 %593, %v590
          %v595 = vpop.permute.xlu0 %594
          %598 = vset.pattern.permute.xlu0 0
          %599 = vperm.xlu0 %598, %v591
          %v600 = vpop.permute.xlu0 %599
          %v602 = vmul.f32 %v586, %v595
          %v603 = vmul.f32 %v587, %v600
          %v604 = vpack.c.bf16 %v603, %v602
          %v606 = vunpack.c.l.b16 %v604
          %v607 = vunpack.c.h.b16 %v604
          %v608 = vpack.c.b16 %v606, %v606
          %v609 = vpack.c.b16 %v607, %v607
          %612 = vst [vmem:[%s388] sm:$0xf] %v608
          %613 = vst [vmem:[%s388 + $0x4] sm:$0xf] %v609
        $region163: #{forward.20} parent=142 // pred_fallthru
          _
        %s614 = sand.u32 %s135, 1
        %s615 = sand.u32 %s135, 1
        %s616 = smul.addr %s615, 8
        %s617 = scalar_lea.vmem [#allocation8], %s616
        // Predicated region
        $region164: #{forward.20} parent=142 // pred_check
          %p618 = pneg %p145
        $region165: #{forward.20} parent=142 // pred_check_branch
          %620 = sbr.rel (%p618) target = $region167
        $region166: #{forward.20} parent=142 // pred_region
          %s621 = smul.addr %s19, 4
          %s622 = sadd.s32 %s20, %s621
          %s623 = smul.addr %s622, 4
          %s624 = scalar_lea.vmem %s3, %s623
          // Predicated region
          $region168: #{forward.20} parent=166 // pred_check
            _
          $region169: #{forward.20} parent=166 // pred_check_branch
            %626 = sbr.rel (0) target = $region171
          $region170: #{forward.20} parent=166 // pred_region
            // Predicated region
            $region172: #{forward.20} parent=170 // pred_check
              _
            $region173: #{forward.20} parent=170 // pred_check_branch
              %628 = sbr.rel target = $region175
            $region174: #{forward.20} parent=170 // pred_region
              // Predicated region
              $region187: #{forward.20} parent=174 // pred_check
                _
              $region188: #{forward.20} parent=174 // pred_check_branch
                %645 = sbr.rel (0) target = $region190
              $region189: #{forward.20} parent=174 // pred_region
                loop: start=0, step=1, limit=1
                $region191: #{forward.20} parent=189 // loop_pre_header
                  _
                $region192: #{forward.20} parent=189 // loop_header
                  %s647 = sphi 0, %s651
                  %p648 = scmp.ge.s32.totalorder %s647, 1
                  %s652 = sphi %s617, %s617
                  %s653 = sphi %s624, %s624
                $region193: #{forward.20} parent=189 // loop_header_branch
                  %650 = sbr.rel (%p648) target = $region197
                $region194: #{forward.20} parent=189 // loop_body
                  _
                $region195: #{forward.20} parent=189 // loop_footer
                  %s651 = sadd.s32 1, %s647
                $region196: #{forward.20} parent=189 // loop_footer_branch
                  %646 = sbr.rel target = $region192
                $region197: #{forward.20} parent=189 // loop_exit
                  _
                loop: start=0, step=1, limit=1
                $region198: #{forward.20} parent=189 // loop_pre_header
                  _
                $region199: #{forward.20} parent=189 // loop_header
                  %s656 = sphi 0, %s660
                  %p657 = scmp.ge.s32.totalorder %s656, 1
                  %s661 = sphi %s617, %s617
                  %s662 = sphi %s624, %s624
                $region200: #{forward.20} parent=189 // loop_header_branch
                  %659 = sbr.rel (%p657) target = $region204
                $region201: #{forward.20} parent=189 // loop_body
                  %v663 = vld [vmem:[%s661] sm:$0xf]
                  %664 = vst [vmem:[%s662] sm:$0xf] %v663
                  %v665 = vld [vmem:[%s661 + $0x4] sm:$0xf]
                  %666 = vst [vmem:[%s662 + $0x8] sm:$0xf] %v665
                $region202: #{forward.20} parent=189 // loop_footer
                  %s660 = sadd.s32 1, %s656
                $region203: #{forward.20} parent=189 // loop_footer_branch
                  %655 = sbr.rel target = $region199
                $region204: #{forward.20} parent=189 // loop_exit
                  _
              $region190: #{forward.20} parent=174 // pred_fallthru
                _
            $region175: #{forward.20} parent=170 // pred_fallthru
              _
            // Predicated region
            $region176: #{forward.20} parent=170 // pred_check
              _
            $region177: #{forward.20} parent=170 // pred_check_branch
              %630 = sbr.rel (0) target = $region179
            $region178: #{forward.20} parent=170 // pred_region
              loop: start=0, step=1, limit=1
              $region180: #{forward.20} parent=178 // loop_pre_header
                _
              $region181: #{forward.20} parent=178 // loop_header
                %s633 = sphi 0, %s637
                %p634 = scmp.ge.s32.totalorder %s633, 1
                %s638 = sphi %s617, %s617
                %s639 = sphi %s624, %s624
              $region182: #{forward.20} parent=178 // loop_header_branch
                %636 = sbr.rel (%p634) target = $region186
              $region183: #{forward.20} parent=178 // loop_body
                %v640 = vld [vmem:[%s638] sm:$0xf]
                %641 = vst [vmem:[%s639] sm:$0xf] %v640
                %v642 = vld [vmem:[%s638 + $0x4] sm:$0xf]
                %643 = vst [vmem:[%s639 + $0x8] sm:$0xf] %v642
              $region184: #{forward.20} parent=178 // loop_footer
                %s637 = sadd.s32 1, %s633
              $region185: #{forward.20} parent=178 // loop_footer_branch
                %632 = sbr.rel target = $region181
              $region186: #{forward.20} parent=178 // loop_exit
                _
            $region179: #{forward.20} parent=170 // pred_fallthru
              _
          $region171: #{forward.20} parent=166 // pred_fallthru
            _
          %667 = vnop
        $region167: #{forward.20} parent=142 // pred_fallthru
          _
      $region143: #{forward.20} parent=5 // pred_fallthru
        _
      %p668 = scmp.le.s32.totalorder 2, %s9
      // Predicated region
      $region205: #{forward.20} parent=5 // pred_check
        %p669 = pneg %p668
      $region206: #{forward.20} parent=5 // pred_check_branch
        %671 = sbr.rel (%p669) target = $region208
      $region207: #{forward.20} parent=5 // pred_region
        %s672 = ssub.s32 %s9, 2
        // Predicated region
        $region209: #{forward.20} parent=207 // pred_check
          %p673 = pneg %p151
        $region210: #{forward.20} parent=207 // pred_check_branch
          %675 = sbr.rel (%p673) target = $region212
        $region211: #{forward.20} parent=207 // pred_region
          %s676 = sand.u32 %s136, 1
          %s677 = sand.u32 %s136, 1
          %s678 = smul.addr %s677, 8
          %s679 = scalar_lea.vmem [#allocation8], %s678
        $region212: #{forward.20} parent=207 // pred_fallthru
          _
      $region208: #{forward.20} parent=5 // pred_fallthru
        _
    $region6: #{forward.20} parent=1 // loop_footer
      %s13 = sadd.s32 1, %s9
    $region7: #{forward.20} parent=1 // loop_footer_branch
      %8 = sbr.rel target = $region3
    $region8: #{forward.20} parent=1 // loop_exit
      _

// kernel: forward.21
$region0: #{forward.21}
  #allocation0 [shape = 'u32[]', space=smem, size = 0x4, offset = 0x4, fixed_abs, tag = 'smem constant byte address 0x4 - core index']
  #allocation1 [shape = 'u32[144,128]{1,0:T(1,128)}', space=vmem, size = 0x12000, scoped, tag = 'internal scratch']
  #allocation2 [shape = 'f32[16,256]{1,0:T(8,128)}', space=vmem, size = 0x4000, scoped, tag = 'scratch operand']
  %s0 = inlined_call_operand.vmem [shape: bf16[32,256], index: 0, kind: input, shape index: {}]
  %s1 = inlined_call_operand.vmem [shape: bf16[256,256], index: 1, kind: input, shape index: {}]
  %s2 = inlined_call_operand.vmem [shape: f32[1,256], index: 2, kind: input, shape index: {}]
  %s3 = inlined_call_operand.vmem [shape: bf16[32,256], index: 3, kind: input, shape index: {}]
  %s4 = inlined_call_operand.vmem [shape: f32[1,256], index: 4, kind: input, shape index: {}]
  %s5 = inlined_call_operand.vmem [shape: f32[1,256], index: 5, kind: input, shape index: {}]
  %s6 = inlined_call_operand.vmem [shape: bf16[32,256], index: 6, kind: output, shape index: {}]
  %s7 = sld [smem:[#allocation0]]
  $region65: #{forward.21} parent=0
    _
  %s9 = ssub.s32 1, %s7
  %s10 = scalar_select 0, %s9, %s7
  loop: start=0, step=1, limit=4
  $region2: #{forward.21} parent=0 // loop_pre_header
    _
  $region3: #{forward.21} parent=0 // loop_header
    %s12 = sphi 0, %s16
    %p13 = scmp.ge.s32.totalorder %s12, 4
    %s19 = sphi 0, %s31
    %s20 = sphi 0, %s27
    %s21 = sphi 0, %s19
    %s22 = sphi 0, %s20
    %s23 = sphi 0, %s21
    %s24 = sphi 0, %s22
    %s36 = sphi 0, %s38
    %s39 = sphi 0, %s36
    %s40 = sphi 0, %s39
    %s56 = sphi 0, %s40
    %s62 = sphi 0, %s64
    %s65 = sphi 0, %s62
    %s66 = sphi 0, %s65
    %s82 = sphi 0, %s66
    %s86 = sphi 0, %s86
    %s88 = sphi 0, %s86
    %s89 = sphi 0, %s88
    %s103 = sphi 0, %s89
    %s109 = sphi 0, %s111
    %s112 = sphi 0, %s109
    %s113 = sphi 0, %s112
    %s129 = sphi 0, %s113
    %s133 = sphi 0, %s133
    %s135 = sphi 0, %s133
    %s136 = sphi 0, %s135
    %s150 = sphi 0, %s136
    %s154 = sphi 0, %s154
    %s156 = sphi 0, %s154
    %s157 = sphi 0, %s156
    %s171 = sphi 0, %s157
    %s177 = sphi 0, %s179
    %s180 = sphi 0, %s177
    %s181 = sphi 0, %s180
    %s197 = sphi 0, %s181
  $region4: #{forward.21} parent=0 // loop_header_branch
    %15 = sbr.rel (%p13) target = $region8
  $region5: #{forward.21} parent=0 // loop_body
    %s17 = ssub.s32 %s12, 1
    %s18 = ssub.s32 %s12, 2
    %s25 = sadd.s32 1, %s20
    %p26 = scmp.ge.s32.totalorder %s25, 1
    %s27 = scalar_select %p26, 0, %s25
    %s28 = sadd.s32 1, %s19
    %s29 = scalar_select %p26, %s28, %s19
    %p30 = scmp.ge.s32.totalorder %s29, 2
    %s31 = scalar_select %p30, 0, %s29
    %s32 = ssub.s32 %s19, %s31
    %s33 = ssub.s32 %s20, %s27
    %s34 = sor.u32 %s32, %s33
    %p35 = scmp.eq.s32.totalorder %s34, 0
    %s37 = sadd.s32 %s36, 1
    %s38 = scalar_select %p35, %s36, %s37
    %p41 = pneg %p35
    %p42 = scmp.eq.s32.totalorder %s12, 1
    %p43 = por %p41, %p42
    %p44 = scmp.ne.s32.totalorder %s36, %s39
    %p45 = scmp.eq.s32.totalorder %s12, 0
    %p46 = por %p44, %p45
    %p47 = scmp.ne.s32.totalorder %s36, %s39
    %p48 = scmp.eq.s32.totalorder %s17, 1
    %p49 = por %p47, %p48
    %p50 = scmp.ne.s32.totalorder %s39, %s40
    %p51 = scmp.eq.s32.totalorder %s17, 0
    %p52 = por %p50, %p51
    %p53 = scmp.ne.s32.totalorder %s39, %s40
    %p54 = scmp.eq.s32.totalorder %s18, 1
    %p55 = por %p53, %p54
    %p57 = scmp.ne.s32.totalorder %s40, %s56
    %p58 = scmp.eq.s32.totalorder %s18, 0
    %p59 = por %p57, %p58
    %s60 = ssub.s32 %s20, %s27
    %p61 = scmp.eq.s32.totalorder %s60, 0
    %s63 = sadd.s32 %s62, 1
    %s64 = scalar_select %p61, %s62, %s63
    %p67 = pneg %p61
    %p68 = scmp.eq.s32.totalorder %s12, 1
    %p69 = por %p67, %p68
    %p70 = scmp.ne.s32.totalorder %s62, %s65
    %p71 = scmp.eq.s32.totalorder %s12, 0
    %p72 = por %p70, %p71
    %p73 = scmp.ne.s32.totalorder %s62, %s65
    %p74 = scmp.eq.s32.totalorder %s17, 1
    %p75 = por %p73, %p74
    %p76 = scmp.ne.s32.totalorder %s65, %s66
    %p77 = scmp.eq.s32.totalorder %s17, 0
    %p78 = por %p76, %p77
    %p79 = scmp.ne.s32.totalorder %s65, %s66
    %p80 = scmp.eq.s32.totalorder %s18, 1
    %p81 = por %p79, %p80
    %p83 = scmp.ne.s32.totalorder %s66, %s82
    %p84 = scmp.eq.s32.totalorder %s18, 0
    %p85 = por %p83, %p84
    %s87 = sadd.s32 %s86, 1
    %p90 = scmp.eq.s32.totalorder %s12, 1
    %p91 = scmp.ne.s32.totalorder %s86, %s88
    %p92 = scmp.eq.s32.totalorder %s12, 0
    %p93 = por %p91, %p92
    %p94 = scmp.ne.s32.totalorder %s86, %s88
    %p95 = scmp.eq.s32.totalorder %s17, 1
    %p96 = por %p94, %p95
    %p97 = scmp.ne.s32.totalorder %s88, %s89
    %p98 = scmp.eq.s32.totalorder %s17, 0
    %p99 = por %p97, %p98
    %p100 = scmp.ne.s32.totalorder %s88, %s89
    %p101 = scmp.eq.s32.totalorder %s18, 1
    %p102 = por %p100, %p101
    %p104 = scmp.ne.s32.totalorder %s89, %s103
    %p105 = scmp.eq.s32.totalorder %s18, 0
    %p106 = por %p104, %p105
    %s107 = ssub.s32 %s19, %s31
    %p108 = scmp.eq.s32.totalorder %s107, 0
    %s110 = sadd.s32 %s109, 1
    %s111 = scalar_select %p108, %s109, %s110
    %p114 = pneg %p108
    %p115 = scmp.eq.s32.totalorder %s12, 1
    %p116 = por %p114, %p115
    %p117 = scmp.ne.s32.totalorder %s109, %s112
    %p118 = scmp.eq.s32.totalorder %s12, 0
    %p119 = por %p117, %p118
    %p120 = scmp.ne.s32.totalorder %s109, %s112
    %p121 = scmp.eq.s32.totalorder %s17, 1
    %p122 = por %p120, %p121
    %p123 = scmp.ne.s32.totalorder %s112, %s113
    %p124 = scmp.eq.s32.totalorder %s17, 0
    %p125 = por %p123, %p124
    %p126 = scmp.ne.s32.totalorder %s112, %s113
    %p127 = scmp.eq.s32.totalorder %s18, 1
    %p128 = por %p126, %p127
    %p130 = scmp.ne.s32.totalorder %s113, %s129
    %p131 = scmp.eq.s32.totalorder %s18, 0
    %p132 = por %p130, %p131
    %s134 = sadd.s32 %s133, 1
    %p137 = scmp.eq.s32.totalorder %s12, 1
    %p138 = scmp.ne.s32.totalorder %s133, %s135
    %p139 = scmp.eq.s32.totalorder %s12, 0
    %p140 = por %p138, %p139
    %p141 = scmp.ne.s32.totalorder %s133, %s135
    %p142 = scmp.eq.s32.totalorder %s17, 1
    %p143 = por %p141, %p142
    %p144 = scmp.ne.s32.totalorder %s135, %s136
    %p145 = scmp.eq.s32.totalorder %s17, 0
    %p146 = por %p144, %p145
    %p147 = scmp.ne.s32.totalorder %s135, %s136
    %p148 = scmp.eq.s32.totalorder %s18, 1
    %p149 = por %p147, %p148
    %p151 = scmp.ne.s32.totalorder %s136, %s150
    %p152 = scmp.eq.s32.totalorder %s18, 0
    %p153 = por %p151, %p152
    %s155 = sadd.s32 %s154, 1
    %p158 = scmp.eq.s32.totalorder %s12, 1
    %p159 = scmp.ne.s32.totalorder %s154, %s156
    %p160 = scmp.eq.s32.totalorder %s12, 0
    %p161 = por %p159, %p160
    %p162 = scmp.ne.s32.totalorder %s154, %s156
    %p163 = scmp.eq.s32.totalorder %s17, 1
    %p164 = por %p162, %p163
    %p165 = scmp.ne.s32.totalorder %s156, %s157
    %p166 = scmp.eq.s32.totalorder %s17, 0
    %p167 = por %p165, %p166
    %p168 = scmp.ne.s32.totalorder %s156, %s157
    %p169 = scmp.eq.s32.totalorder %s18, 1
    %p170 = por %p168, %p169
    %p172 = scmp.ne.s32.totalorder %s157, %s171
    %p173 = scmp.eq.s32.totalorder %s18, 0
    %p174 = por %p172, %p173
    %s175 = ssub.s32 %s19, %s31
    %p176 = scmp.eq.s32.totalorder %s175, 0
    %s178 = sadd.s32 %s177, 1
    %s179 = scalar_select %p176, %s177, %s178
    %p182 = pneg %p176
    %p183 = scmp.eq.s32.totalorder %s12, 1
    %p184 = por %p182, %p183
    %p185 = scmp.ne.s32.totalorder %s177, %s180
    %p186 = scmp.eq.s32.totalorder %s12, 0
    %p187 = por %p185, %p186
    %p188 = scmp.ne.s32.totalorder %s177, %s180
    %p189 = scmp.eq.s32.totalorder %s17, 1
    %p190 = por %p188, %p189
    %p191 = scmp.ne.s32.totalorder %s180, %s181
    %p192 = scmp.eq.s32.totalorder %s17, 0
    %p193 = por %p191, %p192
    %p194 = scmp.ne.s32.totalorder %s180, %s181
    %p195 = scmp.eq.s32.totalorder %s18, 1
    %p196 = por %p194, %p195
    %p198 = scmp.ne.s32.totalorder %s181, %s197
    %p199 = scmp.eq.s32.totalorder %s18, 0
    %p200 = por %p198, %p199
    %p201 = scmp.le.s32.totalorder 1, %s12
    %p202 = scmp.lt.s32.totalorder %s12, 3
    %p203 = pnand %p201, %p202
    %p204 = pneg %p203
    // Predicated region
    $region9: #{forward.21} parent=5 // pred_check
      _
    $region10: #{forward.21} parent=5 // pred_check_branch
      %206 = sbr.rel (%p203) target = $region12
    $region11: #{forward.21} parent=5 // pred_region
      %s207 = ssub.s32 %s12, 1
      // Predicated region
      $region13: #{forward.21} parent=11 // pred_check
        %p208 = pneg %p78
      $region14: #{forward.21} parent=11 // pred_check_branch
        %210 = sbr.rel (%p208) target = $region16
      $region15: #{forward.21} parent=11 // pred_region
        %s211 = smul.u32 32, %s22
        %p212 = scmp.lt.s32.totalorder %s211, 31
        %s213 = scalar_select %p212, %s211, 31
        %s214 = smul.addr %s213, 2
        %s215 = smul.addr %s214, 4
        %s216 = scalar_lea.vmem %s1, %s215
        %s217 = smul.u32 32, %s22
      $region16: #{forward.21} parent=11 // pred_fallthru
        _
      // Predicated region
      $region17: #{forward.21} parent=11 // pred_check
        %p218 = pneg %p99
      $region18: #{forward.21} parent=11 // pred_check_branch
        %220 = sbr.rel (%p218) target = $region20
      $region19: #{forward.21} parent=11 // pred_region
        _
      $region20: #{forward.21} parent=11 // pred_fallthru
        _
      // Predicated region
      $region21: #{forward.21} parent=11 // pred_check
        %p221 = pneg %p146
      $region22: #{forward.21} parent=11 // pred_check_branch
        %223 = sbr.rel (%p221) target = $region24
      $region23: #{forward.21} parent=11 // pred_region
        _
      $region24: #{forward.21} parent=11 // pred_fallthru
        _
      // Predicated region
      $region25: #{forward.21} parent=11 // pred_check
        %p224 = pneg %p167
      $region26: #{forward.21} parent=11 // pred_check_branch
        %226 = sbr.rel (%p224) target = $region28
      $region27: #{forward.21} parent=11 // pred_region
        _
      $region28: #{forward.21} parent=11 // pred_fallthru
        _
    $region12: #{forward.21} parent=5 // pred_fallthru
      _
    %p227 = scmp.lt.s32.totalorder %s12, 2
    // Predicated region
    $region29: #{forward.21} parent=5 // pred_check
      %p228 = pneg %p227
    $region30: #{forward.21} parent=5 // pred_check_branch
      %230 = sbr.rel (%p228) target = $region32
    $region31: #{forward.21} parent=5 // pred_region
      // Predicated region
      $region33: #{forward.21} parent=31 // pred_check
        %p231 = pneg %p46
      $region34: #{forward.21} parent=31 // pred_check_branch
        %233 = sbr.rel (%p231) target = $region36
      $region35: #{forward.21} parent=31 // pred_region
        %s234 = smul.u32 2, %s19
        %s235 = smul.u32 2, %s20
        %p236 = scmp.lt.s32.totalorder %s234, 3
        %s237 = scalar_select %p236, %s234, 3
        %p238 = scmp.lt.s32.totalorder %s235, 1
        %s239 = scalar_select %p238, %s235, 1
        %s240 = smul.addr %s237, 2
        %s241 = sadd.s32 %s239, %s240
        %s242 = smul.addr %s241, 4
        %s243 = scalar_lea.vmem %s0, %s242
        %s244 = smul.u32 2, %s19
        %s245 = smul.u32 2, %s20
      $region36: #{forward.21} parent=31 // pred_fallthru
        _
      // Predicated region
      $region37: #{forward.21} parent=31 // pred_check
        %p246 = pneg %p119
      $region38: #{forward.21} parent=31 // pred_check_branch
        %248 = sbr.rel (%p246) target = $region40
      $region39: #{forward.21} parent=31 // pred_region
        %s249 = smul.u32 2, %s19
        %p250 = scmp.lt.s32.totalorder %s249, 3
        %s251 = scalar_select %p250, %s249, 3
        %s252 = smul.addr %s251, 2
        %s253 = smul.addr %s252, 4
        %s254 = scalar_lea.vmem %s3, %s253
        %s255 = smul.u32 2, %s19
      $region40: #{forward.21} parent=31 // pred_fallthru
        _
    $region32: #{forward.21} parent=5 // pred_fallthru
      _
    %p256 = scmp.le.s32.totalorder 1, %s12
    %p257 = scmp.lt.s32.totalorder %s12, 3
    %p258 = pnand %p256, %p257
    %p259 = pneg %p258
    // Predicated region
    $region41: #{forward.21} parent=5 // pred_check
      _
    $region42: #{forward.21} parent=5 // pred_check_branch
      %261 = sbr.rel (%p258) target = $region44
    $region43: #{forward.21} parent=5 // pred_region
      %s262 = ssub.s32 %s12, 1
      %s263 = smul.u32 2, %s21
      %s264 = smul.u32 2, %s22
      %p265 = scmp.lt.s32.totalorder %s263, 3
      %s266 = scalar_select %p265, %s263, 3
      %p267 = scmp.lt.s32.totalorder %s264, 1
      %s268 = scalar_select %p267, %s264, 1
      %s269 = smul.addr %s266, 2
      %s270 = sadd.s32 %s268, %s269
      %s271 = smul.addr %s270, 4
      %s272 = scalar_lea.vmem %s0, %s271
      %p273 = pneg %p52
      %p274 = pneg %p49
      %s275 = smul.u32 32, %s22
      %p276 = scmp.lt.s32.totalorder %s275, 31
      %s277 = scalar_select %p276, %s275, 31
      %s278 = smul.addr %s277, 2
      %s279 = smul.addr %s278, 4
      %s280 = scalar_lea.vmem %s1, %s279
      %p281 = pneg %p78
      %p282 = pneg %p75
      %p283 = pneg %p99
      %p284 = pneg %p96
      %s285 = smul.u32 2, %s21
      %p286 = scmp.lt.s32.totalorder %s285, 3
      %s287 = scalar_select %p286, %s285, 3
      %s288 = smul.addr %s287, 2
      %s289 = smul.addr %s288, 4
      %s290 = scalar_lea.vmem %s3, %s289
      %p291 = pneg %p125
      %p292 = pneg %p122
      %p293 = pneg %p146
      %p294 = pneg %p143
      %p295 = pneg %p167
      %p296 = pneg %p164
      %p297 = pneg %p193
      %p298 = pneg %p190
      %s299 = smul.u32 2, %s21
      %p300 = scmp.lt.s32.totalorder %s299, 3
      %s301 = scalar_select %p300, %s299, 3
      %s302 = smul.addr %s301, 2
      %s303 = smul.addr %s302, 4
      %s304 = scalar_lea.vmem %s6, %s303
      %s305 = smul.u32 2, %s21
      %s306 = smul.u32 2, %s22
      %p307 = scmp.lt.s32.totalorder %s305, 3
      %s308 = scalar_select %p307, %s305, 3
      %p309 = scmp.lt.s32.totalorder %s306, 1
      %s310 = scalar_select %p309, %s306, 1
      %s311 = smul.addr %s308, 2
      %s312 = sadd.s32 %s310, %s311
      %s313 = smul.addr %s312, 4
      %s314 = scalar_lea.vmem %s0, %s313
      %s315 = smul.u32 2, %s21
      %s316 = smul.u32 2, %s22
      %s317 = smul.u32 32, %s22
      %p318 = scmp.lt.s32.totalorder %s317, 31
      %s319 = scalar_select %p318, %s317, 31
      %s320 = smul.addr %s319, 2
      %s321 = smul.addr %s320, 4
      %s322 = scalar_lea.vmem %s1, %s321
      %s323 = smul.u32 32, %s22
      %s324 = smul.u32 2, %s21
      %p325 = scmp.lt.s32.totalorder %s324, 3
      %s326 = scalar_select %p325, %s324, 3
      %s327 = smul.addr %s326, 2
      %s328 = smul.addr %s327, 4
      %s329 = scalar_lea.vmem %s3, %s328
      %s330 = smul.u32 2, %s21
      %s331 = smul.u32 2, %s21
      %p332 = scmp.lt.s32.totalorder %s331, 3
      %s333 = scalar_select %p332, %s331, 3
      %s334 = smul.addr %s333, 2
      %s335 = smul.addr %s334, 4
      %s336 = scalar_lea.vmem %s6, %s335
      %s337 = smul.u32 2, %s21
      %p338 = scmp.eq.s32.totalorder %s22, 0
      // Predicated region
      $region45: #{forward.21} parent=43 // pred_check
        %p339 = pneg %p338
      $region46: #{forward.21} parent=43 // pred_check_branch
        %341 = sbr.rel (%p339) target = $region48
      $region47: #{forward.21} parent=43 // pred_region
        %342 = vst [vmem:[#allocation2] sm:$0xff] 0.0
        %343 = vst [vmem:[#allocation2 + $0x8] sm:$0xff] 0.0
        %344 = vst [vmem:[#allocation2 + $0x10] sm:$0xff] 0.0
        %345 = vst [vmem:[#allocation2 + $0x18] sm:$0xff] 0.0
      $region48: #{forward.21} parent=43 // pred_fallthru
        _
      %v346 = vld [vmem:[#allocation2] sm:$0xff]
      %v347 = vld [vmem:[#allocation2 + $0x8] sm:$0xff]
      %v348 = vld [vmem:[#allocation2 + $0x10] sm:$0xff]
      %v349 = vld [vmem:[#allocation2 + $0x18] sm:$0xff]
      %v350 = vld [vmem:[%s314] sm:$0xff]
      %v351 = vld [vmem:[%s314 + $0x8] sm:$0xff]
      %v352 = vld [vmem:[%s322] sm:$0xff]
      %v353 = vld [vmem:[%s322 + $0x8] sm:$0xff]
      %v354 = vld [vmem:[%s322 + $0x10] sm:$0xff]
      %v355 = vld [vmem:[%s322 + $0x18] sm:$0xff]
      %v356 = vld [vmem:[%s322 + $0x20] sm:$0xff]
      %v357 = vld [vmem:[%s322 + $0x28] sm:$0xff]
      %v358 = vld [vmem:[%s322 + $0x30] sm:$0xff]
      %v359 = vld [vmem:[%s322 + $0x38] sm:$0xff]
      %v360 = vld [vmem:[%s322 + $0x40] sm:$0xff]
      %v361 = vld [vmem:[%s322 + $0x48] sm:$0xff]
      %v362 = vld [vmem:[%s322 + $0x50] sm:$0xff]
      %v363 = vld [vmem:[%s322 + $0x58] sm:$0xff]
      %v364 = vld [vmem:[%s322 + $0x60] sm:$0xff]
      %v365 = vld [vmem:[%s322 + $0x68] sm:$0xff]
      %v366 = vld [vmem:[%s322 + $0x70] sm:$0xff]
      %v367 = vld [vmem:[%s322 + $0x78] sm:$0xff]
      %v368 = vld [vmem:[%s322 + $0x80] sm:$0xff]
      %v369 = vld [vmem:[%s322 + $0x88] sm:$0xff]
      %v370 = vld [vmem:[%s322 + $0x90] sm:$0xff]
      %v371 = vld [vmem:[%s322 + $0x98] sm:$0xff]
      %v372 = vld [vmem:[%s322 + $0xa0] sm:$0xff]
      %v373 = vld [vmem:[%s322 + $0xa8] sm:$0xff]
      %v374 = vld [vmem:[%s322 + $0xb0] sm:$0xff]
      %v375 = vld [vmem:[%s322 + $0xb8] sm:$0xff]
      %v376 = vld [vmem:[%s322 + $0xc0] sm:$0xff]
      %v377 = vld [vmem:[%s322 + $0xc8] sm:$0xff]
      %v378 = vld [vmem:[%s322 + $0xd0] sm:$0xff]
      %v379 = vld [vmem:[%s322 + $0xd8] sm:$0xff]
      %v380 = vld [vmem:[%s322 + $0xe0] sm:$0xff]
      %v381 = vld [vmem:[%s322 + $0xe8] sm:$0xff]
      %v382 = vld [vmem:[%s322 + $0xf0] sm:$0xff]
      %v383 = vld [vmem:[%s322 + $0xf8] sm:$0xff]
      %v386 = vunpack.c.l.b16 %v350
      %v387 = vunpack.c.h.b16 %v350
      %v388 = vunpack.c.l.b16 %v351
      %v389 = vunpack.c.h.b16 %v351
      %v390 = vpack.c.b16 %v388, %v386
      %v391 = vpack.c.b16 %v389, %v387
      %v426 = vunpack.c.l.b16 %v352
      %v427 = vunpack.c.h.b16 %v352
      %v428 = vunpack.c.l.b16 %v353
      %v429 = vunpack.c.h.b16 %v353
      %v430 = vunpack.c.l.b16 %v354
      %v431 = vunpack.c.h.b16 %v354
      %v432 = vunpack.c.l.b16 %v355
      %v433 = vunpack.c.h.b16 %v355
      %v434 = vunpack.c.l.b16 %v356
      %v435 = vunpack.c.h.b16 %v356
      %v436 = vunpack.c.l.b16 %v357
      %v437 = vunpack.c.h.b16 %v357
      %v438 = vunpack.c.l.b16 %v358
      %v439 = vunpack.c.h.b16 %v358
      %v440 = vunpack.c.l.b16 %v359
      %v441 = vunpack.c.h.b16 %v359
      %v442 = vunpack.c.l.b16 %v360
      %v443 = vunpack.c.h.b16 %v360
      %v444 = vunpack.c.l.b16 %v361
      %v445 = vunpack.c.h.b16 %v361
      %v446 = vunpack.c.l.b16 %v362
      %v447 = vunpack.c.h.b16 %v362
      %v448 = vunpack.c.l.b16 %v363
      %v449 = vunpack.c.h.b16 %v363
      %v450 = vunpack.c.l.b16 %v364
      %v451 = vunpack.c.h.b16 %v364
      %v452 = vunpack.c.l.b16 %v365
      %v453 = vunpack.c.h.b16 %v365
      %v454 = vunpack.c.l.b16 %v366
      %v455 = vunpack.c.h.b16 %v366
      %v456 = vunpack.c.l.b16 %v367
      %v457 = vunpack.c.h.b16 %v367
      %v458 = vunpack.c.l.b16 %v368
      %v459 = vunpack.c.h.b16 %v368
      %v460 = vunpack.c.l.b16 %v369
      %v461 = vunpack.c.h.b16 %v369
      %v462 = vunpack.c.l.b16 %v370
      %v463 = vunpack.c.h.b16 %v370
      %v464 = vunpack.c.l.b16 %v371
      %v465 = vunpack.c.h.b16 %v371
      %v466 = vunpack.c.l.b16 %v372
      %v467 = vunpack.c.h.b16 %v372
      %v468 = vunpack.c.l.b16 %v373
      %v469 = vunpack.c.h.b16 %v373
      %v470 = vunpack.c.l.b16 %v374
      %v471 = vunpack.c.h.b16 %v374
      %v472 = vunpack.c.l.b16 %v375
      %v473 = vunpack.c.h.b16 %v375
      %v474 = vunpack.c.l.b16 %v376
      %v475 = vunpack.c.h.b16 %v376
      %v476 = vunpack.c.l.b16 %v377
      %v477 = vunpack.c.h.b16 %v377
      %v478 = vunpack.c.l.b16 %v378
      %v479 = vunpack.c.h.b16 %v378
      %v480 = vunpack.c.l.b16 %v379
      %v481 = vunpack.c.h.b16 %v379
      %v482 = vunpack.c.l.b16 %v380
      %v483 = vunpack.c.h.b16 %v380
      %v484 = vunpack.c.l.b16 %v381
      %v485 = vunpack.c.h.b16 %v381
      %v486 = vunpack.c.l.b16 %v382
      %v487 = vunpack.c.h.b16 %v382
      %v488 = vunpack.c.l.b16 %v383
      %v489 = vunpack.c.h.b16 %v383
      %v490 = vpack.c.b16 %v428, %v426
      %v491 = vpack.c.b16 %v429, %v427
      %v492 = vpack.c.b16 %v432, %v430
      %v493 = vpack.c.b16 %v433, %v431
      %v494 = vpack.c.b16 %v436, %v434
      %v495 = vpack.c.b16 %v437, %v435
      %v496 = vpack.c.b16 %v440, %v438
      %v497 = vpack.c.b16 %v441, %v439
      %v498 = vpack.c.b16 %v444, %v442
      %v499 = vpack.c.b16 %v445, %v443
      %v500 = vpack.c.b16 %v448, %v446
      %v501 = vpack.c.b16 %v449, %v447
      %v502 = vpack.c.b16 %v452, %v450
      %v503 = vpack.c.b16 %v453, %v451
      %v504 = vpack.c.b16 %v456, %v454
      %v505 = vpack.c.b16 %v457, %v455
      %v506 = vpack.c.b16 %v460, %v458
      %v507 = vpack.c.b16 %v461, %v459
      %v508 = vpack.c.b16 %v464, %v462
      %v509 = vpack.c.b16 %v465, %v463
      %v510 = vpack.c.b16 %v468, %v466
      %v511 = vpack.c.b16 %v469, %v467
      %v512 = vpack.c.b16 %v472, %v470
      %v513 = vpack.c.b16 %v473, %v471
      %v514 = vpack.c.b16 %v476, %v474
      %v515 = vpack.c.b16 %v477, %v475
      %v516 = vpack.c.b16 %v480, %v478
      %v517 = vpack.c.b16 %v481, %v479
      %v518 = vpack.c.b16 %v484, %v482
      %v519 = vpack.c.b16 %v485, %v483
      %v520 = vpack.c.b16 %v488, %v486
      %v521 = vpack.c.b16 %v489, %v487
      %554 = vmatprep.subr.bf16.mxu0 %v491
      %555 = vmatpush1.bf16.msra.mxu0 %v490
      %556 = vmatprep.subr.bf16.mxu0 %v493
      %557 = vmatpush1.bf16.msra.mxu0 %v492
      %558 = vmatprep.subr.bf16.mxu0 %v495
      %559 = vmatpush1.bf16.msra.mxu0 %v494
      %560 = vmatprep.subr.bf16.mxu0 %v497
      %561 = vmatpush1.bf16.msra.mxu0 %v496
      %562 = vmatprep.subr.bf16.mxu0 %v499
      %563 = vmatpush1.bf16.msra.mxu0 %v498
      %564 = vmatprep.subr.bf16.mxu0 %v501
      %565 = vmatpush1.bf16.msra.mxu0 %v500
      %566 = vmatprep.subr.bf16.mxu0 %v503
      %567 = vmatpush1.bf16.msra.mxu0 %v502
      %568 = vmatprep.subr.bf16.mxu0 %v505
      %569 = vmatpush1.bf16.msra.mxu0 %v504
      %570 = vmatprep.subr.bf16.mxu0 %v507
      %571 = vmatpush1.bf16.msra.mxu0 %v506
      %572 = vmatprep.subr.bf16.mxu0 %v509
      %573 = vmatpush1.bf16.msra.mxu0 %v508
      %574 = vmatprep.subr.bf16.mxu0 %v511
      %575 = vmatpush1.bf16.msra.mxu0 %v510
      %576 = vmatprep.subr.bf16.mxu0 %v513
      %577 = vmatpush1.bf16.msra.mxu0 %v512
      %578 = vmatprep.subr.bf16.mxu0 %v515
      %579 = vmatpush1.bf16.msra.mxu0 %v514
      %580 = vmatprep.subr.bf16.mxu0 %v517
      %581 = vmatpush1.bf16.msra.mxu0 %v516
      %582 = vmatprep.subr.bf16.mxu0 %v519
      %583 = vmatpush1.bf16.msra.mxu0 %v518
      %584 = vmatprep.subr.bf16.mxu0 %v521
      %585 = vmatpush1.bf16.msra.mxu0 %v520
      %586 = vmatprep.mubr.bf16.mxu0 %v391
      %587 = vmatmul.mubr.bf16.gmra.mrb[0].mxu0 %v390
      %v588 = vpop.f32.mrb[0].mxu0
      %v589 = vadd.f32 0.0, %v588
      %v590 = vpop.f32.mrb[0].mxu0
      %v591 = vadd.f32 0.0, %v590
      %v592 = vpop.f32.mrb[0].mxu0
      %v593 = vadd.f32 0.0, %v592
      %v594 = vpop.f32.mrb[0].mxu0
      %v595 = vadd.f32 0.0, %v594
      %596 = vdwg.mxu0
      %v597 = vadd.f32 %v346, %v589
      %v598 = vadd.f32 %v347, %v591
      %v599 = vadd.f32 %v348, %v593
      %v600 = vadd.f32 %v349, %v595
      %601 = vst [vmem:[#allocation2] sm:$0xff] %v597
      %602 = vst [vmem:[#allocation2 + $0x8] sm:$0xff] %v598
      %603 = vst [vmem:[#allocation2 + $0x10] sm:$0xff] %v599
      %604 = vst [vmem:[#allocation2 + $0x18] sm:$0xff] %v600
      // Predicated region
      $region49: #{forward.21} parent=43 // pred_check
        %p605 = pneg %p338
      $region50: #{forward.21} parent=43 // pred_check_branch
        %607 = sbr.rel (%p605) target = $region52
      $region51: #{forward.21} parent=43 // pred_region
        %v608 = vld [vmem:[#allocation2] sm:$0xff]
        %v609 = vld [vmem:[#allocation2 + $0x8] sm:$0xff]
        %v610 = vld [vmem:[#allocation2 + $0x10] sm:$0xff]
        %v611 = vld [vmem:[#allocation2 + $0x18] sm:$0xff]
        %v612 = vld [vmem:[%s2] sm:$0x3]
        %v614 = vlaneseq
        %v615 = vshrl.u32 %v614, 7
        %v616 = vsub.s32 0, %v615
        %v617 = vrot.slane %v612, %v616
        %v618 = vlaneseq
        %v619 = vshrl.u32 %v618, 7
        %v620 = vsub.s32 1, %v619
        %v621 = vrot.slane %v612, %v620
        %v624 = vadd.f32 %v608, %v617
        %v625 = vadd.f32 %v609, %v621
        %v626 = vadd.f32 %v610, %v617
        %v627 = vadd.f32 %v611, %v621
        %v628 = vld [vmem:[%s329] sm:$0xff]
        %v629 = vld [vmem:[%s329 + $0x8] sm:$0xff]
        %v630 = vunpack.c.l.bf16 %v628
        %v631 = vunpack.c.h.bf16 %v628
        %v632 = vunpack.c.l.bf16 %v629
        %v633 = vunpack.c.h.bf16 %v629
        %v634 = vadd.f32 %v624, %v630
        %v635 = vadd.f32 %v625, %v631
        %v636 = vadd.f32 %v626, %v632
        %v637 = vadd.f32 %v627, %v633
        %v638 = vadd.f32 %v634, %v635
        %639 = vadd.xlane.f32.xlu0 %v638
        %v640 = vpop.xlane.xlu0 %639
        %v641 = vadd.f32 %v636, %v637
        %642 = vadd.xlane.f32.xlu0 %v641
        %v643 = vpop.xlane.xlu0 %642
        %v644 = vmul.f32 %v640, 0.00390625
        %v645 = vmul.f32 %v643, 0.00390625
        %v646 = vmul.f32 %v634, %v634
        %v647 = vmul.f32 %v635, %v635
        %v648 = vmul.f32 %v636, %v636
        %v649 = vmul.f32 %v637, %v637
        %v650 = vadd.f32 %v646, %v647
        %651 = vadd.xlane.f32.xlu0 %v650
        %v652 = vpop.xlane.xlu0 %651
        %v653 = vadd.f32 %v648, %v649
        %654 = vadd.xlane.f32.xlu0 %v653
        %v655 = vpop.xlane.xlu0 %654
        %v656 = vmul.f32 %v652, 0.00390625
        %v657 = vmul.f32 %v655, 0.00390625
        %v658 = vmul.f32 %v644, %v644
        %v659 = vmul.f32 %v645, %v645
        %v660 = vsub.f32 %v656, %v658
        %v661 = vsub.f32 %v657, %v659
        %v662 = vsub.f32 %v634, %v644
        %v663 = vsub.f32 %v635, %v644
        %v664 = vsub.f32 %v636, %v645
        %v665 = vsub.f32 %v637, %v645
        %v666 = vadd.f32 %v660, 1e-05
        %v667 = vadd.f32 %v661, 1e-05
        %v668 = vrsqrt.pop %v666
        %v669 = vrsqrt.pop %v667
        %v670 = vmul.f32 %v662, %v668
        %v671 = vmul.f32 %v663, %v668
        %v672 = vmul.f32 %v664, %v669
        %v673 = vmul.f32 %v665, %v669
        %v674 = vld [vmem:[%s4] sm:$0x3]
        %v676 = vlaneseq
        %v677 = vshrl.u32 %v676, 7
        %v678 = vsub.s32 0, %v677
        %v679 = vrot.slane %v674, %v678
        %v680 = vlaneseq
        %v681 = vshrl.u32 %v680, 7
        %v682 = vsub.s32 1, %v681
        %v683 = vrot.slane %v674, %v682
        %v686 = vmul.f32 %v670, %v679
        %v687 = vmul.f32 %v671, %v683
        %v688 = vmul.f32 %v672, %v679
        %v689 = vmul.f32 %v673, %v683
        %v690 = vld [vmem:[%s5] sm:$0x3]
        %v692 = vlaneseq
        %v693 = vshrl.u32 %v692, 7
        %v694 = vsub.s32 0, %v693
        %v695 = vrot.slane %v690, %v694
        %v696 = vlaneseq
        %v697 = vshrl.u32 %v696, 7
        %v698 = vsub.s32 1, %v697
        %v699 = vrot.slane %v690, %v698
        %v702 = vadd.f32 %v686, %v695
        %v703 = vadd.f32 %v687, %v699
        %v704 = vadd.f32 %v688, %v695
        %v705 = vadd.f32 %v689, %v699
        %v706 = vpack.c.bf16 %v704, %v702
        %v707 = vpack.c.bf16 %v705, %v703
        %v710 = vunpack.c.l.b16 %v706
        %v711 = vunpack.c.l.b16 %v707
        %v712 = vunpack.c.h.b16 %v706
        %v713 = vunpack.c.h.b16 %v707
        %v714 = vpack.c.b16 %v711, %v710
        %v715 = vpack.c.b16 %v713, %v712
        %718 = vst [vmem:[%s336] sm:$0xff] %v714
        %719 = vst [vmem:[%s336 + $0x8] sm:$0xff] %v715
      $region52: #{forward.21} parent=43 // pred_fallthru
        _
      %s720 = smul.u32 2, %s21
      %p721 = scmp.lt.s32.totalorder %s720, 3
      %s722 = scalar_select %p721, %s720, 3
      %s723 = smul.addr %s722, 2
      %s724 = smul.addr %s723, 4
      %s725 = scalar_lea.vmem %s6, %s724
      // Predicated region
      $region53: #{forward.21} parent=43 // pred_check
        %p726 = pneg %p190
      $region54: #{forward.21} parent=43 // pred_check_branch
        %728 = sbr.rel (%p726) target = $region56
      $region55: #{forward.21} parent=43 // pred_region
        %s729 = smul.u32 2, %s21
      $region56: #{forward.21} parent=43 // pred_fallthru
        _
    $region44: #{forward.21} parent=5 // pred_fallthru
      _
    %p730 = scmp.le.s32.totalorder 2, %s12
    // Predicated region
    $region57: #{forward.21} parent=5 // pred_check
      %p731 = pneg %p730
    $region58: #{forward.21} parent=5 // pred_check_branch
      %733 = sbr.rel (%p731) target = $region60
    $region59: #{forward.21} parent=5 // pred_region
      %s734 = ssub.s32 %s12, 2
      // Predicated region
      $region61: #{forward.21} parent=59 // pred_check
        %p735 = pneg %p196
      $region62: #{forward.21} parent=59 // pred_check_branch
        %737 = sbr.rel (%p735) target = $region64
      $region63: #{forward.21} parent=59 // pred_region
        %s738 = smul.u32 2, %s23
        %p739 = scmp.lt.s32.totalorder %s738, 3
        %s740 = scalar_select %p739, %s738, 3
        %s741 = smul.addr %s740, 2
        %s742 = smul.addr %s741, 4
        %s743 = scalar_lea.vmem %s6, %s742
      $region64: #{forward.21} parent=59 // pred_fallthru
        _
    $region60: #{forward.21} parent=5 // pred_fallthru
      _
  $region6: #{forward.21} parent=0 // loop_footer
    %s16 = sadd.s32 1, %s12
  $region7: #{forward.21} parent=0 // loop_footer_branch
    %11 = sbr.rel target = $region3
  $region8: #{forward.21} parent=0 // loop_exit
    _

// kernel: forward.22
$region0: #{forward.22}
  #allocation0 [shape = 'u32[]', space=smem, size = 0x4, offset = 0x4, fixed_abs, tag = 'smem constant byte address 0x4 - core index']
  #allocation1 [shape = 'u32[144,128]{1,0:T(1,128)}', space=vmem, size = 0x12000, scoped, tag = 'internal scratch']
  #allocation2 [shape = 'f32[16,256]{1,0:T(8,128)}', space=vmem, size = 0x4000, scoped, tag = 'scratch operand']
  %s0 = inlined_call_operand.vmem [shape: bf16[32,256], index: 0, kind: input, shape index: {}]
  %s1 = inlined_call_operand.vmem [shape: bf16[256,256], index: 1, kind: input, shape index: {}]
  %s2 = inlined_call_operand.vmem [shape: f32[1,256], index: 2, kind: input, shape index: {}]
  %s3 = inlined_call_operand.vmem [shape: bf16[32,256], index: 3, kind: output, shape index: {}]
  %s4 = sld [smem:[#allocation0]]
  $region53: #{forward.22} parent=0
    _
  %s6 = ssub.s32 1, %s4
  %s7 = scalar_select 0, %s6, %s4
  loop: start=0, step=1, limit=4
  $region2: #{forward.22} parent=0 // loop_pre_header
    _
  $region3: #{forward.22} parent=0 // loop_header
    %s9 = sphi 0, %s13
    %p10 = scmp.ge.s32.totalorder %s9, 4
    %s16 = sphi 0, %s35
    %s17 = sphi 0, %s31
    %s18 = sphi 0, %s27
    %s19 = sphi 0, %s16
    %s20 = sphi 0, %s17
    %s21 = sphi 0, %s18
    %s22 = sphi 0, %s19
    %s23 = sphi 0, %s20
    %s24 = sphi 0, %s21
    %s40 = sphi 0, %s42
    %s43 = sphi 0, %s40
    %s44 = sphi 0, %s43
    %s60 = sphi 0, %s44
    %s68 = sphi 0, %s70
    %s71 = sphi 0, %s68
    %s72 = sphi 0, %s71
    %s88 = sphi 0, %s72
    %s94 = sphi 0, %s96
    %s97 = sphi 0, %s94
    %s98 = sphi 0, %s97
    %s114 = sphi 0, %s98
    %s122 = sphi 0, %s124
    %s125 = sphi 0, %s122
    %s126 = sphi 0, %s125
    %s142 = sphi 0, %s126
  $region4: #{forward.22} parent=0 // loop_header_branch
    %12 = sbr.rel (%p10) target = $region8
  $region5: #{forward.22} parent=0 // loop_body
    %s14 = ssub.s32 %s9, 1
    %s15 = ssub.s32 %s9, 2
    %s25 = sadd.s32 1, %s18
    %p26 = scmp.ge.s32.totalorder %s25, 1
    %s27 = scalar_select %p26, 0, %s25
    %s28 = sadd.s32 1, %s17
    %s29 = scalar_select %p26, %s28, %s17
    %p30 = scmp.ge.s32.totalorder %s29, 1
    %s31 = scalar_select %p30, 0, %s29
    %s32 = sadd.s32 1, %s16
    %s33 = scalar_select %p30, %s32, %s16
    %p34 = scmp.ge.s32.totalorder %s33, 2
    %s35 = scalar_select %p34, 0, %s33
    %s36 = ssub.s32 %s16, %s35
    %s37 = ssub.s32 %s18, %s27
    %s38 = sor.u32 %s36, %s37
    %p39 = scmp.eq.s32.totalorder %s38, 0
    %s41 = sadd.s32 %s40, 1
    %s42 = scalar_select %p39, %s40, %s41
    %p45 = pneg %p39
    %p46 = scmp.eq.s32.totalorder %s9, 1
    %p47 = por %p45, %p46
    %p48 = scmp.ne.s32.totalorder %s40, %s43
    %p49 = scmp.eq.s32.totalorder %s9, 0
    %p50 = por %p48, %p49
    %p51 = scmp.ne.s32.totalorder %s40, %s43
    %p52 = scmp.eq.s32.totalorder %s14, 1
    %p53 = por %p51, %p52
    %p54 = scmp.ne.s32.totalorder %s43, %s44
    %p55 = scmp.eq.s32.totalorder %s14, 0
    %p56 = por %p54, %p55
    %p57 = scmp.ne.s32.totalorder %s43, %s44
    %p58 = scmp.eq.s32.totalorder %s15, 1
    %p59 = por %p57, %p58
    %p61 = scmp.ne.s32.totalorder %s44, %s60
    %p62 = scmp.eq.s32.totalorder %s15, 0
    %p63 = por %p61, %p62
    %s64 = ssub.s32 %s18, %s27
    %s65 = ssub.s32 %s17, %s31
    %s66 = sor.u32 %s64, %s65
    %p67 = scmp.eq.s32.totalorder %s66, 0
    %s69 = sadd.s32 %s68, 1
    %s70 = scalar_select %p67, %s68, %s69
    %p73 = pneg %p67
    %p74 = scmp.eq.s32.totalorder %s9, 1
    %p75 = por %p73, %p74
    %p76 = scmp.ne.s32.totalorder %s68, %s71
    %p77 = scmp.eq.s32.totalorder %s9, 0
    %p78 = por %p76, %p77
    %p79 = scmp.ne.s32.totalorder %s68, %s71
    %p80 = scmp.eq.s32.totalorder %s14, 1
    %p81 = por %p79, %p80
    %p82 = scmp.ne.s32.totalorder %s71, %s72
    %p83 = scmp.eq.s32.totalorder %s14, 0
    %p84 = por %p82, %p83
    %p85 = scmp.ne.s32.totalorder %s71, %s72
    %p86 = scmp.eq.s32.totalorder %s15, 1
    %p87 = por %p85, %p86
    %p89 = scmp.ne.s32.totalorder %s72, %s88
    %p90 = scmp.eq.s32.totalorder %s15, 0
    %p91 = por %p89, %p90
    %s92 = ssub.s32 %s17, %s31
    %p93 = scmp.eq.s32.totalorder %s92, 0
    %s95 = sadd.s32 %s94, 1
    %s96 = scalar_select %p93, %s94, %s95
    %p99 = pneg %p93
    %p100 = scmp.eq.s32.totalorder %s9, 1
    %p101 = por %p99, %p100
    %p102 = scmp.ne.s32.totalorder %s94, %s97
    %p103 = scmp.eq.s32.totalorder %s9, 0
    %p104 = por %p102, %p103
    %p105 = scmp.ne.s32.totalorder %s94, %s97
    %p106 = scmp.eq.s32.totalorder %s14, 1
    %p107 = por %p105, %p106
    %p108 = scmp.ne.s32.totalorder %s97, %s98
    %p109 = scmp.eq.s32.totalorder %s14, 0
    %p110 = por %p108, %p109
    %p111 = scmp.ne.s32.totalorder %s97, %s98
    %p112 = scmp.eq.s32.totalorder %s15, 1
    %p113 = por %p111, %p112
    %p115 = scmp.ne.s32.totalorder %s98, %s114
    %p116 = scmp.eq.s32.totalorder %s15, 0
    %p117 = por %p115, %p116
    %s118 = ssub.s32 %s16, %s35
    %s119 = ssub.s32 %s17, %s31
    %s120 = sor.u32 %s118, %s119
    %p121 = scmp.eq.s32.totalorder %s120, 0
    %s123 = sadd.s32 %s122, 1
    %s124 = scalar_select %p121, %s122, %s123
    %p127 = pneg %p121
    %p128 = scmp.eq.s32.totalorder %s9, 1
    %p129 = por %p127, %p128
    %p130 = scmp.ne.s32.totalorder %s122, %s125
    %p131 = scmp.eq.s32.totalorder %s9, 0
    %p132 = por %p130, %p131
    %p133 = scmp.ne.s32.totalorder %s122, %s125
    %p134 = scmp.eq.s32.totalorder %s14, 1
    %p135 = por %p133, %p134
    %p136 = scmp.ne.s32.totalorder %s125, %s126
    %p137 = scmp.eq.s32.totalorder %s14, 0
    %p138 = por %p136, %p137
    %p139 = scmp.ne.s32.totalorder %s125, %s126
    %p140 = scmp.eq.s32.totalorder %s15, 1
    %p141 = por %p139, %p140
    %p143 = scmp.ne.s32.totalorder %s126, %s142
    %p144 = scmp.eq.s32.totalorder %s15, 0
    %p145 = por %p143, %p144
    %p146 = scmp.le.s32.totalorder 1, %s9
    %p147 = scmp.lt.s32.totalorder %s9, 3
    %p148 = pnand %p146, %p147
    %p149 = pneg %p148
    // Predicated region
    $region9: #{forward.22} parent=5 // pred_check
      _
    $region10: #{forward.22} parent=5 // pred_check_branch
      %151 = sbr.rel (%p148) target = $region12
    $region11: #{forward.22} parent=5 // pred_region
      %s152 = ssub.s32 %s9, 1
      // Predicated region
      $region13: #{forward.22} parent=11 // pred_check
        %p153 = pneg %p84
      $region14: #{forward.22} parent=11 // pred_check_branch
        %155 = sbr.rel (%p153) target = $region16
      $region15: #{forward.22} parent=11 // pred_region
        %s156 = smul.u32 32, %s21
        %s157 = smul.u32 2, %s20
        %p158 = scmp.lt.s32.totalorder %s156, 31
        %s159 = scalar_select %p158, %s156, 31
        %p160 = scmp.lt.s32.totalorder %s157, 1
        %s161 = scalar_select %p160, %s157, 1
        %s162 = smul.addr %s159, 2
        %s163 = sadd.s32 %s161, %s162
        %s164 = smul.addr %s163, 4
        %s165 = scalar_lea.vmem %s1, %s164
        %s166 = smul.u32 32, %s21
        %s167 = smul.u32 2, %s20
      $region16: #{forward.22} parent=11 // pred_fallthru
        _
      // Predicated region
      $region17: #{forward.22} parent=11 // pred_check
        %p168 = pneg %p110
      $region18: #{forward.22} parent=11 // pred_check_branch
        %170 = sbr.rel (%p168) target = $region20
      $region19: #{forward.22} parent=11 // pred_region
        %s171 = smul.u32 2, %s20
        %p172 = scmp.lt.s32.totalorder %s171, 1
        %s173 = scalar_select %p172, %s171, 1
        %s174 = scalar_lea.vmem %s2, %s173
        %s175 = smul.u32 2, %s20
      $region20: #{forward.22} parent=11 // pred_fallthru
        _
    $region12: #{forward.22} parent=5 // pred_fallthru
      _
    %p176 = scmp.lt.s32.totalorder %s9, 2
    // Predicated region
    $region21: #{forward.22} parent=5 // pred_check
      %p177 = pneg %p176
    $region22: #{forward.22} parent=5 // pred_check_branch
      %179 = sbr.rel (%p177) target = $region24
    $region23: #{forward.22} parent=5 // pred_region
      // Predicated region
      $region25: #{forward.22} parent=23 // pred_check
        %p180 = pneg %p50
      $region26: #{forward.22} parent=23 // pred_check_branch
        %182 = sbr.rel (%p180) target = $region28
      $region27: #{forward.22} parent=23 // pred_region
        %s183 = smul.u32 2, %s16
        %s184 = smul.u32 2, %s18
        %p185 = scmp.lt.s32.totalorder %s183, 3
        %s186 = scalar_select %p185, %s183, 3
        %p187 = scmp.lt.s32.totalorder %s184, 1
        %s188 = scalar_select %p187, %s184, 1
        %s189 = smul.addr %s186, 2
        %s190 = sadd.s32 %s188, %s189
        %s191 = smul.addr %s190, 4
        %s192 = scalar_lea.vmem %s0, %s191
        %s193 = smul.u32 2, %s16
        %s194 = smul.u32 2, %s18
      $region28: #{forward.22} parent=23 // pred_fallthru
        _
    $region24: #{forward.22} parent=5 // pred_fallthru
      _
    %p195 = scmp.le.s32.totalorder 1, %s9
    %p196 = scmp.lt.s32.totalorder %s9, 3
    %p197 = pnand %p195, %p196
    %p198 = pneg %p197
    // Predicated region
    $region29: #{forward.22} parent=5 // pred_check
      _
    $region30: #{forward.22} parent=5 // pred_check_branch
      %200 = sbr.rel (%p197) target = $region32
    $region31: #{forward.22} parent=5 // pred_region
      %s201 = ssub.s32 %s9, 1
      %s202 = smul.u32 2, %s19
      %s203 = smul.u32 2, %s21
      %p204 = scmp.lt.s32.totalorder %s202, 3
      %s205 = scalar_select %p204, %s202, 3
      %p206 = scmp.lt.s32.totalorder %s203, 1
      %s207 = scalar_select %p206, %s203, 1
      %s208 = smul.addr %s205, 2
      %s209 = sadd.s32 %s207, %s208
      %s210 = smul.addr %s209, 4
      %s211 = scalar_lea.vmem %s0, %s210
      %p212 = pneg %p56
      %p213 = pneg %p53
      %s214 = smul.u32 32, %s21
      %s215 = smul.u32 2, %s20
      %p216 = scmp.lt.s32.totalorder %s214, 31
      %s217 = scalar_select %p216, %s214, 31
      %p218 = scmp.lt.s32.totalorder %s215, 1
      %s219 = scalar_select %p218, %s215, 1
      %s220 = smul.addr %s217, 2
      %s221 = sadd.s32 %s219, %s220
      %s222 = smul.addr %s221, 4
      %s223 = scalar_lea.vmem %s1, %s222
      %p224 = pneg %p84
      %p225 = pneg %p81
      %s226 = smul.u32 2, %s20
      %p227 = scmp.lt.s32.totalorder %s226, 1
      %s228 = scalar_select %p227, %s226, 1
      %s229 = scalar_lea.vmem %s2, %s228
      %p230 = pneg %p110
      %p231 = pneg %p107
      %p232 = pneg %p138
      %p233 = pneg %p135
      %s234 = smul.u32 2, %s19
      %s235 = smul.u32 2, %s20
      %p236 = scmp.lt.s32.totalorder %s234, 3
      %s237 = scalar_select %p236, %s234, 3
      %p238 = scmp.lt.s32.totalorder %s235, 1
      %s239 = scalar_select %p238, %s235, 1
      %s240 = smul.addr %s237, 2
      %s241 = sadd.s32 %s239, %s240
      %s242 = smul.addr %s241, 4
      %s243 = scalar_lea.vmem %s3, %s242
      %s244 = smul.u32 2, %s19
      %s245 = smul.u32 2, %s21
      %p246 = scmp.lt.s32.totalorder %s244, 3
      %s247 = scalar_select %p246, %s244, 3
      %p248 = scmp.lt.s32.totalorder %s245, 1
      %s249 = scalar_select %p248, %s245, 1
      %s250 = smul.addr %s247, 2
      %s251 = sadd.s32 %s249, %s250
      %s252 = smul.addr %s251, 4
      %s253 = scalar_lea.vmem %s0, %s252
      %s254 = smul.u32 2, %s19
      %s255 = smul.u32 2, %s21
      %s256 = smul.u32 32, %s21
      %s257 = smul.u32 2, %s20
      %p258 = scmp.lt.s32.totalorder %s256, 31
      %s259 = scalar_select %p258, %s256, 31
      %p260 = scmp.lt.s32.totalorder %s257, 1
      %s261 = scalar_select %p260, %s257, 1
      %s262 = smul.addr %s259, 2
      %s263 = sadd.s32 %s261, %s262
      %s264 = smul.addr %s263, 4
      %s265 = scalar_lea.vmem %s1, %s264
      %s266 = smul.u32 32, %s21
      %s267 = smul.u32 2, %s20
      %s268 = smul.u32 2, %s20
      %p269 = scmp.lt.s32.totalorder %s268, 1
      %s270 = scalar_select %p269, %s268, 1
      %s271 = scalar_lea.vmem %s2, %s270
      %s272 = smul.u32 2, %s20
      %s273 = smul.u32 2, %s19
      %s274 = smul.u32 2, %s20
      %p275 = scmp.lt.s32.totalorder %s273, 3
      %s276 = scalar_select %p275, %s273, 3
      %p277 = scmp.lt.s32.totalorder %s274, 1
      %s278 = scalar_select %p277, %s274, 1
      %s279 = smul.addr %s276, 2
      %s280 = sadd.s32 %s278, %s279
      %s281 = smul.addr %s280, 4
      %s282 = scalar_lea.vmem %s3, %s281
      %s283 = smul.u32 2, %s19
      %s284 = smul.u32 2, %s20
      %p285 = scmp.eq.s32.totalorder %s21, 0
      // Predicated region
      $region33: #{forward.22} parent=31 // pred_check
        %p286 = pneg %p285
      $region34: #{forward.22} parent=31 // pred_check_branch
        %288 = sbr.rel (%p286) target = $region36
      $region35: #{forward.22} parent=31 // pred_region
        %289 = vst [vmem:[#allocation2] sm:$0xff] 0.0
        %290 = vst [vmem:[#allocation2 + $0x8] sm:$0xff] 0.0
        %291 = vst [vmem:[#allocation2 + $0x10] sm:$0xff] 0.0
        %292 = vst [vmem:[#allocation2 + $0x18] sm:$0xff] 0.0
      $region36: #{forward.22} parent=31 // pred_fallthru
        _
      %v293 = vld [vmem:[#allocation2] sm:$0xff]
      %v294 = vld [vmem:[#allocation2 + $0x8] sm:$0xff]
      %v295 = vld [vmem:[#allocation2 + $0x10] sm:$0xff]
      %v296 = vld [vmem:[#allocation2 + $0x18] sm:$0xff]
      %v297 = vld [vmem:[%s253] sm:$0xff]
      %v298 = vld [vmem:[%s253 + $0x8] sm:$0xff]
      %v299 = vld [vmem:[%s265] sm:$0xff]
      %v300 = vld [vmem:[%s265 + $0x8] sm:$0xff]
      %v301 = vld [vmem:[%s265 + $0x10] sm:$0xff]
      %v302 = vld [vmem:[%s265 + $0x18] sm:$0xff]
      %v303 = vld [vmem:[%s265 + $0x20] sm:$0xff]
      %v304 = vld [vmem:[%s265 + $0x28] sm:$0xff]
      %v305 = vld [vmem:[%s265 + $0x30] sm:$0xff]
      %v306 = vld [vmem:[%s265 + $0x38] sm:$0xff]
      %v307 = vld [vmem:[%s265 + $0x40] sm:$0xff]
      %v308 = vld [vmem:[%s265 + $0x48] sm:$0xff]
      %v309 = vld [vmem:[%s265 + $0x50] sm:$0xff]
      %v310 = vld [vmem:[%s265 + $0x58] sm:$0xff]
      %v311 = vld [vmem:[%s265 + $0x60] sm:$0xff]
      %v312 = vld [vmem:[%s265 + $0x68] sm:$0xff]
      %v313 = vld [vmem:[%s265 + $0x70] sm:$0xff]
      %v314 = vld [vmem:[%s265 + $0x78] sm:$0xff]
      %v315 = vld [vmem:[%s265 + $0x80] sm:$0xff]
      %v316 = vld [vmem:[%s265 + $0x88] sm:$0xff]
      %v317 = vld [vmem:[%s265 + $0x90] sm:$0xff]
      %v318 = vld [vmem:[%s265 + $0x98] sm:$0xff]
      %v319 = vld [vmem:[%s265 + $0xa0] sm:$0xff]
      %v320 = vld [vmem:[%s265 + $0xa8] sm:$0xff]
      %v321 = vld [vmem:[%s265 + $0xb0] sm:$0xff]
      %v322 = vld [vmem:[%s265 + $0xb8] sm:$0xff]
      %v323 = vld [vmem:[%s265 + $0xc0] sm:$0xff]
      %v324 = vld [vmem:[%s265 + $0xc8] sm:$0xff]
      %v325 = vld [vmem:[%s265 + $0xd0] sm:$0xff]
      %v326 = vld [vmem:[%s265 + $0xd8] sm:$0xff]
      %v327 = vld [vmem:[%s265 + $0xe0] sm:$0xff]
      %v328 = vld [vmem:[%s265 + $0xe8] sm:$0xff]
      %v329 = vld [vmem:[%s265 + $0xf0] sm:$0xff]
      %v330 = vld [vmem:[%s265 + $0xf8] sm:$0xff]
      %v333 = vunpack.c.l.b16 %v297
      %v334 = vunpack.c.h.b16 %v297
      %v335 = vunpack.c.l.b16 %v298
      %v336 = vunpack.c.h.b16 %v298
      %v337 = vpack.c.b16 %v335, %v333
      %v338 = vpack.c.b16 %v336, %v334
      %v373 = vunpack.c.l.b16 %v299
      %v374 = vunpack.c.h.b16 %v299
      %v375 = vunpack.c.l.b16 %v300
      %v376 = vunpack.c.h.b16 %v300
      %v377 = vunpack.c.l.b16 %v301
      %v378 = vunpack.c.h.b16 %v301
      %v379 = vunpack.c.l.b16 %v302
      %v380 = vunpack.c.h.b16 %v302
      %v381 = vunpack.c.l.b16 %v303
      %v382 = vunpack.c.h.b16 %v303
      %v383 = vunpack.c.l.b16 %v304
      %v384 = vunpack.c.h.b16 %v304
      %v385 = vunpack.c.l.b16 %v305
      %v386 = vunpack.c.h.b16 %v305
      %v387 = vunpack.c.l.b16 %v306
      %v388 = vunpack.c.h.b16 %v306
      %v389 = vunpack.c.l.b16 %v307
      %v390 = vunpack.c.h.b16 %v307
      %v391 = vunpack.c.l.b16 %v308
      %v392 = vunpack.c.h.b16 %v308
      %v393 = vunpack.c.l.b16 %v309
      %v394 = vunpack.c.h.b16 %v309
      %v395 = vunpack.c.l.b16 %v310
      %v396 = vunpack.c.h.b16 %v310
      %v397 = vunpack.c.l.b16 %v311
      %v398 = vunpack.c.h.b16 %v311
      %v399 = vunpack.c.l.b16 %v312
      %v400 = vunpack.c.h.b16 %v312
      %v401 = vunpack.c.l.b16 %v313
      %v402 = vunpack.c.h.b16 %v313
      %v403 = vunpack.c.l.b16 %v314
      %v404 = vunpack.c.h.b16 %v314
      %v405 = vunpack.c.l.b16 %v315
      %v406 = vunpack.c.h.b16 %v315
      %v407 = vunpack.c.l.b16 %v316
      %v408 = vunpack.c.h.b16 %v316
      %v409 = vunpack.c.l.b16 %v317
      %v410 = vunpack.c.h.b16 %v317
      %v411 = vunpack.c.l.b16 %v318
      %v412 = vunpack.c.h.b16 %v318
      %v413 = vunpack.c.l.b16 %v319
      %v414 = vunpack.c.h.b16 %v319
      %v415 = vunpack.c.l.b16 %v320
      %v416 = vunpack.c.h.b16 %v320
      %v417 = vunpack.c.l.b16 %v321
      %v418 = vunpack.c.h.b16 %v321
      %v419 = vunpack.c.l.b16 %v322
      %v420 = vunpack.c.h.b16 %v322
      %v421 = vunpack.c.l.b16 %v323
      %v422 = vunpack.c.h.b16 %v323
      %v423 = vunpack.c.l.b16 %v324
      %v424 = vunpack.c.h.b16 %v324
      %v425 = vunpack.c.l.b16 %v325
      %v426 = vunpack.c.h.b16 %v325
      %v427 = vunpack.c.l.b16 %v326
      %v428 = vunpack.c.h.b16 %v326
      %v429 = vunpack.c.l.b16 %v327
      %v430 = vunpack.c.h.b16 %v327
      %v431 = vunpack.c.l.b16 %v328
      %v432 = vunpack.c.h.b16 %v328
      %v433 = vunpack.c.l.b16 %v329
      %v434 = vunpack.c.h.b16 %v329
      %v435 = vunpack.c.l.b16 %v330
      %v436 = vunpack.c.h.b16 %v330
      %v437 = vpack.c.b16 %v375, %v373
      %v438 = vpack.c.b16 %v376, %v374
      %v439 = vpack.c.b16 %v379, %v377
      %v440 = vpack.c.b16 %v380, %v378
      %v441 = vpack.c.b16 %v383, %v381
      %v442 = vpack.c.b16 %v384, %v382
      %v443 = vpack.c.b16 %v387, %v385
      %v444 = vpack.c.b16 %v388, %v386
      %v445 = vpack.c.b16 %v391, %v389
      %v446 = vpack.c.b16 %v392, %v390
      %v447 = vpack.c.b16 %v395, %v393
      %v448 = vpack.c.b16 %v396, %v394
      %v449 = vpack.c.b16 %v399, %v397
      %v450 = vpack.c.b16 %v400, %v398
      %v451 = vpack.c.b16 %v403, %v401
      %v452 = vpack.c.b16 %v404, %v402
      %v453 = vpack.c.b16 %v407, %v405
      %v454 = vpack.c.b16 %v408, %v406
      %v455 = vpack.c.b16 %v411, %v409
      %v456 = vpack.c.b16 %v412, %v410
      %v457 = vpack.c.b16 %v415, %v413
      %v458 = vpack.c.b16 %v416, %v414
      %v459 = vpack.c.b16 %v419, %v417
      %v460 = vpack.c.b16 %v420, %v418
      %v461 = vpack.c.b16 %v423, %v421
      %v462 = vpack.c.b16 %v424, %v422
      %v463 = vpack.c.b16 %v427, %v425
      %v464 = vpack.c.b16 %v428, %v426
      %v465 = vpack.c.b16 %v431, %v429
      %v466 = vpack.c.b16 %v432, %v430
      %v467 = vpack.c.b16 %v435, %v433
      %v468 = vpack.c.b16 %v436, %v434
      %501 = vmatprep.subr.bf16.mxu0 %v438
      %502 = vmatpush1.bf16.msra.mxu0 %v437
      %503 = vmatprep.subr.bf16.mxu0 %v440
      %504 = vmatpush1.bf16.msra.mxu0 %v439
      %505 = vmatprep.subr.bf16.mxu0 %v442
      %506 = vmatpush1.bf16.msra.mxu0 %v441
      %507 = vmatprep.subr.bf16.mxu0 %v444
      %508 = vmatpush1.bf16.msra.mxu0 %v443
      %509 = vmatprep.subr.bf16.mxu0 %v446
      %510 = vmatpush1.bf16.msra.mxu0 %v445
      %511 = vmatprep.subr.bf16.mxu0 %v448
      %512 = vmatpush1.bf16.msra.mxu0 %v447
      %513 = vmatprep.subr.bf16.mxu0 %v450
      %514 = vmatpush1.bf16.msra.mxu0 %v449
      %515 = vmatprep.subr.bf16.mxu0 %v452
      %516 = vmatpush1.bf16.msra.mxu0 %v451
      %517 = vmatprep.subr.bf16.mxu0 %v454
      %518 = vmatpush1.bf16.msra.mxu0 %v453
      %519 = vmatprep.subr.bf16.mxu0 %v456
      %520 = vmatpush1.bf16.msra.mxu0 %v455
      %521 = vmatprep.subr.bf16.mxu0 %v458
      %522 = vmatpush1.bf16.msra.mxu0 %v457
      %523 = vmatprep.subr.bf16.mxu0 %v460
      %524 = vmatpush1.bf16.msra.mxu0 %v459
      %525 = vmatprep.subr.bf16.mxu0 %v462
      %526 = vmatpush1.bf16.msra.mxu0 %v461
      %527 = vmatprep.subr.bf16.mxu0 %v464
      %528 = vmatpush1.bf16.msra.mxu0 %v463
      %529 = vmatprep.subr.bf16.mxu0 %v466
      %530 = vmatpush1.bf16.msra.mxu0 %v465
      %531 = vmatprep.subr.bf16.mxu0 %v468
      %532 = vmatpush1.bf16.msra.mxu0 %v467
      %533 = vmatprep.mubr.bf16.mxu0 %v338
      %534 = vmatmul.mubr.bf16.gmra.mrb[0].mxu0 %v337
      %v535 = vpop.f32.mrb[0].mxu0
      %v536 = vadd.f32 0.0, %v535
      %v537 = vpop.f32.mrb[0].mxu0
      %v538 = vadd.f32 0.0, %v537
      %v539 = vpop.f32.mrb[0].mxu0
      %v540 = vadd.f32 0.0, %v539
      %v541 = vpop.f32.mrb[0].mxu0
      %v542 = vadd.f32 0.0, %v541
      %543 = vdwg.mxu0
      %v544 = vadd.f32 %v293, %v536
      %v545 = vadd.f32 %v294, %v538
      %v546 = vadd.f32 %v295, %v540
      %v547 = vadd.f32 %v296, %v542
      %548 = vst [vmem:[#allocation2] sm:$0xff] %v544
      %549 = vst [vmem:[#allocation2 + $0x8] sm:$0xff] %v545
      %550 = vst [vmem:[#allocation2 + $0x10] sm:$0xff] %v546
      %551 = vst [vmem:[#allocation2 + $0x18] sm:$0xff] %v547
      // Predicated region
      $region37: #{forward.22} parent=31 // pred_check
        %p552 = pneg %p285
      $region38: #{forward.22} parent=31 // pred_check_branch
        %554 = sbr.rel (%p552) target = $region40
      $region39: #{forward.22} parent=31 // pred_region
        %v555 = vld [vmem:[#allocation2] sm:$0xff]
        %v556 = vld [vmem:[#allocation2 + $0x8] sm:$0xff]
        %v557 = vld [vmem:[#allocation2 + $0x10] sm:$0xff]
        %v558 = vld [vmem:[#allocation2 + $0x18] sm:$0xff]
        %v559 = vld [vmem:[%s271] sm:$0x3]
        %v561 = vlaneseq
        %v562 = vshrl.u32 %v561, 7
        %v563 = vsub.s32 0, %v562
        %v564 = vrot.slane %v559, %v563
        %v565 = vlaneseq
        %v566 = vshrl.u32 %v565, 7
        %v567 = vsub.s32 1, %v566
        %v568 = vrot.slane %v559, %v567
        %v571 = vadd.f32 %v555, %v564
        %v572 = vadd.f32 %v556, %v568
        %v573 = vadd.f32 %v557, %v564
        %v574 = vadd.f32 %v558, %v568
        %v575 = vpack.c.bf16 %v573, %v571
        %v576 = vpack.c.bf16 %v574, %v572
        %v579 = vunpack.c.l.b16 %v575
        %v580 = vunpack.c.l.b16 %v576
        %v581 = vunpack.c.h.b16 %v575
        %v582 = vunpack.c.h.b16 %v576
        %v583 = vpack.c.b16 %v580, %v579
        %v584 = vpack.c.b16 %v582, %v581
        %587 = vst [vmem:[%s282] sm:$0xff] %v583
        %588 = vst [vmem:[%s282 + $0x8] sm:$0xff] %v584
      $region40: #{forward.22} parent=31 // pred_fallthru
        _
      %s589 = smul.u32 2, %s19
      %s590 = smul.u32 2, %s20
      %p591 = scmp.lt.s32.totalorder %s589, 3
      %s592 = scalar_select %p591, %s589, 3
      %p593 = scmp.lt.s32.totalorder %s590, 1
      %s594 = scalar_select %p593, %s590, 1
      %s595 = smul.addr %s592, 2
      %s596 = sadd.s32 %s594, %s595
      %s597 = smul.addr %s596, 4
      %s598 = scalar_lea.vmem %s3, %s597
      // Predicated region
      $region41: #{forward.22} parent=31 // pred_check
        %p599 = pneg %p135
      $region42: #{forward.22} parent=31 // pred_check_branch
        %601 = sbr.rel (%p599) target = $region44
      $region43: #{forward.22} parent=31 // pred_region
        %s602 = smul.u32 2, %s19
        %s603 = smul.u32 2, %s20
      $region44: #{forward.22} parent=31 // pred_fallthru
        _
    $region32: #{forward.22} parent=5 // pred_fallthru
      _
    %p604 = scmp.le.s32.totalorder 2, %s9
    // Predicated region
    $region45: #{forward.22} parent=5 // pred_check
      %p605 = pneg %p604
    $region46: #{forward.22} parent=5 // pred_check_branch
      %607 = sbr.rel (%p605) target = $region48
    $region47: #{forward.22} parent=5 // pred_region
      %s608 = ssub.s32 %s9, 2
      // Predicated region
      $region49: #{forward.22} parent=47 // pred_check
        %p609 = pneg %p141
      $region50: #{forward.22} parent=47 // pred_check_branch
        %611 = sbr.rel (%p609) target = $region52
      $region51: #{forward.22} parent=47 // pred_region
        %s612 = smul.u32 2, %s22
        %s613 = smul.u32 2, %s23
        %p614 = scmp.lt.s32.totalorder %s612, 3
        %s615 = scalar_select %p614, %s612, 3
        %p616 = scmp.lt.s32.totalorder %s613, 1
        %s617 = scalar_select %p616, %s613, 1
        %s618 = smul.addr %s615, 2
        %s619 = sadd.s32 %s617, %s618
        %s620 = smul.addr %s619, 4
        %s621 = scalar_lea.vmem %s3, %s620
      $region52: #{forward.22} parent=47 // pred_fallthru
        _
    $region48: #{forward.22} parent=5 // pred_fallthru
      _
  $region6: #{forward.22} parent=0 // loop_footer
    %s13 = sadd.s32 1, %s9
  $region7: #{forward.22} parent=0 // loop_footer_branch
    %8 = sbr.rel target = $region3
  $region8: #{forward.22} parent=0 // loop_exit
    _

// kernel: forward.19
$region0: #{forward.19}
  #allocation0 [shape = 'u32[]', space=smem, size = 0x4, offset = 0x4, fixed_abs, tag = 'smem constant byte address 0x4 - core index']
  #allocation1 [shape = 'u32[144,128]{1,0:T(1,128)}', space=vmem, size = 0x12000, scoped, tag = 'internal scratch']
  #allocation2 [shape = 'f32[16,768]{1,0:T(8,128)}', space=vmem, size = 0xc000, scoped, tag = 'scratch operand']
  %s0 = inlined_call_operand.vmem [shape: bf16[32,256], index: 0, kind: input, shape index: {}]
  %s1 = inlined_call_operand.vmem [shape: bf16[256,768], index: 1, kind: input, shape index: {}]
  %s2 = inlined_call_operand.vmem [shape: f32[1,768], index: 2, kind: input, shape index: {}]
  %s3 = inlined_call_operand.vmem [shape: bf16[32,768], index: 3, kind: output, shape index: {}]
  %s4 = sld [smem:[#allocation0]]
  $region53: #{forward.19} parent=0
    _
  %s6 = ssub.s32 1, %s4
  %s7 = scalar_select 0, %s6, %s4
  loop: start=0, step=1, limit=4
  $region2: #{forward.19} parent=0 // loop_pre_header
    _
  $region3: #{forward.19} parent=0 // loop_header
    %s9 = sphi 0, %s13
    %p10 = scmp.ge.s32.totalorder %s9, 4
    %s16 = sphi 0, %s35
    %s17 = sphi 0, %s31
    %s18 = sphi 0, %s27
    %s19 = sphi 0, %s16
    %s20 = sphi 0, %s17
    %s21 = sphi 0, %s18
    %s22 = sphi 0, %s19
    %s23 = sphi 0, %s20
    %s24 = sphi 0, %s21
    %s40 = sphi 0, %s42
    %s43 = sphi 0, %s40
    %s44 = sphi 0, %s43
    %s60 = sphi 0, %s44
    %s68 = sphi 0, %s70
    %s71 = sphi 0, %s68
    %s72 = sphi 0, %s71
    %s88 = sphi 0, %s72
    %s94 = sphi 0, %s96
    %s97 = sphi 0, %s94
    %s98 = sphi 0, %s97
    %s114 = sphi 0, %s98
    %s122 = sphi 0, %s124
    %s125 = sphi 0, %s122
    %s126 = sphi 0, %s125
    %s142 = sphi 0, %s126
  $region4: #{forward.19} parent=0 // loop_header_branch
    %12 = sbr.rel (%p10) target = $region8
  $region5: #{forward.19} parent=0 // loop_body
    %s14 = ssub.s32 %s9, 1
    %s15 = ssub.s32 %s9, 2
    %s25 = sadd.s32 1, %s18
    %p26 = scmp.ge.s32.totalorder %s25, 1
    %s27 = scalar_select %p26, 0, %s25
    %s28 = sadd.s32 1, %s17
    %s29 = scalar_select %p26, %s28, %s17
    %p30 = scmp.ge.s32.totalorder %s29, 1
    %s31 = scalar_select %p30, 0, %s29
    %s32 = sadd.s32 1, %s16
    %s33 = scalar_select %p30, %s32, %s16
    %p34 = scmp.ge.s32.totalorder %s33, 2
    %s35 = scalar_select %p34, 0, %s33
    %s36 = ssub.s32 %s16, %s35
    %s37 = ssub.s32 %s18, %s27
    %s38 = sor.u32 %s36, %s37
    %p39 = scmp.eq.s32.totalorder %s38, 0
    %s41 = sadd.s32 %s40, 1
    %s42 = scalar_select %p39, %s40, %s41
    %p45 = pneg %p39
    %p46 = scmp.eq.s32.totalorder %s9, 1
    %p47 = por %p45, %p46
    %p48 = scmp.ne.s32.totalorder %s40, %s43
    %p49 = scmp.eq.s32.totalorder %s9, 0
    %p50 = por %p48, %p49
    %p51 = scmp.ne.s32.totalorder %s40, %s43
    %p52 = scmp.eq.s32.totalorder %s14, 1
    %p53 = por %p51, %p52
    %p54 = scmp.ne.s32.totalorder %s43, %s44
    %p55 = scmp.eq.s32.totalorder %s14, 0
    %p56 = por %p54, %p55
    %p57 = scmp.ne.s32.totalorder %s43, %s44
    %p58 = scmp.eq.s32.totalorder %s15, 1
    %p59 = por %p57, %p58
    %p61 = scmp.ne.s32.totalorder %s44, %s60
    %p62 = scmp.eq.s32.totalorder %s15, 0
    %p63 = por %p61, %p62
    %s64 = ssub.s32 %s18, %s27
    %s65 = ssub.s32 %s17, %s31
    %s66 = sor.u32 %s64, %s65
    %p67 = scmp.eq.s32.totalorder %s66, 0
    %s69 = sadd.s32 %s68, 1
    %s70 = scalar_select %p67, %s68, %s69
    %p73 = pneg %p67
    %p74 = scmp.eq.s32.totalorder %s9, 1
    %p75 = por %p73, %p74
    %p76 = scmp.ne.s32.totalorder %s68, %s71
    %p77 = scmp.eq.s32.totalorder %s9, 0
    %p78 = por %p76, %p77
    %p79 = scmp.ne.s32.totalorder %s68, %s71
    %p80 = scmp.eq.s32.totalorder %s14, 1
    %p81 = por %p79, %p80
    %p82 = scmp.ne.s32.totalorder %s71, %s72
    %p83 = scmp.eq.s32.totalorder %s14, 0
    %p84 = por %p82, %p83
    %p85 = scmp.ne.s32.totalorder %s71, %s72
    %p86 = scmp.eq.s32.totalorder %s15, 1
    %p87 = por %p85, %p86
    %p89 = scmp.ne.s32.totalorder %s72, %s88
    %p90 = scmp.eq.s32.totalorder %s15, 0
    %p91 = por %p89, %p90
    %s92 = ssub.s32 %s17, %s31
    %p93 = scmp.eq.s32.totalorder %s92, 0
    %s95 = sadd.s32 %s94, 1
    %s96 = scalar_select %p93, %s94, %s95
    %p99 = pneg %p93
    %p100 = scmp.eq.s32.totalorder %s9, 1
    %p101 = por %p99, %p100
    %p102 = scmp.ne.s32.totalorder %s94, %s97
    %p103 = scmp.eq.s32.totalorder %s9, 0
    %p104 = por %p102, %p103
    %p105 = scmp.ne.s32.totalorder %s94, %s97
    %p106 = scmp.eq.s32.totalorder %s14, 1
    %p107 = por %p105, %p106
    %p108 = scmp.ne.s32.totalorder %s97, %s98
    %p109 = scmp.eq.s32.totalorder %s14, 0
    %p110 = por %p108, %p109
    %p111 = scmp.ne.s32.totalorder %s97, %s98
    %p112 = scmp.eq.s32.totalorder %s15, 1
    %p113 = por %p111, %p112
    %p115 = scmp.ne.s32.totalorder %s98, %s114
    %p116 = scmp.eq.s32.totalorder %s15, 0
    %p117 = por %p115, %p116
    %s118 = ssub.s32 %s16, %s35
    %s119 = ssub.s32 %s17, %s31
    %s120 = sor.u32 %s118, %s119
    %p121 = scmp.eq.s32.totalorder %s120, 0
    %s123 = sadd.s32 %s122, 1
    %s124 = scalar_select %p121, %s122, %s123
    %p127 = pneg %p121
    %p128 = scmp.eq.s32.totalorder %s9, 1
    %p129 = por %p127, %p128
    %p130 = scmp.ne.s32.totalorder %s122, %s125
    %p131 = scmp.eq.s32.totalorder %s9, 0
    %p132 = por %p130, %p131
    %p133 = scmp.ne.s32.totalorder %s122, %s125
    %p134 = scmp.eq.s32.totalorder %s14, 1
    %p135 = por %p133, %p134
    %p136 = scmp.ne.s32.totalorder %s125, %s126
    %p137 = scmp.eq.s32.totalorder %s14, 0
    %p138 = por %p136, %p137
    %p139 = scmp.ne.s32.totalorder %s125, %s126
    %p140 = scmp.eq.s32.totalorder %s15, 1
    %p141 = por %p139, %p140
    %p143 = scmp.ne.s32.totalorder %s126, %s142
    %p144 = scmp.eq.s32.totalorder %s15, 0
    %p145 = por %p143, %p144
    %p146 = scmp.le.s32.totalorder 1, %s9
    %p147 = scmp.lt.s32.totalorder %s9, 3
    %p148 = pnand %p146, %p147
    %p149 = pneg %p148
    // Predicated region
    $region9: #{forward.19} parent=5 // pred_check
      _
    $region10: #{forward.19} parent=5 // pred_check_branch
      %151 = sbr.rel (%p148) target = $region12
    $region11: #{forward.19} parent=5 // pred_region
      %s152 = ssub.s32 %s9, 1
      // Predicated region
      $region13: #{forward.19} parent=11 // pred_check
        %p153 = pneg %p84
      $region14: #{forward.19} parent=11 // pred_check_branch
        %155 = sbr.rel (%p153) target = $region16
      $region15: #{forward.19} parent=11 // pred_region
        %s156 = smul.u32 32, %s21
        %s157 = smul.u32 6, %s20
        %p158 = scmp.lt.s32.totalorder %s156, 31
        %s159 = scalar_select %p158, %s156, 31
        %p160 = scmp.lt.s32.totalorder %s157, 5
        %s161 = scalar_select %p160, %s157, 5
        %s162 = smul.addr %s159, 6
        %s163 = sadd.s32 %s161, %s162
        %s164 = smul.addr %s163, 4
        %s165 = scalar_lea.vmem %s1, %s164
        %s166 = smul.u32 32, %s21
        %s167 = smul.u32 6, %s20
      $region16: #{forward.19} parent=11 // pred_fallthru
        _
      // Predicated region
      $region17: #{forward.19} parent=11 // pred_check
        %p168 = pneg %p110
      $region18: #{forward.19} parent=11 // pred_check_branch
        %170 = sbr.rel (%p168) target = $region20
      $region19: #{forward.19} parent=11 // pred_region
        %s171 = smul.u32 6, %s20
        %p172 = scmp.lt.s32.totalorder %s171, 5
        %s173 = scalar_select %p172, %s171, 5
        %s174 = scalar_lea.vmem %s2, %s173
        %s175 = smul.u32 6, %s20
      $region20: #{forward.19} parent=11 // pred_fallthru
        _
    $region12: #{forward.19} parent=5 // pred_fallthru
      _
    %p176 = scmp.lt.s32.totalorder %s9, 2
    // Predicated region
    $region21: #{forward.19} parent=5 // pred_check
      %p177 = pneg %p176
    $region22: #{forward.19} parent=5 // pred_check_branch
      %179 = sbr.rel (%p177) target = $region24
    $region23: #{forward.19} parent=5 // pred_region
      // Predicated region
      $region25: #{forward.19} parent=23 // pred_check
        %p180 = pneg %p50
      $region26: #{forward.19} parent=23 // pred_check_branch
        %182 = sbr.rel (%p180) target = $region28
      $region27: #{forward.19} parent=23 // pred_region
        %s183 = smul.u32 2, %s16
        %s184 = smul.u32 2, %s18
        %p185 = scmp.lt.s32.totalorder %s183, 3
        %s186 = scalar_select %p185, %s183, 3
        %p187 = scmp.lt.s32.totalorder %s184, 1
        %s188 = scalar_select %p187, %s184, 1
        %s189 = smul.addr %s186, 2
        %s190 = sadd.s32 %s188, %s189
        %s191 = smul.addr %s190, 4
        %s192 = scalar_lea.vmem %s0, %s191
        %s193 = smul.u32 2, %s16
        %s194 = smul.u32 2, %s18
      $region28: #{forward.19} parent=23 // pred_fallthru
        _
    $region24: #{forward.19} parent=5 // pred_fallthru
      _
    %p195 = scmp.le.s32.totalorder 1, %s9
    %p196 = scmp.lt.s32.totalorder %s9, 3
    %p197 = pnand %p195, %p196
    %p198 = pneg %p197
    // Predicated region
    $region29: #{forward.19} parent=5 // pred_check
      _
    $region30: #{forward.19} parent=5 // pred_check_branch
      %200 = sbr.rel (%p197) target = $region32
    $region31: #{forward.19} parent=5 // pred_region
      %s201 = ssub.s32 %s9, 1
      %s202 = smul.u32 2, %s19
      %s203 = smul.u32 2, %s21
      %p204 = scmp.lt.s32.totalorder %s202, 3
      %s205 = scalar_select %p204, %s202, 3
      %p206 = scmp.lt.s32.totalorder %s203, 1
      %s207 = scalar_select %p206, %s203, 1
      %s208 = smul.addr %s205, 2
      %s209 = sadd.s32 %s207, %s208
      %s210 = smul.addr %s209, 4
      %s211 = scalar_lea.vmem %s0, %s210
      %p212 = pneg %p56
      %p213 = pneg %p53
      %s214 = smul.u32 32, %s21
      %s215 = smul.u32 6, %s20
      %p216 = scmp.lt.s32.totalorder %s214, 31
      %s217 = scalar_select %p216, %s214, 31
      %p218 = scmp.lt.s32.totalorder %s215, 5
      %s219 = scalar_select %p218, %s215, 5
      %s220 = smul.addr %s217, 6
      %s221 = sadd.s32 %s219, %s220
      %s222 = smul.addr %s221, 4
      %s223 = scalar_lea.vmem %s1, %s222
      %p224 = pneg %p84
      %p225 = pneg %p81
      %s226 = smul.u32 6, %s20
      %p227 = scmp.lt.s32.totalorder %s226, 5
      %s228 = scalar_select %p227, %s226, 5
      %s229 = scalar_lea.vmem %s2, %s228
      %p230 = pneg %p110
      %p231 = pneg %p107
      %p232 = pneg %p138
      %p233 = pneg %p135
      %s234 = smul.u32 2, %s19
      %s235 = smul.u32 6, %s20
      %p236 = scmp.lt.s32.totalorder %s234, 3
      %s237 = scalar_select %p236, %s234, 3
      %p238 = scmp.lt.s32.totalorder %s235, 5
      %s239 = scalar_select %p238, %s235, 5
      %s240 = smul.addr %s237, 6
      %s241 = sadd.s32 %s239, %s240
      %s242 = smul.addr %s241, 4
      %s243 = scalar_lea.vmem %s3, %s242
      %s244 = smul.u32 2, %s19
      %s245 = smul.u32 2, %s21
      %p246 = scmp.lt.s32.totalorder %s244, 3
      %s247 = scalar_select %p246, %s244, 3
      %p248 = scmp.lt.s32.totalorder %s245, 1
      %s249 = scalar_select %p248, %s245, 1
      %s250 = smul.addr %s247, 2
      %s251 = sadd.s32 %s249, %s250
      %s252 = smul.addr %s251, 4
      %s253 = scalar_lea.vmem %s0, %s252
      %s254 = smul.u32 2, %s19
      %s255 = smul.u32 2, %s21
      %s256 = smul.u32 32, %s21
      %s257 = smul.u32 6, %s20
      %p258 = scmp.lt.s32.totalorder %s256, 31
      %s259 = scalar_select %p258, %s256, 31
      %p260 = scmp.lt.s32.totalorder %s257, 5
      %s261 = scalar_select %p260, %s257, 5
      %s262 = smul.addr %s259, 6
      %s263 = sadd.s32 %s261, %s262
      %s264 = smul.addr %s263, 4
      %s265 = scalar_lea.vmem %s1, %s264
      %s266 = smul.u32 32, %s21
      %s267 = smul.u32 6, %s20
      %s268 = smul.u32 6, %s20
      %p269 = scmp.lt.s32.totalorder %s268, 5
      %s270 = scalar_select %p269, %s268, 5
      %s271 = scalar_lea.vmem %s2, %s270
      %s272 = smul.u32 6, %s20
      %s273 = smul.u32 2, %s19
      %s274 = smul.u32 6, %s20
      %p275 = scmp.lt.s32.totalorder %s273, 3
      %s276 = scalar_select %p275, %s273, 3
      %p277 = scmp.lt.s32.totalorder %s274, 5
      %s278 = scalar_select %p277, %s274, 5
      %s279 = smul.addr %s276, 6
      %s280 = sadd.s32 %s278, %s279
      %s281 = smul.addr %s280, 4
      %s282 = scalar_lea.vmem %s3, %s281
      %s283 = smul.u32 2, %s19
      %s284 = smul.u32 6, %s20
      %p285 = scmp.eq.s32.totalorder %s21, 0
      // Predicated region
      $region33: #{forward.19} parent=31 // pred_check
        %p286 = pneg %p285
      $region34: #{forward.19} parent=31 // pred_check_branch
        %288 = sbr.rel (%p286) target = $region36
      $region35: #{forward.19} parent=31 // pred_region
        %289 = vst [vmem:[#allocation2] sm:$0xff] 0.0
        %290 = vst [vmem:[#allocation2 + $0x8] sm:$0xff] 0.0
        %291 = vst [vmem:[#allocation2 + $0x10] sm:$0xff] 0.0
        %292 = vst [vmem:[#allocation2 + $0x18] sm:$0xff] 0.0
        %293 = vst [vmem:[#allocation2 + $0x20] sm:$0xff] 0.0
        %294 = vst [vmem:[#allocation2 + $0x28] sm:$0xff] 0.0
        %295 = vst [vmem:[#allocation2 + $0x30] sm:$0xff] 0.0
        %296 = vst [vmem:[#allocation2 + $0x38] sm:$0xff] 0.0
        %297 = vst [vmem:[#allocation2 + $0x40] sm:$0xff] 0.0
        %298 = vst [vmem:[#allocation2 + $0x48] sm:$0xff] 0.0
        %299 = vst [vmem:[#allocation2 + $0x50] sm:$0xff] 0.0
        %300 = vst [vmem:[#allocation2 + $0x58] sm:$0xff] 0.0
      $region36: #{forward.19} parent=31 // pred_fallthru
        _
      %v301 = vld [vmem:[#allocation2] sm:$0xff]
      %v302 = vld [vmem:[#allocation2 + $0x8] sm:$0xff]
      %v303 = vld [vmem:[#allocation2 + $0x10] sm:$0xff]
      %v304 = vld [vmem:[#allocation2 + $0x18] sm:$0xff]
      %v305 = vld [vmem:[#allocation2 + $0x20] sm:$0xff]
      %v306 = vld [vmem:[#allocation2 + $0x28] sm:$0xff]
      %v307 = vld [vmem:[#allocation2 + $0x30] sm:$0xff]
      %v308 = vld [vmem:[#allocation2 + $0x38] sm:$0xff]
      %v309 = vld [vmem:[#allocation2 + $0x40] sm:$0xff]
      %v310 = vld [vmem:[#allocation2 + $0x48] sm:$0xff]
      %v311 = vld [vmem:[#allocation2 + $0x50] sm:$0xff]
      %v312 = vld [vmem:[#allocation2 + $0x58] sm:$0xff]
      %v313 = vld [vmem:[%s253] sm:$0xff]
      %v314 = vld [vmem:[%s253 + $0x8] sm:$0xff]
      %v315 = vld [vmem:[%s265] sm:$0xff]
      %v316 = vld [vmem:[%s265 + $0x8] sm:$0xff]
      %v317 = vld [vmem:[%s265 + $0x10] sm:$0xff]
      %v318 = vld [vmem:[%s265 + $0x18] sm:$0xff]
      %v319 = vld [vmem:[%s265 + $0x20] sm:$0xff]
      %v320 = vld [vmem:[%s265 + $0x28] sm:$0xff]
      %v321 = vld [vmem:[%s265 + $0x30] sm:$0xff]
      %v322 = vld [vmem:[%s265 + $0x38] sm:$0xff]
      %v323 = vld [vmem:[%s265 + $0x40] sm:$0xff]
      %v324 = vld [vmem:[%s265 + $0x48] sm:$0xff]
      %v325 = vld [vmem:[%s265 + $0x50] sm:$0xff]
      %v326 = vld [vmem:[%s265 + $0x58] sm:$0xff]
      %v327 = vld [vmem:[%s265 + $0x60] sm:$0xff]
      %v328 = vld [vmem:[%s265 + $0x68] sm:$0xff]
      %v329 = vld [vmem:[%s265 + $0x70] sm:$0xff]
      %v330 = vld [vmem:[%s265 + $0x78] sm:$0xff]
      %v331 = vld [vmem:[%s265 + $0x80] sm:$0xff]
      %v332 = vld [vmem:[%s265 + $0x88] sm:$0xff]
      %v333 = vld [vmem:[%s265 + $0x90] sm:$0xff]
      %v334 = vld [vmem:[%s265 + $0x98] sm:$0xff]
      %v335 = vld [vmem:[%s265 + $0xa0] sm:$0xff]
      %v336 = vld [vmem:[%s265 + $0xa8] sm:$0xff]
      %v337 = vld [vmem:[%s265 + $0xb0] sm:$0xff]
      %v338 = vld [vmem:[%s265 + $0xb8] sm:$0xff]
      %v339 = vld [vmem:[%s265 + $0xc0] sm:$0xff]
      %v340 = vld [vmem:[%s265 + $0xc8] sm:$0xff]
      %v341 = vld [vmem:[%s265 + $0xd0] sm:$0xff]
      %v342 = vld [vmem:[%s265 + $0xd8] sm:$0xff]
      %v343 = vld [vmem:[%s265 + $0xe0] sm:$0xff]
      %v344 = vld [vmem:[%s265 + $0xe8] sm:$0xff]
      %v345 = vld [vmem:[%s265 + $0xf0] sm:$0xff]
      %v346 = vld [vmem:[%s265 + $0xf8] sm:$0xff]
      %v347 = vld [vmem:[%s265 + $0x100] sm:$0xff]
      %v348 = vld [vmem:[%s265 + $0x108] sm:$0xff]
      %v349 = vld [vmem:[%s265 + $0x110] sm:$0xff]
      %v350 = vld [vmem:[%s265 + $0x118] sm:$0xff]
      %v351 = vld [vmem:[%s265 + $0x120] sm:$0xff]
      %v352 = vld [vmem:[%s265 + $0x128] sm:$0xff]
      %v353 = vld [vmem:[%s265 + $0x130] sm:$0xff]
      %v354 = vld [vmem:[%s265 + $0x138] sm:$0xff]
      %v355 = vld [vmem:[%s265 + $0x140] sm:$0xff]
      %v356 = vld [vmem:[%s265 + $0x148] sm:$0xff]
      %v357 = vld [vmem:[%s265 + $0x150] sm:$0xff]
      %v358 = vld [vmem:[%s265 + $0x158] sm:$0xff]
      %v359 = vld [vmem:[%s265 + $0x160] sm:$0xff]
      %v360 = vld [vmem:[%s265 + $0x168] sm:$0xff]
      %v361 = vld [vmem:[%s265 + $0x170] sm:$0xff]
      %v362 = vld [vmem:[%s265 + $0x178] sm:$0xff]
      %v363 = vld [vmem:[%s265 + $0x180] sm:$0xff]
      %v364 = vld [vmem:[%s265 + $0x188] sm:$0xff]
      %v365 = vld [vmem:[%s265 + $0x190] sm:$0xff]
      %v366 = vld [vmem:[%s265 + $0x198] sm:$0xff]
      %v367 = vld [vmem:[%s265 + $0x1a0] sm:$0xff]
      %v368 = vld [vmem:[%s265 + $0x1a8] sm:$0xff]
      %v369 = vld [vmem:[%s265 + $0x1b0] sm:$0xff]
      %v370 = vld [vmem:[%s265 + $0x1b8] sm:$0xff]
      %v371 = vld [vmem:[%s265 + $0x1c0] sm:$0xff]
      %v372 = vld [vmem:[%s265 + $0x1c8] sm:$0xff]
      %v373 = vld [vmem:[%s265 + $0x1d0] sm:$0xff]
      %v374 = vld [vmem:[%s265 + $0x1d8] sm:$0xff]
      %v375 = vld [vmem:[%s265 + $0x1e0] sm:$0xff]
      %v376 = vld [vmem:[%s265 + $0x1e8] sm:$0xff]
      %v377 = vld [vmem:[%s265 + $0x1f0] sm:$0xff]
      %v378 = vld [vmem:[%s265 + $0x1f8] sm:$0xff]
      %v379 = vld [vmem:[%s265 + $0x200] sm:$0xff]
      %v380 = vld [vmem:[%s265 + $0x208] sm:$0xff]
      %v381 = vld [vmem:[%s265 + $0x210] sm:$0xff]
      %v382 = vld [vmem:[%s265 + $0x218] sm:$0xff]
      %v383 = vld [vmem:[%s265 + $0x220] sm:$0xff]
      %v384 = vld [vmem:[%s265 + $0x228] sm:$0xff]
      %v385 = vld [vmem:[%s265 + $0x230] sm:$0xff]
      %v386 = vld [vmem:[%s265 + $0x238] sm:$0xff]
      %v387 = vld [vmem:[%s265 + $0x240] sm:$0xff]
      %v388 = vld [vmem:[%s265 + $0x248] sm:$0xff]
      %v389 = vld [vmem:[%s265 + $0x250] sm:$0xff]
      %v390 = vld [vmem:[%s265 + $0x258] sm:$0xff]
      %v391 = vld [vmem:[%s265 + $0x260] sm:$0xff]
      %v392 = vld [vmem:[%s265 + $0x268] sm:$0xff]
      %v393 = vld [vmem:[%s265 + $0x270] sm:$0xff]
      %v394 = vld [vmem:[%s265 + $0x278] sm:$0xff]
      %v395 = vld [vmem:[%s265 + $0x280] sm:$0xff]
      %v396 = vld [vmem:[%s265 + $0x288] sm:$0xff]
      %v397 = vld [vmem:[%s265 + $0x290] sm:$0xff]
      %v398 = vld [vmem:[%s265 + $0x298] sm:$0xff]
      %v399 = vld [vmem:[%s265 + $0x2a0] sm:$0xff]
      %v400 = vld [vmem:[%s265 + $0x2a8] sm:$0xff]
      %v401 = vld [vmem:[%s265 + $0x2b0] sm:$0xff]
      %v402 = vld [vmem:[%s265 + $0x2b8] sm:$0xff]
      %v403 = vld [vmem:[%s265 + $0x2c0] sm:$0xff]
      %v404 = vld [vmem:[%s265 + $0x2c8] sm:$0xff]
      %v405 = vld [vmem:[%s265 + $0x2d0] sm:$0xff]
      %v406 = vld [vmem:[%s265 + $0x2d8] sm:$0xff]
      %v407 = vld [vmem:[%s265 + $0x2e0] sm:$0xff]
      %v408 = vld [vmem:[%s265 + $0x2e8] sm:$0xff]
      %v409 = vld [vmem:[%s265 + $0x2f0] sm:$0xff]
      %v410 = vld [vmem:[%s265 + $0x2f8] sm:$0xff]
      %v413 = vunpack.c.l.b16 %v313
      %v414 = vunpack.c.h.b16 %v313
      %v415 = vunpack.c.l.b16 %v314
      %v416 = vunpack.c.h.b16 %v314
      %v417 = vpack.c.b16 %v415, %v413
      %v418 = vpack.c.b16 %v416, %v414
      %v517 = vunpack.c.l.b16 %v315
      %v518 = vunpack.c.h.b16 %v315
      %v519 = vunpack.c.l.b16 %v316
      %v520 = vunpack.c.h.b16 %v316
      %v521 = vunpack.c.l.b16 %v317
      %v522 = vunpack.c.h.b16 %v317
      %v523 = vunpack.c.l.b16 %v318
      %v524 = vunpack.c.h.b16 %v318
      %v525 = vunpack.c.l.b16 %v319
      %v526 = vunpack.c.h.b16 %v319
      %v527 = vunpack.c.l.b16 %v320
      %v528 = vunpack.c.h.b16 %v320
      %v529 = vunpack.c.l.b16 %v321
      %v530 = vunpack.c.h.b16 %v321
      %v531 = vunpack.c.l.b16 %v322
      %v532 = vunpack.c.h.b16 %v322
      %v533 = vunpack.c.l.b16 %v323
      %v534 = vunpack.c.h.b16 %v323
      %v535 = vunpack.c.l.b16 %v324
      %v536 = vunpack.c.h.b16 %v324
      %v537 = vunpack.c.l.b16 %v325
      %v538 = vunpack.c.h.b16 %v325
      %v539 = vunpack.c.l.b16 %v326
      %v540 = vunpack.c.h.b16 %v326
      %v541 = vunpack.c.l.b16 %v327
      %v542 = vunpack.c.h.b16 %v327
      %v543 = vunpack.c.l.b16 %v328
      %v544 = vunpack.c.h.b16 %v328
      %v545 = vunpack.c.l.b16 %v329
      %v546 = vunpack.c.h.b16 %v329
      %v547 = vunpack.c.l.b16 %v330
      %v548 = vunpack.c.h.b16 %v330
      %v549 = vunpack.c.l.b16 %v331
      %v550 = vunpack.c.h.b16 %v331
      %v551 = vunpack.c.l.b16 %v332
      %v552 = vunpack.c.h.b16 %v332
      %v553 = vunpack.c.l.b16 %v333
      %v554 = vunpack.c.h.b16 %v333
      %v555 = vunpack.c.l.b16 %v334
      %v556 = vunpack.c.h.b16 %v334
      %v557 = vunpack.c.l.b16 %v335
      %v558 = vunpack.c.h.b16 %v335
      %v559 = vunpack.c.l.b16 %v336
      %v560 = vunpack.c.h.b16 %v336
      %v561 = vunpack.c.l.b16 %v337
      %v562 = vunpack.c.h.b16 %v337
      %v563 = vunpack.c.l.b16 %v338
      %v564 = vunpack.c.h.b16 %v338
      %v565 = vunpack.c.l.b16 %v339
      %v566 = vunpack.c.h.b16 %v339
      %v567 = vunpack.c.l.b16 %v340
      %v568 = vunpack.c.h.b16 %v340
      %v569 = vunpack.c.l.b16 %v341
      %v570 = vunpack.c.h.b16 %v341
      %v571 = vunpack.c.l.b16 %v342
      %v572 = vunpack.c.h.b16 %v342
      %v573 = vunpack.c.l.b16 %v343
      %v574 = vunpack.c.h.b16 %v343
      %v575 = vunpack.c.l.b16 %v344
      %v576 = vunpack.c.h.b16 %v344
      %v577 = vunpack.c.l.b16 %v345
      %v578 = vunpack.c.h.b16 %v345
      %v579 = vunpack.c.l.b16 %v346
      %v580 = vunpack.c.h.b16 %v346
      %v581 = vunpack.c.l.b16 %v347
      %v582 = vunpack.c.h.b16 %v347
      %v583 = vunpack.c.l.b16 %v348
      %v584 = vunpack.c.h.b16 %v348
      %v585 = vunpack.c.l.b16 %v349
      %v586 = vunpack.c.h.b16 %v349
      %v587 = vunpack.c.l.b16 %v350
      %v588 = vunpack.c.h.b16 %v350
      %v589 = vunpack.c.l.b16 %v351
      %v590 = vunpack.c.h.b16 %v351
      %v591 = vunpack.c.l.b16 %v352
      %v592 = vunpack.c.h.b16 %v352
      %v593 = vunpack.c.l.b16 %v353
      %v594 = vunpack.c.h.b16 %v353
      %v595 = vunpack.c.l.b16 %v354
      %v596 = vunpack.c.h.b16 %v354
      %v597 = vunpack.c.l.b16 %v355
      %v598 = vunpack.c.h.b16 %v355
      %v599 = vunpack.c.l.b16 %v356
      %v600 = vunpack.c.h.b16 %v356
      %v601 = vunpack.c.l.b16 %v357
      %v602 = vunpack.c.h.b16 %v357
      %v603 = vunpack.c.l.b16 %v358
      %v604 = vunpack.c.h.b16 %v358
      %v605 = vunpack.c.l.b16 %v359
      %v606 = vunpack.c.h.b16 %v359
      %v607 = vunpack.c.l.b16 %v360
      %v608 = vunpack.c.h.b16 %v360
      %v609 = vunpack.c.l.b16 %v361
      %v610 = vunpack.c.h.b16 %v361
      %v611 = vunpack.c.l.b16 %v362
      %v612 = vunpack.c.h.b16 %v362
      %v613 = vunpack.c.l.b16 %v363
      %v614 = vunpack.c.h.b16 %v363
      %v615 = vunpack.c.l.b16 %v364
      %v616 = vunpack.c.h.b16 %v364
      %v617 = vunpack.c.l.b16 %v365
      %v618 = vunpack.c.h.b16 %v365
      %v619 = vunpack.c.l.b16 %v366
      %v620 = vunpack.c.h.b16 %v366
      %v621 = vunpack.c.l.b16 %v367
      %v622 = vunpack.c.h.b16 %v367
      %v623 = vunpack.c.l.b16 %v368
      %v624 = vunpack.c.h.b16 %v368
      %v625 = vunpack.c.l.b16 %v369
      %v626 = vunpack.c.h.b16 %v369
      %v627 = vunpack.c.l.b16 %v370
      %v628 = vunpack.c.h.b16 %v370
      %v629 = vunpack.c.l.b16 %v371
      %v630 = vunpack.c.h.b16 %v371
      %v631 = vunpack.c.l.b16 %v372
      %v632 = vunpack.c.h.b16 %v372
      %v633 = vunpack.c.l.b16 %v373
      %v634 = vunpack.c.h.b16 %v373
      %v635 = vunpack.c.l.b16 %v374
      %v636 = vunpack.c.h.b16 %v374
      %v637 = vunpack.c.l.b16 %v375
      %v638 = vunpack.c.h.b16 %v375
      %v639 = vunpack.c.l.b16 %v376
      %v640 = vunpack.c.h.b16 %v376
      %v641 = vunpack.c.l.b16 %v377
      %v642 = vunpack.c.h.b16 %v377
      %v643 = vunpack.c.l.b16 %v378
      %v644 = vunpack.c.h.b16 %v378
      %v645 = vunpack.c.l.b16 %v379
      %v646 = vunpack.c.h.b16 %v379
      %v647 = vunpack.c.l.b16 %v380
      %v648 = vunpack.c.h.b16 %v380
      %v649 = vunpack.c.l.b16 %v381
      %v650 = vunpack.c.h.b16 %v381
      %v651 = vunpack.c.l.b16 %v382
      %v652 = vunpack.c.h.b16 %v382
      %v653 = vunpack.c.l.b16 %v383
      %v654 = vunpack.c.h.b16 %v383
      %v655 = vunpack.c.l.b16 %v384
      %v656 = vunpack.c.h.b16 %v384
      %v657 = vunpack.c.l.b16 %v385
      %v658 = vunpack.c.h.b16 %v385
      %v659 = vunpack.c.l.b16 %v386
      %v660 = vunpack.c.h.b16 %v386
      %v661 = vunpack.c.l.b16 %v387
      %v662 = vunpack.c.h.b16 %v387
      %v663 = vunpack.c.l.b16 %v388
      %v664 = vunpack.c.h.b16 %v388
      %v665 = vunpack.c.l.b16 %v389
      %v666 = vunpack.c.h.b16 %v389
      %v667 = vunpack.c.l.b16 %v390
      %v668 = vunpack.c.h.b16 %v390
      %v669 = vunpack.c.l.b16 %v391
      %v670 = vunpack.c.h.b16 %v391
      %v671 = vunpack.c.l.b16 %v392
      %v672 = vunpack.c.h.b16 %v392
      %v673 = vunpack.c.l.b16 %v393
      %v674 = vunpack.c.h.b16 %v393
      %v675 = vunpack.c.l.b16 %v394
      %v676 = vunpack.c.h.b16 %v394
      %v677 = vunpack.c.l.b16 %v395
      %v678 = vunpack.c.h.b16 %v395
      %v679 = vunpack.c.l.b16 %v396
      %v680 = vunpack.c.h.b16 %v396
      %v681 = vunpack.c.l.b16 %v397
      %v682 = vunpack.c.h.b16 %v397
      %v683 = vunpack.c.l.b16 %v398
      %v684 = vunpack.c.h.b16 %v398
      %v685 = vunpack.c.l.b16 %v399
      %v686 = vunpack.c.h.b16 %v399
      %v687 = vunpack.c.l.b16 %v400
      %v688 = vunpack.c.h.b16 %v400
      %v689 = vunpack.c.l.b16 %v401
      %v690 = vunpack.c.h.b16 %v401
      %v691 = vunpack.c.l.b16 %v402
      %v692 = vunpack.c.h.b16 %v402
      %v693 = vunpack.c.l.b16 %v403
      %v694 = vunpack.c.h.b16 %v403
      %v695 = vunpack.c.l.b16 %v404
      %v696 = vunpack.c.h.b16 %v404
      %v697 = vunpack.c.l.b16 %v405
      %v698 = vunpack.c.h.b16 %v405
      %v699 = vunpack.c.l.b16 %v406
      %v700 = vunpack.c.h.b16 %v406
      %v701 = vunpack.c.l.b16 %v407
      %v702 = vunpack.c.h.b16 %v407
      %v703 = vunpack.c.l.b16 %v408
      %v704 = vunpack.c.h.b16 %v408
      %v705 = vunpack.c.l.b16 %v409
      %v706 = vunpack.c.h.b16 %v409
      %v707 = vunpack.c.l.b16 %v410
      %v708 = vunpack.c.h.b16 %v410
      %v709 = vpack.c.b16 %v523, %v517
      %v710 = vpack.c.b16 %v524, %v518
      %v711 = vpack.c.b16 %v525, %v519
      %v712 = vpack.c.b16 %v526, %v520
      %v713 = vpack.c.b16 %v527, %v521
      %v714 = vpack.c.b16 %v528, %v522
      %v715 = vpack.c.b16 %v535, %v529
      %v716 = vpack.c.b16 %v536, %v530
      %v717 = vpack.c.b16 %v537, %v531
      %v718 = vpack.c.b16 %v538, %v532
      %v719 = vpack.c.b16 %v539, %v533
      %v720 = vpack.c.b16 %v540, %v534
      %v721 = vpack.c.b16 %v547, %v541
      %v722 = vpack.c.b16 %v548, %v542
      %v723 = vpack.c.b16 %v549, %v543
      %v724 = vpack.c.b16 %v550, %v544
      %v725 = vpack.c.b16 %v551, %v545
      %v726 = vpack.c.b16 %v552, %v546
      %v727 = vpack.c.b16 %v559, %v553
      %v728 = vpack.c.b16 %v560, %v554
      %v729 = vpack.c.b16 %v561, %v555
      %v730 = vpack.c.b16 %v562, %v556
      %v731 = vpack.c.b16 %v563, %v557
      %v732 = vpack.c.b16 %v564, %v558
      %v733 = vpack.c.b16 %v571, %v565
      %v734 = vpack.c.b16 %v572, %v566
      %v735 = vpack.c.b16 %v573, %v567
      %v736 = vpack.c.b16 %v574, %v568
      %v737 = vpack.c.b16 %v575, %v569
      %v738 = vpack.c.b16 %v576, %v570
      %v739 = vpack.c.b16 %v583, %v577
      %v740 = vpack.c.b16 %v584, %v578
      %v741 = vpack.c.b16 %v585, %v579
      %v742 = vpack.c.b16 %v586, %v580
      %v743 = vpack.c.b16 %v587, %v581
      %v744 = vpack.c.b16 %v588, %v582
      %v745 = vpack.c.b16 %v595, %v589
      %v746 = vpack.c.b16 %v596, %v590
      %v747 = vpack.c.b16 %v597, %v591
      %v748 = vpack.c.b16 %v598, %v592
      %v749 = vpack.c.b16 %v599, %v593
      %v750 = vpack.c.b16 %v600, %v594
      %v751 = vpack.c.b16 %v607, %v601
      %v752 = vpack.c.b16 %v608, %v602
      %v753 = vpack.c.b16 %v609, %v603
      %v754 = vpack.c.b16 %v610, %v604
      %v755 = vpack.c.b16 %v611, %v605
      %v756 = vpack.c.b16 %v612, %v606
      %v757 = vpack.c.b16 %v619, %v613
      %v758 = vpack.c.b16 %v620, %v614
      %v759 = vpack.c.b16 %v621, %v615
      %v760 = vpack.c.b16 %v622, %v616
      %v761 = vpack.c.b16 %v623, %v617
      %v762 = vpack.c.b16 %v624, %v618
      %v763 = vpack.c.b16 %v631, %v625
      %v764 = vpack.c.b16 %v632, %v626
      %v765 = vpack.c.b16 %v633, %v627
      %v766 = vpack.c.b16 %v634, %v628
      %v767 = vpack.c.b16 %v635, %v629
      %v768 = vpack.c.b16 %v636, %v630
      %v769 = vpack.c.b16 %v643, %v637
      %v770 = vpack.c.b16 %v644, %v638
      %v771 = vpack.c.b16 %v645, %v639
      %v772 = vpack.c.b16 %v646, %v640
      %v773 = vpack.c.b16 %v647, %v641
      %v774 = vpack.c.b16 %v648, %v642
      %v775 = vpack.c.b16 %v655, %v649
      %v776 = vpack.c.b16 %v656, %v650
      %v777 = vpack.c.b16 %v657, %v651
      %v778 = vpack.c.b16 %v658, %v652
      %v779 = vpack.c.b16 %v659, %v653
      %v780 = vpack.c.b16 %v660, %v654
      %v781 = vpack.c.b16 %v667, %v661
      %v782 = vpack.c.b16 %v668, %v662
      %v783 = vpack.c.b16 %v669, %v663
      %v784 = vpack.c.b16 %v670, %v664
      %v785 = vpack.c.b16 %v671, %v665
      %v786 = vpack.c.b16 %v672, %v666
      %v787 = vpack.c.b16 %v679, %v673
      %v788 = vpack.c.b16 %v680, %v674
      %v789 = vpack.c.b16 %v681, %v675
      %v790 = vpack.c.b16 %v682, %v676
      %v791 = vpack.c.b16 %v683, %v677
      %v792 = vpack.c.b16 %v684, %v678
      %v793 = vpack.c.b16 %v691, %v685
      %v794 = vpack.c.b16 %v692, %v686
      %v795 = vpack.c.b16 %v693, %v687
      %v796 = vpack.c.b16 %v694, %v688
      %v797 = vpack.c.b16 %v695, %v689
      %v798 = vpack.c.b16 %v696, %v690
      %v799 = vpack.c.b16 %v703, %v697
      %v800 = vpack.c.b16 %v704, %v698
      %v801 = vpack.c.b16 %v705, %v699
      %v802 = vpack.c.b16 %v706, %v700
      %v803 = vpack.c.b16 %v707, %v701
      %v804 = vpack.c.b16 %v708, %v702
      %901 = vmatprep.subr.bf16.mxu0 %v710
      %902 = vmatpush1.bf16.msra.mxu0 %v709
      %903 = vmatprep.subr.bf16.mxu0 %v716
      %904 = vmatpush1.bf16.msra.mxu0 %v715
      %905 = vmatprep.subr.bf16.mxu0 %v722
      %906 = vmatpush1.bf16.msra.mxu0 %v721
      %907 = vmatprep.subr.bf16.mxu0 %v728
      %908 = vmatpush1.bf16.msra.mxu0 %v727
      %909 = vmatprep.subr.bf16.mxu0 %v734
      %910 = vmatpush1.bf16.msra.mxu0 %v733
      %911 = vmatprep.subr.bf16.mxu0 %v740
      %912 = vmatpush1.bf16.msra.mxu0 %v739
      %913 = vmatprep.subr.bf16.mxu0 %v746
      %914 = vmatpush1.bf16.msra.mxu0 %v745
      %915 = vmatprep.subr.bf16.mxu0 %v752
      %916 = vmatpush1.bf16.msra.mxu0 %v751
      %917 = vmatprep.subr.bf16.mxu0 %v758
      %918 = vmatpush1.bf16.msra.mxu0 %v757
      %919 = vmatprep.subr.bf16.mxu0 %v764
      %920 = vmatpush1.bf16.msra.mxu0 %v763
      %921 = vmatprep.subr.bf16.mxu0 %v770
      %922 = vmatpush1.bf16.msra.mxu0 %v769
      %923 = vmatprep.subr.bf16.mxu0 %v776
      %924 = vmatpush1.bf16.msra.mxu0 %v775
      %925 = vmatprep.subr.bf16.mxu0 %v782
      %926 = vmatpush1.bf16.msra.mxu0 %v781
      %927 = vmatprep.subr.bf16.mxu0 %v788
      %928 = vmatpush1.bf16.msra.mxu0 %v787
      %929 = vmatprep.subr.bf16.mxu0 %v794
      %930 = vmatpush1.bf16.msra.mxu0 %v793
      %931 = vmatprep.subr.bf16.mxu0 %v800
      %932 = vmatpush1.bf16.msra.mxu0 %v799
      %933 = vmatprep.mubr.bf16.mxu0 %v418
      %934 = vmatmul.mubr.bf16.gmra.mrb[0].mxu0 %v417
      %v935 = vpop.f32.mrb[0].mxu0
      %v936 = vadd.f32 0.0, %v935
      %v937 = vpop.f32.mrb[0].mxu0
      %v938 = vadd.f32 0.0, %v937
      %v939 = vpop.f32.mrb[0].mxu0
      %v940 = vadd.f32 0.0, %v939
      %v941 = vpop.f32.mrb[0].mxu0
      %v942 = vadd.f32 0.0, %v941
      %943 = vdwg.mxu0
      %944 = vmatprep.subr.bf16.mxu0 %v712
      %945 = vmatpush1.bf16.msra.mxu0 %v711
      %946 = vmatprep.subr.bf16.mxu0 %v718
      %947 = vmatpush1.bf16.msra.mxu0 %v717
      %948 = vmatprep.subr.bf16.mxu0 %v724
      %949 = vmatpush1.bf16.msra.mxu0 %v723
      %950 = vmatprep.subr.bf16.mxu0 %v730
      %951 = vmatpush1.bf16.msra.mxu0 %v729
      %952 = vmatprep.subr.bf16.mxu0 %v736
      %953 = vmatpush1.bf16.msra.mxu0 %v735
      %954 = vmatprep.subr.bf16.mxu0 %v742
      %955 = vmatpush1.bf16.msra.mxu0 %v741
      %956 = vmatprep.subr.bf16.mxu0 %v748
      %957 = vmatpush1.bf16.msra.mxu0 %v747
      %958 = vmatprep.subr.bf16.mxu0 %v754
      %959 = vmatpush1.bf16.msra.mxu0 %v753
      %960 = vmatprep.subr.bf16.mxu0 %v760
      %961 = vmatpush1.bf16.msra.mxu0 %v759
      %962 = vmatprep.subr.bf16.mxu0 %v766
      %963 = vmatpush1.bf16.msra.mxu0 %v765
      %964 = vmatprep.subr.bf16.mxu0 %v772
      %965 = vmatpush1.bf16.msra.mxu0 %v771
      %966 = vmatprep.subr.bf16.mxu0 %v778
      %967 = vmatpush1.bf16.msra.mxu0 %v777
      %968 = vmatprep.subr.bf16.mxu0 %v784
      %969 = vmatpush1.bf16.msra.mxu0 %v783
      %970 = vmatprep.subr.bf16.mxu0 %v790
      %971 = vmatpush1.bf16.msra.mxu0 %v789
      %972 = vmatprep.subr.bf16.mxu0 %v796
      %973 = vmatpush1.bf16.msra.mxu0 %v795
      %974 = vmatprep.subr.bf16.mxu0 %v802
      %975 = vmatpush1.bf16.msra.mxu0 %v801
      %976 = vmatprep.mubr.bf16.mxu0 %v418
      %977 = vmatmul.mubr.bf16.gmra.mrb[0].mxu0 %v417
      %v978 = vpop.f32.mrb[0].mxu0
      %v979 = vadd.f32 0.0, %v978
      %v980 = vpop.f32.mrb[0].mxu0
      %v981 = vadd.f32 0.0, %v980
      %v982 = vpop.f32.mrb[0].mxu0
      %v983 = vadd.f32 0.0, %v982
      %v984 = vpop.f32.mrb[0].mxu0
      %v985 = vadd.f32 0.0, %v984
      %986 = vdwg.mxu0
      %987 = vmatprep.subr.bf16.mxu0 %v714
      %988 = vmatpush1.bf16.msra.mxu0 %v713
      %989 = vmatprep.subr.bf16.mxu0 %v720
      %990 = vmatpush1.bf16.msra.mxu0 %v719
      %991 = vmatprep.subr.bf16.mxu0 %v726
      %992 = vmatpush1.bf16.msra.mxu0 %v725
      %993 = vmatprep.subr.bf16.mxu0 %v732
      %994 = vmatpush1.bf16.msra.mxu0 %v731
      %995 = vmatprep.subr.bf16.mxu0 %v738
      %996 = vmatpush1.bf16.msra.mxu0 %v737
      %997 = vmatprep.subr.bf16.mxu0 %v744
      %998 = vmatpush1.bf16.msra.mxu0 %v743
      %999 = vmatprep.subr.bf16.mxu0 %v750
      %1000 = vmatpush1.bf16.msra.mxu0 %v749
      %1001 = vmatprep.subr.bf16.mxu0 %v756
      %1002 = vmatpush1.bf16.msra.mxu0 %v755
      %1003 = vmatprep.subr.bf16.mxu0 %v762
      %1004 = vmatpush1.bf16.msra.mxu0 %v761
      %1005 = vmatprep.subr.bf16.mxu0 %v768
      %1006 = vmatpush1.bf16.msra.mxu0 %v767
      %1007 = vmatprep.subr.bf16.mxu0 %v774
      %1008 = vmatpush1.bf16.msra.mxu0 %v773
      %1009 = vmatprep.subr.bf16.mxu0 %v780
      %1010 = vmatpush1.bf16.msra.mxu0 %v779
      %1011 = vmatprep.subr.bf16.mxu0 %v786
      %1012 = vmatpush1.bf16.msra.mxu0 %v785
      %1013 = vmatprep.subr.bf16.mxu0 %v792
      %1014 = vmatpush1.bf16.msra.mxu0 %v791
      %1015 = vmatprep.subr.bf16.mxu0 %v798
      %1016 = vmatpush1.bf16.msra.mxu0 %v797
      %1017 = vmatprep.subr.bf16.mxu0 %v804
      %1018 = vmatpush1.bf16.msra.mxu0 %v803
      %1019 = vmatprep.mubr.bf16.mxu0 %v418
      %1020 = vmatmul.mubr.bf16.gmra.mrb[0].mxu0 %v417
      %v1021 = vpop.f32.mrb[0].mxu0
      %v1022 = vadd.f32 0.0, %v1021
      %v1023 = vpop.f32.mrb[0].mxu0
      %v1024 = vadd.f32 0.0, %v1023
      %v1025 = vpop.f32.mrb[0].mxu0
      %v1026 = vadd.f32 0.0, %v1025
      %v1027 = vpop.f32.mrb[0].mxu0
      %v1028 = vadd.f32 0.0, %v1027
      %1029 = vdwg.mxu0
      %v1030 = vadd.f32 %v301, %v936
      %v1031 = vadd.f32 %v302, %v938
      %v1032 = vadd.f32 %v303, %v979
      %v1033 = vadd.f32 %v304, %v981
      %v1034 = vadd.f32 %v305, %v1022
      %v1035 = vadd.f32 %v306, %v1024
      %v1036 = vadd.f32 %v307, %v940
      %v1037 = vadd.f32 %v308, %v942
      %v1038 = vadd.f32 %v309, %v983
      %v1039 = vadd.f32 %v310, %v985
      %v1040 = vadd.f32 %v311, %v1026
      %v1041 = vadd.f32 %v312, %v1028
      %1042 = vst [vmem:[#allocation2] sm:$0xff] %v1030
      %1043 = vst [vmem:[#allocation2 + $0x8] sm:$0xff] %v1031
      %1044 = vst [vmem:[#allocation2 + $0x10] sm:$0xff] %v1032
      %1045 = vst [vmem:[#allocation2 + $0x18] sm:$0xff] %v1033
      %1046 = vst [vmem:[#allocation2 + $0x20] sm:$0xff] %v1034
      %1047 = vst [vmem:[#allocation2 + $0x28] sm:$0xff] %v1035
      %1048 = vst [vmem:[#allocation2 + $0x30] sm:$0xff] %v1036
      %1049 = vst [vmem:[#allocation2 + $0x38] sm:$0xff] %v1037
      %1050 = vst [vmem:[#allocation2 + $0x40] sm:$0xff] %v1038
      %1051 = vst [vmem:[#allocation2 + $0x48] sm:$0xff] %v1039
      %1052 = vst [vmem:[#allocation2 + $0x50] sm:$0xff] %v1040
      %1053 = vst [vmem:[#allocation2 + $0x58] sm:$0xff] %v1041
      // Predicated region
      $region37: #{forward.19} parent=31 // pred_check
        %p1054 = pneg %p285
      $region38: #{forward.19} parent=31 // pred_check_branch
        %1056 = sbr.rel (%p1054) target = $region40
      $region39: #{forward.19} parent=31 // pred_region
        %v1057 = vld [vmem:[#allocation2] sm:$0xff]
        %v1058 = vld [vmem:[#allocation2 + $0x8] sm:$0xff]
        %v1059 = vld [vmem:[#allocation2 + $0x10] sm:$0xff]
        %v1060 = vld [vmem:[#allocation2 + $0x18] sm:$0xff]
        %v1061 = vld [vmem:[#allocation2 + $0x20] sm:$0xff]
        %v1062 = vld [vmem:[#allocation2 + $0x28] sm:$0xff]
        %v1063 = vld [vmem:[#allocation2 + $0x30] sm:$0xff]
        %v1064 = vld [vmem:[#allocation2 + $0x38] sm:$0xff]
        %v1065 = vld [vmem:[#allocation2 + $0x40] sm:$0xff]
        %v1066 = vld [vmem:[#allocation2 + $0x48] sm:$0xff]
        %v1067 = vld [vmem:[#allocation2 + $0x50] sm:$0xff]
        %v1068 = vld [vmem:[#allocation2 + $0x58] sm:$0xff]
        %v1069 = vld [vmem:[%s271] sm:$0x3f]
        %v1071 = vlaneseq
        %v1072 = vshrl.u32 %v1071, 7
        %v1073 = vsub.s32 0, %v1072
        %v1074 = vrot.slane %v1069, %v1073
        %v1075 = vlaneseq
        %v1076 = vshrl.u32 %v1075, 7
        %v1077 = vsub.s32 1, %v1076
        %v1078 = vrot.slane %v1069, %v1077
        %v1079 = vlaneseq
        %v1080 = vshrl.u32 %v1079, 7
        %v1081 = vsub.s32 2, %v1080
        %v1082 = vrot.slane %v1069, %v1081
        %v1083 = vlaneseq
        %v1084 = vshrl.u32 %v1083, 7
        %v1085 = vsub.s32 3, %v1084
        %v1086 = vrot.slane %v1069, %v1085
        %v1087 = vlaneseq
        %v1088 = vshrl.u32 %v1087, 7
        %v1089 = vsub.s32 4, %v1088
        %v1090 = vrot.slane %v1069, %v1089
        %v1091 = vlaneseq
        %v1092 = vshrl.u32 %v1091, 7
        %v1093 = vsub.s32 5, %v1092
        %v1094 = vrot.slane %v1069, %v1093
        %v1101 = vadd.f32 %v1057, %v1074
        %v1102 = vadd.f32 %v1058, %v1078
        %v1103 = vadd.f32 %v1059, %v1082
        %v1104 = vadd.f32 %v1060, %v1086
        %v1105 = vadd.f32 %v1061, %v1090
        %v1106 = vadd.f32 %v1062, %v1094
        %v1107 = vadd.f32 %v1063, %v1074
        %v1108 = vadd.f32 %v1064, %v1078
        %v1109 = vadd.f32 %v1065, %v1082
        %v1110 = vadd.f32 %v1066, %v1086
        %v1111 = vadd.f32 %v1067, %v1090
        %v1112 = vadd.f32 %v1068, %v1094
        %v1113 = vpack.c.bf16 %v1107, %v1101
        %v1114 = vpack.c.bf16 %v1108, %v1102
        %v1115 = vpack.c.bf16 %v1109, %v1103
        %v1116 = vpack.c.bf16 %v1110, %v1104
        %v1117 = vpack.c.bf16 %v1111, %v1105
        %v1118 = vpack.c.bf16 %v1112, %v1106
        %v1125 = vunpack.c.l.b16 %v1113
        %v1126 = vunpack.c.l.b16 %v1114
        %v1127 = vunpack.c.l.b16 %v1115
        %v1128 = vunpack.c.l.b16 %v1116
        %v1129 = vunpack.c.l.b16 %v1117
        %v1130 = vunpack.c.l.b16 %v1118
        %v1131 = vunpack.c.h.b16 %v1113
        %v1132 = vunpack.c.h.b16 %v1114
        %v1133 = vunpack.c.h.b16 %v1115
        %v1134 = vunpack.c.h.b16 %v1116
        %v1135 = vunpack.c.h.b16 %v1117
        %v1136 = vunpack.c.h.b16 %v1118
        %v1137 = vpack.c.b16 %v1126, %v1125
        %v1138 = vpack.c.b16 %v1128, %v1127
        %v1139 = vpack.c.b16 %v1130, %v1129
        %v1140 = vpack.c.b16 %v1132, %v1131
        %v1141 = vpack.c.b16 %v1134, %v1133
        %v1142 = vpack.c.b16 %v1136, %v1135
        %1149 = vst [vmem:[%s282] sm:$0xff] %v1137
        %1150 = vst [vmem:[%s282 + $0x8] sm:$0xff] %v1138
        %1151 = vst [vmem:[%s282 + $0x10] sm:$0xff] %v1139
        %1152 = vst [vmem:[%s282 + $0x18] sm:$0xff] %v1140
        %1153 = vst [vmem:[%s282 + $0x20] sm:$0xff] %v1141
        %1154 = vst [vmem:[%s282 + $0x28] sm:$0xff] %v1142
      $region40: #{forward.19} parent=31 // pred_fallthru
        _
      %s1155 = smul.u32 2, %s19
      %s1156 = smul.u32 6, %s20
      %p1157 = scmp.lt.s32.totalorder %s1155, 3
      %s1158 = scalar_select %p1157, %s1155, 3
      %p1159 = scmp.lt.s32.totalorder %s1156, 5
      %s1160 = scalar_select %p1159, %s1156, 5
      %s1161 = smul.addr %s1158, 6
      %s1162 = sadd.s32 %s1160, %s1161
      %s1163 = smul.addr %s1162, 4
      %s1164 = scalar_lea.vmem %s3, %s1163
      // Predicated region
      $region41: #{forward.19} parent=31 // pred_check
        %p1165 = pneg %p135
      $region42: #{forward.19} parent=31 // pred_check_branch
        %1167 = sbr.rel (%p1165) target = $region44
      $region43: #{forward.19} parent=31 // pred_region
        %s1168 = smul.u32 2, %s19
        %s1169 = smul.u32 6, %s20
      $region44: #{forward.19} parent=31 // pred_fallthru
        _
    $region32: #{forward.19} parent=5 // pred_fallthru
      _
    %p1170 = scmp.le.s32.totalorder 2, %s9
    // Predicated region
    $region45: #{forward.19} parent=5 // pred_check
      %p1171 = pneg %p1170
    $region46: #{forward.19} parent=5 // pred_check_branch
      %1173 = sbr.rel (%p1171) target = $region48
    $region47: #{forward.19} parent=5 // pred_region
      %s1174 = ssub.s32 %s9, 2
      // Predicated region
      $region49: #{forward.19} parent=47 // pred_check
        %p1175 = pneg %p141
      $region50: #{forward.19} parent=47 // pred_check_branch
        %1177 = sbr.rel (%p1175) target = $region52
      $region51: #{forward.19} parent=47 // pred_region
        %s1178 = smul.u32 2, %s22
        %s1179 = smul.u32 6, %s23
        %p1180 = scmp.lt.s32.totalorder %s1178, 3
        %s1181 = scalar_select %p1180, %s1178, 3
        %p1182 = scmp.lt.s32.totalorder %s1179, 5
        %s1183 = scalar_select %p1182, %s1179, 5
        %s1184 = smul.addr %s1181, 6
        %s1185 = sadd.s32 %s1183, %s1184
        %s1186 = smul.addr %s1185, 4
        %s1187 = scalar_lea.vmem %s3, %s1186
      $region52: #{forward.19} parent=47 // pred_fallthru
        _
    $region48: #{forward.19} parent=5 // pred_fallthru
      _
  $region6: #{forward.19} parent=0 // loop_footer
    %s13 = sadd.s32 1, %s9
  $region7: #{forward.19} parent=0 // loop_footer_branch
    %8 = sbr.rel target = $region3
  $region8: #{forward.19} parent=0 // loop_exit
    _

// kernel: forward.24
$region0: #{forward.24}
  #allocation0 [shape = 'u32[]', space=smem, size = 0x4, offset = 0x4, fixed_abs, tag = 'smem constant byte address 0x4 - core index']
  #allocation1 [shape = 'u32[144,128]{1,0:T(1,128)}', space=vmem, size = 0x12000, scoped, tag = 'internal scratch']
  #allocation2 [shape = 'f32[16,1]{1,0:T(8,128)}', space=vmem, size = 0x2000, scoped, tag = 'scratch operand']
  #allocation3 [shape = 'f32[16,1]{1,0:T(8,128)}', space=vmem, size = 0x2000, scoped, tag = 'scratch operand']
  #allocation4 [shape = 'f32[16,128]{1,0:T(8,128)}', space=vmem, size = 0x2000, scoped, tag = 'scratch operand']
  %s0 = inlined_call_operand.vmem [shape: bf16[2,16,256], index: 0, kind: input, shape index: {}]
  %s1 = inlined_call_operand.vmem [shape: bf16[2,16,512], index: 1, kind: input, shape index: {}, may-alias: {1,2}]
  %s2 = inlined_call_operand.vmem [shape: bf16[2,16,512], index: 2, kind: input, shape index: {}, may-alias: {1,2}]
  %s3 = inlined_call_operand.vmem [shape: bf16[2,16,256], index: 3, kind: output, shape index: {}]
  %s4 = sld [smem:[#allocation0]]
  $region213: #{forward.24} parent=0
    _
  %s6 = ssub.s32 1, %s4
  %s7 = scalar_select 0, %s6, %s4
  $region1: #{forward.24} parent=0
    #allocation5 [shape = 'u8[8192]{0}', space=vmem, size = 0x2000, scoped, tag = 'input window, operand 0']
    #allocation6 [shape = 'u8[8192]{0}', space=vmem, size = 0x2000, scoped, tag = 'input window, operand 1']
    #allocation7 [shape = 'u8[8192]{0}', space=vmem, size = 0x2000, scoped, tag = 'input window, operand 2']
    #allocation8 [shape = 'u8[8192]{0}', space=vmem, size = 0x2000, scoped, tag = 'output window, operand 0']
    loop: start=0, step=1, limit=6
    $region2: #{forward.24} parent=1 // loop_pre_header
      _
    $region3: #{forward.24} parent=1 // loop_header
      %s9 = sphi 0, %s13
      %p10 = scmp.ge.s32.totalorder %s9, 6
      %s16 = sphi 0, %s35
      %s17 = sphi 0, %s31
      %s18 = sphi 0, %s27
      %s19 = sphi 0, %s16
      %s20 = sphi 0, %s17
      %s21 = sphi 0, %s18
      %s22 = sphi 0, %s19
      %s23 = sphi 0, %s20
      %s24 = sphi 0, %s21
      %s40 = sphi 0, %s42
      %s43 = sphi 0, %s40
      %s44 = sphi 0, %s43
      %s60 = sphi 0, %s44
      %s70 = sphi 0, %s72
      %s73 = sphi 0, %s70
      %s74 = sphi 0, %s73
      %s90 = sphi 0, %s74
      %s102 = sphi 0, %s104
      %s105 = sphi 0, %s102
      %s106 = sphi 0, %s105
      %s122 = sphi 0, %s106
      %s130 = sphi 0, %s132
      %s133 = sphi 0, %s130
      %s134 = sphi 0, %s133
      %s150 = sphi 0, %s134
    $region4: #{forward.24} parent=1 // loop_header_branch
      %12 = sbr.rel (%p10) target = $region8
    $region5: #{forward.24} parent=1 // loop_body
      %s14 = ssub.s32 %s9, 1
      %s15 = ssub.s32 %s9, 2
      %s25 = sadd.s32 1, %s18
      %p26 = scmp.ge.s32.totalorder %s25, 1
      %s27 = scalar_select %p26, 0, %s25
      %s28 = sadd.s32 1, %s17
      %s29 = scalar_select %p26, %s28, %s17
      %p30 = scmp.ge.s32.totalorder %s29, 2
      %s31 = scalar_select %p30, 0, %s29
      %s32 = sadd.s32 1, %s16
      %s33 = scalar_select %p30, %s32, %s16
      %p34 = scmp.ge.s32.totalorder %s33, 2
      %s35 = scalar_select %p34, 0, %s33
      %s36 = ssub.s32 %s16, %s35
      %s37 = ssub.s32 %s17, %s31
      %s38 = sor.u32 %s36, %s37
      %p39 = scmp.eq.s32.totalorder %s38, 0
      %s41 = sadd.s32 %s40, 1
      %s42 = scalar_select %p39, %s40, %s41
      %p45 = pneg %p39
      %p46 = scmp.eq.s32.totalorder %s9, 3
      %p47 = por %p45, %p46
      %p48 = scmp.ne.s32.totalorder %s40, %s43
      %p49 = scmp.eq.s32.totalorder %s9, 0
      %p50 = por %p48, %p49
      %p51 = scmp.ne.s32.totalorder %s40, %s43
      %p52 = scmp.eq.s32.totalorder %s14, 3
      %p53 = por %p51, %p52
      %p54 = scmp.ne.s32.totalorder %s43, %s44
      %p55 = scmp.eq.s32.totalorder %s14, 0
      %p56 = por %p54, %p55
      %p57 = scmp.ne.s32.totalorder %s43, %s44
      %p58 = scmp.eq.s32.totalorder %s15, 3
      %p59 = por %p57, %p58
      %p61 = scmp.ne.s32.totalorder %s44, %s60
      %p62 = scmp.eq.s32.totalorder %s15, 0
      %p63 = por %p61, %p62
      %s64 = ssub.s32 %s16, %s35
      %s65 = ssub.s32 %s18, %s27
      %s66 = sor.u32 %s64, %s65
      %s67 = ssub.s32 %s17, %s31
      %s68 = sor.u32 %s66, %s67
      %p69 = scmp.eq.s32.totalorder %s68, 0
      %s71 = sadd.s32 %s70, 1
      %s72 = scalar_select %p69, %s70, %s71
      %p75 = pneg %p69
      %p76 = scmp.eq.s32.totalorder %s9, 3
      %p77 = por %p75, %p76
      %p78 = scmp.ne.s32.totalorder %s70, %s73
      %p79 = scmp.eq.s32.totalorder %s9, 0
      %p80 = por %p78, %p79
      %p81 = scmp.ne.s32.totalorder %s70, %s73
      %p82 = scmp.eq.s32.totalorder %s14, 3
      %p83 = por %p81, %p82
      %p84 = scmp.ne.s32.totalorder %s73, %s74
      %p85 = scmp.eq.s32.totalorder %s14, 0
      %p86 = por %p84, %p85
      %p87 = scmp.ne.s32.totalorder %s73, %s74
      %p88 = scmp.eq.s32.totalorder %s15, 3
      %p89 = por %p87, %p88
      %p91 = scmp.ne.s32.totalorder %s74, %s90
      %p92 = scmp.eq.s32.totalorder %s15, 0
      %p93 = por %p91, %p92
      %s94 = sadd.s32 %s17, 2
      %s95 = sadd.s32 %s31, 2
      %s96 = ssub.s32 %s16, %s35
      %s97 = ssub.s32 %s18, %s27
      %s98 = sor.u32 %s96, %s97
      %s99 = ssub.s32 %s94, %s95
      %s100 = sor.u32 %s98, %s99
      %p101 = scmp.eq.s32.totalorder %s100, 0
      %s103 = sadd.s32 %s102, 1
      %s104 = scalar_select %p101, %s102, %s103
      %p107 = pneg %p101
      %p108 = scmp.eq.s32.totalorder %s9, 3
      %p109 = por %p107, %p108
      %p110 = scmp.ne.s32.totalorder %s102, %s105
      %p111 = scmp.eq.s32.totalorder %s9, 0
      %p112 = por %p110, %p111
      %p113 = scmp.ne.s32.totalorder %s102, %s105
      %p114 = scmp.eq.s32.totalorder %s14, 3
      %p115 = por %p113, %p114
      %p116 = scmp.ne.s32.totalorder %s105, %s106
      %p117 = scmp.eq.s32.totalorder %s14, 0
      %p118 = por %p116, %p117
      %p119 = scmp.ne.s32.totalorder %s105, %s106
      %p120 = scmp.eq.s32.totalorder %s15, 3
      %p121 = por %p119, %p120
      %p123 = scmp.ne.s32.totalorder %s106, %s122
      %p124 = scmp.eq.s32.totalorder %s15, 0
      %p125 = por %p123, %p124
      %s126 = ssub.s32 %s16, %s35
      %s127 = ssub.s32 %s17, %s31
      %s128 = sor.u32 %s126, %s127
      %p129 = scmp.eq.s32.totalorder %s128, 0
      %s131 = sadd.s32 %s130, 1
      %s132 = scalar_select %p129, %s130, %s131
      %p135 = pneg %p129
      %p136 = scmp.eq.s32.totalorder %s9, 3
      %p137 = por %p135, %p136
      %p138 = scmp.ne.s32.totalorder %s130, %s133
      %p139 = scmp.eq.s32.totalorder %s9, 0
      %p140 = por %p138, %p139
      %p141 = scmp.ne.s32.totalorder %s130, %s133
      %p142 = scmp.eq.s32.totalorder %s14, 3
      %p143 = por %p141, %p142
      %p144 = scmp.ne.s32.totalorder %s133, %s134
      %p145 = scmp.eq.s32.totalorder %s14, 0
      %p146 = por %p144, %p145
      %p147 = scmp.ne.s32.totalorder %s133, %s134
      %p148 = scmp.eq.s32.totalorder %s15, 3
      %p149 = por %p147, %p148
      %p151 = scmp.ne.s32.totalorder %s134, %s150
      %p152 = scmp.eq.s32.totalorder %s15, 0
      %p153 = por %p151, %p152
      %p154 = scmp.le.s32.totalorder 1, %s9
      %p155 = scmp.lt.s32.totalorder %s9, 5
      %p156 = pnand %p154, %p155
      %p157 = pneg %p156
      // Predicated region
      $region9: #{forward.24} parent=5 // pred_check
        _
      $region10: #{forward.24} parent=5 // pred_check_branch
        %159 = sbr.rel (%p156) target = $region12
      $region11: #{forward.24} parent=5 // pred_region
        %s160 = ssub.s32 %s9, 1
      $region12: #{forward.24} parent=5 // pred_fallthru
        _
      %p161 = scmp.lt.s32.totalorder %s9, 4
      // Predicated region
      $region13: #{forward.24} parent=5 // pred_check
        %p162 = pneg %p161
      $region14: #{forward.24} parent=5 // pred_check_branch
        %164 = sbr.rel (%p162) target = $region16
      $region15: #{forward.24} parent=5 // pred_region
        // Predicated region
        $region17: #{forward.24} parent=15 // pred_check
          %p165 = pneg %p50
        $region18: #{forward.24} parent=15 // pred_check_branch
          %167 = sbr.rel (%p165) target = $region20
        $region19: #{forward.24} parent=15 // pred_region
          %s168 = sand.u32 %s40, 1
          %s169 = sand.u32 %s40, 1
          %s170 = smul.addr %s169, 8
          %s171 = scalar_lea.vmem [#allocation5], %s170
          %s172 = smul.addr %s16, 4
          %s173 = sadd.s32 %s17, %s172
          %s174 = smul.addr %s173, 4
          %s175 = scalar_lea.vmem %s0, %s174
          // Predicated region
          $region21: #{forward.24} parent=19 // pred_check
            _
          $region22: #{forward.24} parent=19 // pred_check_branch
            %177 = sbr.rel (0) target = $region24
          $region23: #{forward.24} parent=19 // pred_region
            // Predicated region
            $region25: #{forward.24} parent=23 // pred_check
              _
            $region26: #{forward.24} parent=23 // pred_check_branch
              %179 = sbr.rel target = $region28
            $region27: #{forward.24} parent=23 // pred_region
              // Predicated region
              $region40: #{forward.24} parent=27 // pred_check
                _
              $region41: #{forward.24} parent=27 // pred_check_branch
                %196 = sbr.rel (0) target = $region43
              $region42: #{forward.24} parent=27 // pred_region
                loop: start=0, step=1, limit=1
                $region44: #{forward.24} parent=42 // loop_pre_header
                  _
                $region45: #{forward.24} parent=42 // loop_header
                  %s198 = sphi 0, %s202
                  %p199 = scmp.ge.s32.totalorder %s198, 1
                  %s203 = sphi %s175, %s175
                  %s204 = sphi %s171, %s171
                $region46: #{forward.24} parent=42 // loop_header_branch
                  %201 = sbr.rel (%p199) target = $region50
                $region47: #{forward.24} parent=42 // loop_body
                  _
                $region48: #{forward.24} parent=42 // loop_footer
                  %s202 = sadd.s32 1, %s198
                $region49: #{forward.24} parent=42 // loop_footer_branch
                  %197 = sbr.rel target = $region45
                $region50: #{forward.24} parent=42 // loop_exit
                  _
                loop: start=0, step=1, limit=1
                $region51: #{forward.24} parent=42 // loop_pre_header
                  _
                $region52: #{forward.24} parent=42 // loop_header
                  %s207 = sphi 0, %s211
                  %p208 = scmp.ge.s32.totalorder %s207, 1
                  %s212 = sphi %s175, %s175
                  %s213 = sphi %s171, %s171
                $region53: #{forward.24} parent=42 // loop_header_branch
                  %210 = sbr.rel (%p208) target = $region57
                $region54: #{forward.24} parent=42 // loop_body
                  %v214 = vld [vmem:[%s212] sm:$0xf]
                  %215 = vst [vmem:[%s213] sm:$0xf] %v214
                  %v216 = vld [vmem:[%s212 + $0x8] sm:$0xf]
                  %217 = vst [vmem:[%s213 + $0x4] sm:$0xf] %v216
                $region55: #{forward.24} parent=42 // loop_footer
                  %s211 = sadd.s32 1, %s207
                $region56: #{forward.24} parent=42 // loop_footer_branch
                  %206 = sbr.rel target = $region52
                $region57: #{forward.24} parent=42 // loop_exit
                  _
              $region43: #{forward.24} parent=27 // pred_fallthru
                _
            $region28: #{forward.24} parent=23 // pred_fallthru
              _
            // Predicated region
            $region29: #{forward.24} parent=23 // pred_check
              _
            $region30: #{forward.24} parent=23 // pred_check_branch
              %181 = sbr.rel (0) target = $region32
            $region31: #{forward.24} parent=23 // pred_region
              loop: start=0, step=1, limit=1
              $region33: #{forward.24} parent=31 // loop_pre_header
                _
              $region34: #{forward.24} parent=31 // loop_header
                %s184 = sphi 0, %s188
                %p185 = scmp.ge.s32.totalorder %s184, 1
                %s189 = sphi %s175, %s175
                %s190 = sphi %s171, %s171
              $region35: #{forward.24} parent=31 // loop_header_branch
                %187 = sbr.rel (%p185) target = $region39
              $region36: #{forward.24} parent=31 // loop_body
                %v191 = vld [vmem:[%s189] sm:$0xf]
                %192 = vst [vmem:[%s190] sm:$0xf] %v191
                %v193 = vld [vmem:[%s189 + $0x8] sm:$0xf]
                %194 = vst [vmem:[%s190 + $0x4] sm:$0xf] %v193
              $region37: #{forward.24} parent=31 // loop_footer
                %s188 = sadd.s32 1, %s184
              $region38: #{forward.24} parent=31 // loop_footer_branch
                %183 = sbr.rel target = $region34
              $region39: #{forward.24} parent=31 // loop_exit
                _
            $region32: #{forward.24} parent=23 // pred_fallthru
              _
          $region24: #{forward.24} parent=19 // pred_fallthru
            _
          %218 = vnop
        $region20: #{forward.24} parent=15 // pred_fallthru
          _
        // Predicated region
        $region58: #{forward.24} parent=15 // pred_check
          %p219 = pneg %p80
        $region59: #{forward.24} parent=15 // pred_check_branch
          %221 = sbr.rel (%p219) target = $region61
        $region60: #{forward.24} parent=15 // pred_region
          %s222 = sand.u32 %s70, 1
          %s223 = sand.u32 %s70, 1
          %s224 = smul.addr %s223, 8
          %s225 = scalar_lea.vmem [#allocation6], %s224
          %s226 = smul.u32 2, %s18
          %s227 = smul.addr %s226, 4
          %s228 = sadd.s32 %s17, %s227
          %s229 = smul.addr %s16, 8
          %s230 = sadd.s32 %s228, %s229
          %s231 = smul.addr %s230, 4
          %s232 = scalar_lea.vmem %s1, %s231
          // Predicated region
          $region62: #{forward.24} parent=60 // pred_check
            _
          $region63: #{forward.24} parent=60 // pred_check_branch
            %234 = sbr.rel (0) target = $region65
          $region64: #{forward.24} parent=60 // pred_region
            // Predicated region
            $region66: #{forward.24} parent=64 // pred_check
              _
            $region67: #{forward.24} parent=64 // pred_check_branch
              %236 = sbr.rel target = $region69
            $region68: #{forward.24} parent=64 // pred_region
              // Predicated region
              $region81: #{forward.24} parent=68 // pred_check
                _
              $region82: #{forward.24} parent=68 // pred_check_branch
                %253 = sbr.rel (0) target = $region84
              $region83: #{forward.24} parent=68 // pred_region
                loop: start=0, step=1, limit=1
                $region85: #{forward.24} parent=83 // loop_pre_header
                  _
                $region86: #{forward.24} parent=83 // loop_header
                  %s255 = sphi 0, %s259
                  %p256 = scmp.ge.s32.totalorder %s255, 1
                  %s260 = sphi %s232, %s232
                  %s261 = sphi %s225, %s225
                $region87: #{forward.24} parent=83 // loop_header_branch
                  %258 = sbr.rel (%p256) target = $region91
                $region88: #{forward.24} parent=83 // loop_body
                  _
                $region89: #{forward.24} parent=83 // loop_footer
                  %s259 = sadd.s32 1, %s255
                $region90: #{forward.24} parent=83 // loop_footer_branch
                  %254 = sbr.rel target = $region86
                $region91: #{forward.24} parent=83 // loop_exit
                  _
                loop: start=0, step=1, limit=1
                $region92: #{forward.24} parent=83 // loop_pre_header
                  _
                $region93: #{forward.24} parent=83 // loop_header
                  %s264 = sphi 0, %s268
                  %p265 = scmp.ge.s32.totalorder %s264, 1
                  %s269 = sphi %s232, %s232
                  %s270 = sphi %s225, %s225
                $region94: #{forward.24} parent=83 // loop_header_branch
                  %267 = sbr.rel (%p265) target = $region98
                $region95: #{forward.24} parent=83 // loop_body
                  %v271 = vld [vmem:[%s269] sm:$0xf]
                  %272 = vst [vmem:[%s270] sm:$0xf] %v271
                  %v273 = vld [vmem:[%s269 + $0x10] sm:$0xf]
                  %274 = vst [vmem:[%s270 + $0x4] sm:$0xf] %v273
                $region96: #{forward.24} parent=83 // loop_footer
                  %s268 = sadd.s32 1, %s264
                $region97: #{forward.24} parent=83 // loop_footer_branch
                  %263 = sbr.rel target = $region93
                $region98: #{forward.24} parent=83 // loop_exit
                  _
              $region84: #{forward.24} parent=68 // pred_fallthru
                _
            $region69: #{forward.24} parent=64 // pred_fallthru
              _
            // Predicated region
            $region70: #{forward.24} parent=64 // pred_check
              _
            $region71: #{forward.24} parent=64 // pred_check_branch
              %238 = sbr.rel (0) target = $region73
            $region72: #{forward.24} parent=64 // pred_region
              loop: start=0, step=1, limit=1
              $region74: #{forward.24} parent=72 // loop_pre_header
                _
              $region75: #{forward.24} parent=72 // loop_header
                %s241 = sphi 0, %s245
                %p242 = scmp.ge.s32.totalorder %s241, 1
                %s246 = sphi %s232, %s232
                %s247 = sphi %s225, %s225
              $region76: #{forward.24} parent=72 // loop_header_branch
                %244 = sbr.rel (%p242) target = $region80
              $region77: #{forward.24} parent=72 // loop_body
                %v248 = vld [vmem:[%s246] sm:$0xf]
                %249 = vst [vmem:[%s247] sm:$0xf] %v248
                %v250 = vld [vmem:[%s246 + $0x10] sm:$0xf]
                %251 = vst [vmem:[%s247 + $0x4] sm:$0xf] %v250
              $region78: #{forward.24} parent=72 // loop_footer
                %s245 = sadd.s32 1, %s241
              $region79: #{forward.24} parent=72 // loop_footer_branch
                %240 = sbr.rel target = $region75
              $region80: #{forward.24} parent=72 // loop_exit
                _
            $region73: #{forward.24} parent=64 // pred_fallthru
              _
          $region65: #{forward.24} parent=60 // pred_fallthru
            _
          %275 = vnop
        $region61: #{forward.24} parent=15 // pred_fallthru
          _
        // Predicated region
        $region99: #{forward.24} parent=15 // pred_check
          %p276 = pneg %p112
        $region100: #{forward.24} parent=15 // pred_check_branch
          %278 = sbr.rel (%p276) target = $region102
        $region101: #{forward.24} parent=15 // pred_region
          %s279 = sand.u32 %s102, 1
          %s280 = sand.u32 %s102, 1
          %s281 = smul.addr %s280, 8
          %s282 = scalar_lea.vmem [#allocation7], %s281
          %s283 = sadd.s32 %s17, 2
          %s284 = smul.u32 2, %s18
          %s285 = smul.addr %s284, 4
          %s286 = sadd.s32 %s283, %s285
          %s287 = smul.addr %s16, 8
          %s288 = sadd.s32 %s286, %s287
          %s289 = smul.addr %s288, 4
          %s290 = scalar_lea.vmem %s2, %s289
          // Predicated region
          $region103: #{forward.24} parent=101 // pred_check
            _
          $region104: #{forward.24} parent=101 // pred_check_branch
            %292 = sbr.rel (0) target = $region106
          $region105: #{forward.24} parent=101 // pred_region
            // Predicated region
            $region107: #{forward.24} parent=105 // pred_check
              _
            $region108: #{forward.24} parent=105 // pred_check_branch
              %294 = sbr.rel target = $region110
            $region109: #{forward.24} parent=105 // pred_region
              // Predicated region
              $region122: #{forward.24} parent=109 // pred_check
                _
              $region123: #{forward.24} parent=109 // pred_check_branch
                %311 = sbr.rel (0) target = $region125
              $region124: #{forward.24} parent=109 // pred_region
                loop: start=0, step=1, limit=1
                $region126: #{forward.24} parent=124 // loop_pre_header
                  _
                $region127: #{forward.24} parent=124 // loop_header
                  %s313 = sphi 0, %s317
                  %p314 = scmp.ge.s32.totalorder %s313, 1
                  %s318 = sphi %s290, %s290
                  %s319 = sphi %s282, %s282
                $region128: #{forward.24} parent=124 // loop_header_branch
                  %316 = sbr.rel (%p314) target = $region132
                $region129: #{forward.24} parent=124 // loop_body
                  _
                $region130: #{forward.24} parent=124 // loop_footer
                  %s317 = sadd.s32 1, %s313
                $region131: #{forward.24} parent=124 // loop_footer_branch
                  %312 = sbr.rel target = $region127
                $region132: #{forward.24} parent=124 // loop_exit
                  _
                loop: start=0, step=1, limit=1
                $region133: #{forward.24} parent=124 // loop_pre_header
                  _
                $region134: #{forward.24} parent=124 // loop_header
                  %s322 = sphi 0, %s326
                  %p323 = scmp.ge.s32.totalorder %s322, 1
                  %s327 = sphi %s290, %s290
                  %s328 = sphi %s282, %s282
                $region135: #{forward.24} parent=124 // loop_header_branch
                  %325 = sbr.rel (%p323) target = $region139
                $region136: #{forward.24} parent=124 // loop_body
                  %v329 = vld [vmem:[%s327] sm:$0xf]
                  %330 = vst [vmem:[%s328] sm:$0xf] %v329
                  %v331 = vld [vmem:[%s327 + $0x10] sm:$0xf]
                  %332 = vst [vmem:[%s328 + $0x4] sm:$0xf] %v331
                $region137: #{forward.24} parent=124 // loop_footer
                  %s326 = sadd.s32 1, %s322
                $region138: #{forward.24} parent=124 // loop_footer_branch
                  %321 = sbr.rel target = $region134
                $region139: #{forward.24} parent=124 // loop_exit
                  _
              $region125: #{forward.24} parent=109 // pred_fallthru
                _
            $region110: #{forward.24} parent=105 // pred_fallthru
              _
            // Predicated region
            $region111: #{forward.24} parent=105 // pred_check
              _
            $region112: #{forward.24} parent=105 // pred_check_branch
              %296 = sbr.rel (0) target = $region114
            $region113: #{forward.24} parent=105 // pred_region
              loop: start=0, step=1, limit=1
              $region115: #{forward.24} parent=113 // loop_pre_header
                _
              $region116: #{forward.24} parent=113 // loop_header
                %s299 = sphi 0, %s303
                %p300 = scmp.ge.s32.totalorder %s299, 1
                %s304 = sphi %s290, %s290
                %s305 = sphi %s282, %s282
              $region117: #{forward.24} parent=113 // loop_header_branch
                %302 = sbr.rel (%p300) target = $region121
              $region118: #{forward.24} parent=113 // loop_body
                %v306 = vld [vmem:[%s304] sm:$0xf]
                %307 = vst [vmem:[%s305] sm:$0xf] %v306
                %v308 = vld [vmem:[%s304 + $0x10] sm:$0xf]
                %309 = vst [vmem:[%s305 + $0x4] sm:$0xf] %v308
              $region119: #{forward.24} parent=113 // loop_footer
                %s303 = sadd.s32 1, %s299
              $region120: #{forward.24} parent=113 // loop_footer_branch
                %298 = sbr.rel target = $region116
              $region121: #{forward.24} parent=113 // loop_exit
                _
            $region114: #{forward.24} parent=105 // pred_fallthru
              _
          $region106: #{forward.24} parent=101 // pred_fallthru
            _
          %333 = vnop
        $region102: #{forward.24} parent=15 // pred_fallthru
          _
      $region16: #{forward.24} parent=5 // pred_fallthru
        _
      %p334 = scmp.le.s32.totalorder 1, %s9
      %p335 = scmp.lt.s32.totalorder %s9, 5
      %p336 = pnand %p334, %p335
      %p337 = pneg %p336
      // Predicated region
      $region140: #{forward.24} parent=5 // pred_check
        _
      $region141: #{forward.24} parent=5 // pred_check_branch
        %339 = sbr.rel (%p336) target = $region143
      $region142: #{forward.24} parent=5 // pred_region
        %s340 = ssub.s32 %s9, 1
        %s341 = sand.u32 %s43, 1
        %s342 = sand.u32 %s43, 1
        %s343 = smul.addr %s342, 8
        %s344 = scalar_lea.vmem [#allocation5], %s343
        // Predicated region
        $region144: #{forward.24} parent=142 // pred_check
          %p345 = pneg %p56
        $region145: #{forward.24} parent=142 // pred_check_branch
          %347 = sbr.rel (%p345) target = $region147
        $region146: #{forward.24} parent=142 // pred_region
          _
        $region147: #{forward.24} parent=142 // pred_fallthru
          _
        %s348 = sand.u32 %s73, 1
        %s349 = sand.u32 %s73, 1
        %s350 = smul.addr %s349, 8
        %s351 = scalar_lea.vmem [#allocation6], %s350
        // Predicated region
        $region148: #{forward.24} parent=142 // pred_check
          %p352 = pneg %p86
        $region149: #{forward.24} parent=142 // pred_check_branch
          %354 = sbr.rel (%p352) target = $region151
        $region150: #{forward.24} parent=142 // pred_region
          _
        $region151: #{forward.24} parent=142 // pred_fallthru
          _
        %s355 = sand.u32 %s105, 1
        %s356 = sand.u32 %s105, 1
        %s357 = smul.addr %s356, 8
        %s358 = scalar_lea.vmem [#allocation7], %s357
        // Predicated region
        $region152: #{forward.24} parent=142 // pred_check
          %p359 = pneg %p118
        $region153: #{forward.24} parent=142 // pred_check_branch
          %361 = sbr.rel (%p359) target = $region155
        $region154: #{forward.24} parent=142 // pred_region
          _
        $region155: #{forward.24} parent=142 // pred_fallthru
          _
        %s362 = sand.u32 %s43, 1
        %s363 = sand.u32 %s43, 1
        %s364 = smul.addr %s363, 8
        %s365 = scalar_lea.vmem [#allocation5], %s364
        %p366 = pneg %p56
        %p367 = pneg %p53
        %s368 = sand.u32 %s73, 1
        %s369 = sand.u32 %s73, 1
        %s370 = smul.addr %s369, 8
        %s371 = scalar_lea.vmem [#allocation6], %s370
        %p372 = pneg %p86
        %p373 = pneg %p83
        %s374 = sand.u32 %s105, 1
        %s375 = sand.u32 %s105, 1
        %s376 = smul.addr %s375, 8
        %s377 = scalar_lea.vmem [#allocation7], %s376
        %p378 = pneg %p118
        %p379 = pneg %p115
        %p380 = pneg %p146
        %p381 = pneg %p143
        %s382 = sand.u32 %s133, 1
        %s383 = sand.u32 %s133, 1
        %s384 = smul.addr %s383, 8
        %s385 = scalar_lea.vmem [#allocation8], %s384
        %s386 = smul.u32 2, %s21
        %s387 = sadd.s32 %s20, 2
        %s388 = smul.u32 2, %s21
        %p390 = scmp.eq.s32.totalorder %s21, 0
        // Predicated region
        $region156: #{forward.24} parent=142 // pred_check
          %p391 = pneg %p390
        $region157: #{forward.24} parent=142 // pred_check_branch
          %393 = sbr.rel (%p391) target = $region159
        $region158: #{forward.24} parent=142 // pred_region
          %vm394 = vcmask 7168
          %395 = vst.msk [vmem:[#allocation2] sm:$0xff] %vm394, -inf
          %396 = vst.msk [vmem:[#allocation2 + $0x8] sm:$0xff] %vm394, -inf
          %397 = vst.msk [vmem:[#allocation3] sm:$0xff] %vm394, 0.0
          %398 = vst.msk [vmem:[#allocation3 + $0x8] sm:$0xff] %vm394, 0.0
          %399 = vst [vmem:[#allocation4] sm:$0xff] 0.0
          %400 = vst [vmem:[#allocation4 + $0x8] sm:$0xff] 0.0
        $region159: #{forward.24} parent=142 // pred_fallthru
          _
        %v401 = vld [vmem:[%s344] sm:$0xf]
        %v402 = vld [vmem:[%s344 + $0x4] sm:$0xf]
        %v403 = vld [vmem:[%s351] sm:$0xf]
        %v404 = vld [vmem:[%s351 + $0x4] sm:$0xf]
        %v405 = vld [vmem:[%s358] sm:$0xf]
        %v406 = vld [vmem:[%s358 + $0x4] sm:$0xf]
        %v409 = vunpack.c.l.b16 %v401
        %v410 = vunpack.c.l.b16 %v402
        %v411 = vpack.c.b16 %v410, %v409
        %v415 = vunpack.c.l.b16 %v403
        %v416 = vunpack.c.l.b16 %v404
        %v417 = vpack.c.b16 %v416, %v415
        %419 = vmatprep.subr.bf16.mxu0 0
        %420 = vmatpush1.bf16.xpose.msra.mxu0 %v417
        %421 = vmatprep.subr.bf16.mxu0 0
        %422 = vmatpush1.bf16.xpose.msra.mxu0 0
        %423 = vmatprep.subr.bf16.mxu0 0
        %424 = vmatpush1.bf16.xpose.msra.mxu0 0
        %425 = vmatprep.subr.bf16.mxu0 0
        %426 = vmatpush1.bf16.xpose.msra.mxu0 0
        %427 = vmatprep.subr.bf16.mxu0 0
        %428 = vmatpush1.bf16.xpose.msra.mxu0 0
        %429 = vmatprep.subr.bf16.mxu0 0
        %430 = vmatpush1.bf16.xpose.msra.mxu0 0
        %431 = vmatprep.subr.bf16.mxu0 0
        %432 = vmatpush1.bf16.xpose.msra.mxu0 0
        %433 = vmatprep.subr.bf16.mxu0 0
        %434 = vmatpush1.bf16.xpose.msra.mxu0 0
        %435 = vmatprep.subr.bf16.mxu0 0
        %436 = vmatpush1.bf16.xpose.msra.mxu0 0
        %437 = vmatprep.subr.bf16.mxu0 0
        %438 = vmatpush1.bf16.xpose.msra.mxu0 0
        %439 = vmatprep.subr.bf16.mxu0 0
        %440 = vmatpush1.bf16.xpose.msra.mxu0 0
        %441 = vmatprep.subr.bf16.mxu0 0
        %442 = vmatpush1.bf16.xpose.msra.mxu0 0
        %443 = vmatprep.subr.bf16.mxu0 0
        %444 = vmatpush1.bf16.xpose.msra.mxu0 0
        %445 = vmatprep.subr.bf16.mxu0 0
        %446 = vmatpush1.bf16.xpose.msra.mxu0 0
        %447 = vmatprep.subr.bf16.mxu0 0
        %448 = vmatpush1.bf16.xpose.msra.mxu0 0
        %449 = vmatprep.subr.bf16.mxu0 0
        %450 = vmatpush1.bf16.xpose.msra.mxu0 0
        %451 = vmatprep.mubr.bf16.mxu0 0
        %452 = vmatmul.mubr.bf16.gmra.mrb[0].mxu0 %v411
        %v453 = vpop.f32.mrb[0].mxu0
        %v454 = vadd.f32 0.0, %v453
        %v455 = vpop.f32.mrb[0].mxu0
        %v456 = vpop.f32.mrb[0].mxu0
        %v457 = vadd.f32 0.0, %v456
        %v458 = vpop.f32.mrb[0].mxu0
        %459 = vdwg.mxu0
        %v460 = vld [vmem:[#allocation2] sm:$0xff]
        %v461 = vld [vmem:[#allocation2 + $0x8] sm:$0xff]
        %vm462 = vcmask 130048
        %v463 = vsel %vm462, %v454, -inf
        %464 = vmax.xlane.f32.xlu0 %v463
        %v465 = vpop.xlane.xlu0 %464
        %v466 = vsel %vm462, %v457, -inf
        %467 = vmax.xlane.f32.xlu0 %v466
        %v468 = vpop.xlane.xlu0 %467
        %v469 = vmax.f32 %v460, %v465
        %v470 = vmax.f32 %v461, %v468
        %v471 = vsub.f32 %v460, %v469
        %v472 = vsub.f32 %v461, %v470
        %v473 = vmul.f32 %v471, 1.442695
        %v474 = vpow.pop %v473
        %v475 = vmul.f32 %v472, 1.442695
        %v476 = vpow.pop %v475
        %478 = vset.pattern.permute.xlu0 0
        %479 = vperm.xlu0 %478, %v469
        %v480 = vpop.permute.xlu0 %479
        %483 = vset.pattern.permute.xlu0 0
        %484 = vperm.xlu0 %483, %v470
        %v485 = vpop.permute.xlu0 %484
        %v487 = vsub.f32 %v454, %v480
        %v488 = vsub.f32 %v457, %v485
        %v489 = vmul.f32 %v487, 1.442695
        %v490 = vpow.pop %v489
        %v491 = vmul.f32 %v488, 1.442695
        %v492 = vpow.pop %v491
        %v493 = vld [vmem:[#allocation3] sm:$0xff]
        %v494 = vld [vmem:[#allocation3 + $0x8] sm:$0xff]
        %v495 = vmul.f32 %v474, %v493
        %v496 = vmul.f32 %v476, %v494
        %v497 = vsel %vm462, %v490, 0.0
        %498 = vadd.xlane.f32.xlu0 %v497
        %v499 = vpop.xlane.xlu0 %498
        %v500 = vsel %vm462, %v492, 0.0
        %501 = vadd.xlane.f32.xlu0 %v500
        %v502 = vpop.xlane.xlu0 %501
        %v503 = vadd.f32 %v495, %v499
        %v504 = vadd.f32 %v496, %v502
        %vm505 = vcmask 7168
        %506 = vst.msk [vmem:[#allocation3] sm:$0xff] %vm505, %v503
        %507 = vst.msk [vmem:[#allocation3 + $0x8] sm:$0xff] %vm505, %v504
        %v508 = vld [vmem:[#allocation4] sm:$0xff]
        %v509 = vld [vmem:[#allocation4 + $0x8] sm:$0xff]
        %511 = vset.pattern.permute.xlu0 0
        %512 = vperm.xlu0 %511, %v474
        %v513 = vpop.permute.xlu0 %512
        %516 = vset.pattern.permute.xlu0 0
        %517 = vperm.xlu0 %516, %v476
        %v518 = vpop.permute.xlu0 %517
        %v520 = vmul.f32 %v513, %v508
        %v521 = vmul.f32 %v518, %v509
        %v522 = vpack.c.bf16 %v492, %v490
        %v525 = vunpack.c.l.b16 %v405
        %v526 = vunpack.c.l.b16 %v406
        %v527 = vpack.c.b16 %v526, %v525
        %v530 = vsel %vm462, %v522, 0
        %532 = vmatprep.subr.bf16.mxu0 0
        %533 = vmatpush1.bf16.msra.mxu0 %v527
        %534 = vmatprep.subr.bf16.mxu0 0
        %535 = vmatpush1.bf16.msra.mxu0 0
        %536 = vmatprep.subr.bf16.mxu0 0
        %537 = vmatpush1.bf16.msra.mxu0 0
        %538 = vmatprep.subr.bf16.mxu0 0
        %539 = vmatpush1.bf16.msra.mxu0 0
        %540 = vmatprep.subr.bf16.mxu0 0
        %541 = vmatpush1.bf16.msra.mxu0 0
        %542 = vmatprep.subr.bf16.mxu0 0
        %543 = vmatpush1.bf16.msra.mxu0 0
        %544 = vmatprep.subr.bf16.mxu0 0
        %545 = vmatpush1.bf16.msra.mxu0 0
        %546 = vmatprep.subr.bf16.mxu0 0
        %547 = vmatpush1.bf16.msra.mxu0 0
        %548 = vmatprep.subr.bf16.mxu0 0
        %549 = vmatpush1.bf16.msra.mxu0 0
        %550 = vmatprep.subr.bf16.mxu0 0
        %551 = vmatpush1.bf16.msra.mxu0 0
        %552 = vmatprep.subr.bf16.mxu0 0
        %553 = vmatpush1.bf16.msra.mxu0 0
        %554 = vmatprep.subr.bf16.mxu0 0
        %555 = vmatpush1.bf16.msra.mxu0 0
        %556 = vmatprep.subr.bf16.mxu0 0
        %557 = vmatpush1.bf16.msra.mxu0 0
        %558 = vmatprep.subr.bf16.mxu0 0
        %559 = vmatpush1.bf16.msra.mxu0 0
        %560 = vmatprep.subr.bf16.mxu0 0
        %561 = vmatpush1.bf16.msra.mxu0 0
        %562 = vmatprep.subr.bf16.mxu0 0
        %563 = vmatpush1.bf16.msra.mxu0 0
        %564 = vmatprep.mubr.bf16.mxu0 0
        %565 = vmatmul.mubr.bf16.gmra.mrb[0].mxu0 %v530
        %v566 = vpop.f32.mrb[0].mxu0
        %v567 = vadd.f32 0.0, %v566
        %v568 = vpop.f32.mrb[0].mxu0
        %v569 = vpop.f32.mrb[0].mxu0
        %v570 = vadd.f32 0.0, %v569
        %v571 = vpop.f32.mrb[0].mxu0
        %572 = vdwg.mxu0
        %v573 = vadd.f32 %v520, %v567
        %v574 = vadd.f32 %v521, %v570
        %575 = vst [vmem:[#allocation4] sm:$0xff] %v573
        %576 = vst [vmem:[#allocation4 + $0x8] sm:$0xff] %v574
        %577 = vst.msk [vmem:[#allocation2] sm:$0xff] %vm505, %v469
        %578 = vst.msk [vmem:[#allocation2 + $0x8] sm:$0xff] %vm505, %v470
        // Predicated region
        $region160: #{forward.24} parent=142 // pred_check
          %p579 = pneg %p390
        $region161: #{forward.24} parent=142 // pred_check_branch
          %581 = sbr.rel (%p579) target = $region163
        $region162: #{forward.24} parent=142 // pred_region
          %v582 = vld [vmem:[#allocation4] sm:$0xff]
          %v583 = vld [vmem:[#allocation4 + $0x8] sm:$0xff]
          %v584 = vld [vmem:[#allocation3] sm:$0xff]
          %v585 = vld [vmem:[#allocation3 + $0x8] sm:$0xff]
          %v586 = vrcp.pop %v584
          %v587 = vrcp.pop %v585
          %589 = vset.pattern.permute.xlu0 0
          %590 = vperm.xlu0 %589, %v586
          %v591 = vpop.permute.xlu0 %590
          %594 = vset.pattern.permute.xlu0 0
          %595 = vperm.xlu0 %594, %v587
          %v596 = vpop.permute.xlu0 %595
          %v598 = vmul.f32 %v582, %v591
          %v599 = vmul.f32 %v583, %v596
          %v600 = vpack.c.bf16 %v599, %v598
          %v602 = vunpack.c.l.b16 %v600
          %v603 = vunpack.c.h.b16 %v600
          %v604 = vpack.c.b16 %v602, %v602
          %v605 = vpack.c.b16 %v603, %v603
          %608 = vst [vmem:[%s385] sm:$0xf] %v604
          %609 = vst [vmem:[%s385 + $0x4] sm:$0xf] %v605
        $region163: #{forward.24} parent=142 // pred_fallthru
          _
        %s610 = sand.u32 %s133, 1
        %s611 = sand.u32 %s133, 1
        %s612 = smul.addr %s611, 8
        %s613 = scalar_lea.vmem [#allocation8], %s612
        // Predicated region
        $region164: #{forward.24} parent=142 // pred_check
          %p614 = pneg %p143
        $region165: #{forward.24} parent=142 // pred_check_branch
          %616 = sbr.rel (%p614) target = $region167
        $region166: #{forward.24} parent=142 // pred_region
          %s617 = smul.addr %s19, 4
          %s618 = sadd.s32 %s20, %s617
          %s619 = smul.addr %s618, 4
          %s620 = scalar_lea.vmem %s3, %s619
          // Predicated region
          $region168: #{forward.24} parent=166 // pred_check
            _
          $region169: #{forward.24} parent=166 // pred_check_branch
            %622 = sbr.rel (0) target = $region171
          $region170: #{forward.24} parent=166 // pred_region
            // Predicated region
            $region172: #{forward.24} parent=170 // pred_check
              _
            $region173: #{forward.24} parent=170 // pred_check_branch
              %624 = sbr.rel target = $region175
            $region174: #{forward.24} parent=170 // pred_region
              // Predicated region
              $region187: #{forward.24} parent=174 // pred_check
                _
              $region188: #{forward.24} parent=174 // pred_check_branch
                %641 = sbr.rel (0) target = $region190
              $region189: #{forward.24} parent=174 // pred_region
                loop: start=0, step=1, limit=1
                $region191: #{forward.24} parent=189 // loop_pre_header
                  _
                $region192: #{forward.24} parent=189 // loop_header
                  %s643 = sphi 0, %s647
                  %p644 = scmp.ge.s32.totalorder %s643, 1
                  %s648 = sphi %s613, %s613
                  %s649 = sphi %s620, %s620
                $region193: #{forward.24} parent=189 // loop_header_branch
                  %646 = sbr.rel (%p644) target = $region197
                $region194: #{forward.24} parent=189 // loop_body
                  _
                $region195: #{forward.24} parent=189 // loop_footer
                  %s647 = sadd.s32 1, %s643
                $region196: #{forward.24} parent=189 // loop_footer_branch
                  %642 = sbr.rel target = $region192
                $region197: #{forward.24} parent=189 // loop_exit
                  _
                loop: start=0, step=1, limit=1
                $region198: #{forward.24} parent=189 // loop_pre_header
                  _
                $region199: #{forward.24} parent=189 // loop_header
                  %s652 = sphi 0, %s656
                  %p653 = scmp.ge.s32.totalorder %s652, 1
                  %s657 = sphi %s613, %s613
                  %s658 = sphi %s620, %s620
                $region200: #{forward.24} parent=189 // loop_header_branch
                  %655 = sbr.rel (%p653) target = $region204
                $region201: #{forward.24} parent=189 // loop_body
                  %v659 = vld [vmem:[%s657] sm:$0xf]
                  %660 = vst [vmem:[%s658] sm:$0xf] %v659
                  %v661 = vld [vmem:[%s657 + $0x4] sm:$0xf]
                  %662 = vst [vmem:[%s658 + $0x8] sm:$0xf] %v661
                $region202: #{forward.24} parent=189 // loop_footer
                  %s656 = sadd.s32 1, %s652
                $region203: #{forward.24} parent=189 // loop_footer_branch
                  %651 = sbr.rel target = $region199
                $region204: #{forward.24} parent=189 // loop_exit
                  _
              $region190: #{forward.24} parent=174 // pred_fallthru
                _
            $region175: #{forward.24} parent=170 // pred_fallthru
              _
            // Predicated region
            $region176: #{forward.24} parent=170 // pred_check
              _
            $region177: #{forward.24} parent=170 // pred_check_branch
              %626 = sbr.rel (0) target = $region179
            $region178: #{forward.24} parent=170 // pred_region
              loop: start=0, step=1, limit=1
              $region180: #{forward.24} parent=178 // loop_pre_header
                _
              $region181: #{forward.24} parent=178 // loop_header
                %s629 = sphi 0, %s633
                %p630 = scmp.ge.s32.totalorder %s629, 1
                %s634 = sphi %s613, %s613
                %s635 = sphi %s620, %s620
              $region182: #{forward.24} parent=178 // loop_header_branch
                %632 = sbr.rel (%p630) target = $region186
              $region183: #{forward.24} parent=178 // loop_body
                %v636 = vld [vmem:[%s634] sm:$0xf]
                %637 = vst [vmem:[%s635] sm:$0xf] %v636
                %v638 = vld [vmem:[%s634 + $0x4] sm:$0xf]
                %639 = vst [vmem:[%s635 + $0x8] sm:$0xf] %v638
              $region184: #{forward.24} parent=178 // loop_footer
                %s633 = sadd.s32 1, %s629
              $region185: #{forward.24} parent=178 // loop_footer_branch
                %628 = sbr.rel target = $region181
              $region186: #{forward.24} parent=178 // loop_exit
                _
            $region179: #{forward.24} parent=170 // pred_fallthru
              _
          $region171: #{forward.24} parent=166 // pred_fallthru
            _
          %663 = vnop
        $region167: #{forward.24} parent=142 // pred_fallthru
          _
      $region143: #{forward.24} parent=5 // pred_fallthru
        _
      %p664 = scmp.le.s32.totalorder 2, %s9
      // Predicated region
      $region205: #{forward.24} parent=5 // pred_check
        %p665 = pneg %p664
      $region206: #{forward.24} parent=5 // pred_check_branch
        %667 = sbr.rel (%p665) target = $region208
      $region207: #{forward.24} parent=5 // pred_region
        %s668 = ssub.s32 %s9, 2
        // Predicated region
        $region209: #{forward.24} parent=207 // pred_check
          %p669 = pneg %p149
        $region210: #{forward.24} parent=207 // pred_check_branch
          %671 = sbr.rel (%p669) target = $region212
        $region211: #{forward.24} parent=207 // pred_region
          %s672 = sand.u32 %s134, 1
          %s673 = sand.u32 %s134, 1
          %s674 = smul.addr %s673, 8
          %s675 = scalar_lea.vmem [#allocation8], %s674
        $region212: #{forward.24} parent=207 // pred_fallthru
          _
      $region208: #{forward.24} parent=5 // pred_fallthru
        _
    $region6: #{forward.24} parent=1 // loop_footer
      %s13 = sadd.s32 1, %s9
    $region7: #{forward.24} parent=1 // loop_footer_branch
      %8 = sbr.rel target = $region3
    $region8: #{forward.24} parent=1 // loop_exit
      _

// kernel: forward.23
$region0: #{forward.23}
  #allocation0 [shape = 'u32[]', space=smem, size = 0x4, offset = 0x4, fixed_abs, tag = 'smem constant byte address 0x4 - core index']
  #allocation1 [shape = 'u32[144,128]{1,0:T(1,128)}', space=vmem, size = 0x12000, scoped, tag = 'internal scratch']
  #allocation2 [shape = 'f32[16,512]{1,0:T(8,128)}', space=vmem, size = 0x8000, scoped, tag = 'scratch operand']
  %s0 = inlined_call_operand.vmem [shape: bf16[32,256], index: 0, kind: input, shape index: {}]
  %s1 = inlined_call_operand.vmem [shape: bf16[256,512], index: 1, kind: input, shape index: {}]
  %s2 = inlined_call_operand.vmem [shape: f32[1,512], index: 2, kind: input, shape index: {}]
  %s3 = inlined_call_operand.vmem [shape: bf16[32,512], index: 3, kind: output, shape index: {}]
  %s4 = sld [smem:[#allocation0]]
  $region53: #{forward.23} parent=0
    _
  %s6 = ssub.s32 1, %s4
  %s7 = scalar_select 0, %s6, %s4
  loop: start=0, step=1, limit=4
  $region2: #{forward.23} parent=0 // loop_pre_header
    _
  $region3: #{forward.23} parent=0 // loop_header
    %s9 = sphi 0, %s13
    %p10 = scmp.ge.s32.totalorder %s9, 4
    %s16 = sphi 0, %s35
    %s17 = sphi 0, %s31
    %s18 = sphi 0, %s27
    %s19 = sphi 0, %s16
    %s20 = sphi 0, %s17
    %s21 = sphi 0, %s18
    %s22 = sphi 0, %s19
    %s23 = sphi 0, %s20
    %s24 = sphi 0, %s21
    %s40 = sphi 0, %s42
    %s43 = sphi 0, %s40
    %s44 = sphi 0, %s43
    %s60 = sphi 0, %s44
    %s68 = sphi 0, %s70
    %s71 = sphi 0, %s68
    %s72 = sphi 0, %s71
    %s88 = sphi 0, %s72
    %s94 = sphi 0, %s96
    %s97 = sphi 0, %s94
    %s98 = sphi 0, %s97
    %s114 = sphi 0, %s98
    %s122 = sphi 0, %s124
    %s125 = sphi 0, %s122
    %s126 = sphi 0, %s125
    %s142 = sphi 0, %s126
  $region4: #{forward.23} parent=0 // loop_header_branch
    %12 = sbr.rel (%p10) target = $region8
  $region5: #{forward.23} parent=0 // loop_body
    %s14 = ssub.s32 %s9, 1
    %s15 = ssub.s32 %s9, 2
    %s25 = sadd.s32 1, %s18
    %p26 = scmp.ge.s32.totalorder %s25, 1
    %s27 = scalar_select %p26, 0, %s25
    %s28 = sadd.s32 1, %s17
    %s29 = scalar_select %p26, %s28, %s17
    %p30 = scmp.ge.s32.totalorder %s29, 1
    %s31 = scalar_select %p30, 0, %s29
    %s32 = sadd.s32 1, %s16
    %s33 = scalar_select %p30, %s32, %s16
    %p34 = scmp.ge.s32.totalorder %s33, 2
    %s35 = scalar_select %p34, 0, %s33
    %s36 = ssub.s32 %s16, %s35
    %s37 = ssub.s32 %s18, %s27
    %s38 = sor.u32 %s36, %s37
    %p39 = scmp.eq.s32.totalorder %s38, 0
    %s41 = sadd.s32 %s40, 1
    %s42 = scalar_select %p39, %s40, %s41
    %p45 = pneg %p39
    %p46 = scmp.eq.s32.totalorder %s9, 1
    %p47 = por %p45, %p46
    %p48 = scmp.ne.s32.totalorder %s40, %s43
    %p49 = scmp.eq.s32.totalorder %s9, 0
    %p50 = por %p48, %p49
    %p51 = scmp.ne.s32.totalorder %s40, %s43
    %p52 = scmp.eq.s32.totalorder %s14, 1
    %p53 = por %p51, %p52
    %p54 = scmp.ne.s32.totalorder %s43, %s44
    %p55 = scmp.eq.s32.totalorder %s14, 0
    %p56 = por %p54, %p55
    %p57 = scmp.ne.s32.totalorder %s43, %s44
    %p58 = scmp.eq.s32.totalorder %s15, 1
    %p59 = por %p57, %p58
    %p61 = scmp.ne.s32.totalorder %s44, %s60
    %p62 = scmp.eq.s32.totalorder %s15, 0
    %p63 = por %p61, %p62
    %s64 = ssub.s32 %s18, %s27
    %s65 = ssub.s32 %s17, %s31
    %s66 = sor.u32 %s64, %s65
    %p67 = scmp.eq.s32.totalorder %s66, 0
    %s69 = sadd.s32 %s68, 1
    %s70 = scalar_select %p67, %s68, %s69
    %p73 = pneg %p67
    %p74 = scmp.eq.s32.totalorder %s9, 1
    %p75 = por %p73, %p74
    %p76 = scmp.ne.s32.totalorder %s68, %s71
    %p77 = scmp.eq.s32.totalorder %s9, 0
    %p78 = por %p76, %p77
    %p79 = scmp.ne.s32.totalorder %s68, %s71
    %p80 = scmp.eq.s32.totalorder %s14, 1
    %p81 = por %p79, %p80
    %p82 = scmp.ne.s32.totalorder %s71, %s72
    %p83 = scmp.eq.s32.totalorder %s14, 0
    %p84 = por %p82, %p83
    %p85 = scmp.ne.s32.totalorder %s71, %s72
    %p86 = scmp.eq.s32.totalorder %s15, 1
    %p87 = por %p85, %p86
    %p89 = scmp.ne.s32.totalorder %s72, %s88
    %p90 = scmp.eq.s32.totalorder %s15, 0
    %p91 = por %p89, %p90
    %s92 = ssub.s32 %s17, %s31
    %p93 = scmp.eq.s32.totalorder %s92, 0
    %s95 = sadd.s32 %s94, 1
    %s96 = scalar_select %p93, %s94, %s95
    %p99 = pneg %p93
    %p100 = scmp.eq.s32.totalorder %s9, 1
    %p101 = por %p99, %p100
    %p102 = scmp.ne.s32.totalorder %s94, %s97
    %p103 = scmp.eq.s32.totalorder %s9, 0
    %p104 = por %p102, %p103
    %p105 = scmp.ne.s32.totalorder %s94, %s97
    %p106 = scmp.eq.s32.totalorder %s14, 1
    %p107 = por %p105, %p106
    %p108 = scmp.ne.s32.totalorder %s97, %s98
    %p109 = scmp.eq.s32.totalorder %s14, 0
    %p110 = por %p108, %p109
    %p111 = scmp.ne.s32.totalorder %s97, %s98
    %p112 = scmp.eq.s32.totalorder %s15, 1
    %p113 = por %p111, %p112
    %p115 = scmp.ne.s32.totalorder %s98, %s114
    %p116 = scmp.eq.s32.totalorder %s15, 0
    %p117 = por %p115, %p116
    %s118 = ssub.s32 %s16, %s35
    %s119 = ssub.s32 %s17, %s31
    %s120 = sor.u32 %s118, %s119
    %p121 = scmp.eq.s32.totalorder %s120, 0
    %s123 = sadd.s32 %s122, 1
    %s124 = scalar_select %p121, %s122, %s123
    %p127 = pneg %p121
    %p128 = scmp.eq.s32.totalorder %s9, 1
    %p129 = por %p127, %p128
    %p130 = scmp.ne.s32.totalorder %s122, %s125
    %p131 = scmp.eq.s32.totalorder %s9, 0
    %p132 = por %p130, %p131
    %p133 = scmp.ne.s32.totalorder %s122, %s125
    %p134 = scmp.eq.s32.totalorder %s14, 1
    %p135 = por %p133, %p134
    %p136 = scmp.ne.s32.totalorder %s125, %s126
    %p137 = scmp.eq.s32.totalorder %s14, 0
    %p138 = por %p136, %p137
    %p139 = scmp.ne.s32.totalorder %s125, %s126
    %p140 = scmp.eq.s32.totalorder %s15, 1
    %p141 = por %p139, %p140
    %p143 = scmp.ne.s32.totalorder %s126, %s142
    %p144 = scmp.eq.s32.totalorder %s15, 0
    %p145 = por %p143, %p144
    %p146 = scmp.le.s32.totalorder 1, %s9
    %p147 = scmp.lt.s32.totalorder %s9, 3
    %p148 = pnand %p146, %p147
    %p149 = pneg %p148
    // Predicated region
    $region9: #{forward.23} parent=5 // pred_check
      _
    $region10: #{forward.23} parent=5 // pred_check_branch
      %151 = sbr.rel (%p148) target = $region12
    $region11: #{forward.23} parent=5 // pred_region
      %s152 = ssub.s32 %s9, 1
      // Predicated region
      $region13: #{forward.23} parent=11 // pred_check
        %p153 = pneg %p84
      $region14: #{forward.23} parent=11 // pred_check_branch
        %155 = sbr.rel (%p153) target = $region16
      $region15: #{forward.23} parent=11 // pred_region
        %s156 = smul.u32 32, %s21
        %s157 = smul.u32 4, %s20
        %p158 = scmp.lt.s32.totalorder %s156, 31
        %s159 = scalar_select %p158, %s156, 31
        %p160 = scmp.lt.s32.totalorder %s157, 3
        %s161 = scalar_select %p160, %s157, 3
        %s162 = smul.addr %s159, 4
        %s163 = sadd.s32 %s161, %s162
        %s164 = smul.addr %s163, 4
        %s165 = scalar_lea.vmem %s1, %s164
        %s166 = smul.u32 32, %s21
        %s167 = smul.u32 4, %s20
      $region16: #{forward.23} parent=11 // pred_fallthru
        _
      // Predicated region
      $region17: #{forward.23} parent=11 // pred_check
        %p168 = pneg %p110
      $region18: #{forward.23} parent=11 // pred_check_branch
        %170 = sbr.rel (%p168) target = $region20
      $region19: #{forward.23} parent=11 // pred_region
        %s171 = smul.u32 4, %s20
        %p172 = scmp.lt.s32.totalorder %s171, 3
        %s173 = scalar_select %p172, %s171, 3
        %s174 = scalar_lea.vmem %s2, %s173
        %s175 = smul.u32 4, %s20
      $region20: #{forward.23} parent=11 // pred_fallthru
        _
    $region12: #{forward.23} parent=5 // pred_fallthru
      _
    %p176 = scmp.lt.s32.totalorder %s9, 2
    // Predicated region
    $region21: #{forward.23} parent=5 // pred_check
      %p177 = pneg %p176
    $region22: #{forward.23} parent=5 // pred_check_branch
      %179 = sbr.rel (%p177) target = $region24
    $region23: #{forward.23} parent=5 // pred_region
      // Predicated region
      $region25: #{forward.23} parent=23 // pred_check
        %p180 = pneg %p50
      $region26: #{forward.23} parent=23 // pred_check_branch
        %182 = sbr.rel (%p180) target = $region28
      $region27: #{forward.23} parent=23 // pred_region
        %s183 = smul.u32 2, %s16
        %s184 = smul.u32 2, %s18
        %p185 = scmp.lt.s32.totalorder %s183, 3
        %s186 = scalar_select %p185, %s183, 3
        %p187 = scmp.lt.s32.totalorder %s184, 1
        %s188 = scalar_select %p187, %s184, 1
        %s189 = smul.addr %s186, 2
        %s190 = sadd.s32 %s188, %s189
        %s191 = smul.addr %s190, 4
        %s192 = scalar_lea.vmem %s0, %s191
        %s193 = smul.u32 2, %s16
        %s194 = smul.u32 2, %s18
      $region28: #{forward.23} parent=23 // pred_fallthru
        _
    $region24: #{forward.23} parent=5 // pred_fallthru
      _
    %p195 = scmp.le.s32.totalorder 1, %s9
    %p196 = scmp.lt.s32.totalorder %s9, 3
    %p197 = pnand %p195, %p196
    %p198 = pneg %p197
    // Predicated region
    $region29: #{forward.23} parent=5 // pred_check
      _
    $region30: #{forward.23} parent=5 // pred_check_branch
      %200 = sbr.rel (%p197) target = $region32
    $region31: #{forward.23} parent=5 // pred_region
      %s201 = ssub.s32 %s9, 1
      %s202 = smul.u32 2, %s19
      %s203 = smul.u32 2, %s21
      %p204 = scmp.lt.s32.totalorder %s202, 3
      %s205 = scalar_select %p204, %s202, 3
      %p206 = scmp.lt.s32.totalorder %s203, 1
      %s207 = scalar_select %p206, %s203, 1
      %s208 = smul.addr %s205, 2
      %s209 = sadd.s32 %s207, %s208
      %s210 = smul.addr %s209, 4
      %s211 = scalar_lea.vmem %s0, %s210
      %p212 = pneg %p56
      %p213 = pneg %p53
      %s214 = smul.u32 32, %s21
      %s215 = smul.u32 4, %s20
      %p216 = scmp.lt.s32.totalorder %s214, 31
      %s217 = scalar_select %p216, %s214, 31
      %p218 = scmp.lt.s32.totalorder %s215, 3
      %s219 = scalar_select %p218, %s215, 3
      %s220 = smul.addr %s217, 4
      %s221 = sadd.s32 %s219, %s220
      %s222 = smul.addr %s221, 4
      %s223 = scalar_lea.vmem %s1, %s222
      %p224 = pneg %p84
      %p225 = pneg %p81
      %s226 = smul.u32 4, %s20
      %p227 = scmp.lt.s32.totalorder %s226, 3
      %s228 = scalar_select %p227, %s226, 3
      %s229 = scalar_lea.vmem %s2, %s228
      %p230 = pneg %p110
      %p231 = pneg %p107
      %p232 = pneg %p138
      %p233 = pneg %p135
      %s234 = smul.u32 2, %s19
      %s235 = smul.u32 4, %s20
      %p236 = scmp.lt.s32.totalorder %s234, 3
      %s237 = scalar_select %p236, %s234, 3
      %p238 = scmp.lt.s32.totalorder %s235, 3
      %s239 = scalar_select %p238, %s235, 3
      %s240 = smul.addr %s237, 4
      %s241 = sadd.s32 %s239, %s240
      %s242 = smul.addr %s241, 4
      %s243 = scalar_lea.vmem %s3, %s242
      %s244 = smul.u32 2, %s19
      %s245 = smul.u32 2, %s21
      %p246 = scmp.lt.s32.totalorder %s244, 3
      %s247 = scalar_select %p246, %s244, 3
      %p248 = scmp.lt.s32.totalorder %s245, 1
      %s249 = scalar_select %p248, %s245, 1
      %s250 = smul.addr %s247, 2
      %s251 = sadd.s32 %s249, %s250
      %s252 = smul.addr %s251, 4
      %s253 = scalar_lea.vmem %s0, %s252
      %s254 = smul.u32 2, %s19
      %s255 = smul.u32 2, %s21
      %s256 = smul.u32 32, %s21
      %s257 = smul.u32 4, %s20
      %p258 = scmp.lt.s32.totalorder %s256, 31
      %s259 = scalar_select %p258, %s256, 31
      %p260 = scmp.lt.s32.totalorder %s257, 3
      %s261 = scalar_select %p260, %s257, 3
      %s262 = smul.addr %s259, 4
      %s263 = sadd.s32 %s261, %s262
      %s264 = smul.addr %s263, 4
      %s265 = scalar_lea.vmem %s1, %s264
      %s266 = smul.u32 32, %s21
      %s267 = smul.u32 4, %s20
      %s268 = smul.u32 4, %s20
      %p269 = scmp.lt.s32.totalorder %s268, 3
      %s270 = scalar_select %p269, %s268, 3
      %s271 = scalar_lea.vmem %s2, %s270
      %s272 = smul.u32 4, %s20
      %s273 = smul.u32 2, %s19
      %s274 = smul.u32 4, %s20
      %p275 = scmp.lt.s32.totalorder %s273, 3
      %s276 = scalar_select %p275, %s273, 3
      %p277 = scmp.lt.s32.totalorder %s274, 3
      %s278 = scalar_select %p277, %s274, 3
      %s279 = smul.addr %s276, 4
      %s280 = sadd.s32 %s278, %s279
      %s281 = smul.addr %s280, 4
      %s282 = scalar_lea.vmem %s3, %s281
      %s283 = smul.u32 2, %s19
      %s284 = smul.u32 4, %s20
      %p285 = scmp.eq.s32.totalorder %s21, 0
      // Predicated region
      $region33: #{forward.23} parent=31 // pred_check
        %p286 = pneg %p285
      $region34: #{forward.23} parent=31 // pred_check_branch
        %288 = sbr.rel (%p286) target = $region36
      $region35: #{forward.23} parent=31 // pred_region
        %289 = vst [vmem:[#allocation2] sm:$0xff] 0.0
        %290 = vst [vmem:[#allocation2 + $0x8] sm:$0xff] 0.0
        %291 = vst [vmem:[#allocation2 + $0x10] sm:$0xff] 0.0
        %292 = vst [vmem:[#allocation2 + $0x18] sm:$0xff] 0.0
        %293 = vst [vmem:[#allocation2 + $0x20] sm:$0xff] 0.0
        %294 = vst [vmem:[#allocation2 + $0x28] sm:$0xff] 0.0
        %295 = vst [vmem:[#allocation2 + $0x30] sm:$0xff] 0.0
        %296 = vst [vmem:[#allocation2 + $0x38] sm:$0xff] 0.0
      $region36: #{forward.23} parent=31 // pred_fallthru
        _
      %v297 = vld [vmem:[#allocation2] sm:$0xff]
      %v298 = vld [vmem:[#allocation2 + $0x8] sm:$0xff]
      %v299 = vld [vmem:[#allocation2 + $0x10] sm:$0xff]
      %v300 = vld [vmem:[#allocation2 + $0x18] sm:$0xff]
      %v301 = vld [vmem:[#allocation2 + $0x20] sm:$0xff]
      %v302 = vld [vmem:[#allocation2 + $0x28] sm:$0xff]
      %v303 = vld [vmem:[#allocation2 + $0x30] sm:$0xff]
      %v304 = vld [vmem:[#allocation2 + $0x38] sm:$0xff]
      %v305 = vld [vmem:[%s253] sm:$0xff]
      %v306 = vld [vmem:[%s253 + $0x8] sm:$0xff]
      %v307 = vld [vmem:[%s265] sm:$0xff]
      %v308 = vld [vmem:[%s265 + $0x8] sm:$0xff]
      %v309 = vld [vmem:[%s265 + $0x10] sm:$0xff]
      %v310 = vld [vmem:[%s265 + $0x18] sm:$0xff]
      %v311 = vld [vmem:[%s265 + $0x20] sm:$0xff]
      %v312 = vld [vmem:[%s265 + $0x28] sm:$0xff]
      %v313 = vld [vmem:[%s265 + $0x30] sm:$0xff]
      %v314 = vld [vmem:[%s265 + $0x38] sm:$0xff]
      %v315 = vld [vmem:[%s265 + $0x40] sm:$0xff]
      %v316 = vld [vmem:[%s265 + $0x48] sm:$0xff]
      %v317 = vld [vmem:[%s265 + $0x50] sm:$0xff]
      %v318 = vld [vmem:[%s265 + $0x58] sm:$0xff]
      %v319 = vld [vmem:[%s265 + $0x60] sm:$0xff]
      %v320 = vld [vmem:[%s265 + $0x68] sm:$0xff]
      %v321 = vld [vmem:[%s265 + $0x70] sm:$0xff]
      %v322 = vld [vmem:[%s265 + $0x78] sm:$0xff]
      %v323 = vld [vmem:[%s265 + $0x80] sm:$0xff]
      %v324 = vld [vmem:[%s265 + $0x88] sm:$0xff]
      %v325 = vld [vmem:[%s265 + $0x90] sm:$0xff]
      %v326 = vld [vmem:[%s265 + $0x98] sm:$0xff]
      %v327 = vld [vmem:[%s265 + $0xa0] sm:$0xff]
      %v328 = vld [vmem:[%s265 + $0xa8] sm:$0xff]
      %v329 = vld [vmem:[%s265 + $0xb0] sm:$0xff]
      %v330 = vld [vmem:[%s265 + $0xb8] sm:$0xff]
      %v331 = vld [vmem:[%s265 + $0xc0] sm:$0xff]
      %v332 = vld [vmem:[%s265 + $0xc8] sm:$0xff]
      %v333 = vld [vmem:[%s265 + $0xd0] sm:$0xff]
      %v334 = vld [vmem:[%s265 + $0xd8] sm:$0xff]
      %v335 = vld [vmem:[%s265 + $0xe0] sm:$0xff]
      %v336 = vld [vmem:[%s265 + $0xe8] sm:$0xff]
      %v337 = vld [vmem:[%s265 + $0xf0] sm:$0xff]
      %v338 = vld [vmem:[%s265 + $0xf8] sm:$0xff]
      %v339 = vld [vmem:[%s265 + $0x100] sm:$0xff]
      %v340 = vld [vmem:[%s265 + $0x108] sm:$0xff]
      %v341 = vld [vmem:[%s265 + $0x110] sm:$0xff]
      %v342 = vld [vmem:[%s265 + $0x118] sm:$0xff]
      %v343 = vld [vmem:[%s265 + $0x120] sm:$0xff]
      %v344 = vld [vmem:[%s265 + $0x128] sm:$0xff]
      %v345 = vld [vmem:[%s265 + $0x130] sm:$0xff]
      %v346 = vld [vmem:[%s265 + $0x138] sm:$0xff]
      %v347 = vld [vmem:[%s265 + $0x140] sm:$0xff]
      %v348 = vld [vmem:[%s265 + $0x148] sm:$0xff]
      %v349 = vld [vmem:[%s265 + $0x150] sm:$0xff]
      %v350 = vld [vmem:[%s265 + $0x158] sm:$0xff]
      %v351 = vld [vmem:[%s265 + $0x160] sm:$0xff]
      %v352 = vld [vmem:[%s265 + $0x168] sm:$0xff]
      %v353 = vld [vmem:[%s265 + $0x170] sm:$0xff]
      %v354 = vld [vmem:[%s265 + $0x178] sm:$0xff]
      %v355 = vld [vmem:[%s265 + $0x180] sm:$0xff]
      %v356 = vld [vmem:[%s265 + $0x188] sm:$0xff]
      %v357 = vld [vmem:[%s265 + $0x190] sm:$0xff]
      %v358 = vld [vmem:[%s265 + $0x198] sm:$0xff]
      %v359 = vld [vmem:[%s265 + $0x1a0] sm:$0xff]
      %v360 = vld [vmem:[%s265 + $0x1a8] sm:$0xff]
      %v361 = vld [vmem:[%s265 + $0x1b0] sm:$0xff]
      %v362 = vld [vmem:[%s265 + $0x1b8] sm:$0xff]
      %v363 = vld [vmem:[%s265 + $0x1c0] sm:$0xff]
      %v364 = vld [vmem:[%s265 + $0x1c8] sm:$0xff]
      %v365 = vld [vmem:[%s265 + $0x1d0] sm:$0xff]
      %v366 = vld [vmem:[%s265 + $0x1d8] sm:$0xff]
      %v367 = vld [vmem:[%s265 + $0x1e0] sm:$0xff]
      %v368 = vld [vmem:[%s265 + $0x1e8] sm:$0xff]
      %v369 = vld [vmem:[%s265 + $0x1f0] sm:$0xff]
      %v370 = vld [vmem:[%s265 + $0x1f8] sm:$0xff]
      %v373 = vunpack.c.l.b16 %v305
      %v374 = vunpack.c.h.b16 %v305
      %v375 = vunpack.c.l.b16 %v306
      %v376 = vunpack.c.h.b16 %v306
      %v377 = vpack.c.b16 %v375, %v373
      %v378 = vpack.c.b16 %v376, %v374
      %v445 = vunpack.c.l.b16 %v307
      %v446 = vunpack.c.h.b16 %v307
      %v447 = vunpack.c.l.b16 %v308
      %v448 = vunpack.c.h.b16 %v308
      %v449 = vunpack.c.l.b16 %v309
      %v450 = vunpack.c.h.b16 %v309
      %v451 = vunpack.c.l.b16 %v310
      %v452 = vunpack.c.h.b16 %v310
      %v453 = vunpack.c.l.b16 %v311
      %v454 = vunpack.c.h.b16 %v311
      %v455 = vunpack.c.l.b16 %v312
      %v456 = vunpack.c.h.b16 %v312
      %v457 = vunpack.c.l.b16 %v313
      %v458 = vunpack.c.h.b16 %v313
      %v459 = vunpack.c.l.b16 %v314
      %v460 = vunpack.c.h.b16 %v314
      %v461 = vunpack.c.l.b16 %v315
      %v462 = vunpack.c.h.b16 %v315
      %v463 = vunpack.c.l.b16 %v316
      %v464 = vunpack.c.h.b16 %v316
      %v465 = vunpack.c.l.b16 %v317
      %v466 = vunpack.c.h.b16 %v317
      %v467 = vunpack.c.l.b16 %v318
      %v468 = vunpack.c.h.b16 %v318
      %v469 = vunpack.c.l.b16 %v319
      %v470 = vunpack.c.h.b16 %v319
      %v471 = vunpack.c.l.b16 %v320
      %v472 = vunpack.c.h.b16 %v320
      %v473 = vunpack.c.l.b16 %v321
      %v474 = vunpack.c.h.b16 %v321
      %v475 = vunpack.c.l.b16 %v322
      %v476 = vunpack.c.h.b16 %v322
      %v477 = vunpack.c.l.b16 %v323
      %v478 = vunpack.c.h.b16 %v323
      %v479 = vunpack.c.l.b16 %v324
      %v480 = vunpack.c.h.b16 %v324
      %v481 = vunpack.c.l.b16 %v325
      %v482 = vunpack.c.h.b16 %v325
      %v483 = vunpack.c.l.b16 %v326
      %v484 = vunpack.c.h.b16 %v326
      %v485 = vunpack.c.l.b16 %v327
      %v486 = vunpack.c.h.b16 %v327
      %v487 = vunpack.c.l.b16 %v328
      %v488 = vunpack.c.h.b16 %v328
      %v489 = vunpack.c.l.b16 %v329
      %v490 = vunpack.c.h.b16 %v329
      %v491 = vunpack.c.l.b16 %v330
      %v492 = vunpack.c.h.b16 %v330
      %v493 = vunpack.c.l.b16 %v331
      %v494 = vunpack.c.h.b16 %v331
      %v495 = vunpack.c.l.b16 %v332
      %v496 = vunpack.c.h.b16 %v332
      %v497 = vunpack.c.l.b16 %v333
      %v498 = vunpack.c.h.b16 %v333
      %v499 = vunpack.c.l.b16 %v334
      %v500 = vunpack.c.h.b16 %v334
      %v501 = vunpack.c.l.b16 %v335
      %v502 = vunpack.c.h.b16 %v335
      %v503 = vunpack.c.l.b16 %v336
      %v504 = vunpack.c.h.b16 %v336
      %v505 = vunpack.c.l.b16 %v337
      %v506 = vunpack.c.h.b16 %v337
      %v507 = vunpack.c.l.b16 %v338
      %v508 = vunpack.c.h.b16 %v338
      %v509 = vunpack.c.l.b16 %v339
      %v510 = vunpack.c.h.b16 %v339
      %v511 = vunpack.c.l.b16 %v340
      %v512 = vunpack.c.h.b16 %v340
      %v513 = vunpack.c.l.b16 %v341
      %v514 = vunpack.c.h.b16 %v341
      %v515 = vunpack.c.l.b16 %v342
      %v516 = vunpack.c.h.b16 %v342
      %v517 = vunpack.c.l.b16 %v343
      %v518 = vunpack.c.h.b16 %v343
      %v519 = vunpack.c.l.b16 %v344
      %v520 = vunpack.c.h.b16 %v344
      %v521 = vunpack.c.l.b16 %v345
      %v522 = vunpack.c.h.b16 %v345
      %v523 = vunpack.c.l.b16 %v346
      %v524 = vunpack.c.h.b16 %v346
      %v525 = vunpack.c.l.b16 %v347
      %v526 = vunpack.c.h.b16 %v347
      %v527 = vunpack.c.l.b16 %v348
      %v528 = vunpack.c.h.b16 %v348
      %v529 = vunpack.c.l.b16 %v349
      %v530 = vunpack.c.h.b16 %v349
      %v531 = vunpack.c.l.b16 %v350
      %v532 = vunpack.c.h.b16 %v350
      %v533 = vunpack.c.l.b16 %v351
      %v534 = vunpack.c.h.b16 %v351
      %v535 = vunpack.c.l.b16 %v352
      %v536 = vunpack.c.h.b16 %v352
      %v537 = vunpack.c.l.b16 %v353
      %v538 = vunpack.c.h.b16 %v353
      %v539 = vunpack.c.l.b16 %v354
      %v540 = vunpack.c.h.b16 %v354
      %v541 = vunpack.c.l.b16 %v355
      %v542 = vunpack.c.h.b16 %v355
      %v543 = vunpack.c.l.b16 %v356
      %v544 = vunpack.c.h.b16 %v356
      %v545 = vunpack.c.l.b16 %v357
      %v546 = vunpack.c.h.b16 %v357
      %v547 = vunpack.c.l.b16 %v358
      %v548 = vunpack.c.h.b16 %v358
      %v549 = vunpack.c.l.b16 %v359
      %v550 = vunpack.c.h.b16 %v359
      %v551 = vunpack.c.l.b16 %v360
      %v552 = vunpack.c.h.b16 %v360
      %v553 = vunpack.c.l.b16 %v361
      %v554 = vunpack.c.h.b16 %v361
      %v555 = vunpack.c.l.b16 %v362
      %v556 = vunpack.c.h.b16 %v362
      %v557 = vunpack.c.l.b16 %v363
      %v558 = vunpack.c.h.b16 %v363
      %v559 = vunpack.c.l.b16 %v364
      %v560 = vunpack.c.h.b16 %v364
      %v561 = vunpack.c.l.b16 %v365
      %v562 = vunpack.c.h.b16 %v365
      %v563 = vunpack.c.l.b16 %v366
      %v564 = vunpack.c.h.b16 %v366
      %v565 = vunpack.c.l.b16 %v367
      %v566 = vunpack.c.h.b16 %v367
      %v567 = vunpack.c.l.b16 %v368
      %v568 = vunpack.c.h.b16 %v368
      %v569 = vunpack.c.l.b16 %v369
      %v570 = vunpack.c.h.b16 %v369
      %v571 = vunpack.c.l.b16 %v370
      %v572 = vunpack.c.h.b16 %v370
      %v573 = vpack.c.b16 %v449, %v445
      %v574 = vpack.c.b16 %v450, %v446
      %v575 = vpack.c.b16 %v451, %v447
      %v576 = vpack.c.b16 %v452, %v448
      %v577 = vpack.c.b16 %v457, %v453
      %v578 = vpack.c.b16 %v458, %v454
      %v579 = vpack.c.b16 %v459, %v455
      %v580 = vpack.c.b16 %v460, %v456
      %v581 = vpack.c.b16 %v465, %v461
      %v582 = vpack.c.b16 %v466, %v462
      %v583 = vpack.c.b16 %v467, %v463
      %v584 = vpack.c.b16 %v468, %v464
      %v585 = vpack.c.b16 %v473, %v469
      %v586 = vpack.c.b16 %v474, %v470
      %v587 = vpack.c.b16 %v475, %v471
      %v588 = vpack.c.b16 %v476, %v472
      %v589 = vpack.c.b16 %v481, %v477
      %v590 = vpack.c.b16 %v482, %v478
      %v591 = vpack.c.b16 %v483, %v479
      %v592 = vpack.c.b16 %v484, %v480
      %v593 = vpack.c.b16 %v489, %v485
      %v594 = vpack.c.b16 %v490, %v486
      %v595 = vpack.c.b16 %v491, %v487
      %v596 = vpack.c.b16 %v492, %v488
      %v597 = vpack.c.b16 %v497, %v493
      %v598 = vpack.c.b16 %v498, %v494
      %v599 = vpack.c.b16 %v499, %v495
      %v600 = vpack.c.b16 %v500, %v496
      %v601 = vpack.c.b16 %v505, %v501
      %v602 = vpack.c.b16 %v506, %v502
      %v603 = vpack.c.b16 %v507, %v503
      %v604 = vpack.c.b16 %v508, %v504
      %v605 = vpack.c.b16 %v513, %v509
      %v606 = vpack.c.b16 %v514, %v510
      %v607 = vpack.c.b16 %v515, %v511
      %v608 = vpack.c.b16 %v516, %v512
      %v609 = vpack.c.b16 %v521, %v517
      %v610 = vpack.c.b16 %v522, %v518
      %v611 = vpack.c.b16 %v523, %v519
      %v612 = vpack.c.b16 %v524, %v520
      %v613 = vpack.c.b16 %v529, %v525
      %v614 = vpack.c.b16 %v530, %v526
      %v615 = vpack.c.b16 %v531, %v527
      %v616 = vpack.c.b16 %v532, %v528
      %v617 = vpack.c.b16 %v537, %v533
      %v618 = vpack.c.b16 %v538, %v534
      %v619 = vpack.c.b16 %v539, %v535
      %v620 = vpack.c.b16 %v540, %v536
      %v621 = vpack.c.b16 %v545, %v541
      %v622 = vpack.c.b16 %v546, %v542
      %v623 = vpack.c.b16 %v547, %v543
      %v624 = vpack.c.b16 %v548, %v544
      %v625 = vpack.c.b16 %v553, %v549
      %v626 = vpack.c.b16 %v554, %v550
      %v627 = vpack.c.b16 %v555, %v551
      %v628 = vpack.c.b16 %v556, %v552
      %v629 = vpack.c.b16 %v561, %v557
      %v630 = vpack.c.b16 %v562, %v558
      %v631 = vpack.c.b16 %v563, %v559
      %v632 = vpack.c.b16 %v564, %v560
      %v633 = vpack.c.b16 %v569, %v565
      %v634 = vpack.c.b16 %v570, %v566
      %v635 = vpack.c.b16 %v571, %v567
      %v636 = vpack.c.b16 %v572, %v568
      %701 = vmatprep.subr.bf16.mxu0 %v574
      %702 = vmatpush1.bf16.msra.mxu0 %v573
      %703 = vmatprep.subr.bf16.mxu0 %v578
      %704 = vmatpush1.bf16.msra.mxu0 %v577
      %705 = vmatprep.subr.bf16.mxu0 %v582
      %706 = vmatpush1.bf16.msra.mxu0 %v581
      %707 = vmatprep.subr.bf16.mxu0 %v586
      %708 = vmatpush1.bf16.msra.mxu0 %v585
      %709 = vmatprep.subr.bf16.mxu0 %v590
      %710 = vmatpush1.bf16.msra.mxu0 %v589
      %711 = vmatprep.subr.bf16.mxu0 %v594
      %712 = vmatpush1.bf16.msra.mxu0 %v593
      %713 = vmatprep.subr.bf16.mxu0 %v598
      %714 = vmatpush1.bf16.msra.mxu0 %v597
      %715 = vmatprep.subr.bf16.mxu0 %v602
      %716 = vmatpush1.bf16.msra.mxu0 %v601
      %717 = vmatprep.subr.bf16.mxu0 %v606
      %718 = vmatpush1.bf16.msra.mxu0 %v605
      %719 = vmatprep.subr.bf16.mxu0 %v610
      %720 = vmatpush1.bf16.msra.mxu0 %v609
      %721 = vmatprep.subr.bf16.mxu0 %v614
      %722 = vmatpush1.bf16.msra.mxu0 %v613
      %723 = vmatprep.subr.bf16.mxu0 %v618
      %724 = vmatpush1.bf16.msra.mxu0 %v617
      %725 = vmatprep.subr.bf16.mxu0 %v622
      %726 = vmatpush1.bf16.msra.mxu0 %v621
      %727 = vmatprep.subr.bf16.mxu0 %v626
      %728 = vmatpush1.bf16.msra.mxu0 %v625
      %729 = vmatprep.subr.bf16.mxu0 %v630
      %730 = vmatpush1.bf16.msra.mxu0 %v629
      %731 = vmatprep.subr.bf16.mxu0 %v634
      %732 = vmatpush1.bf16.msra.mxu0 %v633
      %733 = vmatprep.mubr.bf16.mxu0 %v378
      %734 = vmatmul.mubr.bf16.gmra.mrb[0].mxu0 %v377
      %v735 = vpop.f32.mrb[0].mxu0
      %v736 = vadd.f32 0.0, %v735
      %v737 = vpop.f32.mrb[0].mxu0
      %v738 = vadd.f32 0.0, %v737
      %v739 = vpop.f32.mrb[0].mxu0
      %v740 = vadd.f32 0.0, %v739
      %v741 = vpop.f32.mrb[0].mxu0
      %v742 = vadd.f32 0.0, %v741
      %743 = vdwg.mxu0
      %744 = vmatprep.subr.bf16.mxu0 %v576
      %745 = vmatpush1.bf16.msra.mxu0 %v575
      %746 = vmatprep.subr.bf16.mxu0 %v580
      %747 = vmatpush1.bf16.msra.mxu0 %v579
      %748 = vmatprep.subr.bf16.mxu0 %v584
      %749 = vmatpush1.bf16.msra.mxu0 %v583
      %750 = vmatprep.subr.bf16.mxu0 %v588
      %751 = vmatpush1.bf16.msra.mxu0 %v587
      %752 = vmatprep.subr.bf16.mxu0 %v592
      %753 = vmatpush1.bf16.msra.mxu0 %v591
      %754 = vmatprep.subr.bf16.mxu0 %v596
      %755 = vmatpush1.bf16.msra.mxu0 %v595
      %756 = vmatprep.subr.bf16.mxu0 %v600
      %757 = vmatpush1.bf16.msra.mxu0 %v599
      %758 = vmatprep.subr.bf16.mxu0 %v604
      %759 = vmatpush1.bf16.msra.mxu0 %v603
      %760 = vmatprep.subr.bf16.mxu0 %v608
      %761 = vmatpush1.bf16.msra.mxu0 %v607
      %762 = vmatprep.subr.bf16.mxu0 %v612
      %763 = vmatpush1.bf16.msra.mxu0 %v611
      %764 = vmatprep.subr.bf16.mxu0 %v616
      %765 = vmatpush1.bf16.msra.mxu0 %v615
      %766 = vmatprep.subr.bf16.mxu0 %v620
      %767 = vmatpush1.bf16.msra.mxu0 %v619
      %768 = vmatprep.subr.bf16.mxu0 %v624
      %769 = vmatpush1.bf16.msra.mxu0 %v623
      %770 = vmatprep.subr.bf16.mxu0 %v628
      %771 = vmatpush1.bf16.msra.mxu0 %v627
      %772 = vmatprep.subr.bf16.mxu0 %v632
      %773 = vmatpush1.bf16.msra.mxu0 %v631
      %774 = vmatprep.subr.bf16.mxu0 %v636
      %775 = vmatpush1.bf16.msra.mxu0 %v635
      %776 = vmatprep.mubr.bf16.mxu0 %v378
      %777 = vmatmul.mubr.bf16.gmra.mrb[0].mxu0 %v377
      %v778 = vpop.f32.mrb[0].mxu0
      %v779 = vadd.f32 0.0, %v778
      %v780 = vpop.f32.mrb[0].mxu0
      %v781 = vadd.f32 0.0, %v780
      %v782 = vpop.f32.mrb[0].mxu0
      %v783 = vadd.f32 0.0, %v782
      %v784 = vpop.f32.mrb[0].mxu0
      %v785 = vadd.f32 0.0, %v784
      %786 = vdwg.mxu0
      %v787 = vadd.f32 %v297, %v736
      %v788 = vadd.f32 %v298, %v738
      %v789 = vadd.f32 %v299, %v779
      %v790 = vadd.f32 %v300, %v781
      %v791 = vadd.f32 %v301, %v740
      %v792 = vadd.f32 %v302, %v742
      %v793 = vadd.f32 %v303, %v783
      %v794 = vadd.f32 %v304, %v785
      %795 = vst [vmem:[#allocation2] sm:$0xff] %v787
      %796 = vst [vmem:[#allocation2 + $0x8] sm:$0xff] %v788
      %797 = vst [vmem:[#allocation2 + $0x10] sm:$0xff] %v789
      %798 = vst [vmem:[#allocation2 + $0x18] sm:$0xff] %v790
      %799 = vst [vmem:[#allocation2 + $0x20] sm:$0xff] %v791
      %800 = vst [vmem:[#allocation2 + $0x28] sm:$0xff] %v792
      %801 = vst [vmem:[#allocation2 + $0x30] sm:$0xff] %v793
      %802 = vst [vmem:[#allocation2 + $0x38] sm:$0xff] %v794
      // Predicated region
      $region37: #{forward.23} parent=31 // pred_check
        %p803 = pneg %p285
      $region38: #{forward.23} parent=31 // pred_check_branch
        %805 = sbr.rel (%p803) target = $region40
      $region39: #{forward.23} parent=31 // pred_region
        %v806 = vld [vmem:[#allocation2] sm:$0xff]
        %v807 = vld [vmem:[#allocation2 + $0x8] sm:$0xff]
        %v808 = vld [vmem:[#allocation2 + $0x10] sm:$0xff]
        %v809 = vld [vmem:[#allocation2 + $0x18] sm:$0xff]
        %v810 = vld [vmem:[#allocation2 + $0x20] sm:$0xff]
        %v811 = vld [vmem:[#allocation2 + $0x28] sm:$0xff]
        %v812 = vld [vmem:[#allocation2 + $0x30] sm:$0xff]
        %v813 = vld [vmem:[#allocation2 + $0x38] sm:$0xff]
        %v814 = vld [vmem:[%s271] sm:$0xf]
        %v816 = vlaneseq
        %v817 = vshrl.u32 %v816, 7
        %v818 = vsub.s32 0, %v817
        %v819 = vrot.slane %v814, %v818
        %v820 = vlaneseq
        %v821 = vshrl.u32 %v820, 7
        %v822 = vsub.s32 1, %v821
        %v823 = vrot.slane %v814, %v822
        %v824 = vlaneseq
        %v825 = vshrl.u32 %v824, 7
        %v826 = vsub.s32 2, %v825
        %v827 = vrot.slane %v814, %v826
        %v828 = vlaneseq
        %v829 = vshrl.u32 %v828, 7
        %v830 = vsub.s32 3, %v829
        %v831 = vrot.slane %v814, %v830
        %v836 = vadd.f32 %v806, %v819
        %v837 = vadd.f32 %v807, %v823
        %v838 = vadd.f32 %v808, %v827
        %v839 = vadd.f32 %v809, %v831
        %v840 = vadd.f32 %v810, %v819
        %v841 = vadd.f32 %v811, %v823
        %v842 = vadd.f32 %v812, %v827
        %v843 = vadd.f32 %v813, %v831
        %v844 = vpack.c.bf16 %v840, %v836
        %v845 = vpack.c.bf16 %v841, %v837
        %v846 = vpack.c.bf16 %v842, %v838
        %v847 = vpack.c.bf16 %v843, %v839
        %v852 = vunpack.c.l.b16 %v844
        %v853 = vunpack.c.l.b16 %v845
        %v854 = vunpack.c.l.b16 %v846
        %v855 = vunpack.c.l.b16 %v847
        %v856 = vunpack.c.h.b16 %v844
        %v857 = vunpack.c.h.b16 %v845
        %v858 = vunpack.c.h.b16 %v846
        %v859 = vunpack.c.h.b16 %v847
        %v860 = vpack.c.b16 %v853, %v852
        %v861 = vpack.c.b16 %v855, %v854
        %v862 = vpack.c.b16 %v857, %v856
        %v863 = vpack.c.b16 %v859, %v858
        %868 = vst [vmem:[%s282] sm:$0xff] %v860
        %869 = vst [vmem:[%s282 + $0x8] sm:$0xff] %v861
        %870 = vst [vmem:[%s282 + $0x10] sm:$0xff] %v862
        %871 = vst [vmem:[%s282 + $0x18] sm:$0xff] %v863
      $region40: #{forward.23} parent=31 // pred_fallthru
        _
      %s872 = smul.u32 2, %s19
      %s873 = smul.u32 4, %s20
      %p874 = scmp.lt.s32.totalorder %s872, 3
      %s875 = scalar_select %p874, %s872, 3
      %p876 = scmp.lt.s32.totalorder %s873, 3
      %s877 = scalar_select %p876, %s873, 3
      %s878 = smul.addr %s875, 4
      %s879 = sadd.s32 %s877, %s878
      %s880 = smul.addr %s879, 4
      %s881 = scalar_lea.vmem %s3, %s880
      // Predicated region
      $region41: #{forward.23} parent=31 // pred_check
        %p882 = pneg %p135
      $region42: #{forward.23} parent=31 // pred_check_branch
        %884 = sbr.rel (%p882) target = $region44
      $region43: #{forward.23} parent=31 // pred_region
        %s885 = smul.u32 2, %s19
        %s886 = smul.u32 4, %s20
      $region44: #{forward.23} parent=31 // pred_fallthru
        _
    $region32: #{forward.23} parent=5 // pred_fallthru
      _
    %p887 = scmp.le.s32.totalorder 2, %s9
    // Predicated region
    $region45: #{forward.23} parent=5 // pred_check
      %p888 = pneg %p887
    $region46: #{forward.23} parent=5 // pred_check_branch
      %890 = sbr.rel (%p888) target = $region48
    $region47: #{forward.23} parent=5 // pred_region
      %s891 = ssub.s32 %s9, 2
      // Predicated region
      $region49: #{forward.23} parent=47 // pred_check
        %p892 = pneg %p141
      $region50: #{forward.23} parent=47 // pred_check_branch
        %894 = sbr.rel (%p892) target = $region52
      $region51: #{forward.23} parent=47 // pred_region
        %s895 = smul.u32 2, %s22
        %s896 = smul.u32 4, %s23
        %p897 = scmp.lt.s32.totalorder %s895, 3
        %s898 = scalar_select %p897, %s895, 3
        %p899 = scmp.lt.s32.totalorder %s896, 3
        %s900 = scalar_select %p899, %s896, 3
        %s901 = smul.addr %s898, 4
        %s902 = sadd.s32 %s900, %s901
        %s903 = smul.addr %s902, 4
        %s904 = scalar_lea.vmem %s3, %s903
      $region52: #{forward.23} parent=47 // pred_fallthru
        _
    $region48: #{forward.23} parent=5 // pred_fallthru
      _
  $region6: #{forward.23} parent=0 // loop_footer
    %s13 = sadd.s32 1, %s9
  $region7: #{forward.23} parent=0 // loop_footer_branch
    %8 = sbr.rel target = $region3
  $region8: #{forward.23} parent=0 // loop_exit
    _

// kernel: forward.26
$region0: #{forward.26}
  #allocation0 [shape = 'u32[]', space=smem, size = 0x4, offset = 0x4, fixed_abs, tag = 'smem constant byte address 0x4 - core index']
  #allocation1 [shape = 'u32[144,128]{1,0:T(1,128)}', space=vmem, size = 0x12000, scoped, tag = 'internal scratch']
  #allocation2 [shape = 'f32[16,512]{1,0:T(8,128)}', space=vmem, size = 0x8000, scoped, tag = 'scratch operand']
  %s0 = inlined_call_operand.vmem [shape: bf16[32,256], index: 0, kind: input, shape index: {}]
  %s1 = inlined_call_operand.vmem [shape: bf16[256,512], index: 1, kind: input, shape index: {}]
  %s2 = inlined_call_operand.vmem [shape: f32[1,512], index: 2, kind: input, shape index: {}]
  %s3 = inlined_call_operand.vmem [shape: bf16[32,512], index: 3, kind: output, shape index: {}]
  %s4 = sld [smem:[#allocation0]]
  $region53: #{forward.26} parent=0
    _
  %s6 = ssub.s32 1, %s4
  %s7 = scalar_select 0, %s6, %s4
  loop: start=0, step=1, limit=4
  $region2: #{forward.26} parent=0 // loop_pre_header
    _
  $region3: #{forward.26} parent=0 // loop_header
    %s9 = sphi 0, %s13
    %p10 = scmp.ge.s32.totalorder %s9, 4
    %s16 = sphi 0, %s35
    %s17 = sphi 0, %s31
    %s18 = sphi 0, %s27
    %s19 = sphi 0, %s16
    %s20 = sphi 0, %s17
    %s21 = sphi 0, %s18
    %s22 = sphi 0, %s19
    %s23 = sphi 0, %s20
    %s24 = sphi 0, %s21
    %s40 = sphi 0, %s42
    %s43 = sphi 0, %s40
    %s44 = sphi 0, %s43
    %s60 = sphi 0, %s44
    %s68 = sphi 0, %s70
    %s71 = sphi 0, %s68
    %s72 = sphi 0, %s71
    %s88 = sphi 0, %s72
    %s94 = sphi 0, %s96
    %s97 = sphi 0, %s94
    %s98 = sphi 0, %s97
    %s114 = sphi 0, %s98
    %s122 = sphi 0, %s124
    %s125 = sphi 0, %s122
    %s126 = sphi 0, %s125
    %s142 = sphi 0, %s126
  $region4: #{forward.26} parent=0 // loop_header_branch
    %12 = sbr.rel (%p10) target = $region8
  $region5: #{forward.26} parent=0 // loop_body
    %s14 = ssub.s32 %s9, 1
    %s15 = ssub.s32 %s9, 2
    %s25 = sadd.s32 1, %s18
    %p26 = scmp.ge.s32.totalorder %s25, 1
    %s27 = scalar_select %p26, 0, %s25
    %s28 = sadd.s32 1, %s17
    %s29 = scalar_select %p26, %s28, %s17
    %p30 = scmp.ge.s32.totalorder %s29, 1
    %s31 = scalar_select %p30, 0, %s29
    %s32 = sadd.s32 1, %s16
    %s33 = scalar_select %p30, %s32, %s16
    %p34 = scmp.ge.s32.totalorder %s33, 2
    %s35 = scalar_select %p34, 0, %s33
    %s36 = ssub.s32 %s16, %s35
    %s37 = ssub.s32 %s18, %s27
    %s38 = sor.u32 %s36, %s37
    %p39 = scmp.eq.s32.totalorder %s38, 0
    %s41 = sadd.s32 %s40, 1
    %s42 = scalar_select %p39, %s40, %s41
    %p45 = pneg %p39
    %p46 = scmp.eq.s32.totalorder %s9, 1
    %p47 = por %p45, %p46
    %p48 = scmp.ne.s32.totalorder %s40, %s43
    %p49 = scmp.eq.s32.totalorder %s9, 0
    %p50 = por %p48, %p49
    %p51 = scmp.ne.s32.totalorder %s40, %s43
    %p52 = scmp.eq.s32.totalorder %s14, 1
    %p53 = por %p51, %p52
    %p54 = scmp.ne.s32.totalorder %s43, %s44
    %p55 = scmp.eq.s32.totalorder %s14, 0
    %p56 = por %p54, %p55
    %p57 = scmp.ne.s32.totalorder %s43, %s44
    %p58 = scmp.eq.s32.totalorder %s15, 1
    %p59 = por %p57, %p58
    %p61 = scmp.ne.s32.totalorder %s44, %s60
    %p62 = scmp.eq.s32.totalorder %s15, 0
    %p63 = por %p61, %p62
    %s64 = ssub.s32 %s18, %s27
    %s65 = ssub.s32 %s17, %s31
    %s66 = sor.u32 %s64, %s65
    %p67 = scmp.eq.s32.totalorder %s66, 0
    %s69 = sadd.s32 %s68, 1
    %s70 = scalar_select %p67, %s68, %s69
    %p73 = pneg %p67
    %p74 = scmp.eq.s32.totalorder %s9, 1
    %p75 = por %p73, %p74
    %p76 = scmp.ne.s32.totalorder %s68, %s71
    %p77 = scmp.eq.s32.totalorder %s9, 0
    %p78 = por %p76, %p77
    %p79 = scmp.ne.s32.totalorder %s68, %s71
    %p80 = scmp.eq.s32.totalorder %s14, 1
    %p81 = por %p79, %p80
    %p82 = scmp.ne.s32.totalorder %s71, %s72
    %p83 = scmp.eq.s32.totalorder %s14, 0
    %p84 = por %p82, %p83
    %p85 = scmp.ne.s32.totalorder %s71, %s72
    %p86 = scmp.eq.s32.totalorder %s15, 1
    %p87 = por %p85, %p86
    %p89 = scmp.ne.s32.totalorder %s72, %s88
    %p90 = scmp.eq.s32.totalorder %s15, 0
    %p91 = por %p89, %p90
    %s92 = ssub.s32 %s17, %s31
    %p93 = scmp.eq.s32.totalorder %s92, 0
    %s95 = sadd.s32 %s94, 1
    %s96 = scalar_select %p93, %s94, %s95
    %p99 = pneg %p93
    %p100 = scmp.eq.s32.totalorder %s9, 1
    %p101 = por %p99, %p100
    %p102 = scmp.ne.s32.totalorder %s94, %s97
    %p103 = scmp.eq.s32.totalorder %s9, 0
    %p104 = por %p102, %p103
    %p105 = scmp.ne.s32.totalorder %s94, %s97
    %p106 = scmp.eq.s32.totalorder %s14, 1
    %p107 = por %p105, %p106
    %p108 = scmp.ne.s32.totalorder %s97, %s98
    %p109 = scmp.eq.s32.totalorder %s14, 0
    %p110 = por %p108, %p109
    %p111 = scmp.ne.s32.totalorder %s97, %s98
    %p112 = scmp.eq.s32.totalorder %s15, 1
    %p113 = por %p111, %p112
    %p115 = scmp.ne.s32.totalorder %s98, %s114
    %p116 = scmp.eq.s32.totalorder %s15, 0
    %p117 = por %p115, %p116
    %s118 = ssub.s32 %s16, %s35
    %s119 = ssub.s32 %s17, %s31
    %s120 = sor.u32 %s118, %s119
    %p121 = scmp.eq.s32.totalorder %s120, 0
    %s123 = sadd.s32 %s122, 1
    %s124 = scalar_select %p121, %s122, %s123
    %p127 = pneg %p121
    %p128 = scmp.eq.s32.totalorder %s9, 1
    %p129 = por %p127, %p128
    %p130 = scmp.ne.s32.totalorder %s122, %s125
    %p131 = scmp.eq.s32.totalorder %s9, 0
    %p132 = por %p130, %p131
    %p133 = scmp.ne.s32.totalorder %s122, %s125
    %p134 = scmp.eq.s32.totalorder %s14, 1
    %p135 = por %p133, %p134
    %p136 = scmp.ne.s32.totalorder %s125, %s126
    %p137 = scmp.eq.s32.totalorder %s14, 0
    %p138 = por %p136, %p137
    %p139 = scmp.ne.s32.totalorder %s125, %s126
    %p140 = scmp.eq.s32.totalorder %s15, 1
    %p141 = por %p139, %p140
    %p143 = scmp.ne.s32.totalorder %s126, %s142
    %p144 = scmp.eq.s32.totalorder %s15, 0
    %p145 = por %p143, %p144
    %p146 = scmp.le.s32.totalorder 1, %s9
    %p147 = scmp.lt.s32.totalorder %s9, 3
    %p148 = pnand %p146, %p147
    %p149 = pneg %p148
    // Predicated region
    $region9: #{forward.26} parent=5 // pred_check
      _
    $region10: #{forward.26} parent=5 // pred_check_branch
      %151 = sbr.rel (%p148) target = $region12
    $region11: #{forward.26} parent=5 // pred_region
      %s152 = ssub.s32 %s9, 1
      // Predicated region
      $region13: #{forward.26} parent=11 // pred_check
        %p153 = pneg %p84
      $region14: #{forward.26} parent=11 // pred_check_branch
        %155 = sbr.rel (%p153) target = $region16
      $region15: #{forward.26} parent=11 // pred_region
        %s156 = smul.u32 32, %s21
        %s157 = smul.u32 4, %s20
        %p158 = scmp.lt.s32.totalorder %s156, 31
        %s159 = scalar_select %p158, %s156, 31
        %p160 = scmp.lt.s32.totalorder %s157, 3
        %s161 = scalar_select %p160, %s157, 3
        %s162 = smul.addr %s159, 4
        %s163 = sadd.s32 %s161, %s162
        %s164 = smul.addr %s163, 4
        %s165 = scalar_lea.vmem %s1, %s164
        %s166 = smul.u32 32, %s21
        %s167 = smul.u32 4, %s20
      $region16: #{forward.26} parent=11 // pred_fallthru
        _
      // Predicated region
      $region17: #{forward.26} parent=11 // pred_check
        %p168 = pneg %p110
      $region18: #{forward.26} parent=11 // pred_check_branch
        %170 = sbr.rel (%p168) target = $region20
      $region19: #{forward.26} parent=11 // pred_region
        %s171 = smul.u32 4, %s20
        %p172 = scmp.lt.s32.totalorder %s171, 3
        %s173 = scalar_select %p172, %s171, 3
        %s174 = scalar_lea.vmem %s2, %s173
        %s175 = smul.u32 4, %s20
      $region20: #{forward.26} parent=11 // pred_fallthru
        _
    $region12: #{forward.26} parent=5 // pred_fallthru
      _
    %p176 = scmp.lt.s32.totalorder %s9, 2
    // Predicated region
    $region21: #{forward.26} parent=5 // pred_check
      %p177 = pneg %p176
    $region22: #{forward.26} parent=5 // pred_check_branch
      %179 = sbr.rel (%p177) target = $region24
    $region23: #{forward.26} parent=5 // pred_region
      // Predicated region
      $region25: #{forward.26} parent=23 // pred_check
        %p180 = pneg %p50
      $region26: #{forward.26} parent=23 // pred_check_branch
        %182 = sbr.rel (%p180) target = $region28
      $region27: #{forward.26} parent=23 // pred_region
        %s183 = smul.u32 2, %s16
        %s184 = smul.u32 2, %s18
        %p185 = scmp.lt.s32.totalorder %s183, 3
        %s186 = scalar_select %p185, %s183, 3
        %p187 = scmp.lt.s32.totalorder %s184, 1
        %s188 = scalar_select %p187, %s184, 1
        %s189 = smul.addr %s186, 2
        %s190 = sadd.s32 %s188, %s189
        %s191 = smul.addr %s190, 4
        %s192 = scalar_lea.vmem %s0, %s191
        %s193 = smul.u32 2, %s16
        %s194 = smul.u32 2, %s18
      $region28: #{forward.26} parent=23 // pred_fallthru
        _
    $region24: #{forward.26} parent=5 // pred_fallthru
      _
    %p195 = scmp.le.s32.totalorder 1, %s9
    %p196 = scmp.lt.s32.totalorder %s9, 3
    %p197 = pnand %p195, %p196
    %p198 = pneg %p197
    // Predicated region
    $region29: #{forward.26} parent=5 // pred_check
      _
    $region30: #{forward.26} parent=5 // pred_check_branch
      %200 = sbr.rel (%p197) target = $region32
    $region31: #{forward.26} parent=5 // pred_region
      %s201 = ssub.s32 %s9, 1
      %s202 = smul.u32 2, %s19
      %s203 = smul.u32 2, %s21
      %p204 = scmp.lt.s32.totalorder %s202, 3
      %s205 = scalar_select %p204, %s202, 3
      %p206 = scmp.lt.s32.totalorder %s203, 1
      %s207 = scalar_select %p206, %s203, 1
      %s208 = smul.addr %s205, 2
      %s209 = sadd.s32 %s207, %s208
      %s210 = smul.addr %s209, 4
      %s211 = scalar_lea.vmem %s0, %s210
      %p212 = pneg %p56
      %p213 = pneg %p53
      %s214 = smul.u32 32, %s21
      %s215 = smul.u32 4, %s20
      %p216 = scmp.lt.s32.totalorder %s214, 31
      %s217 = scalar_select %p216, %s214, 31
      %p218 = scmp.lt.s32.totalorder %s215, 3
      %s219 = scalar_select %p218, %s215, 3
      %s220 = smul.addr %s217, 4
      %s221 = sadd.s32 %s219, %s220
      %s222 = smul.addr %s221, 4
      %s223 = scalar_lea.vmem %s1, %s222
      %p224 = pneg %p84
      %p225 = pneg %p81
      %s226 = smul.u32 4, %s20
      %p227 = scmp.lt.s32.totalorder %s226, 3
      %s228 = scalar_select %p227, %s226, 3
      %s229 = scalar_lea.vmem %s2, %s228
      %p230 = pneg %p110
      %p231 = pneg %p107
      %p232 = pneg %p138
      %p233 = pneg %p135
      %s234 = smul.u32 2, %s19
      %s235 = smul.u32 4, %s20
      %p236 = scmp.lt.s32.totalorder %s234, 3
      %s237 = scalar_select %p236, %s234, 3
      %p238 = scmp.lt.s32.totalorder %s235, 3
      %s239 = scalar_select %p238, %s235, 3
      %s240 = smul.addr %s237, 4
      %s241 = sadd.s32 %s239, %s240
      %s242 = smul.addr %s241, 4
      %s243 = scalar_lea.vmem %s3, %s242
      %s244 = smul.u32 2, %s19
      %s245 = smul.u32 2, %s21
      %p246 = scmp.lt.s32.totalorder %s244, 3
      %s247 = scalar_select %p246, %s244, 3
      %p248 = scmp.lt.s32.totalorder %s245, 1
      %s249 = scalar_select %p248, %s245, 1
      %s250 = smul.addr %s247, 2
      %s251 = sadd.s32 %s249, %s250
      %s252 = smul.addr %s251, 4
      %s253 = scalar_lea.vmem %s0, %s252
      %s254 = smul.u32 2, %s19
      %s255 = smul.u32 2, %s21
      %s256 = smul.u32 32, %s21
      %s257 = smul.u32 4, %s20
      %p258 = scmp.lt.s32.totalorder %s256, 31
      %s259 = scalar_select %p258, %s256, 31
      %p260 = scmp.lt.s32.totalorder %s257, 3
      %s261 = scalar_select %p260, %s257, 3
      %s262 = smul.addr %s259, 4
      %s263 = sadd.s32 %s261, %s262
      %s264 = smul.addr %s263, 4
      %s265 = scalar_lea.vmem %s1, %s264
      %s266 = smul.u32 32, %s21
      %s267 = smul.u32 4, %s20
      %s268 = smul.u32 4, %s20
      %p269 = scmp.lt.s32.totalorder %s268, 3
      %s270 = scalar_select %p269, %s268, 3
      %s271 = scalar_lea.vmem %s2, %s270
      %s272 = smul.u32 4, %s20
      %s273 = smul.u32 2, %s19
      %s274 = smul.u32 4, %s20
      %p275 = scmp.lt.s32.totalorder %s273, 3
      %s276 = scalar_select %p275, %s273, 3
      %p277 = scmp.lt.s32.totalorder %s274, 3
      %s278 = scalar_select %p277, %s274, 3
      %s279 = smul.addr %s276, 4
      %s280 = sadd.s32 %s278, %s279
      %s281 = smul.addr %s280, 4
      %s282 = scalar_lea.vmem %s3, %s281
      %s283 = smul.u32 2, %s19
      %s284 = smul.u32 4, %s20
      %p285 = scmp.eq.s32.totalorder %s21, 0
      // Predicated region
      $region33: #{forward.26} parent=31 // pred_check
        %p286 = pneg %p285
      $region34: #{forward.26} parent=31 // pred_check_branch
        %288 = sbr.rel (%p286) target = $region36
      $region35: #{forward.26} parent=31 // pred_region
        %289 = vst [vmem:[#allocation2] sm:$0xff] 0.0
        %290 = vst [vmem:[#allocation2 + $0x8] sm:$0xff] 0.0
        %291 = vst [vmem:[#allocation2 + $0x10] sm:$0xff] 0.0
        %292 = vst [vmem:[#allocation2 + $0x18] sm:$0xff] 0.0
        %293 = vst [vmem:[#allocation2 + $0x20] sm:$0xff] 0.0
        %294 = vst [vmem:[#allocation2 + $0x28] sm:$0xff] 0.0
        %295 = vst [vmem:[#allocation2 + $0x30] sm:$0xff] 0.0
        %296 = vst [vmem:[#allocation2 + $0x38] sm:$0xff] 0.0
      $region36: #{forward.26} parent=31 // pred_fallthru
        _
      %v297 = vld [vmem:[#allocation2] sm:$0xff]
      %v298 = vld [vmem:[#allocation2 + $0x8] sm:$0xff]
      %v299 = vld [vmem:[#allocation2 + $0x10] sm:$0xff]
      %v300 = vld [vmem:[#allocation2 + $0x18] sm:$0xff]
      %v301 = vld [vmem:[#allocation2 + $0x20] sm:$0xff]
      %v302 = vld [vmem:[#allocation2 + $0x28] sm:$0xff]
      %v303 = vld [vmem:[#allocation2 + $0x30] sm:$0xff]
      %v304 = vld [vmem:[#allocation2 + $0x38] sm:$0xff]
      %v305 = vld [vmem:[%s253] sm:$0xff]
      %v306 = vld [vmem:[%s253 + $0x8] sm:$0xff]
      %v307 = vld [vmem:[%s265] sm:$0xff]
      %v308 = vld [vmem:[%s265 + $0x8] sm:$0xff]
      %v309 = vld [vmem:[%s265 + $0x10] sm:$0xff]
      %v310 = vld [vmem:[%s265 + $0x18] sm:$0xff]
      %v311 = vld [vmem:[%s265 + $0x20] sm:$0xff]
      %v312 = vld [vmem:[%s265 + $0x28] sm:$0xff]
      %v313 = vld [vmem:[%s265 + $0x30] sm:$0xff]
      %v314 = vld [vmem:[%s265 + $0x38] sm:$0xff]
      %v315 = vld [vmem:[%s265 + $0x40] sm:$0xff]
      %v316 = vld [vmem:[%s265 + $0x48] sm:$0xff]
      %v317 = vld [vmem:[%s265 + $0x50] sm:$0xff]
      %v318 = vld [vmem:[%s265 + $0x58] sm:$0xff]
      %v319 = vld [vmem:[%s265 + $0x60] sm:$0xff]
      %v320 = vld [vmem:[%s265 + $0x68] sm:$0xff]
      %v321 = vld [vmem:[%s265 + $0x70] sm:$0xff]
      %v322 = vld [vmem:[%s265 + $0x78] sm:$0xff]
      %v323 = vld [vmem:[%s265 + $0x80] sm:$0xff]
      %v324 = vld [vmem:[%s265 + $0x88] sm:$0xff]
      %v325 = vld [vmem:[%s265 + $0x90] sm:$0xff]
      %v326 = vld [vmem:[%s265 + $0x98] sm:$0xff]
      %v327 = vld [vmem:[%s265 + $0xa0] sm:$0xff]
      %v328 = vld [vmem:[%s265 + $0xa8] sm:$0xff]
      %v329 = vld [vmem:[%s265 + $0xb0] sm:$0xff]
      %v330 = vld [vmem:[%s265 + $0xb8] sm:$0xff]
      %v331 = vld [vmem:[%s265 + $0xc0] sm:$0xff]
      %v332 = vld [vmem:[%s265 + $0xc8] sm:$0xff]
      %v333 = vld [vmem:[%s265 + $0xd0] sm:$0xff]
      %v334 = vld [vmem:[%s265 + $0xd8] sm:$0xff]
      %v335 = vld [vmem:[%s265 + $0xe0] sm:$0xff]
      %v336 = vld [vmem:[%s265 + $0xe8] sm:$0xff]
      %v337 = vld [vmem:[%s265 + $0xf0] sm:$0xff]
      %v338 = vld [vmem:[%s265 + $0xf8] sm:$0xff]
      %v339 = vld [vmem:[%s265 + $0x100] sm:$0xff]
      %v340 = vld [vmem:[%s265 + $0x108] sm:$0xff]
      %v341 = vld [vmem:[%s265 + $0x110] sm:$0xff]
      %v342 = vld [vmem:[%s265 + $0x118] sm:$0xff]
      %v343 = vld [vmem:[%s265 + $0x120] sm:$0xff]
      %v344 = vld [vmem:[%s265 + $0x128] sm:$0xff]
      %v345 = vld [vmem:[%s265 + $0x130] sm:$0xff]
      %v346 = vld [vmem:[%s265 + $0x138] sm:$0xff]
      %v347 = vld [vmem:[%s265 + $0x140] sm:$0xff]
      %v348 = vld [vmem:[%s265 + $0x148] sm:$0xff]
      %v349 = vld [vmem:[%s265 + $0x150] sm:$0xff]
      %v350 = vld [vmem:[%s265 + $0x158] sm:$0xff]
      %v351 = vld [vmem:[%s265 + $0x160] sm:$0xff]
      %v352 = vld [vmem:[%s265 + $0x168] sm:$0xff]
      %v353 = vld [vmem:[%s265 + $0x170] sm:$0xff]
      %v354 = vld [vmem:[%s265 + $0x178] sm:$0xff]
      %v355 = vld [vmem:[%s265 + $0x180] sm:$0xff]
      %v356 = vld [vmem:[%s265 + $0x188] sm:$0xff]
      %v357 = vld [vmem:[%s265 + $0x190] sm:$0xff]
      %v358 = vld [vmem:[%s265 + $0x198] sm:$0xff]
      %v359 = vld [vmem:[%s265 + $0x1a0] sm:$0xff]
      %v360 = vld [vmem:[%s265 + $0x1a8] sm:$0xff]
      %v361 = vld [vmem:[%s265 + $0x1b0] sm:$0xff]
      %v362 = vld [vmem:[%s265 + $0x1b8] sm:$0xff]
      %v363 = vld [vmem:[%s265 + $0x1c0] sm:$0xff]
      %v364 = vld [vmem:[%s265 + $0x1c8] sm:$0xff]
      %v365 = vld [vmem:[%s265 + $0x1d0] sm:$0xff]
      %v366 = vld [vmem:[%s265 + $0x1d8] sm:$0xff]
      %v367 = vld [vmem:[%s265 + $0x1e0] sm:$0xff]
      %v368 = vld [vmem:[%s265 + $0x1e8] sm:$0xff]
      %v369 = vld [vmem:[%s265 + $0x1f0] sm:$0xff]
      %v370 = vld [vmem:[%s265 + $0x1f8] sm:$0xff]
      %v373 = vunpack.c.l.b16 %v305
      %v374 = vunpack.c.h.b16 %v305
      %v375 = vunpack.c.l.b16 %v306
      %v376 = vunpack.c.h.b16 %v306
      %v377 = vpack.c.b16 %v375, %v373
      %v378 = vpack.c.b16 %v376, %v374
      %v445 = vunpack.c.l.b16 %v307
      %v446 = vunpack.c.h.b16 %v307
      %v447 = vunpack.c.l.b16 %v308
      %v448 = vunpack.c.h.b16 %v308
      %v449 = vunpack.c.l.b16 %v309
      %v450 = vunpack.c.h.b16 %v309
      %v451 = vunpack.c.l.b16 %v310
      %v452 = vunpack.c.h.b16 %v310
      %v453 = vunpack.c.l.b16 %v311
      %v454 = vunpack.c.h.b16 %v311
      %v455 = vunpack.c.l.b16 %v312
      %v456 = vunpack.c.h.b16 %v312
      %v457 = vunpack.c.l.b16 %v313
      %v458 = vunpack.c.h.b16 %v313
      %v459 = vunpack.c.l.b16 %v314
      %v460 = vunpack.c.h.b16 %v314
      %v461 = vunpack.c.l.b16 %v315
      %v462 = vunpack.c.h.b16 %v315
      %v463 = vunpack.c.l.b16 %v316
      %v464 = vunpack.c.h.b16 %v316
      %v465 = vunpack.c.l.b16 %v317
      %v466 = vunpack.c.h.b16 %v317
      %v467 = vunpack.c.l.b16 %v318
      %v468 = vunpack.c.h.b16 %v318
      %v469 = vunpack.c.l.b16 %v319
      %v470 = vunpack.c.h.b16 %v319
      %v471 = vunpack.c.l.b16 %v320
      %v472 = vunpack.c.h.b16 %v320
      %v473 = vunpack.c.l.b16 %v321
      %v474 = vunpack.c.h.b16 %v321
      %v475 = vunpack.c.l.b16 %v322
      %v476 = vunpack.c.h.b16 %v322
      %v477 = vunpack.c.l.b16 %v323
      %v478 = vunpack.c.h.b16 %v323
      %v479 = vunpack.c.l.b16 %v324
      %v480 = vunpack.c.h.b16 %v324
      %v481 = vunpack.c.l.b16 %v325
      %v482 = vunpack.c.h.b16 %v325
      %v483 = vunpack.c.l.b16 %v326
      %v484 = vunpack.c.h.b16 %v326
      %v485 = vunpack.c.l.b16 %v327
      %v486 = vunpack.c.h.b16 %v327
      %v487 = vunpack.c.l.b16 %v328
      %v488 = vunpack.c.h.b16 %v328
      %v489 = vunpack.c.l.b16 %v329
      %v490 = vunpack.c.h.b16 %v329
      %v491 = vunpack.c.l.b16 %v330
      %v492 = vunpack.c.h.b16 %v330
      %v493 = vunpack.c.l.b16 %v331
      %v494 = vunpack.c.h.b16 %v331
      %v495 = vunpack.c.l.b16 %v332
      %v496 = vunpack.c.h.b16 %v332
      %v497 = vunpack.c.l.b16 %v333
      %v498 = vunpack.c.h.b16 %v333
      %v499 = vunpack.c.l.b16 %v334
      %v500 = vunpack.c.h.b16 %v334
      %v501 = vunpack.c.l.b16 %v335
      %v502 = vunpack.c.h.b16 %v335
      %v503 = vunpack.c.l.b16 %v336
      %v504 = vunpack.c.h.b16 %v336
      %v505 = vunpack.c.l.b16 %v337
      %v506 = vunpack.c.h.b16 %v337
      %v507 = vunpack.c.l.b16 %v338
      %v508 = vunpack.c.h.b16 %v338
      %v509 = vunpack.c.l.b16 %v339
      %v510 = vunpack.c.h.b16 %v339
      %v511 = vunpack.c.l.b16 %v340
      %v512 = vunpack.c.h.b16 %v340
      %v513 = vunpack.c.l.b16 %v341
      %v514 = vunpack.c.h.b16 %v341
      %v515 = vunpack.c.l.b16 %v342
      %v516 = vunpack.c.h.b16 %v342
      %v517 = vunpack.c.l.b16 %v343
      %v518 = vunpack.c.h.b16 %v343
      %v519 = vunpack.c.l.b16 %v344
      %v520 = vunpack.c.h.b16 %v344
      %v521 = vunpack.c.l.b16 %v345
      %v522 = vunpack.c.h.b16 %v345
      %v523 = vunpack.c.l.b16 %v346
      %v524 = vunpack.c.h.b16 %v346
      %v525 = vunpack.c.l.b16 %v347
      %v526 = vunpack.c.h.b16 %v347
      %v527 = vunpack.c.l.b16 %v348
      %v528 = vunpack.c.h.b16 %v348
      %v529 = vunpack.c.l.b16 %v349
      %v530 = vunpack.c.h.b16 %v349
      %v531 = vunpack.c.l.b16 %v350
      %v532 = vunpack.c.h.b16 %v350
      %v533 = vunpack.c.l.b16 %v351
      %v534 = vunpack.c.h.b16 %v351
      %v535 = vunpack.c.l.b16 %v352
      %v536 = vunpack.c.h.b16 %v352
      %v537 = vunpack.c.l.b16 %v353
      %v538 = vunpack.c.h.b16 %v353
      %v539 = vunpack.c.l.b16 %v354
      %v540 = vunpack.c.h.b16 %v354
      %v541 = vunpack.c.l.b16 %v355
      %v542 = vunpack.c.h.b16 %v355
      %v543 = vunpack.c.l.b16 %v356
      %v544 = vunpack.c.h.b16 %v356
      %v545 = vunpack.c.l.b16 %v357
      %v546 = vunpack.c.h.b16 %v357
      %v547 = vunpack.c.l.b16 %v358
      %v548 = vunpack.c.h.b16 %v358
      %v549 = vunpack.c.l.b16 %v359
      %v550 = vunpack.c.h.b16 %v359
      %v551 = vunpack.c.l.b16 %v360
      %v552 = vunpack.c.h.b16 %v360
      %v553 = vunpack.c.l.b16 %v361
      %v554 = vunpack.c.h.b16 %v361
      %v555 = vunpack.c.l.b16 %v362
      %v556 = vunpack.c.h.b16 %v362
      %v557 = vunpack.c.l.b16 %v363
      %v558 = vunpack.c.h.b16 %v363
      %v559 = vunpack.c.l.b16 %v364
      %v560 = vunpack.c.h.b16 %v364
      %v561 = vunpack.c.l.b16 %v365
      %v562 = vunpack.c.h.b16 %v365
      %v563 = vunpack.c.l.b16 %v366
      %v564 = vunpack.c.h.b16 %v366
      %v565 = vunpack.c.l.b16 %v367
      %v566 = vunpack.c.h.b16 %v367
      %v567 = vunpack.c.l.b16 %v368
      %v568 = vunpack.c.h.b16 %v368
      %v569 = vunpack.c.l.b16 %v369
      %v570 = vunpack.c.h.b16 %v369
      %v571 = vunpack.c.l.b16 %v370
      %v572 = vunpack.c.h.b16 %v370
      %v573 = vpack.c.b16 %v449, %v445
      %v574 = vpack.c.b16 %v450, %v446
      %v575 = vpack.c.b16 %v451, %v447
      %v576 = vpack.c.b16 %v452, %v448
      %v577 = vpack.c.b16 %v457, %v453
      %v578 = vpack.c.b16 %v458, %v454
      %v579 = vpack.c.b16 %v459, %v455
      %v580 = vpack.c.b16 %v460, %v456
      %v581 = vpack.c.b16 %v465, %v461
      %v582 = vpack.c.b16 %v466, %v462
      %v583 = vpack.c.b16 %v467, %v463
      %v584 = vpack.c.b16 %v468, %v464
      %v585 = vpack.c.b16 %v473, %v469
      %v586 = vpack.c.b16 %v474, %v470
      %v587 = vpack.c.b16 %v475, %v471
      %v588 = vpack.c.b16 %v476, %v472
      %v589 = vpack.c.b16 %v481, %v477
      %v590 = vpack.c.b16 %v482, %v478
      %v591 = vpack.c.b16 %v483, %v479
      %v592 = vpack.c.b16 %v484, %v480
      %v593 = vpack.c.b16 %v489, %v485
      %v594 = vpack.c.b16 %v490, %v486
      %v595 = vpack.c.b16 %v491, %v487
      %v596 = vpack.c.b16 %v492, %v488
      %v597 = vpack.c.b16 %v497, %v493
      %v598 = vpack.c.b16 %v498, %v494
      %v599 = vpack.c.b16 %v499, %v495
      %v600 = vpack.c.b16 %v500, %v496
      %v601 = vpack.c.b16 %v505, %v501
      %v602 = vpack.c.b16 %v506, %v502
      %v603 = vpack.c.b16 %v507, %v503
      %v604 = vpack.c.b16 %v508, %v504
      %v605 = vpack.c.b16 %v513, %v509
      %v606 = vpack.c.b16 %v514, %v510
      %v607 = vpack.c.b16 %v515, %v511
      %v608 = vpack.c.b16 %v516, %v512
      %v609 = vpack.c.b16 %v521, %v517
      %v610 = vpack.c.b16 %v522, %v518
      %v611 = vpack.c.b16 %v523, %v519
      %v612 = vpack.c.b16 %v524, %v520
      %v613 = vpack.c.b16 %v529, %v525
      %v614 = vpack.c.b16 %v530, %v526
      %v615 = vpack.c.b16 %v531, %v527
      %v616 = vpack.c.b16 %v532, %v528
      %v617 = vpack.c.b16 %v537, %v533
      %v618 = vpack.c.b16 %v538, %v534
      %v619 = vpack.c.b16 %v539, %v535
      %v620 = vpack.c.b16 %v540, %v536
      %v621 = vpack.c.b16 %v545, %v541
      %v622 = vpack.c.b16 %v546, %v542
      %v623 = vpack.c.b16 %v547, %v543
      %v624 = vpack.c.b16 %v548, %v544
      %v625 = vpack.c.b16 %v553, %v549
      %v626 = vpack.c.b16 %v554, %v550
      %v627 = vpack.c.b16 %v555, %v551
      %v628 = vpack.c.b16 %v556, %v552
      %v629 = vpack.c.b16 %v561, %v557
      %v630 = vpack.c.b16 %v562, %v558
      %v631 = vpack.c.b16 %v563, %v559
      %v632 = vpack.c.b16 %v564, %v560
      %v633 = vpack.c.b16 %v569, %v565
      %v634 = vpack.c.b16 %v570, %v566
      %v635 = vpack.c.b16 %v571, %v567
      %v636 = vpack.c.b16 %v572, %v568
      %701 = vmatprep.subr.bf16.mxu0 %v574
      %702 = vmatpush1.bf16.msra.mxu0 %v573
      %703 = vmatprep.subr.bf16.mxu0 %v578
      %704 = vmatpush1.bf16.msra.mxu0 %v577
      %705 = vmatprep.subr.bf16.mxu0 %v582
      %706 = vmatpush1.bf16.msra.mxu0 %v581
      %707 = vmatprep.subr.bf16.mxu0 %v586
      %708 = vmatpush1.bf16.msra.mxu0 %v585
      %709 = vmatprep.subr.bf16.mxu0 %v590
      %710 = vmatpush1.bf16.msra.mxu0 %v589
      %711 = vmatprep.subr.bf16.mxu0 %v594
      %712 = vmatpush1.bf16.msra.mxu0 %v593
      %713 = vmatprep.subr.bf16.mxu0 %v598
      %714 = vmatpush1.bf16.msra.mxu0 %v597
      %715 = vmatprep.subr.bf16.mxu0 %v602
      %716 = vmatpush1.bf16.msra.mxu0 %v601
      %717 = vmatprep.subr.bf16.mxu0 %v606
      %718 = vmatpush1.bf16.msra.mxu0 %v605
      %719 = vmatprep.subr.bf16.mxu0 %v610
      %720 = vmatpush1.bf16.msra.mxu0 %v609
      %721 = vmatprep.subr.bf16.mxu0 %v614
      %722 = vmatpush1.bf16.msra.mxu0 %v613
      %723 = vmatprep.subr.bf16.mxu0 %v618
      %724 = vmatpush1.bf16.msra.mxu0 %v617
      %725 = vmatprep.subr.bf16.mxu0 %v622
      %726 = vmatpush1.bf16.msra.mxu0 %v621
      %727 = vmatprep.subr.bf16.mxu0 %v626
      %728 = vmatpush1.bf16.msra.mxu0 %v625
      %729 = vmatprep.subr.bf16.mxu0 %v630
      %730 = vmatpush1.bf16.msra.mxu0 %v629
      %731 = vmatprep.subr.bf16.mxu0 %v634
      %732 = vmatpush1.bf16.msra.mxu0 %v633
      %733 = vmatprep.mubr.bf16.mxu0 %v378
      %734 = vmatmul.mubr.bf16.gmra.mrb[0].mxu0 %v377
      %v735 = vpop.f32.mrb[0].mxu0
      %v736 = vadd.f32 0.0, %v735
      %v737 = vpop.f32.mrb[0].mxu0
      %v738 = vadd.f32 0.0, %v737
      %v739 = vpop.f32.mrb[0].mxu0
      %v740 = vadd.f32 0.0, %v739
      %v741 = vpop.f32.mrb[0].mxu0
      %v742 = vadd.f32 0.0, %v741
      %743 = vdwg.mxu0
      %744 = vmatprep.subr.bf16.mxu0 %v576
      %745 = vmatpush1.bf16.msra.mxu0 %v575
      %746 = vmatprep.subr.bf16.mxu0 %v580
      %747 = vmatpush1.bf16.msra.mxu0 %v579
      %748 = vmatprep.subr.bf16.mxu0 %v584
      %749 = vmatpush1.bf16.msra.mxu0 %v583
      %750 = vmatprep.subr.bf16.mxu0 %v588
      %751 = vmatpush1.bf16.msra.mxu0 %v587
      %752 = vmatprep.subr.bf16.mxu0 %v592
      %753 = vmatpush1.bf16.msra.mxu0 %v591
      %754 = vmatprep.subr.bf16.mxu0 %v596
      %755 = vmatpush1.bf16.msra.mxu0 %v595
      %756 = vmatprep.subr.bf16.mxu0 %v600
      %757 = vmatpush1.bf16.msra.mxu0 %v599
      %758 = vmatprep.subr.bf16.mxu0 %v604
      %759 = vmatpush1.bf16.msra.mxu0 %v603
      %760 = vmatprep.subr.bf16.mxu0 %v608
      %761 = vmatpush1.bf16.msra.mxu0 %v607
      %762 = vmatprep.subr.bf16.mxu0 %v612
      %763 = vmatpush1.bf16.msra.mxu0 %v611
      %764 = vmatprep.subr.bf16.mxu0 %v616
      %765 = vmatpush1.bf16.msra.mxu0 %v615
      %766 = vmatprep.subr.bf16.mxu0 %v620
      %767 = vmatpush1.bf16.msra.mxu0 %v619
      %768 = vmatprep.subr.bf16.mxu0 %v624
      %769 = vmatpush1.bf16.msra.mxu0 %v623
      %770 = vmatprep.subr.bf16.mxu0 %v628
      %771 = vmatpush1.bf16.msra.mxu0 %v627
      %772 = vmatprep.subr.bf16.mxu0 %v632
      %773 = vmatpush1.bf16.msra.mxu0 %v631
      %774 = vmatprep.subr.bf16.mxu0 %v636
      %775 = vmatpush1.bf16.msra.mxu0 %v635
      %776 = vmatprep.mubr.bf16.mxu0 %v378
      %777 = vmatmul.mubr.bf16.gmra.mrb[0].mxu0 %v377
      %v778 = vpop.f32.mrb[0].mxu0
      %v779 = vadd.f32 0.0, %v778
      %v780 = vpop.f32.mrb[0].mxu0
      %v781 = vadd.f32 0.0, %v780
      %v782 = vpop.f32.mrb[0].mxu0
      %v783 = vadd.f32 0.0, %v782
      %v784 = vpop.f32.mrb[0].mxu0
      %v785 = vadd.f32 0.0, %v784
      %786 = vdwg.mxu0
      %v787 = vadd.f32 %v297, %v736
      %v788 = vadd.f32 %v298, %v738
      %v789 = vadd.f32 %v299, %v779
      %v790 = vadd.f32 %v300, %v781
      %v791 = vadd.f32 %v301, %v740
      %v792 = vadd.f32 %v302, %v742
      %v793 = vadd.f32 %v303, %v783
      %v794 = vadd.f32 %v304, %v785
      %795 = vst [vmem:[#allocation2] sm:$0xff] %v787
      %796 = vst [vmem:[#allocation2 + $0x8] sm:$0xff] %v788
      %797 = vst [vmem:[#allocation2 + $0x10] sm:$0xff] %v789
      %798 = vst [vmem:[#allocation2 + $0x18] sm:$0xff] %v790
      %799 = vst [vmem:[#allocation2 + $0x20] sm:$0xff] %v791
      %800 = vst [vmem:[#allocation2 + $0x28] sm:$0xff] %v792
      %801 = vst [vmem:[#allocation2 + $0x30] sm:$0xff] %v793
      %802 = vst [vmem:[#allocation2 + $0x38] sm:$0xff] %v794
      // Predicated region
      $region37: #{forward.26} parent=31 // pred_check
        %p803 = pneg %p285
      $region38: #{forward.26} parent=31 // pred_check_branch
        %805 = sbr.rel (%p803) target = $region40
      $region39: #{forward.26} parent=31 // pred_region
        %v806 = vld [vmem:[#allocation2] sm:$0xff]
        %v807 = vld [vmem:[#allocation2 + $0x8] sm:$0xff]
        %v808 = vld [vmem:[#allocation2 + $0x10] sm:$0xff]
        %v809 = vld [vmem:[#allocation2 + $0x18] sm:$0xff]
        %v810 = vld [vmem:[#allocation2 + $0x20] sm:$0xff]
        %v811 = vld [vmem:[#allocation2 + $0x28] sm:$0xff]
        %v812 = vld [vmem:[#allocation2 + $0x30] sm:$0xff]
        %v813 = vld [vmem:[#allocation2 + $0x38] sm:$0xff]
        %v814 = vld [vmem:[%s271] sm:$0xf]
        %v816 = vlaneseq
        %v817 = vshrl.u32 %v816, 7
        %v818 = vsub.s32 0, %v817
        %v819 = vrot.slane %v814, %v818
        %v820 = vlaneseq
        %v821 = vshrl.u32 %v820, 7
        %v822 = vsub.s32 1, %v821
        %v823 = vrot.slane %v814, %v822
        %v824 = vlaneseq
        %v825 = vshrl.u32 %v824, 7
        %v826 = vsub.s32 2, %v825
        %v827 = vrot.slane %v814, %v826
        %v828 = vlaneseq
        %v829 = vshrl.u32 %v828, 7
        %v830 = vsub.s32 3, %v829
        %v831 = vrot.slane %v814, %v830
        %v836 = vadd.f32 %v806, %v819
        %v837 = vadd.f32 %v807, %v823
        %v838 = vadd.f32 %v808, %v827
        %v839 = vadd.f32 %v809, %v831
        %v840 = vadd.f32 %v810, %v819
        %v841 = vadd.f32 %v811, %v823
        %v842 = vadd.f32 %v812, %v827
        %v843 = vadd.f32 %v813, %v831
        %v844 = vmax.f32 %v836, 0.0
        %v845 = vmax.f32 %v837, 0.0
        %v846 = vmax.f32 %v838, 0.0
        %v847 = vmax.f32 %v839, 0.0
        %v848 = vmax.f32 %v840, 0.0
        %v849 = vmax.f32 %v841, 0.0
        %v850 = vmax.f32 %v842, 0.0
        %v851 = vmax.f32 %v843, 0.0
        %v852 = vpack.c.bf16 %v848, %v844
        %v853 = vpack.c.bf16 %v849, %v845
        %v854 = vpack.c.bf16 %v850, %v846
        %v855 = vpack.c.bf16 %v851, %v847
        %v860 = vunpack.c.l.b16 %v852
        %v861 = vunpack.c.l.b16 %v853
        %v862 = vunpack.c.l.b16 %v854
        %v863 = vunpack.c.l.b16 %v855
        %v864 = vunpack.c.h.b16 %v852
        %v865 = vunpack.c.h.b16 %v853
        %v866 = vunpack.c.h.b16 %v854
        %v867 = vunpack.c.h.b16 %v855
        %v868 = vpack.c.b16 %v861, %v860
        %v869 = vpack.c.b16 %v863, %v862
        %v870 = vpack.c.b16 %v865, %v864
        %v871 = vpack.c.b16 %v867, %v866
        %876 = vst [vmem:[%s282] sm:$0xff] %v868
        %877 = vst [vmem:[%s282 + $0x8] sm:$0xff] %v869
        %878 = vst [vmem:[%s282 + $0x10] sm:$0xff] %v870
        %879 = vst [vmem:[%s282 + $0x18] sm:$0xff] %v871
      $region40: #{forward.26} parent=31 // pred_fallthru
        _
      %s880 = smul.u32 2, %s19
      %s881 = smul.u32 4, %s20
      %p882 = scmp.lt.s32.totalorder %s880, 3
      %s883 = scalar_select %p882, %s880, 3
      %p884 = scmp.lt.s32.totalorder %s881, 3
      %s885 = scalar_select %p884, %s881, 3
      %s886 = smul.addr %s883, 4
      %s887 = sadd.s32 %s885, %s886
      %s888 = smul.addr %s887, 4
      %s889 = scalar_lea.vmem %s3, %s888
      // Predicated region
      $region41: #{forward.26} parent=31 // pred_check
        %p890 = pneg %p135
      $region42: #{forward.26} parent=31 // pred_check_branch
        %892 = sbr.rel (%p890) target = $region44
      $region43: #{forward.26} parent=31 // pred_region
        %s893 = smul.u32 2, %s19
        %s894 = smul.u32 4, %s20
      $region44: #{forward.26} parent=31 // pred_fallthru
        _
    $region32: #{forward.26} parent=5 // pred_fallthru
      _
    %p895 = scmp.le.s32.totalorder 2, %s9
    // Predicated region
    $region45: #{forward.26} parent=5 // pred_check
      %p896 = pneg %p895
    $region46: #{forward.26} parent=5 // pred_check_branch
      %898 = sbr.rel (%p896) target = $region48
    $region47: #{forward.26} parent=5 // pred_region
      %s899 = ssub.s32 %s9, 2
      // Predicated region
      $region49: #{forward.26} parent=47 // pred_check
        %p900 = pneg %p141
      $region50: #{forward.26} parent=47 // pred_check_branch
        %902 = sbr.rel (%p900) target = $region52
      $region51: #{forward.26} parent=47 // pred_region
        %s903 = smul.u32 2, %s22
        %s904 = smul.u32 4, %s23
        %p905 = scmp.lt.s32.totalorder %s903, 3
        %s906 = scalar_select %p905, %s903, 3
        %p907 = scmp.lt.s32.totalorder %s904, 3
        %s908 = scalar_select %p907, %s904, 3
        %s909 = smul.addr %s906, 4
        %s910 = sadd.s32 %s908, %s909
        %s911 = smul.addr %s910, 4
        %s912 = scalar_lea.vmem %s3, %s911
      $region52: #{forward.26} parent=47 // pred_fallthru
        _
    $region48: #{forward.26} parent=5 // pred_fallthru
      _
  $region6: #{forward.26} parent=0 // loop_footer
    %s13 = sadd.s32 1, %s9
  $region7: #{forward.26} parent=0 // loop_footer_branch
    %8 = sbr.rel target = $region3
  $region8: #{forward.26} parent=0 // loop_exit
    _

// kernel: forward.27
$region0: #{forward.27}
  #allocation0 [shape = 'u32[]', space=smem, size = 0x4, offset = 0x4, fixed_abs, tag = 'smem constant byte address 0x4 - core index']
  #allocation1 [shape = 'u32[144,128]{1,0:T(1,128)}', space=vmem, size = 0x12000, scoped, tag = 'internal scratch']
  #allocation2 [shape = 'f32[16,256]{1,0:T(8,128)}', space=vmem, size = 0x4000, scoped, tag = 'scratch operand']
  %s0 = inlined_call_operand.vmem [shape: bf16[32,512], index: 0, kind: input, shape index: {}]
  %s1 = inlined_call_operand.vmem [shape: bf16[512,256], index: 1, kind: input, shape index: {}]
  %s2 = inlined_call_operand.vmem [shape: f32[1,256], index: 2, kind: input, shape index: {}]
  %s3 = inlined_call_operand.vmem [shape: bf16[32,256], index: 3, kind: input, shape index: {}]
  %s4 = inlined_call_operand.vmem [shape: f32[1,256], index: 4, kind: input, shape index: {}]
  %s5 = inlined_call_operand.vmem [shape: f32[1,256], index: 5, kind: input, shape index: {}]
  %s6 = inlined_call_operand.vmem [shape: bf16[32,256], index: 6, kind: output, shape index: {}]
  %s7 = sld [smem:[#allocation0]]
  $region65: #{forward.27} parent=0
    _
  %s9 = ssub.s32 1, %s7
  %s10 = scalar_select 0, %s9, %s7
  loop: start=0, step=1, limit=4
  $region2: #{forward.27} parent=0 // loop_pre_header
    _
  $region3: #{forward.27} parent=0 // loop_header
    %s12 = sphi 0, %s16
    %p13 = scmp.ge.s32.totalorder %s12, 4
    %s19 = sphi 0, %s31
    %s20 = sphi 0, %s27
    %s21 = sphi 0, %s19
    %s22 = sphi 0, %s20
    %s23 = sphi 0, %s21
    %s24 = sphi 0, %s22
    %s36 = sphi 0, %s38
    %s39 = sphi 0, %s36
    %s40 = sphi 0, %s39
    %s56 = sphi 0, %s40
    %s62 = sphi 0, %s64
    %s65 = sphi 0, %s62
    %s66 = sphi 0, %s65
    %s82 = sphi 0, %s66
    %s86 = sphi 0, %s86
    %s88 = sphi 0, %s86
    %s89 = sphi 0, %s88
    %s103 = sphi 0, %s89
    %s109 = sphi 0, %s111
    %s112 = sphi 0, %s109
    %s113 = sphi 0, %s112
    %s129 = sphi 0, %s113
    %s133 = sphi 0, %s133
    %s135 = sphi 0, %s133
    %s136 = sphi 0, %s135
    %s150 = sphi 0, %s136
    %s154 = sphi 0, %s154
    %s156 = sphi 0, %s154
    %s157 = sphi 0, %s156
    %s171 = sphi 0, %s157
    %s177 = sphi 0, %s179
    %s180 = sphi 0, %s177
    %s181 = sphi 0, %s180
    %s197 = sphi 0, %s181
  $region4: #{forward.27} parent=0 // loop_header_branch
    %15 = sbr.rel (%p13) target = $region8
  $region5: #{forward.27} parent=0 // loop_body
    %s17 = ssub.s32 %s12, 1
    %s18 = ssub.s32 %s12, 2
    %s25 = sadd.s32 1, %s20
    %p26 = scmp.ge.s32.totalorder %s25, 1
    %s27 = scalar_select %p26, 0, %s25
    %s28 = sadd.s32 1, %s19
    %s29 = scalar_select %p26, %s28, %s19
    %p30 = scmp.ge.s32.totalorder %s29, 2
    %s31 = scalar_select %p30, 0, %s29
    %s32 = ssub.s32 %s19, %s31
    %s33 = ssub.s32 %s20, %s27
    %s34 = sor.u32 %s32, %s33
    %p35 = scmp.eq.s32.totalorder %s34, 0
    %s37 = sadd.s32 %s36, 1
    %s38 = scalar_select %p35, %s36, %s37
    %p41 = pneg %p35
    %p42 = scmp.eq.s32.totalorder %s12, 1
    %p43 = por %p41, %p42
    %p44 = scmp.ne.s32.totalorder %s36, %s39
    %p45 = scmp.eq.s32.totalorder %s12, 0
    %p46 = por %p44, %p45
    %p47 = scmp.ne.s32.totalorder %s36, %s39
    %p48 = scmp.eq.s32.totalorder %s17, 1
    %p49 = por %p47, %p48
    %p50 = scmp.ne.s32.totalorder %s39, %s40
    %p51 = scmp.eq.s32.totalorder %s17, 0
    %p52 = por %p50, %p51
    %p53 = scmp.ne.s32.totalorder %s39, %s40
    %p54 = scmp.eq.s32.totalorder %s18, 1
    %p55 = por %p53, %p54
    %p57 = scmp.ne.s32.totalorder %s40, %s56
    %p58 = scmp.eq.s32.totalorder %s18, 0
    %p59 = por %p57, %p58
    %s60 = ssub.s32 %s20, %s27
    %p61 = scmp.eq.s32.totalorder %s60, 0
    %s63 = sadd.s32 %s62, 1
    %s64 = scalar_select %p61, %s62, %s63
    %p67 = pneg %p61
    %p68 = scmp.eq.s32.totalorder %s12, 1
    %p69 = por %p67, %p68
    %p70 = scmp.ne.s32.totalorder %s62, %s65
    %p71 = scmp.eq.s32.totalorder %s12, 0
    %p72 = por %p70, %p71
    %p73 = scmp.ne.s32.totalorder %s62, %s65
    %p74 = scmp.eq.s32.totalorder %s17, 1
    %p75 = por %p73, %p74
    %p76 = scmp.ne.s32.totalorder %s65, %s66
    %p77 = scmp.eq.s32.totalorder %s17, 0
    %p78 = por %p76, %p77
    %p79 = scmp.ne.s32.totalorder %s65, %s66
    %p80 = scmp.eq.s32.totalorder %s18, 1
    %p81 = por %p79, %p80
    %p83 = scmp.ne.s32.totalorder %s66, %s82
    %p84 = scmp.eq.s32.totalorder %s18, 0
    %p85 = por %p83, %p84
    %s87 = sadd.s32 %s86, 1
    %p90 = scmp.eq.s32.totalorder %s12, 1
    %p91 = scmp.ne.s32.totalorder %s86, %s88
    %p92 = scmp.eq.s32.totalorder %s12, 0
    %p93 = por %p91, %p92
    %p94 = scmp.ne.s32.totalorder %s86, %s88
    %p95 = scmp.eq.s32.totalorder %s17, 1
    %p96 = por %p94, %p95
    %p97 = scmp.ne.s32.totalorder %s88, %s89
    %p98 = scmp.eq.s32.totalorder %s17, 0
    %p99 = por %p97, %p98
    %p100 = scmp.ne.s32.totalorder %s88, %s89
    %p101 = scmp.eq.s32.totalorder %s18, 1
    %p102 = por %p100, %p101
    %p104 = scmp.ne.s32.totalorder %s89, %s103
    %p105 = scmp.eq.s32.totalorder %s18, 0
    %p106 = por %p104, %p105
    %s107 = ssub.s32 %s19, %s31
    %p108 = scmp.eq.s32.totalorder %s107, 0
    %s110 = sadd.s32 %s109, 1
    %s111 = scalar_select %p108, %s109, %s110
    %p114 = pneg %p108
    %p115 = scmp.eq.s32.totalorder %s12, 1
    %p116 = por %p114, %p115
    %p117 = scmp.ne.s32.totalorder %s109, %s112
    %p118 = scmp.eq.s32.totalorder %s12, 0
    %p119 = por %p117, %p118
    %p120 = scmp.ne.s32.totalorder %s109, %s112
    %p121 = scmp.eq.s32.totalorder %s17, 1
    %p122 = por %p120, %p121
    %p123 = scmp.ne.s32.totalorder %s112, %s113
    %p124 = scmp.eq.s32.totalorder %s17, 0
    %p125 = por %p123, %p124
    %p126 = scmp.ne.s32.totalorder %s112, %s113
    %p127 = scmp.eq.s32.totalorder %s18, 1
    %p128 = por %p126, %p127
    %p130 = scmp.ne.s32.totalorder %s113, %s129
    %p131 = scmp.eq.s32.totalorder %s18, 0
    %p132 = por %p130, %p131
    %s134 = sadd.s32 %s133, 1
    %p137 = scmp.eq.s32.totalorder %s12, 1
    %p138 = scmp.ne.s32.totalorder %s133, %s135
    %p139 = scmp.eq.s32.totalorder %s12, 0
    %p140 = por %p138, %p139
    %p141 = scmp.ne.s32.totalorder %s133, %s135
    %p142 = scmp.eq.s32.totalorder %s17, 1
    %p143 = por %p141, %p142
    %p144 = scmp.ne.s32.totalorder %s135, %s136
    %p145 = scmp.eq.s32.totalorder %s17, 0
    %p146 = por %p144, %p145
    %p147 = scmp.ne.s32.totalorder %s135, %s136
    %p148 = scmp.eq.s32.totalorder %s18, 1
    %p149 = por %p147, %p148
    %p151 = scmp.ne.s32.totalorder %s136, %s150
    %p152 = scmp.eq.s32.totalorder %s18, 0
    %p153 = por %p151, %p152
    %s155 = sadd.s32 %s154, 1
    %p158 = scmp.eq.s32.totalorder %s12, 1
    %p159 = scmp.ne.s32.totalorder %s154, %s156
    %p160 = scmp.eq.s32.totalorder %s12, 0
    %p161 = por %p159, %p160
    %p162 = scmp.ne.s32.totalorder %s154, %s156
    %p163 = scmp.eq.s32.totalorder %s17, 1
    %p164 = por %p162, %p163
    %p165 = scmp.ne.s32.totalorder %s156, %s157
    %p166 = scmp.eq.s32.totalorder %s17, 0
    %p167 = por %p165, %p166
    %p168 = scmp.ne.s32.totalorder %s156, %s157
    %p169 = scmp.eq.s32.totalorder %s18, 1
    %p170 = por %p168, %p169
    %p172 = scmp.ne.s32.totalorder %s157, %s171
    %p173 = scmp.eq.s32.totalorder %s18, 0
    %p174 = por %p172, %p173
    %s175 = ssub.s32 %s19, %s31
    %p176 = scmp.eq.s32.totalorder %s175, 0
    %s178 = sadd.s32 %s177, 1
    %s179 = scalar_select %p176, %s177, %s178
    %p182 = pneg %p176
    %p183 = scmp.eq.s32.totalorder %s12, 1
    %p184 = por %p182, %p183
    %p185 = scmp.ne.s32.totalorder %s177, %s180
    %p186 = scmp.eq.s32.totalorder %s12, 0
    %p187 = por %p185, %p186
    %p188 = scmp.ne.s32.totalorder %s177, %s180
    %p189 = scmp.eq.s32.totalorder %s17, 1
    %p190 = por %p188, %p189
    %p191 = scmp.ne.s32.totalorder %s180, %s181
    %p192 = scmp.eq.s32.totalorder %s17, 0
    %p193 = por %p191, %p192
    %p194 = scmp.ne.s32.totalorder %s180, %s181
    %p195 = scmp.eq.s32.totalorder %s18, 1
    %p196 = por %p194, %p195
    %p198 = scmp.ne.s32.totalorder %s181, %s197
    %p199 = scmp.eq.s32.totalorder %s18, 0
    %p200 = por %p198, %p199
    %p201 = scmp.le.s32.totalorder 1, %s12
    %p202 = scmp.lt.s32.totalorder %s12, 3
    %p203 = pnand %p201, %p202
    %p204 = pneg %p203
    // Predicated region
    $region9: #{forward.27} parent=5 // pred_check
      _
    $region10: #{forward.27} parent=5 // pred_check_branch
      %206 = sbr.rel (%p203) target = $region12
    $region11: #{forward.27} parent=5 // pred_region
      %s207 = ssub.s32 %s12, 1
      // Predicated region
      $region13: #{forward.27} parent=11 // pred_check
        %p208 = pneg %p78
      $region14: #{forward.27} parent=11 // pred_check_branch
        %210 = sbr.rel (%p208) target = $region16
      $region15: #{forward.27} parent=11 // pred_region
        %s211 = smul.u32 64, %s22
        %p212 = scmp.lt.s32.totalorder %s211, 63
        %s213 = scalar_select %p212, %s211, 63
        %s214 = smul.addr %s213, 2
        %s215 = smul.addr %s214, 4
        %s216 = scalar_lea.vmem %s1, %s215
        %s217 = smul.u32 64, %s22
      $region16: #{forward.27} parent=11 // pred_fallthru
        _
      // Predicated region
      $region17: #{forward.27} parent=11 // pred_check
        %p218 = pneg %p99
      $region18: #{forward.27} parent=11 // pred_check_branch
        %220 = sbr.rel (%p218) target = $region20
      $region19: #{forward.27} parent=11 // pred_region
        _
      $region20: #{forward.27} parent=11 // pred_fallthru
        _
      // Predicated region
      $region21: #{forward.27} parent=11 // pred_check
        %p221 = pneg %p146
      $region22: #{forward.27} parent=11 // pred_check_branch
        %223 = sbr.rel (%p221) target = $region24
      $region23: #{forward.27} parent=11 // pred_region
        _
      $region24: #{forward.27} parent=11 // pred_fallthru
        _
      // Predicated region
      $region25: #{forward.27} parent=11 // pred_check
        %p224 = pneg %p167
      $region26: #{forward.27} parent=11 // pred_check_branch
        %226 = sbr.rel (%p224) target = $region28
      $region27: #{forward.27} parent=11 // pred_region
        _
      $region28: #{forward.27} parent=11 // pred_fallthru
        _
    $region12: #{forward.27} parent=5 // pred_fallthru
      _
    %p227 = scmp.lt.s32.totalorder %s12, 2
    // Predicated region
    $region29: #{forward.27} parent=5 // pred_check
      %p228 = pneg %p227
    $region30: #{forward.27} parent=5 // pred_check_branch
      %230 = sbr.rel (%p228) target = $region32
    $region31: #{forward.27} parent=5 // pred_region
      // Predicated region
      $region33: #{forward.27} parent=31 // pred_check
        %p231 = pneg %p46
      $region34: #{forward.27} parent=31 // pred_check_branch
        %233 = sbr.rel (%p231) target = $region36
      $region35: #{forward.27} parent=31 // pred_region
        %s234 = smul.u32 2, %s19
        %s235 = smul.u32 4, %s20
        %p236 = scmp.lt.s32.totalorder %s234, 3
        %s237 = scalar_select %p236, %s234, 3
        %p238 = scmp.lt.s32.totalorder %s235, 3
        %s239 = scalar_select %p238, %s235, 3
        %s240 = smul.addr %s237, 4
        %s241 = sadd.s32 %s239, %s240
        %s242 = smul.addr %s241, 4
        %s243 = scalar_lea.vmem %s0, %s242
        %s244 = smul.u32 2, %s19
        %s245 = smul.u32 4, %s20
      $region36: #{forward.27} parent=31 // pred_fallthru
        _
      // Predicated region
      $region37: #{forward.27} parent=31 // pred_check
        %p246 = pneg %p119
      $region38: #{forward.27} parent=31 // pred_check_branch
        %248 = sbr.rel (%p246) target = $region40
      $region39: #{forward.27} parent=31 // pred_region
        %s249 = smul.u32 2, %s19
        %p250 = scmp.lt.s32.totalorder %s249, 3
        %s251 = scalar_select %p250, %s249, 3
        %s252 = smul.addr %s251, 2
        %s253 = smul.addr %s252, 4
        %s254 = scalar_lea.vmem %s3, %s253
        %s255 = smul.u32 2, %s19
      $region40: #{forward.27} parent=31 // pred_fallthru
        _
    $region32: #{forward.27} parent=5 // pred_fallthru
      _
    %p256 = scmp.le.s32.totalorder 1, %s12
    %p257 = scmp.lt.s32.totalorder %s12, 3
    %p258 = pnand %p256, %p257
    %p259 = pneg %p258
    // Predicated region
    $region41: #{forward.27} parent=5 // pred_check
      _
    $region42: #{forward.27} parent=5 // pred_check_branch
      %261 = sbr.rel (%p258) target = $region44
    $region43: #{forward.27} parent=5 // pred_region
      %s262 = ssub.s32 %s12, 1
      %s263 = smul.u32 2, %s21
      %s264 = smul.u32 4, %s22
      %p265 = scmp.lt.s32.totalorder %s263, 3
      %s266 = scalar_select %p265, %s263, 3
      %p267 = scmp.lt.s32.totalorder %s264, 3
      %s268 = scalar_select %p267, %s264, 3
      %s269 = smul.addr %s266, 4
      %s270 = sadd.s32 %s268, %s269
      %s271 = smul.addr %s270, 4
      %s272 = scalar_lea.vmem %s0, %s271
      %p273 = pneg %p52
      %p274 = pneg %p49
      %s275 = smul.u32 64, %s22
      %p276 = scmp.lt.s32.totalorder %s275, 63
      %s277 = scalar_select %p276, %s275, 63
      %s278 = smul.addr %s277, 2
      %s279 = smul.addr %s278, 4
      %s280 = scalar_lea.vmem %s1, %s279
      %p281 = pneg %p78
      %p282 = pneg %p75
      %p283 = pneg %p99
      %p284 = pneg %p96
      %s285 = smul.u32 2, %s21
      %p286 = scmp.lt.s32.totalorder %s285, 3
      %s287 = scalar_select %p286, %s285, 3
      %s288 = smul.addr %s287, 2
      %s289 = smul.addr %s288, 4
      %s290 = scalar_lea.vmem %s3, %s289
      %p291 = pneg %p125
      %p292 = pneg %p122
      %p293 = pneg %p146
      %p294 = pneg %p143
      %p295 = pneg %p167
      %p296 = pneg %p164
      %p297 = pneg %p193
      %p298 = pneg %p190
      %s299 = smul.u32 2, %s21
      %p300 = scmp.lt.s32.totalorder %s299, 3
      %s301 = scalar_select %p300, %s299, 3
      %s302 = smul.addr %s301, 2
      %s303 = smul.addr %s302, 4
      %s304 = scalar_lea.vmem %s6, %s303
      %s305 = smul.u32 2, %s21
      %s306 = smul.u32 4, %s22
      %p307 = scmp.lt.s32.totalorder %s305, 3
      %s308 = scalar_select %p307, %s305, 3
      %p309 = scmp.lt.s32.totalorder %s306, 3
      %s310 = scalar_select %p309, %s306, 3
      %s311 = smul.addr %s308, 4
      %s312 = sadd.s32 %s310, %s311
      %s313 = smul.addr %s312, 4
      %s314 = scalar_lea.vmem %s0, %s313
      %s315 = smul.u32 2, %s21
      %s316 = smul.u32 4, %s22
      %s317 = smul.u32 64, %s22
      %p318 = scmp.lt.s32.totalorder %s317, 63
      %s319 = scalar_select %p318, %s317, 63
      %s320 = smul.addr %s319, 2
      %s321 = smul.addr %s320, 4
      %s322 = scalar_lea.vmem %s1, %s321
      %s323 = smul.u32 64, %s22
      %s324 = smul.u32 2, %s21
      %p325 = scmp.lt.s32.totalorder %s324, 3
      %s326 = scalar_select %p325, %s324, 3
      %s327 = smul.addr %s326, 2
      %s328 = smul.addr %s327, 4
      %s329 = scalar_lea.vmem %s3, %s328
      %s330 = smul.u32 2, %s21
      %s331 = smul.u32 2, %s21
      %p332 = scmp.lt.s32.totalorder %s331, 3
      %s333 = scalar_select %p332, %s331, 3
      %s334 = smul.addr %s333, 2
      %s335 = smul.addr %s334, 4
      %s336 = scalar_lea.vmem %s6, %s335
      %s337 = smul.u32 2, %s21
      %p338 = scmp.eq.s32.totalorder %s22, 0
      // Predicated region
      $region45: #{forward.27} parent=43 // pred_check
        %p339 = pneg %p338
      $region46: #{forward.27} parent=43 // pred_check_branch
        %341 = sbr.rel (%p339) target = $region48
      $region47: #{forward.27} parent=43 // pred_region
        %342 = vst [vmem:[#allocation2] sm:$0xff] 0.0
        %343 = vst [vmem:[#allocation2 + $0x8] sm:$0xff] 0.0
        %344 = vst [vmem:[#allocation2 + $0x10] sm:$0xff] 0.0
        %345 = vst [vmem:[#allocation2 + $0x18] sm:$0xff] 0.0
      $region48: #{forward.27} parent=43 // pred_fallthru
        _
      %v346 = vld [vmem:[#allocation2] sm:$0xff]
      %v347 = vld [vmem:[#allocation2 + $0x8] sm:$0xff]
      %v348 = vld [vmem:[#allocation2 + $0x10] sm:$0xff]
      %v349 = vld [vmem:[#allocation2 + $0x18] sm:$0xff]
      %v350 = vld [vmem:[%s314] sm:$0xff]
      %v351 = vld [vmem:[%s314 + $0x8] sm:$0xff]
      %v352 = vld [vmem:[%s314 + $0x10] sm:$0xff]
      %v353 = vld [vmem:[%s314 + $0x18] sm:$0xff]
      %v354 = vld [vmem:[%s322] sm:$0xff]
      %v355 = vld [vmem:[%s322 + $0x8] sm:$0xff]
      %v356 = vld [vmem:[%s322 + $0x10] sm:$0xff]
      %v357 = vld [vmem:[%s322 + $0x18] sm:$0xff]
      %v358 = vld [vmem:[%s322 + $0x20] sm:$0xff]
      %v359 = vld [vmem:[%s322 + $0x28] sm:$0xff]
      %v360 = vld [vmem:[%s322 + $0x30] sm:$0xff]
      %v361 = vld [vmem:[%s322 + $0x38] sm:$0xff]
      %v362 = vld [vmem:[%s322 + $0x40] sm:$0xff]
      %v363 = vld [vmem:[%s322 + $0x48] sm:$0xff]
      %v364 = vld [vmem:[%s322 + $0x50] sm:$0xff]
      %v365 = vld [vmem:[%s322 + $0x58] sm:$0xff]
      %v366 = vld [vmem:[%s322 + $0x60] sm:$0xff]
      %v367 = vld [vmem:[%s322 + $0x68] sm:$0xff]
      %v368 = vld [vmem:[%s322 + $0x70] sm:$0xff]
      %v369 = vld [vmem:[%s322 + $0x78] sm:$0xff]
      %v370 = vld [vmem:[%s322 + $0x80] sm:$0xff]
      %v371 = vld [vmem:[%s322 + $0x88] sm:$0xff]
      %v372 = vld [vmem:[%s322 + $0x90] sm:$0xff]
      %v373 = vld [vmem:[%s322 + $0x98] sm:$0xff]
      %v374 = vld [vmem:[%s322 + $0xa0] sm:$0xff]
      %v375 = vld [vmem:[%s322 + $0xa8] sm:$0xff]
      %v376 = vld [vmem:[%s322 + $0xb0] sm:$0xff]
      %v377 = vld [vmem:[%s322 + $0xb8] sm:$0xff]
      %v378 = vld [vmem:[%s322 + $0xc0] sm:$0xff]
      %v379 = vld [vmem:[%s322 + $0xc8] sm:$0xff]
      %v380 = vld [vmem:[%s322 + $0xd0] sm:$0xff]
      %v381 = vld [vmem:[%s322 + $0xd8] sm:$0xff]
      %v382 = vld [vmem:[%s322 + $0xe0] sm:$0xff]
      %v383 = vld [vmem:[%s322 + $0xe8] sm:$0xff]
      %v384 = vld [vmem:[%s322 + $0xf0] sm:$0xff]
      %v385 = vld [vmem:[%s322 + $0xf8] sm:$0xff]
      %v386 = vld [vmem:[%s322 + $0x100] sm:$0xff]
      %v387 = vld [vmem:[%s322 + $0x108] sm:$0xff]
      %v388 = vld [vmem:[%s322 + $0x110] sm:$0xff]
      %v389 = vld [vmem:[%s322 + $0x118] sm:$0xff]
      %v390 = vld [vmem:[%s322 + $0x120] sm:$0xff]
      %v391 = vld [vmem:[%s322 + $0x128] sm:$0xff]
      %v392 = vld [vmem:[%s322 + $0x130] sm:$0xff]
      %v393 = vld [vmem:[%s322 + $0x138] sm:$0xff]
      %v394 = vld [vmem:[%s322 + $0x140] sm:$0xff]
      %v395 = vld [vmem:[%s322 + $0x148] sm:$0xff]
      %v396 = vld [vmem:[%s322 + $0x150] sm:$0xff]
      %v397 = vld [vmem:[%s322 + $0x158] sm:$0xff]
      %v398 = vld [vmem:[%s322 + $0x160] sm:$0xff]
      %v399 = vld [vmem:[%s322 + $0x168] sm:$0xff]
      %v400 = vld [vmem:[%s322 + $0x170] sm:$0xff]
      %v401 = vld [vmem:[%s322 + $0x178] sm:$0xff]
      %v402 = vld [vmem:[%s322 + $0x180] sm:$0xff]
      %v403 = vld [vmem:[%s322 + $0x188] sm:$0xff]
      %v404 = vld [vmem:[%s322 + $0x190] sm:$0xff]
      %v405 = vld [vmem:[%s322 + $0x198] sm:$0xff]
      %v406 = vld [vmem:[%s322 + $0x1a0] sm:$0xff]
      %v407 = vld [vmem:[%s322 + $0x1a8] sm:$0xff]
      %v408 = vld [vmem:[%s322 + $0x1b0] sm:$0xff]
      %v409 = vld [vmem:[%s322 + $0x1b8] sm:$0xff]
      %v410 = vld [vmem:[%s322 + $0x1c0] sm:$0xff]
      %v411 = vld [vmem:[%s322 + $0x1c8] sm:$0xff]
      %v412 = vld [vmem:[%s322 + $0x1d0] sm:$0xff]
      %v413 = vld [vmem:[%s322 + $0x1d8] sm:$0xff]
      %v414 = vld [vmem:[%s322 + $0x1e0] sm:$0xff]
      %v415 = vld [vmem:[%s322 + $0x1e8] sm:$0xff]
      %v416 = vld [vmem:[%s322 + $0x1f0] sm:$0xff]
      %v417 = vld [vmem:[%s322 + $0x1f8] sm:$0xff]
      %v422 = vunpack.c.l.b16 %v350
      %v423 = vunpack.c.h.b16 %v350
      %v424 = vunpack.c.l.b16 %v351
      %v425 = vunpack.c.h.b16 %v351
      %v426 = vunpack.c.l.b16 %v352
      %v427 = vunpack.c.h.b16 %v352
      %v428 = vunpack.c.l.b16 %v353
      %v429 = vunpack.c.h.b16 %v353
      %v430 = vpack.c.b16 %v426, %v422
      %v431 = vpack.c.b16 %v427, %v423
      %v432 = vpack.c.b16 %v428, %v424
      %v433 = vpack.c.b16 %v429, %v425
      %v502 = vunpack.c.l.b16 %v354
      %v503 = vunpack.c.h.b16 %v354
      %v504 = vunpack.c.l.b16 %v355
      %v505 = vunpack.c.h.b16 %v355
      %v506 = vunpack.c.l.b16 %v356
      %v507 = vunpack.c.h.b16 %v356
      %v508 = vunpack.c.l.b16 %v357
      %v509 = vunpack.c.h.b16 %v357
      %v510 = vunpack.c.l.b16 %v358
      %v511 = vunpack.c.h.b16 %v358
      %v512 = vunpack.c.l.b16 %v359
      %v513 = vunpack.c.h.b16 %v359
      %v514 = vunpack.c.l.b16 %v360
      %v515 = vunpack.c.h.b16 %v360
      %v516 = vunpack.c.l.b16 %v361
      %v517 = vunpack.c.h.b16 %v361
      %v518 = vunpack.c.l.b16 %v362
      %v519 = vunpack.c.h.b16 %v362
      %v520 = vunpack.c.l.b16 %v363
      %v521 = vunpack.c.h.b16 %v363
      %v522 = vunpack.c.l.b16 %v364
      %v523 = vunpack.c.h.b16 %v364
      %v524 = vunpack.c.l.b16 %v365
      %v525 = vunpack.c.h.b16 %v365
      %v526 = vunpack.c.l.b16 %v366
      %v527 = vunpack.c.h.b16 %v366
      %v528 = vunpack.c.l.b16 %v367
      %v529 = vunpack.c.h.b16 %v367
      %v530 = vunpack.c.l.b16 %v368
      %v531 = vunpack.c.h.b16 %v368
      %v532 = vunpack.c.l.b16 %v369
      %v533 = vunpack.c.h.b16 %v369
      %v534 = vunpack.c.l.b16 %v370
      %v535 = vunpack.c.h.b16 %v370
      %v536 = vunpack.c.l.b16 %v371
      %v537 = vunpack.c.h.b16 %v371
      %v538 = vunpack.c.l.b16 %v372
      %v539 = vunpack.c.h.b16 %v372
      %v540 = vunpack.c.l.b16 %v373
      %v541 = vunpack.c.h.b16 %v373
      %v542 = vunpack.c.l.b16 %v374
      %v543 = vunpack.c.h.b16 %v374
      %v544 = vunpack.c.l.b16 %v375
      %v545 = vunpack.c.h.b16 %v375
      %v546 = vunpack.c.l.b16 %v376
      %v547 = vunpack.c.h.b16 %v376
      %v548 = vunpack.c.l.b16 %v377
      %v549 = vunpack.c.h.b16 %v377
      %v550 = vunpack.c.l.b16 %v378
      %v551 = vunpack.c.h.b16 %v378
      %v552 = vunpack.c.l.b16 %v379
      %v553 = vunpack.c.h.b16 %v379
      %v554 = vunpack.c.l.b16 %v380
      %v555 = vunpack.c.h.b16 %v380
      %v556 = vunpack.c.l.b16 %v381
      %v557 = vunpack.c.h.b16 %v381
      %v558 = vunpack.c.l.b16 %v382
      %v559 = vunpack.c.h.b16 %v382
      %v560 = vunpack.c.l.b16 %v383
      %v561 = vunpack.c.h.b16 %v383
      %v562 = vunpack.c.l.b16 %v384
      %v563 = vunpack.c.h.b16 %v384
      %v564 = vunpack.c.l.b16 %v385
      %v565 = vunpack.c.h.b16 %v385
      %v566 = vunpack.c.l.b16 %v386
      %v567 = vunpack.c.h.b16 %v386
      %v568 = vunpack.c.l.b16 %v387
      %v569 = vunpack.c.h.b16 %v387
      %v570 = vunpack.c.l.b16 %v388
      %v571 = vunpack.c.h.b16 %v388
      %v572 = vunpack.c.l.b16 %v389
      %v573 = vunpack.c.h.b16 %v389
      %v574 = vunpack.c.l.b16 %v390
      %v575 = vunpack.c.h.b16 %v390
      %v576 = vunpack.c.l.b16 %v391
      %v577 = vunpack.c.h.b16 %v391
      %v578 = vunpack.c.l.b16 %v392
      %v579 = vunpack.c.h.b16 %v392
      %v580 = vunpack.c.l.b16 %v393
      %v581 = vunpack.c.h.b16 %v393
      %v582 = vunpack.c.l.b16 %v394
      %v583 = vunpack.c.h.b16 %v394
      %v584 = vunpack.c.l.b16 %v395
      %v585 = vunpack.c.h.b16 %v395
      %v586 = vunpack.c.l.b16 %v396
      %v587 = vunpack.c.h.b16 %v396
      %v588 = vunpack.c.l.b16 %v397
      %v589 = vunpack.c.h.b16 %v397
      %v590 = vunpack.c.l.b16 %v398
      %v591 = vunpack.c.h.b16 %v398
      %v592 = vunpack.c.l.b16 %v399
      %v593 = vunpack.c.h.b16 %v399
      %v594 = vunpack.c.l.b16 %v400
      %v595 = vunpack.c.h.b16 %v400
      %v596 = vunpack.c.l.b16 %v401
      %v597 = vunpack.c.h.b16 %v401
      %v598 = vunpack.c.l.b16 %v402
      %v599 = vunpack.c.h.b16 %v402
      %v600 = vunpack.c.l.b16 %v403
      %v601 = vunpack.c.h.b16 %v403
      %v602 = vunpack.c.l.b16 %v404
      %v603 = vunpack.c.h.b16 %v404
      %v604 = vunpack.c.l.b16 %v405
      %v605 = vunpack.c.h.b16 %v405
      %v606 = vunpack.c.l.b16 %v406
      %v607 = vunpack.c.h.b16 %v406
      %v608 = vunpack.c.l.b16 %v407
      %v609 = vunpack.c.h.b16 %v407
      %v610 = vunpack.c.l.b16 %v408
      %v611 = vunpack.c.h.b16 %v408
      %v612 = vunpack.c.l.b16 %v409
      %v613 = vunpack.c.h.b16 %v409
      %v614 = vunpack.c.l.b16 %v410
      %v615 = vunpack.c.h.b16 %v410
      %v616 = vunpack.c.l.b16 %v411
      %v617 = vunpack.c.h.b16 %v411
      %v618 = vunpack.c.l.b16 %v412
      %v619 = vunpack.c.h.b16 %v412
      %v620 = vunpack.c.l.b16 %v413
      %v621 = vunpack.c.h.b16 %v413
      %v622 = vunpack.c.l.b16 %v414
      %v623 = vunpack.c.h.b16 %v414
      %v624 = vunpack.c.l.b16 %v415
      %v625 = vunpack.c.h.b16 %v415
      %v626 = vunpack.c.l.b16 %v416
      %v627 = vunpack.c.h.b16 %v416
      %v628 = vunpack.c.l.b16 %v417
      %v629 = vunpack.c.h.b16 %v417
      %v630 = vpack.c.b16 %v504, %v502
      %v631 = vpack.c.b16 %v505, %v503
      %v632 = vpack.c.b16 %v508, %v506
      %v633 = vpack.c.b16 %v509, %v507
      %v634 = vpack.c.b16 %v512, %v510
      %v635 = vpack.c.b16 %v513, %v511
      %v636 = vpack.c.b16 %v516, %v514
      %v637 = vpack.c.b16 %v517, %v515
      %v638 = vpack.c.b16 %v520, %v518
      %v639 = vpack.c.b16 %v521, %v519
      %v640 = vpack.c.b16 %v524, %v522
      %v641 = vpack.c.b16 %v525, %v523
      %v642 = vpack.c.b16 %v528, %v526
      %v643 = vpack.c.b16 %v529, %v527
      %v644 = vpack.c.b16 %v532, %v530
      %v645 = vpack.c.b16 %v533, %v531
      %v646 = vpack.c.b16 %v536, %v534
      %v647 = vpack.c.b16 %v537, %v535
      %v648 = vpack.c.b16 %v540, %v538
      %v649 = vpack.c.b16 %v541, %v539
      %v650 = vpack.c.b16 %v544, %v542
      %v651 = vpack.c.b16 %v545, %v543
      %v652 = vpack.c.b16 %v548, %v546
      %v653 = vpack.c.b16 %v549, %v547
      %v654 = vpack.c.b16 %v552, %v550
      %v655 = vpack.c.b16 %v553, %v551
      %v656 = vpack.c.b16 %v556, %v554
      %v657 = vpack.c.b16 %v557, %v555
      %v658 = vpack.c.b16 %v560, %v558
      %v659 = vpack.c.b16 %v561, %v559
      %v660 = vpack.c.b16 %v564, %v562
      %v661 = vpack.c.b16 %v565, %v563
      %v662 = vpack.c.b16 %v568, %v566
      %v663 = vpack.c.b16 %v569, %v567
      %v664 = vpack.c.b16 %v572, %v570
      %v665 = vpack.c.b16 %v573, %v571
      %v666 = vpack.c.b16 %v576, %v574
      %v667 = vpack.c.b16 %v577, %v575
      %v668 = vpack.c.b16 %v580, %v578
      %v669 = vpack.c.b16 %v581, %v579
      %v670 = vpack.c.b16 %v584, %v582
      %v671 = vpack.c.b16 %v585, %v583
      %v672 = vpack.c.b16 %v588, %v586
      %v673 = vpack.c.b16 %v589, %v587
      %v674 = vpack.c.b16 %v592, %v590
      %v675 = vpack.c.b16 %v593, %v591
      %v676 = vpack.c.b16 %v596, %v594
      %v677 = vpack.c.b16 %v597, %v595
      %v678 = vpack.c.b16 %v600, %v598
      %v679 = vpack.c.b16 %v601, %v599
      %v680 = vpack.c.b16 %v604, %v602
      %v681 = vpack.c.b16 %v605, %v603
      %v682 = vpack.c.b16 %v608, %v606
      %v683 = vpack.c.b16 %v609, %v607
      %v684 = vpack.c.b16 %v612, %v610
      %v685 = vpack.c.b16 %v613, %v611
      %v686 = vpack.c.b16 %v616, %v614
      %v687 = vpack.c.b16 %v617, %v615
      %v688 = vpack.c.b16 %v620, %v618
      %v689 = vpack.c.b16 %v621, %v619
      %v690 = vpack.c.b16 %v624, %v622
      %v691 = vpack.c.b16 %v625, %v623
      %v692 = vpack.c.b16 %v628, %v626
      %v693 = vpack.c.b16 %v629, %v627
      %758 = vmatprep.subr.bf16.mxu0 %v631
      %759 = vmatpush1.bf16.msra.mxu0 %v630
      %760 = vmatprep.subr.bf16.mxu0 %v633
      %761 = vmatpush1.bf16.msra.mxu0 %v632
      %762 = vmatprep.subr.bf16.mxu0 %v635
      %763 = vmatpush1.bf16.msra.mxu0 %v634
      %764 = vmatprep.subr.bf16.mxu0 %v637
      %765 = vmatpush1.bf16.msra.mxu0 %v636
      %766 = vmatprep.subr.bf16.mxu0 %v639
      %767 = vmatpush1.bf16.msra.mxu0 %v638
      %768 = vmatprep.subr.bf16.mxu0 %v641
      %769 = vmatpush1.bf16.msra.mxu0 %v640
      %770 = vmatprep.subr.bf16.mxu0 %v643
      %771 = vmatpush1.bf16.msra.mxu0 %v642
      %772 = vmatprep.subr.bf16.mxu0 %v645
      %773 = vmatpush1.bf16.msra.mxu0 %v644
      %774 = vmatprep.subr.bf16.mxu0 %v647
      %775 = vmatpush1.bf16.msra.mxu0 %v646
      %776 = vmatprep.subr.bf16.mxu0 %v649
      %777 = vmatpush1.bf16.msra.mxu0 %v648
      %778 = vmatprep.subr.bf16.mxu0 %v651
      %779 = vmatpush1.bf16.msra.mxu0 %v650
      %780 = vmatprep.subr.bf16.mxu0 %v653
      %781 = vmatpush1.bf16.msra.mxu0 %v652
      %782 = vmatprep.subr.bf16.mxu0 %v655
      %783 = vmatpush1.bf16.msra.mxu0 %v654
      %784 = vmatprep.subr.bf16.mxu0 %v657
      %785 = vmatpush1.bf16.msra.mxu0 %v656
      %786 = vmatprep.subr.bf16.mxu0 %v659
      %787 = vmatpush1.bf16.msra.mxu0 %v658
      %788 = vmatprep.subr.bf16.mxu0 %v661
      %789 = vmatpush1.bf16.msra.mxu0 %v660
      %790 = vmatprep.mubr.bf16.mxu0 %v431
      %791 = vmatmul.mubr.bf16.gmra.mrb[0].mxu0 %v430
      %v792 = vpop.f32.mrb[0].mxu0
      %v793 = vadd.f32 0.0, %v792
      %v794 = vpop.f32.mrb[0].mxu0
      %v795 = vadd.f32 0.0, %v794
      %v796 = vpop.f32.mrb[0].mxu0
      %v797 = vadd.f32 0.0, %v796
      %v798 = vpop.f32.mrb[0].mxu0
      %v799 = vadd.f32 0.0, %v798
      %800 = vdwg.mxu0
      %801 = vmatprep.subr.bf16.mxu0 %v663
      %802 = vmatpush1.bf16.msra.mxu0 %v662
      %803 = vmatprep.subr.bf16.mxu0 %v665
      %804 = vmatpush1.bf16.msra.mxu0 %v664
      %805 = vmatprep.subr.bf16.mxu0 %v667
      %806 = vmatpush1.bf16.msra.mxu0 %v666
      %807 = vmatprep.subr.bf16.mxu0 %v669
      %808 = vmatpush1.bf16.msra.mxu0 %v668
      %809 = vmatprep.subr.bf16.mxu0 %v671
      %810 = vmatpush1.bf16.msra.mxu0 %v670
      %811 = vmatprep.subr.bf16.mxu0 %v673
      %812 = vmatpush1.bf16.msra.mxu0 %v672
      %813 = vmatprep.subr.bf16.mxu0 %v675
      %814 = vmatpush1.bf16.msra.mxu0 %v674
      %815 = vmatprep.subr.bf16.mxu0 %v677
      %816 = vmatpush1.bf16.msra.mxu0 %v676
      %817 = vmatprep.subr.bf16.mxu0 %v679
      %818 = vmatpush1.bf16.msra.mxu0 %v678
      %819 = vmatprep.subr.bf16.mxu0 %v681
      %820 = vmatpush1.bf16.msra.mxu0 %v680
      %821 = vmatprep.subr.bf16.mxu0 %v683
      %822 = vmatpush1.bf16.msra.mxu0 %v682
      %823 = vmatprep.subr.bf16.mxu0 %v685
      %824 = vmatpush1.bf16.msra.mxu0 %v684
      %825 = vmatprep.subr.bf16.mxu0 %v687
      %826 = vmatpush1.bf16.msra.mxu0 %v686
      %827 = vmatprep.subr.bf16.mxu0 %v689
      %828 = vmatpush1.bf16.msra.mxu0 %v688
      %829 = vmatprep.subr.bf16.mxu0 %v691
      %830 = vmatpush1.bf16.msra.mxu0 %v690
      %831 = vmatprep.subr.bf16.mxu0 %v693
      %832 = vmatpush1.bf16.msra.mxu0 %v692
      %833 = vmatprep.mubr.bf16.mxu0 %v433
      %834 = vmatmul.mubr.bf16.gmra.mrb[0].mxu0 %v432
      %v835 = vpop.f32.mrb[0].mxu0
      %v836 = vadd.f32 %v793, %v835
      %v837 = vpop.f32.mrb[0].mxu0
      %v838 = vadd.f32 %v795, %v837
      %v839 = vpop.f32.mrb[0].mxu0
      %v840 = vadd.f32 %v797, %v839
      %v841 = vpop.f32.mrb[0].mxu0
      %v842 = vadd.f32 %v799, %v841
      %843 = vdwg.mxu0
      %v844 = vadd.f32 %v346, %v836
      %v845 = vadd.f32 %v347, %v838
      %v846 = vadd.f32 %v348, %v840
      %v847 = vadd.f32 %v349, %v842
      %848 = vst [vmem:[#allocation2] sm:$0xff] %v844
      %849 = vst [vmem:[#allocation2 + $0x8] sm:$0xff] %v845
      %850 = vst [vmem:[#allocation2 + $0x10] sm:$0xff] %v846
      %851 = vst [vmem:[#allocation2 + $0x18] sm:$0xff] %v847
      // Predicated region
      $region49: #{forward.27} parent=43 // pred_check
        %p852 = pneg %p338
      $region50: #{forward.27} parent=43 // pred_check_branch
        %854 = sbr.rel (%p852) target = $region52
      $region51: #{forward.27} parent=43 // pred_region
        %v855 = vld [vmem:[#allocation2] sm:$0xff]
        %v856 = vld [vmem:[#allocation2 + $0x8] sm:$0xff]
        %v857 = vld [vmem:[#allocation2 + $0x10] sm:$0xff]
        %v858 = vld [vmem:[#allocation2 + $0x18] sm:$0xff]
        %v859 = vld [vmem:[%s2] sm:$0x3]
        %v861 = vlaneseq
        %v862 = vshrl.u32 %v861, 7
        %v863 = vsub.s32 0, %v862
        %v864 = vrot.slane %v859, %v863
        %v865 = vlaneseq
        %v866 = vshrl.u32 %v865, 7
        %v867 = vsub.s32 1, %v866
        %v868 = vrot.slane %v859, %v867
        %v871 = vadd.f32 %v855, %v864
        %v872 = vadd.f32 %v856, %v868
        %v873 = vadd.f32 %v857, %v864
        %v874 = vadd.f32 %v858, %v868
        %v875 = vld [vmem:[%s329] sm:$0xff]
        %v876 = vld [vmem:[%s329 + $0x8] sm:$0xff]
        %v877 = vunpack.c.l.bf16 %v875
        %v878 = vunpack.c.h.bf16 %v875
        %v879 = vunpack.c.l.bf16 %v876
        %v880 = vunpack.c.h.bf16 %v876
        %v881 = vadd.f32 %v871, %v877
        %v882 = vadd.f32 %v872, %v878
        %v883 = vadd.f32 %v873, %v879
        %v884 = vadd.f32 %v874, %v880
        %v885 = vadd.f32 %v881, %v882
        %886 = vadd.xlane.f32.xlu0 %v885
        %v887 = vpop.xlane.xlu0 %886
        %v888 = vadd.f32 %v883, %v884
        %889 = vadd.xlane.f32.xlu0 %v888
        %v890 = vpop.xlane.xlu0 %889
        %v891 = vmul.f32 %v887, 0.00390625
        %v892 = vmul.f32 %v890, 0.00390625
        %v893 = vmul.f32 %v881, %v881
        %v894 = vmul.f32 %v882, %v882
        %v895 = vmul.f32 %v883, %v883
        %v896 = vmul.f32 %v884, %v884
        %v897 = vadd.f32 %v893, %v894
        %898 = vadd.xlane.f32.xlu0 %v897
        %v899 = vpop.xlane.xlu0 %898
        %v900 = vadd.f32 %v895, %v896
        %901 = vadd.xlane.f32.xlu0 %v900
        %v902 = vpop.xlane.xlu0 %901
        %v903 = vmul.f32 %v899, 0.00390625
        %v904 = vmul.f32 %v902, 0.00390625
        %v905 = vmul.f32 %v891, %v891
        %v906 = vmul.f32 %v892, %v892
        %v907 = vsub.f32 %v903, %v905
        %v908 = vsub.f32 %v904, %v906
        %v909 = vsub.f32 %v881, %v891
        %v910 = vsub.f32 %v882, %v891
        %v911 = vsub.f32 %v883, %v892
        %v912 = vsub.f32 %v884, %v892
        %v913 = vadd.f32 %v907, 1e-05
        %v914 = vadd.f32 %v908, 1e-05
        %v915 = vrsqrt.pop %v913
        %v916 = vrsqrt.pop %v914
        %v917 = vmul.f32 %v909, %v915
        %v918 = vmul.f32 %v910, %v915
        %v919 = vmul.f32 %v911, %v916
        %v920 = vmul.f32 %v912, %v916
        %v921 = vld [vmem:[%s4] sm:$0x3]
        %v923 = vlaneseq
        %v924 = vshrl.u32 %v923, 7
        %v925 = vsub.s32 0, %v924
        %v926 = vrot.slane %v921, %v925
        %v927 = vlaneseq
        %v928 = vshrl.u32 %v927, 7
        %v929 = vsub.s32 1, %v928
        %v930 = vrot.slane %v921, %v929
        %v933 = vmul.f32 %v917, %v926
        %v934 = vmul.f32 %v918, %v930
        %v935 = vmul.f32 %v919, %v926
        %v936 = vmul.f32 %v920, %v930
        %v937 = vld [vmem:[%s5] sm:$0x3]
        %v939 = vlaneseq
        %v940 = vshrl.u32 %v939, 7
        %v941 = vsub.s32 0, %v940
        %v942 = vrot.slane %v937, %v941
        %v943 = vlaneseq
        %v944 = vshrl.u32 %v943, 7
        %v945 = vsub.s32 1, %v944
        %v946 = vrot.slane %v937, %v945
        %v949 = vadd.f32 %v933, %v942
        %v950 = vadd.f32 %v934, %v946
        %v951 = vadd.f32 %v935, %v942
        %v952 = vadd.f32 %v936, %v946
        %v953 = vpack.c.bf16 %v951, %v949
        %v954 = vpack.c.bf16 %v952, %v950
        %v957 = vunpack.c.l.b16 %v953
        %v958 = vunpack.c.l.b16 %v954
        %v959 = vunpack.c.h.b16 %v953
        %v960 = vunpack.c.h.b16 %v954
        %v961 = vpack.c.b16 %v958, %v957
        %v962 = vpack.c.b16 %v960, %v959
        %965 = vst [vmem:[%s336] sm:$0xff] %v961
        %966 = vst [vmem:[%s336 + $0x8] sm:$0xff] %v962
      $region52: #{forward.27} parent=43 // pred_fallthru
        _
      %s967 = smul.u32 2, %s21
      %p968 = scmp.lt.s32.totalorder %s967, 3
      %s969 = scalar_select %p968, %s967, 3
      %s970 = smul.addr %s969, 2
      %s971 = smul.addr %s970, 4
      %s972 = scalar_lea.vmem %s6, %s971
      // Predicated region
      $region53: #{forward.27} parent=43 // pred_check
        %p973 = pneg %p190
      $region54: #{forward.27} parent=43 // pred_check_branch
        %975 = sbr.rel (%p973) target = $region56
      $region55: #{forward.27} parent=43 // pred_region
        %s976 = smul.u32 2, %s21
      $region56: #{forward.27} parent=43 // pred_fallthru
        _
    $region44: #{forward.27} parent=5 // pred_fallthru
      _
    %p977 = scmp.le.s32.totalorder 2, %s12
    // Predicated region
    $region57: #{forward.27} parent=5 // pred_check
      %p978 = pneg %p977
    $region58: #{forward.27} parent=5 // pred_check_branch
      %980 = sbr.rel (%p978) target = $region60
    $region59: #{forward.27} parent=5 // pred_region
      %s981 = ssub.s32 %s12, 2
      // Predicated region
      $region61: #{forward.27} parent=59 // pred_check
        %p982 = pneg %p196
      $region62: #{forward.27} parent=59 // pred_check_branch
        %984 = sbr.rel (%p982) target = $region64
      $region63: #{forward.27} parent=59 // pred_region
        %s985 = smul.u32 2, %s23
        %p986 = scmp.lt.s32.totalorder %s985, 3
        %s987 = scalar_select %p986, %s985, 3
        %s988 = smul.addr %s987, 2
        %s989 = smul.addr %s988, 4
        %s990 = scalar_lea.vmem %s6, %s989
      $region64: #{forward.27} parent=59 // pred_fallthru
        _
    $region60: #{forward.27} parent=5 // pred_fallthru
      _
  $region6: #{forward.27} parent=0 // loop_footer
    %s16 = sadd.s32 1, %s12
  $region7: #{forward.27} parent=0 // loop_footer_branch
    %11 = sbr.rel target = $region3
  $region8: #{forward.27} parent=0 // loop_exit
    _

// kernel: forward.37
$region0: #{forward.37}
  #allocation0 [shape = 'u32[]', space=smem, size = 0x4, offset = 0x4, fixed_abs, tag = 'smem constant byte address 0x4 - core index']
  #allocation1 [shape = 'u32[144,128]{1,0:T(1,128)}', space=vmem, size = 0x12000, scoped, tag = 'internal scratch']
  #allocation2 [shape = 'f32[16,512]{1,0:T(8,128)}', space=vmem, size = 0x8000, scoped, tag = 'scratch operand']
  %s0 = inlined_call_operand.vmem [shape: bf16[32,256], index: 0, kind: input, shape index: {}]
  %s1 = inlined_call_operand.vmem [shape: bf16[256,512], index: 1, kind: input, shape index: {}]
  %s2 = inlined_call_operand.vmem [shape: f32[1,512], index: 2, kind: input, shape index: {}]
  %s3 = inlined_call_operand.hbm [shape: f32[32,512], index: 3, kind: output, shape index: {}]
  %s4 = sld [smem:[#allocation0]]
  $region53: #{forward.37} parent=0
    _
  %s6 = ssub.s32 1, %s4
  %s7 = scalar_select 0, %s6, %s4
  $region1: #{forward.37} parent=0
    #allocation3 [shape = 'u8[65536]{0}', space=vmem, size = 0x10000, scoped, tag = 'output window, operand 0']
    #allocation4 [shape = 's32[2]{0}', space=sflag, size = 0x8, scoped, tag = 'scoped memory for forward.37']
    %8 = vsyncpa [#allocation4], 0
    %s9 = scalar_lea.sflag [#allocation4], 1
    %10 = vsyncpa %s9, 0
    loop: start=0, step=1, limit=4
    $region2: #{forward.37} parent=1 // loop_pre_header
      _
    $region3: #{forward.37} parent=1 // loop_header
      %s12 = sphi 0, %s16
      %p13 = scmp.ge.s32.totalorder %s12, 4
      %s19 = sphi 0, %s38
      %s20 = sphi 0, %s34
      %s21 = sphi 0, %s30
      %s22 = sphi 0, %s19
      %s23 = sphi 0, %s20
      %s24 = sphi 0, %s21
      %s25 = sphi 0, %s22
      %s26 = sphi 0, %s23
      %s27 = sphi 0, %s24
      %s43 = sphi 0, %s45
      %s46 = sphi 0, %s43
      %s47 = sphi 0, %s46
      %s63 = sphi 0, %s47
      %s71 = sphi 0, %s73
      %s74 = sphi 0, %s71
      %s75 = sphi 0, %s74
      %s91 = sphi 0, %s75
      %s97 = sphi 0, %s99
      %s100 = sphi 0, %s97
      %s101 = sphi 0, %s100
      %s117 = sphi 0, %s101
      %s125 = sphi 0, %s127
      %s128 = sphi 0, %s125
      %s129 = sphi 0, %s128
      %s145 = sphi 0, %s129
    $region4: #{forward.37} parent=1 // loop_header_branch
      %15 = sbr.rel (%p13) target = $region8
    $region5: #{forward.37} parent=1 // loop_body
      %s17 = ssub.s32 %s12, 1
      %s18 = ssub.s32 %s12, 2
      %s28 = sadd.s32 1, %s21
      %p29 = scmp.ge.s32.totalorder %s28, 1
      %s30 = scalar_select %p29, 0, %s28
      %s31 = sadd.s32 1, %s20
      %s32 = scalar_select %p29, %s31, %s20
      %p33 = scmp.ge.s32.totalorder %s32, 1
      %s34 = scalar_select %p33, 0, %s32
      %s35 = sadd.s32 1, %s19
      %s36 = scalar_select %p33, %s35, %s19
      %p37 = scmp.ge.s32.totalorder %s36, 2
      %s38 = scalar_select %p37, 0, %s36
      %s39 = ssub.s32 %s19, %s38
      %s40 = ssub.s32 %s21, %s30
      %s41 = sor.u32 %s39, %s40
      %p42 = scmp.eq.s32.totalorder %s41, 0
      %s44 = sadd.s32 %s43, 1
      %s45 = scalar_select %p42, %s43, %s44
      %p48 = pneg %p42
      %p49 = scmp.eq.s32.totalorder %s12, 1
      %p50 = por %p48, %p49
      %p51 = scmp.ne.s32.totalorder %s43, %s46
      %p52 = scmp.eq.s32.totalorder %s12, 0
      %p53 = por %p51, %p52
      %p54 = scmp.ne.s32.totalorder %s43, %s46
      %p55 = scmp.eq.s32.totalorder %s17, 1
      %p56 = por %p54, %p55
      %p57 = scmp.ne.s32.totalorder %s46, %s47
      %p58 = scmp.eq.s32.totalorder %s17, 0
      %p59 = por %p57, %p58
      %p60 = scmp.ne.s32.totalorder %s46, %s47
      %p61 = scmp.eq.s32.totalorder %s18, 1
      %p62 = por %p60, %p61
      %p64 = scmp.ne.s32.totalorder %s47, %s63
      %p65 = scmp.eq.s32.totalorder %s18, 0
      %p66 = por %p64, %p65
      %s67 = ssub.s32 %s21, %s30
      %s68 = ssub.s32 %s20, %s34
      %s69 = sor.u32 %s67, %s68
      %p70 = scmp.eq.s32.totalorder %s69, 0
      %s72 = sadd.s32 %s71, 1
      %s73 = scalar_select %p70, %s71, %s72
      %p76 = pneg %p70
      %p77 = scmp.eq.s32.totalorder %s12, 1
      %p78 = por %p76, %p77
      %p79 = scmp.ne.s32.totalorder %s71, %s74
      %p80 = scmp.eq.s32.totalorder %s12, 0
      %p81 = por %p79, %p80
      %p82 = scmp.ne.s32.totalorder %s71, %s74
      %p83 = scmp.eq.s32.totalorder %s17, 1
      %p84 = por %p82, %p83
      %p85 = scmp.ne.s32.totalorder %s74, %s75
      %p86 = scmp.eq.s32.totalorder %s17, 0
      %p87 = por %p85, %p86
      %p88 = scmp.ne.s32.totalorder %s74, %s75
      %p89 = scmp.eq.s32.totalorder %s18, 1
      %p90 = por %p88, %p89
      %p92 = scmp.ne.s32.totalorder %s75, %s91
      %p93 = scmp.eq.s32.totalorder %s18, 0
      %p94 = por %p92, %p93
      %s95 = ssub.s32 %s20, %s34
      %p96 = scmp.eq.s32.totalorder %s95, 0
      %s98 = sadd.s32 %s97, 1
      %s99 = scalar_select %p96, %s97, %s98
      %p102 = pneg %p96
      %p103 = scmp.eq.s32.totalorder %s12, 1
      %p104 = por %p102, %p103
      %p105 = scmp.ne.s32.totalorder %s97, %s100
      %p106 = scmp.eq.s32.totalorder %s12, 0
      %p107 = por %p105, %p106
      %p108 = scmp.ne.s32.totalorder %s97, %s100
      %p109 = scmp.eq.s32.totalorder %s17, 1
      %p110 = por %p108, %p109
      %p111 = scmp.ne.s32.totalorder %s100, %s101
      %p112 = scmp.eq.s32.totalorder %s17, 0
      %p113 = por %p111, %p112
      %p114 = scmp.ne.s32.totalorder %s100, %s101
      %p115 = scmp.eq.s32.totalorder %s18, 1
      %p116 = por %p114, %p115
      %p118 = scmp.ne.s32.totalorder %s101, %s117
      %p119 = scmp.eq.s32.totalorder %s18, 0
      %p120 = por %p118, %p119
      %s121 = ssub.s32 %s19, %s38
      %s122 = ssub.s32 %s20, %s34
      %s123 = sor.u32 %s121, %s122
      %p124 = scmp.eq.s32.totalorder %s123, 0
      %s126 = sadd.s32 %s125, 1
      %s127 = scalar_select %p124, %s125, %s126
      %p130 = pneg %p124
      %p131 = scmp.eq.s32.totalorder %s12, 1
      %p132 = por %p130, %p131
      %p133 = scmp.ne.s32.totalorder %s125, %s128
      %p134 = scmp.eq.s32.totalorder %s12, 0
      %p135 = por %p133, %p134
      %p136 = scmp.ne.s32.totalorder %s125, %s128
      %p137 = scmp.eq.s32.totalorder %s17, 1
      %p138 = por %p136, %p137
      %p139 = scmp.ne.s32.totalorder %s128, %s129
      %p140 = scmp.eq.s32.totalorder %s17, 0
      %p141 = por %p139, %p140
      %p142 = scmp.ne.s32.totalorder %s128, %s129
      %p143 = scmp.eq.s32.totalorder %s18, 1
      %p144 = por %p142, %p143
      %p146 = scmp.ne.s32.totalorder %s129, %s145
      %p147 = scmp.eq.s32.totalorder %s18, 0
      %p148 = por %p146, %p147
      %p149 = scmp.le.s32.totalorder 1, %s12
      %p150 = scmp.lt.s32.totalorder %s12, 3
      %p151 = pnand %p149, %p150
      %p152 = pneg %p151
      // Predicated region
      $region9: #{forward.37} parent=5 // pred_check
        _
      $region10: #{forward.37} parent=5 // pred_check_branch
        %154 = sbr.rel (%p151) target = $region12
      $region11: #{forward.37} parent=5 // pred_region
        %s155 = ssub.s32 %s12, 1
        // Predicated region
        $region13: #{forward.37} parent=11 // pred_check
          %p156 = pneg %p87
        $region14: #{forward.37} parent=11 // pred_check_branch
          %158 = sbr.rel (%p156) target = $region16
        $region15: #{forward.37} parent=11 // pred_region
          %s159 = smul.u32 32, %s24
          %s160 = smul.u32 4, %s23
          %p161 = scmp.lt.s32.totalorder %s159, 31
          %s162 = scalar_select %p161, %s159, 31
          %p163 = scmp.lt.s32.totalorder %s160, 3
          %s164 = scalar_select %p163, %s160, 3
          %s165 = smul.addr %s162, 4
          %s166 = sadd.s32 %s164, %s165
          %s167 = smul.addr %s166, 4
          %s168 = scalar_lea.vmem %s1, %s167
          %s169 = smul.u32 32, %s24
          %s170 = smul.u32 4, %s23
        $region16: #{forward.37} parent=11 // pred_fallthru
          _
        // Predicated region
        $region17: #{forward.37} parent=11 // pred_check
          %p171 = pneg %p113
        $region18: #{forward.37} parent=11 // pred_check_branch
          %173 = sbr.rel (%p171) target = $region20
        $region19: #{forward.37} parent=11 // pred_region
          %s174 = smul.u32 4, %s23
          %p175 = scmp.lt.s32.totalorder %s174, 3
          %s176 = scalar_select %p175, %s174, 3
          %s177 = scalar_lea.vmem %s2, %s176
          %s178 = smul.u32 4, %s23
        $region20: #{forward.37} parent=11 // pred_fallthru
          _
      $region12: #{forward.37} parent=5 // pred_fallthru
        _
      %p179 = scmp.lt.s32.totalorder %s12, 2
      // Predicated region
      $region21: #{forward.37} parent=5 // pred_check
        %p180 = pneg %p179
      $region22: #{forward.37} parent=5 // pred_check_branch
        %182 = sbr.rel (%p180) target = $region24
      $region23: #{forward.37} parent=5 // pred_region
        // Predicated region
        $region25: #{forward.37} parent=23 // pred_check
          %p183 = pneg %p53
        $region26: #{forward.37} parent=23 // pred_check_branch
          %185 = sbr.rel (%p183) target = $region28
        $region27: #{forward.37} parent=23 // pred_region
          %s186 = smul.u32 2, %s19
          %s187 = smul.u32 2, %s21
          %p188 = scmp.lt.s32.totalorder %s186, 3
          %s189 = scalar_select %p188, %s186, 3
          %p190 = scmp.lt.s32.totalorder %s187, 1
          %s191 = scalar_select %p190, %s187, 1
          %s192 = smul.addr %s189, 2
          %s193 = sadd.s32 %s191, %s192
          %s194 = smul.addr %s193, 4
          %s195 = scalar_lea.vmem %s0, %s194
          %s196 = smul.u32 2, %s19
          %s197 = smul.u32 2, %s21
        $region28: #{forward.37} parent=23 // pred_fallthru
          _
      $region24: #{forward.37} parent=5 // pred_fallthru
        _
      %p198 = scmp.le.s32.totalorder 1, %s12
      %p199 = scmp.lt.s32.totalorder %s12, 3
      %p200 = pnand %p198, %p199
      %p201 = pneg %p200
      // Predicated region
      $region29: #{forward.37} parent=5 // pred_check
        _
      $region30: #{forward.37} parent=5 // pred_check_branch
        %203 = sbr.rel (%p200) target = $region32
      $region31: #{forward.37} parent=5 // pred_region
        %s204 = ssub.s32 %s12, 1
        %s205 = smul.u32 2, %s22
        %s206 = smul.u32 2, %s24
        %p207 = scmp.lt.s32.totalorder %s205, 3
        %s208 = scalar_select %p207, %s205, 3
        %p209 = scmp.lt.s32.totalorder %s206, 1
        %s210 = scalar_select %p209, %s206, 1
        %s211 = smul.addr %s208, 2
        %s212 = sadd.s32 %s210, %s211
        %s213 = smul.addr %s212, 4
        %s214 = scalar_lea.vmem %s0, %s213
        %p215 = pneg %p59
        %p216 = pneg %p56
        %s217 = smul.u32 32, %s24
        %s218 = smul.u32 4, %s23
        %p219 = scmp.lt.s32.totalorder %s217, 31
        %s220 = scalar_select %p219, %s217, 31
        %p221 = scmp.lt.s32.totalorder %s218, 3
        %s222 = scalar_select %p221, %s218, 3
        %s223 = smul.addr %s220, 4
        %s224 = sadd.s32 %s222, %s223
        %s225 = smul.addr %s224, 4
        %s226 = scalar_lea.vmem %s1, %s225
        %p227 = pneg %p87
        %p228 = pneg %p84
        %s229 = smul.u32 4, %s23
        %p230 = scmp.lt.s32.totalorder %s229, 3
        %s231 = scalar_select %p230, %s229, 3
        %s232 = scalar_lea.vmem %s2, %s231
        %p233 = pneg %p113
        %p234 = pneg %p110
        %p235 = pneg %p141
        %p236 = pneg %p138
        %s237 = sand.u32 %s128, 1
        %s238 = scalar_lea.sflag [#allocation4], %s237
        %s239 = sand.u32 %s128, 1
        %s240 = smul.addr %s239, 64
        %s241 = scalar_lea.vmem [#allocation3], %s240
        %s242 = smul.u32 2, %s22
        %s243 = smul.u32 2, %s24
        %p244 = scmp.lt.s32.totalorder %s242, 3
        %s245 = scalar_select %p244, %s242, 3
        %p246 = scmp.lt.s32.totalorder %s243, 1
        %s247 = scalar_select %p246, %s243, 1
        %s248 = smul.addr %s245, 2
        %s249 = sadd.s32 %s247, %s248
        %s250 = smul.addr %s249, 4
        %s251 = scalar_lea.vmem %s0, %s250
        %s252 = smul.u32 2, %s22
        %s253 = smul.u32 2, %s24
        %s254 = smul.u32 32, %s24
        %s255 = smul.u32 4, %s23
        %p256 = scmp.lt.s32.totalorder %s254, 31
        %s257 = scalar_select %p256, %s254, 31
        %p258 = scmp.lt.s32.totalorder %s255, 3
        %s259 = scalar_select %p258, %s255, 3
        %s260 = smul.addr %s257, 4
        %s261 = sadd.s32 %s259, %s260
        %s262 = smul.addr %s261, 4
        %s263 = scalar_lea.vmem %s1, %s262
        %s264 = smul.u32 32, %s24
        %s265 = smul.u32 4, %s23
        %s266 = smul.u32 4, %s23
        %p267 = scmp.lt.s32.totalorder %s266, 3
        %s268 = scalar_select %p267, %s266, 3
        %s269 = scalar_lea.vmem %s2, %s268
        %s270 = smul.u32 4, %s23
        %s271 = smul.u32 2, %s22
        %s272 = smul.u32 4, %s23
        %p273 = scmp.eq.s32.totalorder %s24, 0
        // Predicated region
        $region33: #{forward.37} parent=31 // pred_check
          %p274 = pneg %p273
        $region34: #{forward.37} parent=31 // pred_check_branch
          %276 = sbr.rel (%p274) target = $region36
        $region35: #{forward.37} parent=31 // pred_region
          %277 = vst [vmem:[#allocation2] sm:$0xff] 0.0
          %278 = vst [vmem:[#allocation2 + $0x8] sm:$0xff] 0.0
          %279 = vst [vmem:[#allocation2 + $0x10] sm:$0xff] 0.0
          %280 = vst [vmem:[#allocation2 + $0x18] sm:$0xff] 0.0
          %281 = vst [vmem:[#allocation2 + $0x20] sm:$0xff] 0.0
          %282 = vst [vmem:[#allocation2 + $0x28] sm:$0xff] 0.0
          %283 = vst [vmem:[#allocation2 + $0x30] sm:$0xff] 0.0
          %284 = vst [vmem:[#allocation2 + $0x38] sm:$0xff] 0.0
        $region36: #{forward.37} parent=31 // pred_fallthru
          _
        %v285 = vld [vmem:[#allocation2] sm:$0xff]
        %v286 = vld [vmem:[#allocation2 + $0x8] sm:$0xff]
        %v287 = vld [vmem:[#allocation2 + $0x10] sm:$0xff]
        %v288 = vld [vmem:[#allocation2 + $0x18] sm:$0xff]
        %v289 = vld [vmem:[#allocation2 + $0x20] sm:$0xff]
        %v290 = vld [vmem:[#allocation2 + $0x28] sm:$0xff]
        %v291 = vld [vmem:[#allocation2 + $0x30] sm:$0xff]
        %v292 = vld [vmem:[#allocation2 + $0x38] sm:$0xff]
        %v293 = vld [vmem:[%s251] sm:$0xff]
        %v294 = vld [vmem:[%s251 + $0x8] sm:$0xff]
        %v295 = vld [vmem:[%s263] sm:$0xff]
        %v296 = vld [vmem:[%s263 + $0x8] sm:$0xff]
        %v297 = vld [vmem:[%s263 + $0x10] sm:$0xff]
        %v298 = vld [vmem:[%s263 + $0x18] sm:$0xff]
        %v299 = vld [vmem:[%s263 + $0x20] sm:$0xff]
        %v300 = vld [vmem:[%s263 + $0x28] sm:$0xff]
        %v301 = vld [vmem:[%s263 + $0x30] sm:$0xff]
        %v302 = vld [vmem:[%s263 + $0x38] sm:$0xff]
        %v303 = vld [vmem:[%s263 + $0x40] sm:$0xff]
        %v304 = vld [vmem:[%s263 + $0x48] sm:$0xff]
        %v305 = vld [vmem:[%s263 + $0x50] sm:$0xff]
        %v306 = vld [vmem:[%s263 + $0x58] sm:$0xff]
        %v307 = vld [vmem:[%s263 + $0x60] sm:$0xff]
        %v308 = vld [vmem:[%s263 + $0x68] sm:$0xff]
        %v309 = vld [vmem:[%s263 + $0x70] sm:$0xff]
        %v310 = vld [vmem:[%s263 + $0x78] sm:$0xff]
        %v311 = vld [vmem:[%s263 + $0x80] sm:$0xff]
        %v312 = vld [vmem:[%s263 + $0x88] sm:$0xff]
        %v313 = vld [vmem:[%s263 + $0x90] sm:$0xff]
        %v314 = vld [vmem:[%s263 + $0x98] sm:$0xff]
        %v315 = vld [vmem:[%s263 + $0xa0] sm:$0xff]
        %v316 = vld [vmem:[%s263 + $0xa8] sm:$0xff]
        %v317 = vld [vmem:[%s263 + $0xb0] sm:$0xff]
        %v318 = vld [vmem:[%s263 + $0xb8] sm:$0xff]
        %v319 = vld [vmem:[%s263 + $0xc0] sm:$0xff]
        %v320 = vld [vmem:[%s263 + $0xc8] sm:$0xff]
        %v321 = vld [vmem:[%s263 + $0xd0] sm:$0xff]
        %v322 = vld [vmem:[%s263 + $0xd8] sm:$0xff]
        %v323 = vld [vmem:[%s263 + $0xe0] sm:$0xff]
        %v324 = vld [vmem:[%s263 + $0xe8] sm:$0xff]
        %v325 = vld [vmem:[%s263 + $0xf0] sm:$0xff]
        %v326 = vld [vmem:[%s263 + $0xf8] sm:$0xff]
        %v327 = vld [vmem:[%s263 + $0x100] sm:$0xff]
        %v328 = vld [vmem:[%s263 + $0x108] sm:$0xff]
        %v329 = vld [vmem:[%s263 + $0x110] sm:$0xff]
        %v330 = vld [vmem:[%s263 + $0x118] sm:$0xff]
        %v331 = vld [vmem:[%s263 + $0x120] sm:$0xff]
        %v332 = vld [vmem:[%s263 + $0x128] sm:$0xff]
        %v333 = vld [vmem:[%s263 + $0x130] sm:$0xff]
        %v334 = vld [vmem:[%s263 + $0x138] sm:$0xff]
        %v335 = vld [vmem:[%s263 + $0x140] sm:$0xff]
        %v336 = vld [vmem:[%s263 + $0x148] sm:$0xff]
        %v337 = vld [vmem:[%s263 + $0x150] sm:$0xff]
        %v338 = vld [vmem:[%s263 + $0x158] sm:$0xff]
        %v339 = vld [vmem:[%s263 + $0x160] sm:$0xff]
        %v340 = vld [vmem:[%s263 + $0x168] sm:$0xff]
        %v341 = vld [vmem:[%s263 + $0x170] sm:$0xff]
        %v342 = vld [vmem:[%s263 + $0x178] sm:$0xff]
        %v343 = vld [vmem:[%s263 + $0x180] sm:$0xff]
        %v344 = vld [vmem:[%s263 + $0x188] sm:$0xff]
        %v345 = vld [vmem:[%s263 + $0x190] sm:$0xff]
        %v346 = vld [vmem:[%s263 + $0x198] sm:$0xff]
        %v347 = vld [vmem:[%s263 + $0x1a0] sm:$0xff]
        %v348 = vld [vmem:[%s263 + $0x1a8] sm:$0xff]
        %v349 = vld [vmem:[%s263 + $0x1b0] sm:$0xff]
        %v350 = vld [vmem:[%s263 + $0x1b8] sm:$0xff]
        %v351 = vld [vmem:[%s263 + $0x1c0] sm:$0xff]
        %v352 = vld [vmem:[%s263 + $0x1c8] sm:$0xff]
        %v353 = vld [vmem:[%s263 + $0x1d0] sm:$0xff]
        %v354 = vld [vmem:[%s263 + $0x1d8] sm:$0xff]
        %v355 = vld [vmem:[%s263 + $0x1e0] sm:$0xff]
        %v356 = vld [vmem:[%s263 + $0x1e8] sm:$0xff]
        %v357 = vld [vmem:[%s263 + $0x1f0] sm:$0xff]
        %v358 = vld [vmem:[%s263 + $0x1f8] sm:$0xff]
        %v361 = vunpack.c.l.b16 %v293
        %v362 = vunpack.c.h.b16 %v293
        %v363 = vunpack.c.l.b16 %v294
        %v364 = vunpack.c.h.b16 %v294
        %v365 = vpack.c.b16 %v363, %v361
        %v366 = vpack.c.b16 %v364, %v362
        %v433 = vunpack.c.l.b16 %v295
        %v434 = vunpack.c.h.b16 %v295
        %v435 = vunpack.c.l.b16 %v296
        %v436 = vunpack.c.h.b16 %v296
        %v437 = vunpack.c.l.b16 %v297
        %v438 = vunpack.c.h.b16 %v297
        %v439 = vunpack.c.l.b16 %v298
        %v440 = vunpack.c.h.b16 %v298
        %v441 = vunpack.c.l.b16 %v299
        %v442 = vunpack.c.h.b16 %v299
        %v443 = vunpack.c.l.b16 %v300
        %v444 = vunpack.c.h.b16 %v300
        %v445 = vunpack.c.l.b16 %v301
        %v446 = vunpack.c.h.b16 %v301
        %v447 = vunpack.c.l.b16 %v302
        %v448 = vunpack.c.h.b16 %v302
        %v449 = vunpack.c.l.b16 %v303
        %v450 = vunpack.c.h.b16 %v303
        %v451 = vunpack.c.l.b16 %v304
        %v452 = vunpack.c.h.b16 %v304
        %v453 = vunpack.c.l.b16 %v305
        %v454 = vunpack.c.h.b16 %v305
        %v455 = vunpack.c.l.b16 %v306
        %v456 = vunpack.c.h.b16 %v306
        %v457 = vunpack.c.l.b16 %v307
        %v458 = vunpack.c.h.b16 %v307
        %v459 = vunpack.c.l.b16 %v308
        %v460 = vunpack.c.h.b16 %v308
        %v461 = vunpack.c.l.b16 %v309
        %v462 = vunpack.c.h.b16 %v309
        %v463 = vunpack.c.l.b16 %v310
        %v464 = vunpack.c.h.b16 %v310
        %v465 = vunpack.c.l.b16 %v311
        %v466 = vunpack.c.h.b16 %v311
        %v467 = vunpack.c.l.b16 %v312
        %v468 = vunpack.c.h.b16 %v312
        %v469 = vunpack.c.l.b16 %v313
        %v470 = vunpack.c.h.b16 %v313
        %v471 = vunpack.c.l.b16 %v314
        %v472 = vunpack.c.h.b16 %v314
        %v473 = vunpack.c.l.b16 %v315
        %v474 = vunpack.c.h.b16 %v315
        %v475 = vunpack.c.l.b16 %v316
        %v476 = vunpack.c.h.b16 %v316
        %v477 = vunpack.c.l.b16 %v317
        %v478 = vunpack.c.h.b16 %v317
        %v479 = vunpack.c.l.b16 %v318
        %v480 = vunpack.c.h.b16 %v318
        %v481 = vunpack.c.l.b16 %v319
        %v482 = vunpack.c.h.b16 %v319
        %v483 = vunpack.c.l.b16 %v320
        %v484 = vunpack.c.h.b16 %v320
        %v485 = vunpack.c.l.b16 %v321
        %v486 = vunpack.c.h.b16 %v321
        %v487 = vunpack.c.l.b16 %v322
        %v488 = vunpack.c.h.b16 %v322
        %v489 = vunpack.c.l.b16 %v323
        %v490 = vunpack.c.h.b16 %v323
        %v491 = vunpack.c.l.b16 %v324
        %v492 = vunpack.c.h.b16 %v324
        %v493 = vunpack.c.l.b16 %v325
        %v494 = vunpack.c.h.b16 %v325
        %v495 = vunpack.c.l.b16 %v326
        %v496 = vunpack.c.h.b16 %v326
        %v497 = vunpack.c.l.b16 %v327
        %v498 = vunpack.c.h.b16 %v327
        %v499 = vunpack.c.l.b16 %v328
        %v500 = vunpack.c.h.b16 %v328
        %v501 = vunpack.c.l.b16 %v329
        %v502 = vunpack.c.h.b16 %v329
        %v503 = vunpack.c.l.b16 %v330
        %v504 = vunpack.c.h.b16 %v330
        %v505 = vunpack.c.l.b16 %v331
        %v506 = vunpack.c.h.b16 %v331
        %v507 = vunpack.c.l.b16 %v332
        %v508 = vunpack.c.h.b16 %v332
        %v509 = vunpack.c.l.b16 %v333
        %v510 = vunpack.c.h.b16 %v333
        %v511 = vunpack.c.l.b16 %v334
        %v512 = vunpack.c.h.b16 %v334
        %v513 = vunpack.c.l.b16 %v335
        %v514 = vunpack.c.h.b16 %v335
        %v515 = vunpack.c.l.b16 %v336
        %v516 = vunpack.c.h.b16 %v336
        %v517 = vunpack.c.l.b16 %v337
        %v518 = vunpack.c.h.b16 %v337
        %v519 = vunpack.c.l.b16 %v338
        %v520 = vunpack.c.h.b16 %v338
        %v521 = vunpack.c.l.b16 %v339
        %v522 = vunpack.c.h.b16 %v339
        %v523 = vunpack.c.l.b16 %v340
        %v524 = vunpack.c.h.b16 %v340
        %v525 = vunpack.c.l.b16 %v341
        %v526 = vunpack.c.h.b16 %v341
        %v527 = vunpack.c.l.b16 %v342
        %v528 = vunpack.c.h.b16 %v342
        %v529 = vunpack.c.l.b16 %v343
        %v530 = vunpack.c.h.b16 %v343
        %v531 = vunpack.c.l.b16 %v344
        %v532 = vunpack.c.h.b16 %v344
        %v533 = vunpack.c.l.b16 %v345
        %v534 = vunpack.c.h.b16 %v345
        %v535 = vunpack.c.l.b16 %v346
        %v536 = vunpack.c.h.b16 %v346
        %v537 = vunpack.c.l.b16 %v347
        %v538 = vunpack.c.h.b16 %v347
        %v539 = vunpack.c.l.b16 %v348
        %v540 = vunpack.c.h.b16 %v348
        %v541 = vunpack.c.l.b16 %v349
        %v542 = vunpack.c.h.b16 %v349
        %v543 = vunpack.c.l.b16 %v350
        %v544 = vunpack.c.h.b16 %v350
        %v545 = vunpack.c.l.b16 %v351
        %v546 = vunpack.c.h.b16 %v351
        %v547 = vunpack.c.l.b16 %v352
        %v548 = vunpack.c.h.b16 %v352
        %v549 = vunpack.c.l.b16 %v353
        %v550 = vunpack.c.h.b16 %v353
        %v551 = vunpack.c.l.b16 %v354
        %v552 = vunpack.c.h.b16 %v354
        %v553 = vunpack.c.l.b16 %v355
        %v554 = vunpack.c.h.b16 %v355
        %v555 = vunpack.c.l.b16 %v356
        %v556 = vunpack.c.h.b16 %v356
        %v557 = vunpack.c.l.b16 %v357
        %v558 = vunpack.c.h.b16 %v357
        %v559 = vunpack.c.l.b16 %v358
        %v560 = vunpack.c.h.b16 %v358
        %v561 = vpack.c.b16 %v437, %v433
        %v562 = vpack.c.b16 %v438, %v434
        %v563 = vpack.c.b16 %v439, %v435
        %v564 = vpack.c.b16 %v440, %v436
        %v565 = vpack.c.b16 %v445, %v441
        %v566 = vpack.c.b16 %v446, %v442
        %v567 = vpack.c.b16 %v447, %v443
        %v568 = vpack.c.b16 %v448, %v444
        %v569 = vpack.c.b16 %v453, %v449
        %v570 = vpack.c.b16 %v454, %v450
        %v571 = vpack.c.b16 %v455, %v451
        %v572 = vpack.c.b16 %v456, %v452
        %v573 = vpack.c.b16 %v461, %v457
        %v574 = vpack.c.b16 %v462, %v458
        %v575 = vpack.c.b16 %v463, %v459
        %v576 = vpack.c.b16 %v464, %v460
        %v577 = vpack.c.b16 %v469, %v465
        %v578 = vpack.c.b16 %v470, %v466
        %v579 = vpack.c.b16 %v471, %v467
        %v580 = vpack.c.b16 %v472, %v468
        %v581 = vpack.c.b16 %v477, %v473
        %v582 = vpack.c.b16 %v478, %v474
        %v583 = vpack.c.b16 %v479, %v475
        %v584 = vpack.c.b16 %v480, %v476
        %v585 = vpack.c.b16 %v485, %v481
        %v586 = vpack.c.b16 %v486, %v482
        %v587 = vpack.c.b16 %v487, %v483
        %v588 = vpack.c.b16 %v488, %v484
        %v589 = vpack.c.b16 %v493, %v489
        %v590 = vpack.c.b16 %v494, %v490
        %v591 = vpack.c.b16 %v495, %v491
        %v592 = vpack.c.b16 %v496, %v492
        %v593 = vpack.c.b16 %v501, %v497
        %v594 = vpack.c.b16 %v502, %v498
        %v595 = vpack.c.b16 %v503, %v499
        %v596 = vpack.c.b16 %v504, %v500
        %v597 = vpack.c.b16 %v509, %v505
        %v598 = vpack.c.b16 %v510, %v506
        %v599 = vpack.c.b16 %v511, %v507
        %v600 = vpack.c.b16 %v512, %v508
        %v601 = vpack.c.b16 %v517, %v513
        %v602 = vpack.c.b16 %v518, %v514
        %v603 = vpack.c.b16 %v519, %v515
        %v604 = vpack.c.b16 %v520, %v516
        %v605 = vpack.c.b16 %v525, %v521
        %v606 = vpack.c.b16 %v526, %v522
        %v607 = vpack.c.b16 %v527, %v523
        %v608 = vpack.c.b16 %v528, %v524
        %v609 = vpack.c.b16 %v533, %v529
        %v610 = vpack.c.b16 %v534, %v530
        %v611 = vpack.c.b16 %v535, %v531
        %v612 = vpack.c.b16 %v536, %v532
        %v613 = vpack.c.b16 %v541, %v537
        %v614 = vpack.c.b16 %v542, %v538
        %v615 = vpack.c.b16 %v543, %v539
        %v616 = vpack.c.b16 %v544, %v540
        %v617 = vpack.c.b16 %v549, %v545
        %v618 = vpack.c.b16 %v550, %v546
        %v619 = vpack.c.b16 %v551, %v547
        %v620 = vpack.c.b16 %v552, %v548
        %v621 = vpack.c.b16 %v557, %v553
        %v622 = vpack.c.b16 %v558, %v554
        %v623 = vpack.c.b16 %v559, %v555
        %v624 = vpack.c.b16 %v560, %v556
        %689 = vmatprep.subr.bf16.mxu0 %v562
        %690 = vmatpush1.bf16.msra.mxu0 %v561
        %691 = vmatprep.subr.bf16.mxu0 %v566
        %692 = vmatpush1.bf16.msra.mxu0 %v565
        %693 = vmatprep.subr.bf16.mxu0 %v570
        %694 = vmatpush1.bf16.msra.mxu0 %v569
        %695 = vmatprep.subr.bf16.mxu0 %v574
        %696 = vmatpush1.bf16.msra.mxu0 %v573
        %697 = vmatprep.subr.bf16.mxu0 %v578
        %698 = vmatpush1.bf16.msra.mxu0 %v577
        %699 = vmatprep.subr.bf16.mxu0 %v582
        %700 = vmatpush1.bf16.msra.mxu0 %v581
        %701 = vmatprep.subr.bf16.mxu0 %v586
        %702 = vmatpush1.bf16.msra.mxu0 %v585
        %703 = vmatprep.subr.bf16.mxu0 %v590
        %704 = vmatpush1.bf16.msra.mxu0 %v589
        %705 = vmatprep.subr.bf16.mxu0 %v594
        %706 = vmatpush1.bf16.msra.mxu0 %v593
        %707 = vmatprep.subr.bf16.mxu0 %v598
        %708 = vmatpush1.bf16.msra.mxu0 %v597
        %709 = vmatprep.subr.bf16.mxu0 %v602
        %710 = vmatpush1.bf16.msra.mxu0 %v601
        %711 = vmatprep.subr.bf16.mxu0 %v606
        %712 = vmatpush1.bf16.msra.mxu0 %v605
        %713 = vmatprep.subr.bf16.mxu0 %v610
        %714 = vmatpush1.bf16.msra.mxu0 %v609
        %715 = vmatprep.subr.bf16.mxu0 %v614
        %716 = vmatpush1.bf16.msra.mxu0 %v613
        %717 = vmatprep.subr.bf16.mxu0 %v618
        %718 = vmatpush1.bf16.msra.mxu0 %v617
        %719 = vmatprep.subr.bf16.mxu0 %v622
        %720 = vmatpush1.bf16.msra.mxu0 %v621
        %721 = vmatprep.mubr.bf16.mxu0 %v366
        %722 = vmatmul.mubr.bf16.gmra.mrb[0].mxu0 %v365
        %v723 = vpop.f32.mrb[0].mxu0
        %v724 = vadd.f32 0.0, %v723
        %v725 = vpop.f32.mrb[0].mxu0
        %v726 = vadd.f32 0.0, %v725
        %v727 = vpop.f32.mrb[0].mxu0
        %v728 = vadd.f32 0.0, %v727
        %v729 = vpop.f32.mrb[0].mxu0
        %v730 = vadd.f32 0.0, %v729
        %731 = vdwg.mxu0
        %732 = vmatprep.subr.bf16.mxu0 %v564
        %733 = vmatpush1.bf16.msra.mxu0 %v563
        %734 = vmatprep.subr.bf16.mxu0 %v568
        %735 = vmatpush1.bf16.msra.mxu0 %v567
        %736 = vmatprep.subr.bf16.mxu0 %v572
        %737 = vmatpush1.bf16.msra.mxu0 %v571
        %738 = vmatprep.subr.bf16.mxu0 %v576
        %739 = vmatpush1.bf16.msra.mxu0 %v575
        %740 = vmatprep.subr.bf16.mxu0 %v580
        %741 = vmatpush1.bf16.msra.mxu0 %v579
        %742 = vmatprep.subr.bf16.mxu0 %v584
        %743 = vmatpush1.bf16.msra.mxu0 %v583
        %744 = vmatprep.subr.bf16.mxu0 %v588
        %745 = vmatpush1.bf16.msra.mxu0 %v587
        %746 = vmatprep.subr.bf16.mxu0 %v592
        %747 = vmatpush1.bf16.msra.mxu0 %v591
        %748 = vmatprep.subr.bf16.mxu0 %v596
        %749 = vmatpush1.bf16.msra.mxu0 %v595
        %750 = vmatprep.subr.bf16.mxu0 %v600
        %751 = vmatpush1.bf16.msra.mxu0 %v599
        %752 = vmatprep.subr.bf16.mxu0 %v604
        %753 = vmatpush1.bf16.msra.mxu0 %v603
        %754 = vmatprep.subr.bf16.mxu0 %v608
        %755 = vmatpush1.bf16.msra.mxu0 %v607
        %756 = vmatprep.subr.bf16.mxu0 %v612
        %757 = vmatpush1.bf16.msra.mxu0 %v611
        %758 = vmatprep.subr.bf16.mxu0 %v616
        %759 = vmatpush1.bf16.msra.mxu0 %v615
        %760 = vmatprep.subr.bf16.mxu0 %v620
        %761 = vmatpush1.bf16.msra.mxu0 %v619
        %762 = vmatprep.subr.bf16.mxu0 %v624
        %763 = vmatpush1.bf16.msra.mxu0 %v623
        %764 = vmatprep.mubr.bf16.mxu0 %v366
        %765 = vmatmul.mubr.bf16.gmra.mrb[0].mxu0 %v365
        %v766 = vpop.f32.mrb[0].mxu0
        %v767 = vadd.f32 0.0, %v766
        %v768 = vpop.f32.mrb[0].mxu0
        %v769 = vadd.f32 0.0, %v768
        %v770 = vpop.f32.mrb[0].mxu0
        %v771 = vadd.f32 0.0, %v770
        %v772 = vpop.f32.mrb[0].mxu0
        %v773 = vadd.f32 0.0, %v772
        %774 = vdwg.mxu0
        %v775 = vadd.f32 %v285, %v724
        %v776 = vadd.f32 %v286, %v726
        %v777 = vadd.f32 %v287, %v767
        %v778 = vadd.f32 %v288, %v769
        %v779 = vadd.f32 %v289, %v728
        %v780 = vadd.f32 %v290, %v730
        %v781 = vadd.f32 %v291, %v771
        %v782 = vadd.f32 %v292, %v773
        %783 = vst [vmem:[#allocation2] sm:$0xff] %v775
        %784 = vst [vmem:[#allocation2 + $0x8] sm:$0xff] %v776
        %785 = vst [vmem:[#allocation2 + $0x10] sm:$0xff] %v777
        %786 = vst [vmem:[#allocation2 + $0x18] sm:$0xff] %v778
        %787 = vst [vmem:[#allocation2 + $0x20] sm:$0xff] %v779
        %788 = vst [vmem:[#allocation2 + $0x28] sm:$0xff] %v780
        %789 = vst [vmem:[#allocation2 + $0x30] sm:$0xff] %v781
        %790 = vst [vmem:[#allocation2 + $0x38] sm:$0xff] %v782
        // Predicated region
        $region37: #{forward.37} parent=31 // pred_check
          %p791 = pneg %p273
        $region38: #{forward.37} parent=31 // pred_check_branch
          %793 = sbr.rel (%p791) target = $region40
        $region39: #{forward.37} parent=31 // pred_region
          %v794 = vld [vmem:[#allocation2] sm:$0xff]
          %v795 = vld [vmem:[#allocation2 + $0x8] sm:$0xff]
          %v796 = vld [vmem:[#allocation2 + $0x10] sm:$0xff]
          %v797 = vld [vmem:[#allocation2 + $0x18] sm:$0xff]
          %v798 = vld [vmem:[#allocation2 + $0x20] sm:$0xff]
          %v799 = vld [vmem:[#allocation2 + $0x28] sm:$0xff]
          %v800 = vld [vmem:[#allocation2 + $0x30] sm:$0xff]
          %v801 = vld [vmem:[#allocation2 + $0x38] sm:$0xff]
          %v802 = vld [vmem:[%s269] sm:$0xf]
          %v804 = vlaneseq
          %v805 = vshrl.u32 %v804, 7
          %v806 = vsub.s32 0, %v805
          %v807 = vrot.slane %v802, %v806
          %v808 = vlaneseq
          %v809 = vshrl.u32 %v808, 7
          %v810 = vsub.s32 1, %v809
          %v811 = vrot.slane %v802, %v810
          %v812 = vlaneseq
          %v813 = vshrl.u32 %v812, 7
          %v814 = vsub.s32 2, %v813
          %v815 = vrot.slane %v802, %v814
          %v816 = vlaneseq
          %v817 = vshrl.u32 %v816, 7
          %v818 = vsub.s32 3, %v817
          %v819 = vrot.slane %v802, %v818
          %v824 = vadd.f32 %v794, %v807
          %v825 = vadd.f32 %v795, %v811
          %v826 = vadd.f32 %v796, %v815
          %v827 = vadd.f32 %v797, %v819
          %v828 = vadd.f32 %v798, %v807
          %v829 = vadd.f32 %v799, %v811
          %v830 = vadd.f32 %v800, %v815
          %v831 = vadd.f32 %v801, %v819
          %832 = vst [vmem:[%s241] sm:$0xff] %v824
          %833 = vst [vmem:[%s241 + $0x8] sm:$0xff] %v825
          %834 = vst [vmem:[%s241 + $0x10] sm:$0xff] %v826
          %835 = vst [vmem:[%s241 + $0x18] sm:$0xff] %v827
          %836 = vst [vmem:[%s241 + $0x20] sm:$0xff] %v828
          %837 = vst [vmem:[%s241 + $0x28] sm:$0xff] %v829
          %838 = vst [vmem:[%s241 + $0x30] sm:$0xff] %v830
          %839 = vst [vmem:[%s241 + $0x38] sm:$0xff] %v831
        $region40: #{forward.37} parent=31 // pred_fallthru
          _
        %s840 = sand.u32 %s128, 1
        %s841 = scalar_lea.sflag [#allocation4], %s840
        %s842 = sand.u32 %s128, 1
        %s843 = smul.addr %s842, 64
        %s844 = scalar_lea.vmem [#allocation3], %s843
        // Predicated region
        $region41: #{forward.37} parent=31 // pred_check
          %p845 = pneg %p138
        $region42: #{forward.37} parent=31 // pred_check_branch
          %847 = sbr.rel (%p845) target = $region44
        $region43: #{forward.37} parent=31 // pred_region
          %s848 = smul.u32 2, %s22
          %s849 = smul.u32 4, %s23
          %s851 = ssub.s32 1024, 1024
          %852 = vsyncadd %s841, %s851
          %s853 = smul.addr %s848, 4
          %s854 = sadd.s32 %s849, %s853
          %s855 = smul.addr %s854, 128
          %s856 = scalar_lea.hbm %s3, %s855
          %s857 = sshll.u32 %s844, 4
          %s858 = int_to_ptr.vmem [resolvable:$true] %s857
          %863 = dma.vmem_to_hbm [thread:$0]  %s858, 1024, %s856, %s841, 512, 512, 32
        $region44: #{forward.37} parent=31 // pred_fallthru
          _
      $region32: #{forward.37} parent=5 // pred_fallthru
        _
      %p864 = scmp.le.s32.totalorder 2, %s12
      // Predicated region
      $region45: #{forward.37} parent=5 // pred_check
        %p865 = pneg %p864
      $region46: #{forward.37} parent=5 // pred_check_branch
        %867 = sbr.rel (%p865) target = $region48
      $region47: #{forward.37} parent=5 // pred_region
        %s868 = ssub.s32 %s12, 2
        // Predicated region
        $region49: #{forward.37} parent=47 // pred_check
          %p869 = pneg %p144
        $region50: #{forward.37} parent=47 // pred_check_branch
          %871 = sbr.rel (%p869) target = $region52
        $region51: #{forward.37} parent=47 // pred_region
          %s872 = sand.u32 %s129, 1
          %s873 = scalar_lea.sflag [#allocation4], %s872
          %s874 = sand.u32 %s129, 1
          %s875 = smul.addr %s874, 64
          %s876 = scalar_lea.vmem [#allocation3], %s875
          %877 = dma.done %s873, 1024
        $region52: #{forward.37} parent=47 // pred_fallthru
          _
      $region48: #{forward.37} parent=5 // pred_fallthru
        _
    $region6: #{forward.37} parent=1 // loop_footer
      %s16 = sadd.s32 1, %s12
    $region7: #{forward.37} parent=1 // loop_footer_branch
      %11 = sbr.rel target = $region3
    $region8: #{forward.37} parent=1 // loop_exit
      _
    %878 = vsyncpa [#allocation4], 1
    %s879 = scalar_lea.sflag [#allocation4], 1
    %880 = vsyncpa %s879, 1

</llo_original>
